<compile_context>
chip_gen: v7x
topology: tpu7x:2x2x1
jax: 0.10.0
libtpu: 0.0.40
codegen_flags: <defaults>
</compile_context>

<pallas_src>
import jax
import jax.numpy as jnp
from jax.experimental import pallas as pl
from jax.experimental.pallas import tpu as pltpu


# --------------------------------- utilities -------------------------------- #

def _round_up(n, m):
    return ((n + m - 1) // m) * m


def _vmem_capacity_bytes():
    try:
        return int(pltpu.get_tpu_info().vmem_capacity_bytes)
    except Exception:
        return 64 * 1024 * 1024   # conservative default (v7x physical VMEM)


# (tm, tk) candidates, largest first.  tm = adjacency/output row tile,
# tk = adjacency-column / activation-row tile.  All are power-of-two multiples
# of 128, so lcm(tm, tk) == max(tm, tk) and one N padding serves both.
_TILE_CANDIDATES = ((1024, 1024), (512, 1024), (512, 512), (256, 512),
                    (256, 256), (128, 256), (128, 128))


def _choose_tiles(fmax, budget_bytes, itemsize=2):
    """Largest (tm, tk) whose double-buffered working set fits the VMEM budget."""
    for tm, tk in _TILE_CANDIDATES:
        need = (2 * tm * tk * itemsize          # adjacency tile (double-buffered)
                + 2 * tk * fmax * itemsize      # activation stripe (double-buffered)
                + tm * fmax * 4                 # f32 accumulator
                + 2 * fmax * fmax * itemsize    # weight (double-buffered, worst case)
                + 2 * tm * fmax * 4             # output tile (f32 worst case)
                + 2 * fmax * 4)                 # bias/shift row
        if need <= budget_bytes:
            return tm, tk
    return 128, 128


def _block_nonzero_map(adj_pad, tm, tk):
    """Per (row-tile, col-tile) nonzero bitmap + column-block remap table.

    remap[i, k] = nearest nonzero column block (last one <= k, else first one
    >= k, else 0).  Empty blocks are re-pointed at an already-resident / soon
    needed block so the pipeline elides their DMA; the bitmap gates the MXU work.
    """
    n_i = adj_pad.shape[0] // tm
    n_k = adj_pad.shape[1] // tk
    blk = jnp.abs(adj_pad).reshape(n_i, tm, n_k, tk).max(axis=(1, 3))
    nz = blk > 0
    ar = jnp.arange(n_k, dtype=jnp.int32)[None, :]
    fwd = jax.lax.cummax(jnp.where(nz, ar, jnp.int32(-1)), axis=1)
    bwd = jax.lax.cummin(jnp.where(nz, ar, jnp.int32(n_k)), axis=1, reverse=True)
    remap = jnp.where(fwd >= 0, fwd, jnp.where(bwd < n_k, bwd, 0)).astype(jnp.int32)
    return nz.astype(jnp.int32).reshape(-1), remap.reshape(-1)


# -------------------------------- Pallas kernels ----------------------------- #

def _make_gcn_kernel(*, apply_relu, with_weight, n_k):
    """Fused GCN layer kernel.

    with_weight:  out_tile = act( (adj_row_stripe @ x) @ W + c )
    otherwise:    out_tile = act(  adj_row_stripe @ xw      + c )  (W pre-applied)

    Grid = (row tiles, adjacency-column tiles); acc_ref is a VMEM f32 accumulator.
    """
    def kernel(nz_ref, rm_ref, adj_ref, x_ref, *rest):
        del rm_ref                      # consumed only by the index_maps
        if with_weight:
            w_ref, c_ref, o_ref, acc_ref = rest
        else:
            c_ref, o_ref, acc_ref = rest
        i = pl.program_id(0)
        k = pl.program_id(1)

        @pl.when(k == 0)
        def _():
            acc_ref[...] = jnp.zeros_like(acc_ref)

        # Skip empty adjacency blocks (graph block-sparsity + N padding).  The
        # index_map already re-pointed empty blocks at a resident block, so the
        # DMA is elided too; only the ~0.35us grid-step overhead remains.
        @pl.when(nz_ref[i * n_k + k] != 0)
        def _():
            acc_ref[...] += jnp.dot(adj_ref[...], x_ref[...],
                                    preferred_element_type=jnp.float32)

        @pl.when(k == pl.num_programs(1) - 1)
        def _():
            if with_weight:
                y = jnp.dot(acc_ref[...].astype(w_ref.dtype), w_ref[...],
                            preferred_element_type=jnp.float32) + c_ref[...]
            else:
                y = acc_ref[...] + c_ref[...]
            if apply_relu:
                y = jnp.maximum(y, 0.0)
            o_ref[...] = y.astype(o_ref.dtype)

    return kernel


def gcn_aggregate_layer(adj_pad, x_pad, w, c, nzmap, remap, *, tm, tk,
                        apply_relu, out_dtype, vmem_limit):
    """One GCN layer as a single pallas_call (w=None -> aggregation-only)."""
    n_pad = adj_pad.shape[0]
    fin = x_pad.shape[1]
    with_weight = w is not None
    fout = w.shape[1] if with_weight else fin
    n_i, n_k = n_pad // tm, n_pad // tk

    adj_map = lambda i, k, nz, rm: (i, rm[i * n_k + k])
    x_map = lambda i, k, nz, rm: (rm[i * n_k + k], 0)
    const_map = lambda i, k, nz, rm: (0, 0)
    out_map = lambda i, k, nz, rm: (i, 0)

    in_specs = [pl.BlockSpec((tm, tk), adj_map),       # adjacency tile
                pl.BlockSpec((tk, fin), x_map)]        # activation rows for this block
    operands = [nzmap, remap, adj_pad, x_pad]
    if with_weight:
        in_specs.append(pl.BlockSpec((fin, fout), const_map))   # folded weight
        operands.append(w)
    in_specs.append(pl.BlockSpec((1, fout), const_map))         # folded bias/shift
    operands.append(c)

    acc_width = fin if with_weight else fout
    kernel = _make_gcn_kernel(apply_relu=apply_relu, with_weight=with_weight,
                              n_k=n_k)
    return pl.pallas_call(
        kernel,
        out_shape=jax.ShapeDtypeStruct((n_pad, fout), out_dtype),
        grid_spec=pltpu.PrefetchScalarGridSpec(
            num_scalar_prefetch=2,
            grid=(n_i, n_k),
            in_specs=in_specs,
            out_specs=pl.BlockSpec((tm, fout), out_map),
            scratch_shapes=[pltpu.VMEM((tm, acc_width), jnp.float32)]),
        compiler_params=pltpu.CompilerParams(
            dimension_semantics=("parallel", "arbitrary"),
            vmem_limit_bytes=vmem_limit),
    )(*operands)


def _xw_kernel(x_ref, w_ref, o_ref):
    o_ref[...] = jnp.dot(x_ref[...], w_ref[...],
                         preferred_element_type=jnp.float32).astype(o_ref.dtype)


def feature_transform(x_pad, w, *, tm, out_dtype, vmem_limit):
    """Row-tiled x @ W (used to pre-apply W when Fout < Fin; O(N*Fin*Fout))."""
    n_pad, fin = x_pad.shape
    fout = w.shape[1]
    return pl.pallas_call(
        _xw_kernel,
        out_shape=jax.ShapeDtypeStruct((n_pad, fout), out_dtype),
        grid=(n_pad // tm,),
        in_specs=[pl.BlockSpec((tm, fin), lambda i: (i, 0)),
                  pl.BlockSpec((fin, fout), lambda i: (0, 0))],
        out_specs=pl.BlockSpec((tm, fout), lambda i: (i, 0)),
        compiler_params=pltpu.CompilerParams(
            dimension_semantics=("parallel",),
            vmem_limit_bytes=vmem_limit),
    )(x_pad, w)


# ---------------------------------- LAGCN model ------------------------------ #

class LAGCNPallas:
    """Deterministically-initialized LAGCN; forward in eval mode via Pallas."""

    def __init__(self, concat, in_channels, hidden_channels, out_channels,
                 num_layers, dropout, key):
        self.concat = concat
        self.in_channels = in_channels
        self.hidden_channels = hidden_channels
        self.out_channels = out_channels
        self.num_layers = num_layers
        self.dropout = dropout  # eval mode -> identity
        self.bn_eps = 1e-5

        def glorot(k, fin, fout):
            lim = (6.0 / (fin + fout)) ** 0.5
            return jax.random.uniform(k, (fin, fout), jnp.float32, -lim, lim)

        n_mid = num_layers - 2
        keys = jax.random.split(key, 6 * concat + 6 * max(n_mid, 0) + 2)
        ki = iter(keys)

        def bn_params(k1, k2, k3, k4, c):
            gamma = jax.random.uniform(k1, (c,), jnp.float32, 0.5, 1.5)
            beta = 0.1 * jax.random.normal(k2, (c,), jnp.float32)
            mean = 0.1 * jax.random.normal(k3, (c,), jnp.float32)
            var = jax.random.uniform(k4, (c,), jnp.float32, 0.5, 1.5)
            return gamma, beta, mean, var

        # raw parameters (mirroring the PyTorch module, BN eval with running stats)
        self.init_w, self.init_b, self.init_bn = [], [], []
        for _ in range(concat):
            self.init_w.append(glorot(next(ki), in_channels, hidden_channels))
            self.init_b.append(
                0.01 * jax.random.normal(next(ki), (hidden_channels,), jnp.float32))
            self.init_bn.append(bn_params(next(ki), next(ki), next(ki), next(ki),
                                          hidden_channels))

        ch = concat * hidden_channels
        self.mid_w, self.mid_b, self.mid_bn = [], [], []
        for _ in range(n_mid):
            self.mid_w.append(glorot(next(ki), ch, ch))
            self.mid_b.append(0.01 * jax.random.normal(next(ki), (ch,), jnp.float32))
            self.mid_bn.append(bn_params(next(ki), next(ki), next(ki), next(ki), ch))

        self.last_w = glorot(next(ki), ch, out_channels)
        self.last_b = 0.01 * jax.random.normal(next(ki), (out_channels,), jnp.float32)

    # ---- BN folding ---------------------------------------------------------- #
    def _bn_affine(self, bn):
        gamma, beta, mean, var = bn
        scale = gamma / jnp.sqrt(var + self.bn_eps)
        shift = beta - mean * scale
        return scale, shift

    def folded_layers(self, compute_dtype):
        """[(W_folded_padded, c (1,Fout) f32, apply_relu, apply_w_first), ...].

        Feature dims zero-padded to multiples of 128; the `concat` initial convs
        fused into one block-diagonal layer.  apply_w_first is set whenever
        Fout_pad < Fin_pad (review item: pre-apply W for the classifier layer).
        """
        concat = self.concat
        cin, hid = self.in_channels, self.hidden_channels
        ch = concat * hid
        fin0_p = _round_up(concat * cin, 128)
        ch_p = _round_up(ch, 128)
        out_p = _round_up(self.out_channels, 128)

        layers = []

        # fused initial layer: block-diagonal folded weights over the concat views
        w0 = jnp.zeros((fin0_p, ch_p), jnp.float32)
        c0 = jnp.zeros((ch_p,), jnp.float32)
        for v in range(concat):
            scale, shift = self._bn_affine(self.init_bn[v])
            w0 = w0.at[v * cin:(v + 1) * cin, v * hid:(v + 1) * hid].set(
                self.init_w[v] * scale[None, :])
            c0 = c0.at[v * hid:(v + 1) * hid].set(self.init_b[v] * scale + shift)
        layers.append((w0.astype(compute_dtype), c0.reshape(1, -1), True,
                       ch_p < fin0_p))

        # middle layers
        for j in range(len(self.mid_w)):
            scale, shift = self._bn_affine(self.mid_bn[j])
            w = jnp.zeros((ch_p, ch_p), jnp.float32).at[:ch, :ch].set(
                self.mid_w[j] * scale[None, :])
            c = jnp.zeros((ch_p,), jnp.float32).at[:ch].set(
                self.mid_b[j] * scale + shift)
            layers.append((w.astype(compute_dtype), c.reshape(1, -1), True, False))

        # final layer (no BN / ReLU); typically Fout_pad < Fin_pad -> W applied first
        wl = jnp.zeros((ch_p, out_p), jnp.float32).at[:ch, :self.out_channels].set(
            self.last_w)
        cl = jnp.zeros((out_p,), jnp.float32).at[:self.out_channels].set(self.last_b)
        layers.append((wl.astype(compute_dtype), cl.reshape(1, -1), False,
                       out_p < ch_p))
        return layers

    # ---- forward -------------------------------------------------------------- #
    def forward(self, x_list, adj_t, compute_dtype=jnp.bfloat16):
        # TODO(synk): training-mode dropout / batch-statistics BN not implemented
        # (forward reproduced in eval mode: dropout = identity, BN uses running stats).
        N = adj_t.shape[0]
        fin0 = self.concat * self.in_channels
        fin0_p = _round_up(fin0, 128)
        ch_p = _round_up(self.concat * self.hidden_channels, 128)
        out_p = _round_up(self.out_channels, 128)

        # Tile selection from an explicit per-chip VMEM budget; raise the scoped
        # VMEM limit so the chosen tiles compile on v5e (16 MiB default scope)
        # and stay within v7x's 64 MiB physical VMEM.
        cap = _vmem_capacity_bytes()
        budget = min(int(cap * 0.45), 56 * 1024 * 1024)
        vmem_limit = min(int(cap * 0.85), 100 * 1024 * 1024)
        fmax = max(fin0_p, ch_p, out_p)
        tm, tk = _choose_tiles(fmax, budget)

        # pad node count so every tile is full (no tm=N / tk=N VMEM cliff)
        n_pad = _round_up(N, max(tm, tk))
        adj32 = jnp.zeros((n_pad, n_pad), jnp.float32).at[:N, :N].set(
            adj_t.astype(jnp.float32))
        nzmap, remap = _block_nonzero_map(adj32, tm, tk)
        adj = adj32.astype(compute_dtype)

        xcat = jnp.concatenate(x_list, axis=-1)
        x = jnp.zeros((n_pad, fin0_p), compute_dtype).at[:N, :fin0].set(
            xcat.astype(compute_dtype))

        for (w, c, relu, w_first) in self.folded_layers(compute_dtype):
            out_dtype = compute_dtype if relu else jnp.float32
            if w_first:
                # Fout < Fin: transform once (O(N*Fin*Fout)), aggregate at width Fout.
                xw = feature_transform(x, w, tm=tm, out_dtype=compute_dtype,
                                       vmem_limit=vmem_limit)
                x = gcn_aggregate_layer(adj, xw, None, c, nzmap, remap,
                                        tm=tm, tk=tk, apply_relu=relu,
                                        out_dtype=out_dtype, vmem_limit=vmem_limit)
            else:
                x = gcn_aggregate_layer(adj, x, w, c, nzmap, remap,
                                        tm=tm, tk=tk, apply_relu=relu,
                                        out_dtype=out_dtype, vmem_limit=vmem_limit)
        return x[:N, :self.out_channels]

    def __call__(self, x_list, adj_t):
        return self.forward(x_list, adj_t, jnp.bfloat16)


# ------------------------------ pure-JAX references -------------------------- #

def _dot_hi(a, b):
    return jnp.dot(a, b, precision=jax.lax.Precision.HIGHEST,
                   preferred_element_type=jnp.float32)


def lagcn_reference_unfolded_f32(model, x_list, adj_t):
    """Eval-mode LAGCN forward straight from the raw parameters (f32, unfolded)."""
    hs = []
    for v in range(model.concat):
        h = _dot_hi(adj_t, _dot_hi(x_list[v], model.init_w[v])) + model.init_b[v][None, :]
        scale, shift = model._bn_affine(model.init_bn[v])
        hs.append(jnp.maximum(h * scale[None, :] + shift[None, :], 0.0))
    x = jnp.concatenate(hs, axis=-1)
    for j in range(len(model.mid_w)):
        h = _dot_hi(adj_t, _dot_hi(x, model.mid_w[j])) + model.mid_b[j][None, :]
        scale, shift = model._bn_affine(model.mid_bn[j])
        x = jnp.maximum(h * scale[None, :] + shift[None, :], 0.0)
    return _dot_hi(adj_t, _dot_hi(x, model.last_w)) + model.last_b[None, :]


def lagcn_reference_folded(model, x_list, adj_t, compute_dtype):
    """Mirror of the kernel math (folding, padding, W-first reassociation, casts)."""
    N = adj_t.shape[0]
    fin0 = model.concat * model.in_channels
    x = jnp.zeros((N, _round_up(fin0, 128)), compute_dtype)
    x = x.at[:, :fin0].set(jnp.concatenate(x_list, axis=-1).astype(compute_dtype))
    adj = adj_t.astype(compute_dtype)
    for (w, c, relu, w_first) in model.folded_layers(compute_dtype):
        if w_first:
            xw = _dot_hi(x, w).astype(compute_dtype)
            y = _dot_hi(adj, xw) + c
        else:
            agg = _dot_hi(adj, x)
            y = _dot_hi(agg.astype(compute_dtype), w) + c
        x = jnp.maximum(y, 0.0).astype(compute_dtype) if relu else y
    return x[:, :model.out_channels]


# ------------------------------------ main ----------------------------------- #

if __name__ == "__main__":
    key = jax.random.PRNGKey(0)
    k_a1, k_a2, k_feat, k_params = jax.random.split(key, 4)

    # Small demo graph: two disconnected communities whose boundary aligns with
    # the 1024-wide adjacency tiles, so the block-sparse skip path (empty
    # off-diagonal blocks + fully-padded row tiles) is exercised, and N is NOT
    # a multiple of the tile size so the N-padding path is exercised too.
    N = 1500
    split = 1024
    concat = 2
    in_channels = 32
    hidden_channels = 128   # concat*hidden (256) > padded out (128) -> W-first path used
    out_channels = 8
    num_layers = 3
    dropout = 0.5

    def rand_block(k, n):
        a = (jax.random.uniform(k, (n, n)) < 0.05).astype(jnp.float32)
        return jnp.maximum(a, a.T)

    a = jnp.zeros((N, N), jnp.float32)
    a = a.at[:split, :split].set(rand_block(k_a1, split))
    a = a.at[split:, split:].set(rand_block(k_a2, N - split))
    a = a + jnp.eye(N, dtype=jnp.float32)
    deg = jnp.sum(a, axis=1)
    dinv = 1.0 / jnp.sqrt(deg)
    adj_t = (a * dinv[:, None]) * dinv[None, :]   # D^-1/2 (A+I) D^-1/2, cached style

    fkeys = jax.random.split(k_feat, concat)
    x_list = [jax.random.normal(fkeys[i], (N, in_channels), jnp.float32)
              for i in range(concat)]

    model = LAGCNPallas(concat, in_channels, hidden_channels, out_channels,
                        num_layers, dropout, k_params)

    # (1) pure-JAX check: folded / padded / block-diagonal / reassociated math
    #     matches the original eval-mode semantics (both f32, highest precision).
    ref_unfolded = lagcn_reference_unfolded_f32(model, x_list, adj_t)
    ref_folded32 = lagcn_reference_folded(model, x_list, adj_t, jnp.float32)
    assert jnp.allclose(ref_folded32, ref_unfolded, atol=2e-3, rtol=2e-3), \
        float(jnp.max(jnp.abs(ref_folded32 - ref_unfolded)))

    # (2) Pallas bf16 fast path vs the mirrored bf16 reference.
    out = model(x_list, adj_t)
    out = jax.block_until_ready(out)
    ref_bf16 = lagcn_reference_folded(model, x_list, adj_t, jnp.bfloat16)
    assert out.shape == (N, out_channels), out.shape
    assert jnp.allclose(out, ref_bf16, atol=2e-2, rtol=2e-2), \
        float(jnp.max(jnp.abs(out - ref_bf16)))

    print("KERNEL_OK")
</pallas_src>

<mosaic_0001>
module attributes {stable_mosaic.version = 11 : i64} {
  func.func @kernel(%arg0: i32, %arg1: i32, %arg2: memref<4xi32, #tpu.memory_space<smem>>, %arg3: memref<4xi32, #tpu.memory_space<smem>>, %arg4: memref<1024x1024xbf16, #tpu.memory_space<vmem>>, %arg5: memref<1024x128xbf16, #tpu.memory_space<vmem>>, %arg6: memref<128x256xbf16, #tpu.memory_space<vmem>>, %arg7: memref<1x256xf32, #tpu.memory_space<vmem>>, %arg8: memref<1024x256xbf16, #tpu.memory_space<vmem>>, %arg9: memref<1024x128xf32, #tpu.memory_space<vmem>>) attributes {dimension_semantics = [#tpu.dimension_semantics<parallel>, #tpu.dimension_semantics<arbitrary>], iteration_bounds = array<i64: 2, 2>, scalar_prefetch = 2 : i64, scratch_operands = 1 : i64, tpu.core_type = #tpu.core_type<tc>, window_params = [{transform_indices = @transform_0, window_bounds = array<i64: 1024, 1024>}, {transform_indices = @transform_1, window_bounds = array<i64: 1024, 128>}, {pipeline_mode = #tpu.pipeline_mode<synchronous>, transform_indices = @transform_2, window_bounds = array<i64: 128, 256>}, {pipeline_mode = #tpu.pipeline_mode<synchronous>, transform_indices = @transform_3, window_bounds = array<i64: 1, 256>}, {transform_indices = @transform_4, window_bounds = array<i64: 1024, 256>}]} {
    %c0_i32 = arith.constant 0 : i32
    %0 = arith.cmpi eq, %arg1, %c0_i32 : i32
    %1 = arith.extui %0 : i1 to i32
    %c0_i32_0 = arith.constant 0 : i32
    %2 = arith.cmpi ne, %1, %c0_i32_0 : i32
    scf.if %2 {
      %cst = arith.constant 0.000000e+00 : f32
      %13 = vector.broadcast %cst : f32 to vector<1024x128xf32>
      %c0 = arith.constant 0 : index
      %c0_4 = arith.constant 0 : index
      %14 = vector.load %arg9[%c0, %c0_4] : memref<1024x128xf32, #tpu.memory_space<vmem>>, vector<1024x128xf32>
      tpu.vector_store %arg9[%c0, %c0_4], %13 {strides = array<i32>} : memref<1024x128xf32, #tpu.memory_space<vmem>>, vector<1024x128xf32>,
    } else {
    }
    %c2_i32 = arith.constant 2 : i32
    %3 = arith.muli %arg0, %c2_i32 : i32
    %4 = arith.addi %3, %arg1 : i32
    %5 = arith.index_cast %4 : i32 to index
    %6 = memref.load %arg2[%5] : memref<4xi32, #tpu.memory_space<smem>>
    %c0_i32_1 = arith.constant 0 : i32
    %7 = arith.cmpi ne, %6, %c0_i32_1 : i32
    %8 = arith.extui %7 : i1 to i32
    %c0_i32_2 = arith.constant 0 : i32
    %9 = arith.cmpi ne, %8, %c0_i32_2 : i32
    scf.if %9 {
      %c0 = arith.constant 0 : index
      %c0_4 = arith.constant 0 : index
      %13 = vector.load %arg9[%c0, %c0_4] : memref<1024x128xf32, #tpu.memory_space<vmem>>, vector<1024x128xf32>
      %c0_5 = arith.constant 0 : index
      %c0_6 = arith.constant 0 : index
      %14 = vector.load %arg4[%c0_5, %c0_6] : memref<1024x1024xbf16, #tpu.memory_space<vmem>>, vector<1024x1024xbf16>
      %c0_7 = arith.constant 0 : index
      %c0_8 = arith.constant 0 : index
      %15 = vector.load %arg5[%c0_7, %c0_8] : memref<1024x128xbf16, #tpu.memory_space<vmem>>, vector<1024x128xbf16>
      %cst = arith.constant dense<0.000000e+00> : vector<1024x128xf32>
      %16 = tpu.matmul %14, %15, %cst {dimension_numbers = #tpu.dot_dimension_numbers<[1], [0], [0], [1], [0, 0, 1, 1], [], []>} : vector<1024x1024xbf16>, vector<1024x128xbf16>, vector<1024x128xf32> -> vector<1024x128xf32>
      %17 = arith.addf %13, %16 : vector<1024x128xf32>
      %c0_9 = arith.constant 0 : index
      %c0_10 = arith.constant 0 : index
      %18 = vector.load %arg9[%c0_9, %c0_10] : memref<1024x128xf32, #tpu.memory_space<vmem>>, vector<1024x128xf32>
      tpu.vector_store %arg9[%c0_9, %c0_10], %17 {strides = array<i32>} : memref<1024x128xf32, #tpu.memory_space<vmem>>, vector<1024x128xf32>,
    } else {
    }
    %c1_i32 = arith.constant 1 : i32
    %10 = arith.cmpi eq, %arg1, %c1_i32 : i32
    %11 = arith.extui %10 : i1 to i32
    %c0_i32_3 = arith.constant 0 : i32
    %12 = arith.cmpi ne, %11, %c0_i32_3 : i32
    scf.if %12 {
      %c0 = arith.constant 0 : index
      %c0_4 = arith.constant 0 : index
      %13 = vector.load %arg9[%c0, %c0_4] : memref<1024x128xf32, #tpu.memory_space<vmem>>, vector<1024x128xf32>
      %14 = arith.truncf %13 : vector<1024x128xf32> to vector<1024x128xbf16>
      %c0_5 = arith.constant 0 : index
      %c0_6 = arith.constant 0 : index
      %15 = vector.load %arg6[%c0_5, %c0_6] : memref<128x256xbf16, #tpu.memory_space<vmem>>, vector<128x256xbf16>
      %cst = arith.constant dense<0.000000e+00> : vector<1024x256xf32>
      %16 = tpu.matmul %14, %15, %cst {dimension_numbers = #tpu.dot_dimension_numbers<[1], [0], [0], [1], [0, 0, 1, 1], [], []>} : vector<1024x128xbf16>, vector<128x256xbf16>, vector<1024x256xf32> -> vector<1024x256xf32>
      %c0_7 = arith.constant 0 : index
      %c0_8 = arith.constant 0 : index
      %17 = vector.load %arg7[%c0_7, %c0_8] : memref<1x256xf32, #tpu.memory_space<vmem>>, vector<1x256xf32>
      %18 = vector.broadcast %17 : vector<1x256xf32> to vector<1024x256xf32>
      %19 = arith.addf %16, %18 : vector<1024x256xf32>
      %cst_9 = arith.constant 0.000000e+00 : f32
      %20 = vector.broadcast %cst_9 : f32 to vector<1024x256xf32>
      %21 = arith.maximumf %19, %20 : vector<1024x256xf32>
      %22 = arith.truncf %21 : vector<1024x256xf32> to vector<1024x256xbf16>
      %c0_10 = arith.constant 0 : index
      %c0_11 = arith.constant 0 : index
      %23 = vector.load %arg8[%c0_10, %c0_11] : memref<1024x256xbf16, #tpu.memory_space<vmem>>, vector<1024x256xbf16>
      tpu.vector_store %arg8[%c0_10, %c0_11], %22 {strides = array<i32>} : memref<1024x256xbf16, #tpu.memory_space<vmem>>, vector<1024x256xbf16>,
    } else {
    }
    return
  }
  func.func @transform_0(%arg0: i32, %arg1: i32, %arg2: memref<4xi32, #tpu.memory_space<smem>>, %arg3: memref<4xi32, #tpu.memory_space<smem>>) -> (i32, i32) {
    %c2_i32 = arith.constant 2 : i32
    %0 = arith.muli %arg0, %c2_i32 : i32
    %1 = arith.addi %0, %arg1 : i32
    %2 = arith.index_cast %1 : i32 to index
    %3 = memref.load %arg3[%2] : memref<4xi32, #tpu.memory_space<smem>>
    %c0_i32 = arith.constant 0 : i32
    return %arg0, %3 : i32, i32
  }
  func.func @transform_1(%arg0: i32, %arg1: i32, %arg2: memref<4xi32, #tpu.memory_space<smem>>, %arg3: memref<4xi32, #tpu.memory_space<smem>>) -> (i32, i32) {
    %c2_i32 = arith.constant 2 : i32
    %0 = arith.muli %arg0, %c2_i32 : i32
    %1 = arith.addi %0, %arg1 : i32
    %2 = arith.index_cast %1 : i32 to index
    %3 = memref.load %arg3[%2] : memref<4xi32, #tpu.memory_space<smem>>
    %c0_i32 = arith.constant 0 : i32
    %c0_i32_0 = arith.constant 0 : i32
    return %3, %c0_i32 : i32, i32
  }
  func.func @transform_2(%arg0: i32, %arg1: i32, %arg2: memref<4xi32, #tpu.memory_space<smem>>, %arg3: memref<4xi32, #tpu.memory_space<smem>>) -> (i32, i32) {
    %c0_i32 = arith.constant 0 : i32
    %c0_i32_0 = arith.constant 0 : i32
    %c0_i32_1 = arith.constant 0 : i32
    return %c0_i32, %c0_i32_0 : i32, i32
  }
  func.func @transform_3(%arg0: i32, %arg1: i32, %arg2: memref<4xi32, #tpu.memory_space<smem>>, %arg3: memref<4xi32, #tpu.memory_space<smem>>) -> (i32, i32) {
    %c0_i32 = arith.constant 0 : i32
    %c0_i32_0 = arith.constant 0 : i32
    %c0_i32_1 = arith.constant 0 : i32
    return %c0_i32, %c0_i32_0 : i32, i32
  }
  func.func @transform_4(%arg0: i32, %arg1: i32, %arg2: memref<4xi32, #tpu.memory_space<smem>>, %arg3: memref<4xi32, #tpu.memory_space<smem>>) -> (i32, i32) {
    %c0_i32 = arith.constant 0 : i32
    %c0_i32_0 = arith.constant 0 : i32
    return %arg0, %c0_i32 : i32, i32
  }
}

</mosaic_0001>

<llo_original>
// kernel: tpu_custom_call.1
$region0: #{tpu_custom_call.1}
  #allocation0 [shape = 'u32[]', space=smem, size = 0x4, offset = 0x4, fixed_abs, tag = 'smem constant byte address 0x4 - core index']
  #allocation1 [shape = 'u32[144,128]{1,0:T(1,128)}', space=vmem, size = 0x12000, scoped, tag = 'internal scratch']
  #allocation2 [shape = 'f32[1024,128]{1,0:T(8,128)}', space=vmem, size = 0x80000, scoped, tag = 'scratch operand']
  #allocation3 [shape = 's32[1]{0}', space=sflag, size = 0x4, scoped, tag = 'scoped memory for tpu_custom_call.1']
  #allocation4 [shape = 'u8[512]{0}', space=smem, size = 0x200, scoped, tag = 'prefetched SMEM operand 0']
  #allocation5 [shape = 'u8[512]{0}', space=smem, size = 0x200, scoped, tag = 'prefetched SMEM operand 1']
  %s0 = inlined_call_operand.hbm [shape: s32[4], index: 0, kind: input, shape index: {}]
  %s1 = inlined_call_operand.hbm [shape: s32[4], index: 1, kind: input, shape index: {}]
  %s2 = inlined_call_operand.hbm [shape: bf16[2048,2048], index: 2, kind: input, shape index: {}]
  %s3 = inlined_call_operand.hbm [shape: bf16[2048,128], index: 3, kind: input, shape index: {}]
  %s4 = inlined_call_operand.hbm [shape: bf16[128,256], index: 4, kind: input, shape index: {}]
  %s5 = inlined_call_operand.hbm [shape: f32[1,256], index: 5, kind: input, shape index: {}]
  %s6 = inlined_call_operand.hbm [shape: bf16[2048,256], index: 6, kind: output, shape index: {}]
  %s7 = sld [smem:[#allocation0]]
  $region77: #{tpu_custom_call.1} parent=0
    _
  %s9 = ssub.s32 1, %s7
  %s10 = scalar_select 0, %s9, %s7
  %12 = dma.hbm_to_smem %s0, 16, [#allocation4], [#allocation3]
  %14 = dma.hbm_to_smem %s1, 16, [#allocation5], [#allocation3]
  %15 = dma.done [#allocation3], 32
  %16 = sfence
  $region1: #{tpu_custom_call.1} parent=0
    #allocation6 [shape = 'u8[4194304]{0}', space=vmem, size = 0x400000, scoped, tag = 'input window, operand 2']
    #allocation7 [shape = 's32[2]{0}', space=sflag, size = 0x8, scoped, tag = 'scoped memory for tpu_custom_call.1']
    #allocation8 [shape = 's32[2]{0}', space=sflag, size = 0x8, scoped, tag = 'scoped memory for tpu_custom_call.1']
    #allocation9 [shape = 'u8[524288]{0}', space=vmem, size = 0x80000, scoped, tag = 'input window, operand 3']
    #allocation10 [shape = 's32[2]{0}', space=sflag, size = 0x8, scoped, tag = 'scoped memory for tpu_custom_call.1']
    #allocation11 [shape = 'u8[65536]{0}', space=vmem, size = 0x10000, scoped, tag = 'input window, operand 4, single buffered']
    #allocation12 [shape = 'u8[1024]{0}', space=vmem, size = 0x400, scoped, tag = 'input window, operand 5, single buffered']
    #allocation13 [shape = 's32[1]{0}', space=sflag, size = 0x4, scoped, tag = 'scoped memory for tpu_custom_call.1']
    #allocation14 [shape = 'u8[1048576]{0}', space=vmem, size = 0x100000, scoped, tag = 'output window, operand 0']
    %17 = vsyncpa [#allocation7], 0
    %s18 = scalar_lea.sflag [#allocation7], 1
    %19 = vsyncpa %s18, 0
    %20 = vsyncpa [#allocation10], 0
    %s21 = scalar_lea.sflag [#allocation10], 1
    %22 = vsyncpa %s21, 0
    %23 = vsyncpa [#allocation13], 0
    %24 = vsyncpa [#allocation8], 0
    %s25 = scalar_lea.sflag [#allocation8], 1
    %26 = vsyncpa %s25, 0
    loop: start=0, step=1, limit=6
    $region2: #{tpu_custom_call.1} parent=1 // loop_pre_header
      _
    $region3: #{tpu_custom_call.1} parent=1 // loop_header
      %s28 = sphi 0, %s32
      %p29 = scmp.ge.s32.totalorder %s28, 6
      %s35 = sphi 0, %s47
      %s36 = sphi 0, %s43
      %s37 = sphi 0, %s35
      %s38 = sphi 0, %s36
      %s39 = sphi 0, %s37
      %s40 = sphi 0, %s38
      %s58 = sphi 0, %s60
      %s61 = sphi 0, %s58
      %s62 = sphi 0, %s61
      %s78 = sphi 0, %s62
      %s90 = sphi 0, %s92
      %s93 = sphi 0, %s90
      %s94 = sphi 0, %s93
      %s110 = sphi 0, %s94
      %s114 = sphi 0, %s114
      %s116 = sphi 0, %s114
      %s117 = sphi 0, %s116
      %s131 = sphi 0, %s117
      %s135 = sphi 0, %s135
      %s137 = sphi 0, %s135
      %s138 = sphi 0, %s137
      %s152 = sphi 0, %s138
      %s158 = sphi 0, %s160
      %s161 = sphi 0, %s158
      %s162 = sphi 0, %s161
      %s178 = sphi 0, %s162
    $region4: #{tpu_custom_call.1} parent=1 // loop_header_branch
      %31 = sbr.rel (%p29) target = $region8
    $region5: #{tpu_custom_call.1} parent=1 // loop_body
      %s33 = ssub.s32 %s28, 1
      %s34 = ssub.s32 %s28, 2
      %s41 = sadd.s32 1, %s36
      %p42 = scmp.ge.s32.totalorder %s41, 2
      %s43 = scalar_select %p42, 0, %s41
      %s44 = sadd.s32 1, %s35
      %s45 = scalar_select %p42, %s44, %s35
      %p46 = scmp.ge.s32.totalorder %s45, 2
      %s47 = scalar_select %p46, 0, %s45
      %s48 = smul.u32 %s35, 2
      %s49 = sadd.s32 %s48, %s36
      %s50 = sld [smem:[#allocation5 + %s49]]
      %s51 = smul.u32 %s47, 2
      %s52 = sadd.s32 %s51, %s43
      %s53 = sld [smem:[#allocation5 + %s52]]
      %s54 = ssub.s32 %s35, %s47
      %s55 = ssub.s32 %s50, %s53
      %s56 = sor.u32 %s54, %s55
      %p57 = scmp.eq.s32.totalorder %s56, 0
      %s59 = sadd.s32 %s58, 1
      %s60 = scalar_select %p57, %s58, %s59
      %p63 = pneg %p57
      %p64 = scmp.eq.s32.totalorder %s28, 3
      %p65 = por %p63, %p64
      %p66 = scmp.ne.s32.totalorder %s58, %s61
      %p67 = scmp.eq.s32.totalorder %s28, 0
      %p68 = por %p66, %p67
      %p69 = scmp.ne.s32.totalorder %s58, %s61
      %p70 = scmp.eq.s32.totalorder %s33, 3
      %p71 = por %p69, %p70
      %p72 = scmp.ne.s32.totalorder %s61, %s62
      %p73 = scmp.eq.s32.totalorder %s33, 0
      %p74 = por %p72, %p73
      %p75 = scmp.ne.s32.totalorder %s61, %s62
      %p76 = scmp.eq.s32.totalorder %s34, 3
      %p77 = por %p75, %p76
      %p79 = scmp.ne.s32.totalorder %s62, %s78
      %p80 = scmp.eq.s32.totalorder %s34, 0
      %p81 = por %p79, %p80
      %s82 = smul.u32 %s35, 2
      %s83 = sadd.s32 %s82, %s36
      %s84 = sld [smem:[#allocation5 + %s83]]
      %s85 = smul.u32 %s47, 2
      %s86 = sadd.s32 %s85, %s43
      %s87 = sld [smem:[#allocation5 + %s86]]
      %s88 = ssub.s32 %s84, %s87
      %p89 = scmp.eq.s32.totalorder %s88, 0
      %s91 = sadd.s32 %s90, 1
      %s92 = scalar_select %p89, %s90, %s91
      %p95 = pneg %p89
      %p96 = scmp.eq.s32.totalorder %s28, 3
      %p97 = por %p95, %p96
      %p98 = scmp.ne.s32.totalorder %s90, %s93
      %p99 = scmp.eq.s32.totalorder %s28, 0
      %p100 = por %p98, %p99
      %p101 = scmp.ne.s32.totalorder %s90, %s93
      %p102 = scmp.eq.s32.totalorder %s33, 3
      %p103 = por %p101, %p102
      %p104 = scmp.ne.s32.totalorder %s93, %s94
      %p105 = scmp.eq.s32.totalorder %s33, 0
      %p106 = por %p104, %p105
      %p107 = scmp.ne.s32.totalorder %s93, %s94
      %p108 = scmp.eq.s32.totalorder %s34, 3
      %p109 = por %p107, %p108
      %p111 = scmp.ne.s32.totalorder %s94, %s110
      %p112 = scmp.eq.s32.totalorder %s34, 0
      %p113 = por %p111, %p112
      %s115 = sadd.s32 %s114, 1
      %p118 = scmp.eq.s32.totalorder %s28, 3
      %p119 = scmp.ne.s32.totalorder %s114, %s116
      %p120 = scmp.eq.s32.totalorder %s28, 0
      %p121 = por %p119, %p120
      %p122 = scmp.ne.s32.totalorder %s114, %s116
      %p123 = scmp.eq.s32.totalorder %s33, 3
      %p124 = por %p122, %p123
      %p125 = scmp.ne.s32.totalorder %s116, %s117
      %p126 = scmp.eq.s32.totalorder %s33, 0
      %p127 = por %p125, %p126
      %p128 = scmp.ne.s32.totalorder %s116, %s117
      %p129 = scmp.eq.s32.totalorder %s34, 3
      %p130 = por %p128, %p129
      %p132 = scmp.ne.s32.totalorder %s117, %s131
      %p133 = scmp.eq.s32.totalorder %s34, 0
      %p134 = por %p132, %p133
      %s136 = sadd.s32 %s135, 1
      %p139 = scmp.eq.s32.totalorder %s28, 3
      %p140 = scmp.ne.s32.totalorder %s135, %s137
      %p141 = scmp.eq.s32.totalorder %s28, 0
      %p142 = por %p140, %p141
      %p143 = scmp.ne.s32.totalorder %s135, %s137
      %p144 = scmp.eq.s32.totalorder %s33, 3
      %p145 = por %p143, %p144
      %p146 = scmp.ne.s32.totalorder %s137, %s138
      %p147 = scmp.eq.s32.totalorder %s33, 0
      %p148 = por %p146, %p147
      %p149 = scmp.ne.s32.totalorder %s137, %s138
      %p150 = scmp.eq.s32.totalorder %s34, 3
      %p151 = por %p149, %p150
      %p153 = scmp.ne.s32.totalorder %s138, %s152
      %p154 = scmp.eq.s32.totalorder %s34, 0
      %p155 = por %p153, %p154
      %s156 = ssub.s32 %s35, %s47
      %p157 = scmp.eq.s32.totalorder %s156, 0
      %s159 = sadd.s32 %s158, 1
      %s160 = scalar_select %p157, %s158, %s159
      %p163 = pneg %p157
      %p164 = scmp.eq.s32.totalorder %s28, 3
      %p165 = por %p163, %p164
      %p166 = scmp.ne.s32.totalorder %s158, %s161
      %p167 = scmp.eq.s32.totalorder %s28, 0
      %p168 = por %p166, %p167
      %p169 = scmp.ne.s32.totalorder %s158, %s161
      %p170 = scmp.eq.s32.totalorder %s33, 3
      %p171 = por %p169, %p170
      %p172 = scmp.ne.s32.totalorder %s161, %s162
      %p173 = scmp.eq.s32.totalorder %s33, 0
      %p174 = por %p172, %p173
      %p175 = scmp.ne.s32.totalorder %s161, %s162
      %p176 = scmp.eq.s32.totalorder %s34, 3
      %p177 = por %p175, %p176
      %p179 = scmp.ne.s32.totalorder %s162, %s178
      %p180 = scmp.eq.s32.totalorder %s34, 0
      %p181 = por %p179, %p180
      %p182 = scmp.le.s32.totalorder 1, %s28
      %p183 = scmp.lt.s32.totalorder %s28, 5
      %p184 = pnand %p182, %p183
      %p185 = pneg %p184
      // Predicated region
      $region9: #{tpu_custom_call.1} parent=5 // pred_check
        _
      $region10: #{tpu_custom_call.1} parent=5 // pred_check_branch
        %187 = sbr.rel (%p184) target = $region12
      $region11: #{tpu_custom_call.1} parent=5 // pred_region
        %s188 = ssub.s32 %s28, 1
        // Predicated region
        $region13: #{tpu_custom_call.1} parent=11 // pred_check
          %p189 = pneg %p127
        $region14: #{tpu_custom_call.1} parent=11 // pred_check_branch
          %191 = sbr.rel (%p189) target = $region16
        $region15: #{tpu_custom_call.1} parent=11 // pred_region
          %s193 = ssub.s32 2048, 2048
          %194 = vsyncadd [#allocation10], %s193
          %s195 = sshll.u32 [#allocation11], 4
          %s196 = int_to_ptr.vmem [resolvable:$true] %s195
          %201 = dma.hbm_to_vmem [thread:$0]  %s4, 2048, %s196, [#allocation10], 128, 128, 8
        $region16: #{tpu_custom_call.1} parent=11 // pred_fallthru
          _
        // Predicated region
        $region17: #{tpu_custom_call.1} parent=11 // pred_check
          %p202 = pneg %p148
        $region18: #{tpu_custom_call.1} parent=11 // pred_check_branch
          %204 = sbr.rel (%p202) target = $region20
        $region19: #{tpu_custom_call.1} parent=11 // pred_region
          %s206 = ssub.s32 32, 32
          %207 = vsyncadd [#allocation13], %s206
          %s209 = sshll.u32 [#allocation12], 4
          %s210 = int_to_ptr.vmem [resolvable:$true] %s209
          %212 = dma.hbm_to_vmem [thread:$0]  %s5, 32, %s210, [#allocation13]
        $region20: #{tpu_custom_call.1} parent=11 // pred_fallthru
          _
      $region12: #{tpu_custom_call.1} parent=5 // pred_fallthru
        _
      %p213 = scmp.lt.s32.totalorder %s28, 4
      // Predicated region
      $region21: #{tpu_custom_call.1} parent=5 // pred_check
        %p214 = pneg %p213
      $region22: #{tpu_custom_call.1} parent=5 // pred_check_branch
        %216 = sbr.rel (%p214) target = $region24
      $region23: #{tpu_custom_call.1} parent=5 // pred_region
        // Predicated region
        $region25: #{tpu_custom_call.1} parent=23 // pred_check
          %p217 = pneg %p68
        $region26: #{tpu_custom_call.1} parent=23 // pred_check_branch
          %219 = sbr.rel (%p217) target = $region28
        $region27: #{tpu_custom_call.1} parent=23 // pred_region
          %s220 = sand.u32 %s58, 1
          %s221 = scalar_lea.sflag [#allocation7], %s220
          %s222 = sand.u32 %s58, 1
          %s223 = smul.addr %s222, 4096
          %s224 = scalar_lea.vmem [#allocation6], %s223
          %s225 = smul.u32 %s35, 2
          %s226 = sadd.s32 %s225, %s36
          %s227 = sld [smem:[#allocation5 + %s226]]
          %s228 = smul.u32 128, %s35
          %s229 = smul.u32 8, %s227
          %s231 = ssub.s32 65536, 65536
          %232 = vsyncadd %s221, %s231
          %s233 = smul.addr %s228, 16
          %s234 = sadd.s32 %s229, %s233
          %s235 = smul.addr %s234, 64
          %s236 = scalar_lea.hbm %s2, %s235
          %s237 = sshll.u32 %s224, 4
          %s238 = int_to_ptr.vmem [resolvable:$true] %s237
          %243 = dma.hbm_to_vmem [thread:$0]  %s236, 65536, %s238, %s221, 1024, 512, 32
        $region28: #{tpu_custom_call.1} parent=23 // pred_fallthru
          _
        // Predicated region
        $region29: #{tpu_custom_call.1} parent=23 // pred_check
          %p244 = pneg %p100
        $region30: #{tpu_custom_call.1} parent=23 // pred_check_branch
          %246 = sbr.rel (%p244) target = $region32
        $region31: #{tpu_custom_call.1} parent=23 // pred_region
          %s247 = sand.u32 %s28, 1
          %s248 = scalar_lea.sflag [#allocation10], %s247
          %s249 = sand.u32 %s90, 1
          %s250 = smul.addr %s249, 512
          %s251 = scalar_lea.vmem [#allocation9], %s250
          %s252 = smul.u32 %s35, 2
          %s253 = sadd.s32 %s252, %s36
          %s254 = sld [smem:[#allocation5 + %s253]]
          %s255 = smul.u32 128, %s254
          %s257 = ssub.s32 8192, 8192
          %258 = vsyncadd %s248, %s257
          %s259 = smul.addr %s255, 64
          %s260 = scalar_lea.hbm %s3, %s259
          %s261 = sshll.u32 %s251, 4
          %s262 = int_to_ptr.vmem [resolvable:$true] %s261
          %267 = dma.hbm_to_vmem [thread:$0]  %s260, 8192, %s262, %s248, 64, 64, 4
        $region32: #{tpu_custom_call.1} parent=23 // pred_fallthru
          _
      $region24: #{tpu_custom_call.1} parent=5 // pred_fallthru
        _
      %p268 = scmp.le.s32.totalorder 1, %s28
      %p269 = scmp.lt.s32.totalorder %s28, 5
      %p270 = pnand %p268, %p269
      %p271 = pneg %p270
      // Predicated region
      $region33: #{tpu_custom_call.1} parent=5 // pred_check
        _
      $region34: #{tpu_custom_call.1} parent=5 // pred_check_branch
        %273 = sbr.rel (%p270) target = $region36
      $region35: #{tpu_custom_call.1} parent=5 // pred_region
        %s274 = ssub.s32 %s28, 1
        %s275 = sand.u32 %s61, 1
        %s276 = scalar_lea.sflag [#allocation7], %s275
        %s277 = sand.u32 %s61, 1
        %s278 = smul.addr %s277, 4096
        %s279 = scalar_lea.vmem [#allocation6], %s278
        // Predicated region
        $region37: #{tpu_custom_call.1} parent=35 // pred_check
          %p280 = pneg %p74
        $region38: #{tpu_custom_call.1} parent=35 // pred_check_branch
          %282 = sbr.rel (%p280) target = $region40
        $region39: #{tpu_custom_call.1} parent=35 // pred_region
          %283 = dma.done %s276, 65536
        $region40: #{tpu_custom_call.1} parent=35 // pred_fallthru
          _
        %s284 = sand.u32 %s33, 1
        %s285 = scalar_lea.sflag [#allocation10], %s284
        %s286 = sand.u32 %s93, 1
        %s287 = smul.addr %s286, 512
        %s288 = scalar_lea.vmem [#allocation9], %s287
        // Predicated region
        $region41: #{tpu_custom_call.1} parent=35 // pred_check
          %p289 = pneg %p106
        $region42: #{tpu_custom_call.1} parent=35 // pred_check_branch
          %291 = sbr.rel (%p289) target = $region44
        $region43: #{tpu_custom_call.1} parent=35 // pred_region
          %292 = dma.done %s285, 8192
        $region44: #{tpu_custom_call.1} parent=35 // pred_fallthru
          _
        // Predicated region
        $region45: #{tpu_custom_call.1} parent=35 // pred_check
          %p293 = pneg %p127
        $region46: #{tpu_custom_call.1} parent=35 // pred_check_branch
          %295 = sbr.rel (%p293) target = $region48
        $region47: #{tpu_custom_call.1} parent=35 // pred_region
          %296 = dma.done [#allocation10], 2048
        $region48: #{tpu_custom_call.1} parent=35 // pred_fallthru
          _
        // Predicated region
        $region49: #{tpu_custom_call.1} parent=35 // pred_check
          %p297 = pneg %p148
        $region50: #{tpu_custom_call.1} parent=35 // pred_check_branch
          %299 = sbr.rel (%p297) target = $region52
        $region51: #{tpu_custom_call.1} parent=35 // pred_region
          %300 = dma.done [#allocation13], 32
        $region52: #{tpu_custom_call.1} parent=35 // pred_fallthru
          _
        %s301 = sand.u32 %s61, 1
        %s302 = scalar_lea.sflag [#allocation7], %s301
        %s303 = sand.u32 %s61, 1
        %s304 = smul.addr %s303, 4096
        %s305 = scalar_lea.vmem [#allocation6], %s304
        %p306 = pneg %p74
        %p307 = pneg %p71
        %s308 = sand.u32 %s33, 1
        %s309 = scalar_lea.sflag [#allocation10], %s308
        %s310 = sand.u32 %s93, 1
        %s311 = smul.addr %s310, 512
        %s312 = scalar_lea.vmem [#allocation9], %s311
        %p313 = pneg %p106
        %p314 = pneg %p103
        %p315 = pneg %p127
        %p316 = pneg %p124
        %p317 = pneg %p148
        %p318 = pneg %p145
        %p319 = pneg %p174
        %p320 = pneg %p171
        %s321 = sand.u32 %s161, 1
        %s322 = scalar_lea.sflag [#allocation8], %s321
        %s323 = sand.u32 %s161, 1
        %s324 = smul.addr %s323, 1024
        %s325 = scalar_lea.vmem [#allocation14], %s324
        %s326 = smul.u32 %s37, 2
        %s327 = sadd.s32 %s326, %s38
        %s328 = sld [smem:[#allocation5 + %s327]]
        %s329 = smul.u32 128, %s37
        %s330 = smul.u32 8, %s328
        %s331 = smul.u32 %s37, 2
        %s332 = sadd.s32 %s331, %s38
        %s333 = sld [smem:[#allocation5 + %s332]]
        %s334 = smul.u32 128, %s333
        %s335 = smul.u32 128, %s37
        %p337 = scmp.eq.s32.totalorder %s38, 0
        // Predicated region
        $region53: #{tpu_custom_call.1} parent=35 // pred_check
          %p338 = pneg %p337
        $region54: #{tpu_custom_call.1} parent=35 // pred_check_branch
          %340 = sbr.rel (%p338) target = $region56
        $region55: #{tpu_custom_call.1} parent=35 // pred_region
          %341 = vst [vmem:[#allocation2] sm:$0xff] 0.0
          %342 = vst [vmem:[#allocation2 + $0x8] sm:$0xff] 0.0
          %343 = vst [vmem:[#allocation2 + $0x10] sm:$0xff] 0.0
          %344 = vst [vmem:[#allocation2 + $0x18] sm:$0xff] 0.0
          %345 = vst [vmem:[#allocation2 + $0x20] sm:$0xff] 0.0
          %346 = vst [vmem:[#allocation2 + $0x28] sm:$0xff] 0.0
          %347 = vst [vmem:[#allocation2 + $0x30] sm:$0xff] 0.0
          %348 = vst [vmem:[#allocation2 + $0x38] sm:$0xff] 0.0
          %349 = vst [vmem:[#allocation2 + $0x40] sm:$0xff] 0.0
          %350 = vst [vmem:[#allocation2 + $0x48] sm:$0xff] 0.0
          %351 = vst [vmem:[#allocation2 + $0x50] sm:$0xff] 0.0
          %352 = vst [vmem:[#allocation2 + $0x58] sm:$0xff] 0.0
          %353 = vst [vmem:[#allocation2 + $0x60] sm:$0xff] 0.0
          %354 = vst [vmem:[#allocation2 + $0x68] sm:$0xff] 0.0
          %355 = vst [vmem:[#allocation2 + $0x70] sm:$0xff] 0.0
          %356 = vst [vmem:[#allocation2 + $0x78] sm:$0xff] 0.0
          %357 = vst [vmem:[#allocation2 + $0x80] sm:$0xff] 0.0
          %358 = vst [vmem:[#allocation2 + $0x88] sm:$0xff] 0.0
          %359 = vst [vmem:[#allocation2 + $0x90] sm:$0xff] 0.0
          %360 = vst [vmem:[#allocation2 + $0x98] sm:$0xff] 0.0
          %361 = vst [vmem:[#allocation2 + $0xa0] sm:$0xff] 0.0
          %362 = vst [vmem:[#allocation2 + $0xa8] sm:$0xff] 0.0
          %363 = vst [vmem:[#allocation2 + $0xb0] sm:$0xff] 0.0
          %364 = vst [vmem:[#allocation2 + $0xb8] sm:$0xff] 0.0
          %365 = vst [vmem:[#allocation2 + $0xc0] sm:$0xff] 0.0
          %366 = vst [vmem:[#allocation2 + $0xc8] sm:$0xff] 0.0
          %367 = vst [vmem:[#allocation2 + $0xd0] sm:$0xff] 0.0
          %368 = vst [vmem:[#allocation2 + $0xd8] sm:$0xff] 0.0
          %369 = vst [vmem:[#allocation2 + $0xe0] sm:$0xff] 0.0
          %370 = vst [vmem:[#allocation2 + $0xe8] sm:$0xff] 0.0
          %371 = vst [vmem:[#allocation2 + $0xf0] sm:$0xff] 0.0
          %372 = vst [vmem:[#allocation2 + $0xf8] sm:$0xff] 0.0
          %373 = vst [vmem:[#allocation2 + $0x100] sm:$0xff] 0.0
          %374 = vst [vmem:[#allocation2 + $0x108] sm:$0xff] 0.0
          %375 = vst [vmem:[#allocation2 + $0x110] sm:$0xff] 0.0
          %376 = vst [vmem:[#allocation2 + $0x118] sm:$0xff] 0.0
          %377 = vst [vmem:[#allocation2 + $0x120] sm:$0xff] 0.0
          %378 = vst [vmem:[#allocation2 + $0x128] sm:$0xff] 0.0
          %379 = vst [vmem:[#allocation2 + $0x130] sm:$0xff] 0.0
          %380 = vst [vmem:[#allocation2 + $0x138] sm:$0xff] 0.0
          %381 = vst [vmem:[#allocation2 + $0x140] sm:$0xff] 0.0
          %382 = vst [vmem:[#allocation2 + $0x148] sm:$0xff] 0.0
          %383 = vst [vmem:[#allocation2 + $0x150] sm:$0xff] 0.0
          %384 = vst [vmem:[#allocation2 + $0x158] sm:$0xff] 0.0
          %385 = vst [vmem:[#allocation2 + $0x160] sm:$0xff] 0.0
          %386 = vst [vmem:[#allocation2 + $0x168] sm:$0xff] 0.0
          %387 = vst [vmem:[#allocation2 + $0x170] sm:$0xff] 0.0
          %388 = vst [vmem:[#allocation2 + $0x178] sm:$0xff] 0.0
          %389 = vst [vmem:[#allocation2 + $0x180] sm:$0xff] 0.0
          %390 = vst [vmem:[#allocation2 + $0x188] sm:$0xff] 0.0
          %391 = vst [vmem:[#allocation2 + $0x190] sm:$0xff] 0.0
          %392 = vst [vmem:[#allocation2 + $0x198] sm:$0xff] 0.0
          %393 = vst [vmem:[#allocation2 + $0x1a0] sm:$0xff] 0.0
          %394 = vst [vmem:[#allocation2 + $0x1a8] sm:$0xff] 0.0
          %395 = vst [vmem:[#allocation2 + $0x1b0] sm:$0xff] 0.0
          %396 = vst [vmem:[#allocation2 + $0x1b8] sm:$0xff] 0.0
          %397 = vst [vmem:[#allocation2 + $0x1c0] sm:$0xff] 0.0
          %398 = vst [vmem:[#allocation2 + $0x1c8] sm:$0xff] 0.0
          %399 = vst [vmem:[#allocation2 + $0x1d0] sm:$0xff] 0.0
          %400 = vst [vmem:[#allocation2 + $0x1d8] sm:$0xff] 0.0
          %401 = vst [vmem:[#allocation2 + $0x1e0] sm:$0xff] 0.0
          %402 = vst [vmem:[#allocation2 + $0x1e8] sm:$0xff] 0.0
          %403 = vst [vmem:[#allocation2 + $0x1f0] sm:$0xff] 0.0
          %404 = vst [vmem:[#allocation2 + $0x1f8] sm:$0xff] 0.0
          %405 = vst [vmem:[#allocation2 + $0x200] sm:$0xff] 0.0
          %406 = vst [vmem:[#allocation2 + $0x208] sm:$0xff] 0.0
          %407 = vst [vmem:[#allocation2 + $0x210] sm:$0xff] 0.0
          %408 = vst [vmem:[#allocation2 + $0x218] sm:$0xff] 0.0
          %409 = vst [vmem:[#allocation2 + $0x220] sm:$0xff] 0.0
          %410 = vst [vmem:[#allocation2 + $0x228] sm:$0xff] 0.0
          %411 = vst [vmem:[#allocation2 + $0x230] sm:$0xff] 0.0
          %412 = vst [vmem:[#allocation2 + $0x238] sm:$0xff] 0.0
          %413 = vst [vmem:[#allocation2 + $0x240] sm:$0xff] 0.0
          %414 = vst [vmem:[#allocation2 + $0x248] sm:$0xff] 0.0
          %415 = vst [vmem:[#allocation2 + $0x250] sm:$0xff] 0.0
          %416 = vst [vmem:[#allocation2 + $0x258] sm:$0xff] 0.0
          %417 = vst [vmem:[#allocation2 + $0x260] sm:$0xff] 0.0
          %418 = vst [vmem:[#allocation2 + $0x268] sm:$0xff] 0.0
          %419 = vst [vmem:[#allocation2 + $0x270] sm:$0xff] 0.0
          %420 = vst [vmem:[#allocation2 + $0x278] sm:$0xff] 0.0
          %421 = vst [vmem:[#allocation2 + $0x280] sm:$0xff] 0.0
          %422 = vst [vmem:[#allocation2 + $0x288] sm:$0xff] 0.0
          %423 = vst [vmem:[#allocation2 + $0x290] sm:$0xff] 0.0
          %424 = vst [vmem:[#allocation2 + $0x298] sm:$0xff] 0.0
          %425 = vst [vmem:[#allocation2 + $0x2a0] sm:$0xff] 0.0
          %426 = vst [vmem:[#allocation2 + $0x2a8] sm:$0xff] 0.0
          %427 = vst [vmem:[#allocation2 + $0x2b0] sm:$0xff] 0.0
          %428 = vst [vmem:[#allocation2 + $0x2b8] sm:$0xff] 0.0
          %429 = vst [vmem:[#allocation2 + $0x2c0] sm:$0xff] 0.0
          %430 = vst [vmem:[#allocation2 + $0x2c8] sm:$0xff] 0.0
          %431 = vst [vmem:[#allocation2 + $0x2d0] sm:$0xff] 0.0
          %432 = vst [vmem:[#allocation2 + $0x2d8] sm:$0xff] 0.0
          %433 = vst [vmem:[#allocation2 + $0x2e0] sm:$0xff] 0.0
          %434 = vst [vmem:[#allocation2 + $0x2e8] sm:$0xff] 0.0
          %435 = vst [vmem:[#allocation2 + $0x2f0] sm:$0xff] 0.0
          %436 = vst [vmem:[#allocation2 + $0x2f8] sm:$0xff] 0.0
          %437 = vst [vmem:[#allocation2 + $0x300] sm:$0xff] 0.0
          %438 = vst [vmem:[#allocation2 + $0x308] sm:$0xff] 0.0
          %439 = vst [vmem:[#allocation2 + $0x310] sm:$0xff] 0.0
          %440 = vst [vmem:[#allocation2 + $0x318] sm:$0xff] 0.0
          %441 = vst [vmem:[#allocation2 + $0x320] sm:$0xff] 0.0
          %442 = vst [vmem:[#allocation2 + $0x328] sm:$0xff] 0.0
          %443 = vst [vmem:[#allocation2 + $0x330] sm:$0xff] 0.0
          %444 = vst [vmem:[#allocation2 + $0x338] sm:$0xff] 0.0
          %445 = vst [vmem:[#allocation2 + $0x340] sm:$0xff] 0.0
          %446 = vst [vmem:[#allocation2 + $0x348] sm:$0xff] 0.0
          %447 = vst [vmem:[#allocation2 + $0x350] sm:$0xff] 0.0
          %448 = vst [vmem:[#allocation2 + $0x358] sm:$0xff] 0.0
          %449 = vst [vmem:[#allocation2 + $0x360] sm:$0xff] 0.0
          %450 = vst [vmem:[#allocation2 + $0x368] sm:$0xff] 0.0
          %451 = vst [vmem:[#allocation2 + $0x370] sm:$0xff] 0.0
          %452 = vst [vmem:[#allocation2 + $0x378] sm:$0xff] 0.0
          %453 = vst [vmem:[#allocation2 + $0x380] sm:$0xff] 0.0
          %454 = vst [vmem:[#allocation2 + $0x388] sm:$0xff] 0.0
          %455 = vst [vmem:[#allocation2 + $0x390] sm:$0xff] 0.0
          %456 = vst [vmem:[#allocation2 + $0x398] sm:$0xff] 0.0
          %457 = vst [vmem:[#allocation2 + $0x3a0] sm:$0xff] 0.0
          %458 = vst [vmem:[#allocation2 + $0x3a8] sm:$0xff] 0.0
          %459 = vst [vmem:[#allocation2 + $0x3b0] sm:$0xff] 0.0
          %460 = vst [vmem:[#allocation2 + $0x3b8] sm:$0xff] 0.0
          %461 = vst [vmem:[#allocation2 + $0x3c0] sm:$0xff] 0.0
          %462 = vst [vmem:[#allocation2 + $0x3c8] sm:$0xff] 0.0
          %463 = vst [vmem:[#allocation2 + $0x3d0] sm:$0xff] 0.0
          %464 = vst [vmem:[#allocation2 + $0x3d8] sm:$0xff] 0.0
          %465 = vst [vmem:[#allocation2 + $0x3e0] sm:$0xff] 0.0
          %466 = vst [vmem:[#allocation2 + $0x3e8] sm:$0xff] 0.0
          %467 = vst [vmem:[#allocation2 + $0x3f0] sm:$0xff] 0.0
          %468 = vst [vmem:[#allocation2 + $0x3f8] sm:$0xff] 0.0
        $region56: #{tpu_custom_call.1} parent=35 // pred_fallthru
          _
        %s469 = smul.u32 %s37, 2
        %s470 = sadd.s32 %s469, %s38
        %s471 = sld [smem:[#allocation4 + %s470]]
        %p472 = scmp.ne.s32.totalorder %s471, 0
        // Predicated region
        $region57: #{tpu_custom_call.1} parent=35 // pred_check
          %p473 = pneg %p472
        $region58: #{tpu_custom_call.1} parent=35 // pred_check_branch
          %475 = sbr.rel (%p473) target = $region60
        $region59: #{tpu_custom_call.1} parent=35 // pred_region
          %v476 = vld [vmem:[#allocation2] sm:$0xff]
          %v477 = vld [vmem:[#allocation2 + $0x8] sm:$0xff]
          %v478 = vld [vmem:[#allocation2 + $0x10] sm:$0xff]
          %v479 = vld [vmem:[#allocation2 + $0x18] sm:$0xff]
          %v480 = vld [vmem:[#allocation2 + $0x20] sm:$0xff]
          %v481 = vld [vmem:[#allocation2 + $0x28] sm:$0xff]
          %v482 = vld [vmem:[#allocation2 + $0x30] sm:$0xff]
          %v483 = vld [vmem:[#allocation2 + $0x38] sm:$0xff]
          %v484 = vld [vmem:[#allocation2 + $0x40] sm:$0xff]
          %v485 = vld [vmem:[#allocation2 + $0x48] sm:$0xff]
          %v486 = vld [vmem:[#allocation2 + $0x50] sm:$0xff]
          %v487 = vld [vmem:[#allocation2 + $0x58] sm:$0xff]
          %v488 = vld [vmem:[#allocation2 + $0x60] sm:$0xff]
          %v489 = vld [vmem:[#allocation2 + $0x68] sm:$0xff]
          %v490 = vld [vmem:[#allocation2 + $0x70] sm:$0xff]
          %v491 = vld [vmem:[#allocation2 + $0x78] sm:$0xff]
          %v492 = vld [vmem:[#allocation2 + $0x80] sm:$0xff]
          %v493 = vld [vmem:[#allocation2 + $0x88] sm:$0xff]
          %v494 = vld [vmem:[#allocation2 + $0x90] sm:$0xff]
          %v495 = vld [vmem:[#allocation2 + $0x98] sm:$0xff]
          %v496 = vld [vmem:[#allocation2 + $0xa0] sm:$0xff]
          %v497 = vld [vmem:[#allocation2 + $0xa8] sm:$0xff]
          %v498 = vld [vmem:[#allocation2 + $0xb0] sm:$0xff]
          %v499 = vld [vmem:[#allocation2 + $0xb8] sm:$0xff]
          %v500 = vld [vmem:[#allocation2 + $0xc0] sm:$0xff]
          %v501 = vld [vmem:[#allocation2 + $0xc8] sm:$0xff]
          %v502 = vld [vmem:[#allocation2 + $0xd0] sm:$0xff]
          %v503 = vld [vmem:[#allocation2 + $0xd8] sm:$0xff]
          %v504 = vld [vmem:[#allocation2 + $0xe0] sm:$0xff]
          %v505 = vld [vmem:[#allocation2 + $0xe8] sm:$0xff]
          %v506 = vld [vmem:[#allocation2 + $0xf0] sm:$0xff]
          %v507 = vld [vmem:[#allocation2 + $0xf8] sm:$0xff]
          %v508 = vld [vmem:[#allocation2 + $0x100] sm:$0xff]
          %v509 = vld [vmem:[#allocation2 + $0x108] sm:$0xff]
          %v510 = vld [vmem:[#allocation2 + $0x110] sm:$0xff]
          %v511 = vld [vmem:[#allocation2 + $0x118] sm:$0xff]
          %v512 = vld [vmem:[#allocation2 + $0x120] sm:$0xff]
          %v513 = vld [vmem:[#allocation2 + $0x128] sm:$0xff]
          %v514 = vld [vmem:[#allocation2 + $0x130] sm:$0xff]
          %v515 = vld [vmem:[#allocation2 + $0x138] sm:$0xff]
          %v516 = vld [vmem:[#allocation2 + $0x140] sm:$0xff]
          %v517 = vld [vmem:[#allocation2 + $0x148] sm:$0xff]
          %v518 = vld [vmem:[#allocation2 + $0x150] sm:$0xff]
          %v519 = vld [vmem:[#allocation2 + $0x158] sm:$0xff]
          %v520 = vld [vmem:[#allocation2 + $0x160] sm:$0xff]
          %v521 = vld [vmem:[#allocation2 + $0x168] sm:$0xff]
          %v522 = vld [vmem:[#allocation2 + $0x170] sm:$0xff]
          %v523 = vld [vmem:[#allocation2 + $0x178] sm:$0xff]
          %v524 = vld [vmem:[#allocation2 + $0x180] sm:$0xff]
          %v525 = vld [vmem:[#allocation2 + $0x188] sm:$0xff]
          %v526 = vld [vmem:[#allocation2 + $0x190] sm:$0xff]
          %v527 = vld [vmem:[#allocation2 + $0x198] sm:$0xff]
          %v528 = vld [vmem:[#allocation2 + $0x1a0] sm:$0xff]
          %v529 = vld [vmem:[#allocation2 + $0x1a8] sm:$0xff]
          %v530 = vld [vmem:[#allocation2 + $0x1b0] sm:$0xff]
          %v531 = vld [vmem:[#allocation2 + $0x1b8] sm:$0xff]
          %v532 = vld [vmem:[#allocation2 + $0x1c0] sm:$0xff]
          %v533 = vld [vmem:[#allocation2 + $0x1c8] sm:$0xff]
          %v534 = vld [vmem:[#allocation2 + $0x1d0] sm:$0xff]
          %v535 = vld [vmem:[#allocation2 + $0x1d8] sm:$0xff]
          %v536 = vld [vmem:[#allocation2 + $0x1e0] sm:$0xff]
          %v537 = vld [vmem:[#allocation2 + $0x1e8] sm:$0xff]
          %v538 = vld [vmem:[#allocation2 + $0x1f0] sm:$0xff]
          %v539 = vld [vmem:[#allocation2 + $0x1f8] sm:$0xff]
          %v540 = vld [vmem:[#allocation2 + $0x200] sm:$0xff]
          %v541 = vld [vmem:[#allocation2 + $0x208] sm:$0xff]
          %v542 = vld [vmem:[#allocation2 + $0x210] sm:$0xff]
          %v543 = vld [vmem:[#allocation2 + $0x218] sm:$0xff]
          %v544 = vld [vmem:[#allocation2 + $0x220] sm:$0xff]
          %v545 = vld [vmem:[#allocation2 + $0x228] sm:$0xff]
          %v546 = vld [vmem:[#allocation2 + $0x230] sm:$0xff]
          %v547 = vld [vmem:[#allocation2 + $0x238] sm:$0xff]
          %v548 = vld [vmem:[#allocation2 + $0x240] sm:$0xff]
          %v549 = vld [vmem:[#allocation2 + $0x248] sm:$0xff]
          %v550 = vld [vmem:[#allocation2 + $0x250] sm:$0xff]
          %v551 = vld [vmem:[#allocation2 + $0x258] sm:$0xff]
          %v552 = vld [vmem:[#allocation2 + $0x260] sm:$0xff]
          %v553 = vld [vmem:[#allocation2 + $0x268] sm:$0xff]
          %v554 = vld [vmem:[#allocation2 + $0x270] sm:$0xff]
          %v555 = vld [vmem:[#allocation2 + $0x278] sm:$0xff]
          %v556 = vld [vmem:[#allocation2 + $0x280] sm:$0xff]
          %v557 = vld [vmem:[#allocation2 + $0x288] sm:$0xff]
          %v558 = vld [vmem:[#allocation2 + $0x290] sm:$0xff]
          %v559 = vld [vmem:[#allocation2 + $0x298] sm:$0xff]
          %v560 = vld [vmem:[#allocation2 + $0x2a0] sm:$0xff]
          %v561 = vld [vmem:[#allocation2 + $0x2a8] sm:$0xff]
          %v562 = vld [vmem:[#allocation2 + $0x2b0] sm:$0xff]
          %v563 = vld [vmem:[#allocation2 + $0x2b8] sm:$0xff]
          %v564 = vld [vmem:[#allocation2 + $0x2c0] sm:$0xff]
          %v565 = vld [vmem:[#allocation2 + $0x2c8] sm:$0xff]
          %v566 = vld [vmem:[#allocation2 + $0x2d0] sm:$0xff]
          %v567 = vld [vmem:[#allocation2 + $0x2d8] sm:$0xff]
          %v568 = vld [vmem:[#allocation2 + $0x2e0] sm:$0xff]
          %v569 = vld [vmem:[#allocation2 + $0x2e8] sm:$0xff]
          %v570 = vld [vmem:[#allocation2 + $0x2f0] sm:$0xff]
          %v571 = vld [vmem:[#allocation2 + $0x2f8] sm:$0xff]
          %v572 = vld [vmem:[#allocation2 + $0x300] sm:$0xff]
          %v573 = vld [vmem:[#allocation2 + $0x308] sm:$0xff]
          %v574 = vld [vmem:[#allocation2 + $0x310] sm:$0xff]
          %v575 = vld [vmem:[#allocation2 + $0x318] sm:$0xff]
          %v576 = vld [vmem:[#allocation2 + $0x320] sm:$0xff]
          %v577 = vld [vmem:[#allocation2 + $0x328] sm:$0xff]
          %v578 = vld [vmem:[#allocation2 + $0x330] sm:$0xff]
          %v579 = vld [vmem:[#allocation2 + $0x338] sm:$0xff]
          %v580 = vld [vmem:[#allocation2 + $0x340] sm:$0xff]
          %v581 = vld [vmem:[#allocation2 + $0x348] sm:$0xff]
          %v582 = vld [vmem:[#allocation2 + $0x350] sm:$0xff]
          %v583 = vld [vmem:[#allocation2 + $0x358] sm:$0xff]
          %v584 = vld [vmem:[#allocation2 + $0x360] sm:$0xff]
          %v585 = vld [vmem:[#allocation2 + $0x368] sm:$0xff]
          %v586 = vld [vmem:[#allocation2 + $0x370] sm:$0xff]
          %v587 = vld [vmem:[#allocation2 + $0x378] sm:$0xff]
          %v588 = vld [vmem:[#allocation2 + $0x380] sm:$0xff]
          %v589 = vld [vmem:[#allocation2 + $0x388] sm:$0xff]
          %v590 = vld [vmem:[#allocation2 + $0x390] sm:$0xff]
          %v591 = vld [vmem:[#allocation2 + $0x398] sm:$0xff]
          %v592 = vld [vmem:[#allocation2 + $0x3a0] sm:$0xff]
          %v593 = vld [vmem:[#allocation2 + $0x3a8] sm:$0xff]
          %v594 = vld [vmem:[#allocation2 + $0x3b0] sm:$0xff]
          %v595 = vld [vmem:[#allocation2 + $0x3b8] sm:$0xff]
          %v596 = vld [vmem:[#allocation2 + $0x3c0] sm:$0xff]
          %v597 = vld [vmem:[#allocation2 + $0x3c8] sm:$0xff]
          %v598 = vld [vmem:[#allocation2 + $0x3d0] sm:$0xff]
          %v599 = vld [vmem:[#allocation2 + $0x3d8] sm:$0xff]
          %v600 = vld [vmem:[#allocation2 + $0x3e0] sm:$0xff]
          %v601 = vld [vmem:[#allocation2 + $0x3e8] sm:$0xff]
          %v602 = vld [vmem:[#allocation2 + $0x3f0] sm:$0xff]
          %v603 = vld [vmem:[#allocation2 + $0x3f8] sm:$0xff]
          %v604 = vld [vmem:[%s279] sm:$0xff]
          %v605 = vld [vmem:[%s279 + $0x8] sm:$0xff]
          %v606 = vld [vmem:[%s279 + $0x10] sm:$0xff]
          %v607 = vld [vmem:[%s279 + $0x18] sm:$0xff]
          %v608 = vld [vmem:[%s279 + $0x20] sm:$0xff]
          %v609 = vld [vmem:[%s279 + $0x28] sm:$0xff]
          %v610 = vld [vmem:[%s279 + $0x30] sm:$0xff]
          %v611 = vld [vmem:[%s279 + $0x38] sm:$0xff]
          %v612 = vld [vmem:[%s279 + $0x40] sm:$0xff]
          %v613 = vld [vmem:[%s279 + $0x48] sm:$0xff]
          %v614 = vld [vmem:[%s279 + $0x50] sm:$0xff]
          %v615 = vld [vmem:[%s279 + $0x58] sm:$0xff]
          %v616 = vld [vmem:[%s279 + $0x60] sm:$0xff]
          %v617 = vld [vmem:[%s279 + $0x68] sm:$0xff]
          %v618 = vld [vmem:[%s279 + $0x70] sm:$0xff]
          %v619 = vld [vmem:[%s279 + $0x78] sm:$0xff]
          %v620 = vld [vmem:[%s279 + $0x80] sm:$0xff]
          %v621 = vld [vmem:[%s279 + $0x88] sm:$0xff]
          %v622 = vld [vmem:[%s279 + $0x90] sm:$0xff]
          %v623 = vld [vmem:[%s279 + $0x98] sm:$0xff]
          %v624 = vld [vmem:[%s279 + $0xa0] sm:$0xff]
          %v625 = vld [vmem:[%s279 + $0xa8] sm:$0xff]
          %v626 = vld [vmem:[%s279 + $0xb0] sm:$0xff]
          %v627 = vld [vmem:[%s279 + $0xb8] sm:$0xff]
          %v628 = vld [vmem:[%s279 + $0xc0] sm:$0xff]
          %v629 = vld [vmem:[%s279 + $0xc8] sm:$0xff]
          %v630 = vld [vmem:[%s279 + $0xd0] sm:$0xff]
          %v631 = vld [vmem:[%s279 + $0xd8] sm:$0xff]
          %v632 = vld [vmem:[%s279 + $0xe0] sm:$0xff]
          %v633 = vld [vmem:[%s279 + $0xe8] sm:$0xff]
          %v634 = vld [vmem:[%s279 + $0xf0] sm:$0xff]
          %v635 = vld [vmem:[%s279 + $0xf8] sm:$0xff]
          %v636 = vld [vmem:[%s279 + $0x100] sm:$0xff]
          %v637 = vld [vmem:[%s279 + $0x108] sm:$0xff]
          %v638 = vld [vmem:[%s279 + $0x110] sm:$0xff]
          %v639 = vld [vmem:[%s279 + $0x118] sm:$0xff]
          %v640 = vld [vmem:[%s279 + $0x120] sm:$0xff]
          %v641 = vld [vmem:[%s279 + $0x128] sm:$0xff]
          %v642 = vld [vmem:[%s279 + $0x130] sm:$0xff]
          %v643 = vld [vmem:[%s279 + $0x138] sm:$0xff]
          %v644 = vld [vmem:[%s279 + $0x140] sm:$0xff]
          %v645 = vld [vmem:[%s279 + $0x148] sm:$0xff]
          %v646 = vld [vmem:[%s279 + $0x150] sm:$0xff]
          %v647 = vld [vmem:[%s279 + $0x158] sm:$0xff]
          %v648 = vld [vmem:[%s279 + $0x160] sm:$0xff]
          %v649 = vld [vmem:[%s279 + $0x168] sm:$0xff]
          %v650 = vld [vmem:[%s279 + $0x170] sm:$0xff]
          %v651 = vld [vmem:[%s279 + $0x178] sm:$0xff]
          %v652 = vld [vmem:[%s279 + $0x180] sm:$0xff]
          %v653 = vld [vmem:[%s279 + $0x188] sm:$0xff]
          %v654 = vld [vmem:[%s279 + $0x190] sm:$0xff]
          %v655 = vld [vmem:[%s279 + $0x198] sm:$0xff]
          %v656 = vld [vmem:[%s279 + $0x1a0] sm:$0xff]
          %v657 = vld [vmem:[%s279 + $0x1a8] sm:$0xff]
          %v658 = vld [vmem:[%s279 + $0x1b0] sm:$0xff]
          %v659 = vld [vmem:[%s279 + $0x1b8] sm:$0xff]
          %v660 = vld [vmem:[%s279 + $0x1c0] sm:$0xff]
          %v661 = vld [vmem:[%s279 + $0x1c8] sm:$0xff]
          %v662 = vld [vmem:[%s279 + $0x1d0] sm:$0xff]
          %v663 = vld [vmem:[%s279 + $0x1d8] sm:$0xff]
          %v664 = vld [vmem:[%s279 + $0x1e0] sm:$0xff]
          %v665 = vld [vmem:[%s279 + $0x1e8] sm:$0xff]
          %v666 = vld [vmem:[%s279 + $0x1f0] sm:$0xff]
          %v667 = vld [vmem:[%s279 + $0x1f8] sm:$0xff]
          %v668 = vld [vmem:[%s279 + $0x200] sm:$0xff]
          %v669 = vld [vmem:[%s279 + $0x208] sm:$0xff]
          %v670 = vld [vmem:[%s279 + $0x210] sm:$0xff]
          %v671 = vld [vmem:[%s279 + $0x218] sm:$0xff]
          %v672 = vld [vmem:[%s279 + $0x220] sm:$0xff]
          %v673 = vld [vmem:[%s279 + $0x228] sm:$0xff]
          %v674 = vld [vmem:[%s279 + $0x230] sm:$0xff]
          %v675 = vld [vmem:[%s279 + $0x238] sm:$0xff]
          %v676 = vld [vmem:[%s279 + $0x240] sm:$0xff]
          %v677 = vld [vmem:[%s279 + $0x248] sm:$0xff]
          %v678 = vld [vmem:[%s279 + $0x250] sm:$0xff]
          %v679 = vld [vmem:[%s279 + $0x258] sm:$0xff]
          %v680 = vld [vmem:[%s279 + $0x260] sm:$0xff]
          %v681 = vld [vmem:[%s279 + $0x268] sm:$0xff]
          %v682 = vld [vmem:[%s279 + $0x270] sm:$0xff]
          %v683 = vld [vmem:[%s279 + $0x278] sm:$0xff]
          %v684 = vld [vmem:[%s279 + $0x280] sm:$0xff]
          %v685 = vld [vmem:[%s279 + $0x288] sm:$0xff]
          %v686 = vld [vmem:[%s279 + $0x290] sm:$0xff]
          %v687 = vld [vmem:[%s279 + $0x298] sm:$0xff]
          %v688 = vld [vmem:[%s279 + $0x2a0] sm:$0xff]
          %v689 = vld [vmem:[%s279 + $0x2a8] sm:$0xff]
          %v690 = vld [vmem:[%s279 + $0x2b0] sm:$0xff]
          %v691 = vld [vmem:[%s279 + $0x2b8] sm:$0xff]
          %v692 = vld [vmem:[%s279 + $0x2c0] sm:$0xff]
          %v693 = vld [vmem:[%s279 + $0x2c8] sm:$0xff]
          %v694 = vld [vmem:[%s279 + $0x2d0] sm:$0xff]
          %v695 = vld [vmem:[%s279 + $0x2d8] sm:$0xff]
          %v696 = vld [vmem:[%s279 + $0x2e0] sm:$0xff]
          %v697 = vld [vmem:[%s279 + $0x2e8] sm:$0xff]
          %v698 = vld [vmem:[%s279 + $0x2f0] sm:$0xff]
          %v699 = vld [vmem:[%s279 + $0x2f8] sm:$0xff]
          %v700 = vld [vmem:[%s279 + $0x300] sm:$0xff]
          %v701 = vld [vmem:[%s279 + $0x308] sm:$0xff]
          %v702 = vld [vmem:[%s279 + $0x310] sm:$0xff]
          %v703 = vld [vmem:[%s279 + $0x318] sm:$0xff]
          %v704 = vld [vmem:[%s279 + $0x320] sm:$0xff]
          %v705 = vld [vmem:[%s279 + $0x328] sm:$0xff]
          %v706 = vld [vmem:[%s279 + $0x330] sm:$0xff]
          %v707 = vld [vmem:[%s279 + $0x338] sm:$0xff]
          %v708 = vld [vmem:[%s279 + $0x340] sm:$0xff]
          %v709 = vld [vmem:[%s279 + $0x348] sm:$0xff]
          %v710 = vld [vmem:[%s279 + $0x350] sm:$0xff]
          %v711 = vld [vmem:[%s279 + $0x358] sm:$0xff]
          %v712 = vld [vmem:[%s279 + $0x360] sm:$0xff]
          %v713 = vld [vmem:[%s279 + $0x368] sm:$0xff]
          %v714 = vld [vmem:[%s279 + $0x370] sm:$0xff]
          %v715 = vld [vmem:[%s279 + $0x378] sm:$0xff]
          %v716 = vld [vmem:[%s279 + $0x380] sm:$0xff]
          %v717 = vld [vmem:[%s279 + $0x388] sm:$0xff]
          %v718 = vld [vmem:[%s279 + $0x390] sm:$0xff]
          %v719 = vld [vmem:[%s279 + $0x398] sm:$0xff]
          %v720 = vld [vmem:[%s279 + $0x3a0] sm:$0xff]
          %v721 = vld [vmem:[%s279 + $0x3a8] sm:$0xff]
          %v722 = vld [vmem:[%s279 + $0x3b0] sm:$0xff]
          %v723 = vld [vmem:[%s279 + $0x3b8] sm:$0xff]
          %v724 = vld [vmem:[%s279 + $0x3c0] sm:$0xff]
          %v725 = vld [vmem:[%s279 + $0x3c8] sm:$0xff]
          %v726 = vld [vmem:[%s279 + $0x3d0] sm:$0xff]
          %v727 = vld [vmem:[%s279 + $0x3d8] sm:$0xff]
          %v728 = vld [vmem:[%s279 + $0x3e0] sm:$0xff]
          %v729 = vld [vmem:[%s279 + $0x3e8] sm:$0xff]
          %v730 = vld [vmem:[%s279 + $0x3f0] sm:$0xff]
          %v731 = vld [vmem:[%s279 + $0x3f8] sm:$0xff]
          %v732 = vld [vmem:[%s279 + $0x400] sm:$0xff]
          %v733 = vld [vmem:[%s279 + $0x408] sm:$0xff]
          %v734 = vld [vmem:[%s279 + $0x410] sm:$0xff]
          %v735 = vld [vmem:[%s279 + $0x418] sm:$0xff]
          %v736 = vld [vmem:[%s279 + $0x420] sm:$0xff]
          %v737 = vld [vmem:[%s279 + $0x428] sm:$0xff]
          %v738 = vld [vmem:[%s279 + $0x430] sm:$0xff]
          %v739 = vld [vmem:[%s279 + $0x438] sm:$0xff]
          %v740 = vld [vmem:[%s279 + $0x440] sm:$0xff]
          %v741 = vld [vmem:[%s279 + $0x448] sm:$0xff]
          %v742 = vld [vmem:[%s279 + $0x450] sm:$0xff]
          %v743 = vld [vmem:[%s279 + $0x458] sm:$0xff]
          %v744 = vld [vmem:[%s279 + $0x460] sm:$0xff]
          %v745 = vld [vmem:[%s279 + $0x468] sm:$0xff]
          %v746 = vld [vmem:[%s279 + $0x470] sm:$0xff]
          %v747 = vld [vmem:[%s279 + $0x478] sm:$0xff]
          %v748 = vld [vmem:[%s279 + $0x480] sm:$0xff]
          %v749 = vld [vmem:[%s279 + $0x488] sm:$0xff]
          %v750 = vld [vmem:[%s279 + $0x490] sm:$0xff]
          %v751 = vld [vmem:[%s279 + $0x498] sm:$0xff]
          %v752 = vld [vmem:[%s279 + $0x4a0] sm:$0xff]
          %v753 = vld [vmem:[%s279 + $0x4a8] sm:$0xff]
          %v754 = vld [vmem:[%s279 + $0x4b0] sm:$0xff]
          %v755 = vld [vmem:[%s279 + $0x4b8] sm:$0xff]
          %v756 = vld [vmem:[%s279 + $0x4c0] sm:$0xff]
          %v757 = vld [vmem:[%s279 + $0x4c8] sm:$0xff]
          %v758 = vld [vmem:[%s279 + $0x4d0] sm:$0xff]
          %v759 = vld [vmem:[%s279 + $0x4d8] sm:$0xff]
          %v760 = vld [vmem:[%s279 + $0x4e0] sm:$0xff]
          %v761 = vld [vmem:[%s279 + $0x4e8] sm:$0xff]
          %v762 = vld [vmem:[%s279 + $0x4f0] sm:$0xff]
          %v763 = vld [vmem:[%s279 + $0x4f8] sm:$0xff]
          %v764 = vld [vmem:[%s279 + $0x500] sm:$0xff]
          %v765 = vld [vmem:[%s279 + $0x508] sm:$0xff]
          %v766 = vld [vmem:[%s279 + $0x510] sm:$0xff]
          %v767 = vld [vmem:[%s279 + $0x518] sm:$0xff]
          %v768 = vld [vmem:[%s279 + $0x520] sm:$0xff]
          %v769 = vld [vmem:[%s279 + $0x528] sm:$0xff]
          %v770 = vld [vmem:[%s279 + $0x530] sm:$0xff]
          %v771 = vld [vmem:[%s279 + $0x538] sm:$0xff]
          %v772 = vld [vmem:[%s279 + $0x540] sm:$0xff]
          %v773 = vld [vmem:[%s279 + $0x548] sm:$0xff]
          %v774 = vld [vmem:[%s279 + $0x550] sm:$0xff]
          %v775 = vld [vmem:[%s279 + $0x558] sm:$0xff]
          %v776 = vld [vmem:[%s279 + $0x560] sm:$0xff]
          %v777 = vld [vmem:[%s279 + $0x568] sm:$0xff]
          %v778 = vld [vmem:[%s279 + $0x570] sm:$0xff]
          %v779 = vld [vmem:[%s279 + $0x578] sm:$0xff]
          %v780 = vld [vmem:[%s279 + $0x580] sm:$0xff]
          %v781 = vld [vmem:[%s279 + $0x588] sm:$0xff]
          %v782 = vld [vmem:[%s279 + $0x590] sm:$0xff]
          %v783 = vld [vmem:[%s279 + $0x598] sm:$0xff]
          %v784 = vld [vmem:[%s279 + $0x5a0] sm:$0xff]
          %v785 = vld [vmem:[%s279 + $0x5a8] sm:$0xff]
          %v786 = vld [vmem:[%s279 + $0x5b0] sm:$0xff]
          %v787 = vld [vmem:[%s279 + $0x5b8] sm:$0xff]
          %v788 = vld [vmem:[%s279 + $0x5c0] sm:$0xff]
          %v789 = vld [vmem:[%s279 + $0x5c8] sm:$0xff]
          %v790 = vld [vmem:[%s279 + $0x5d0] sm:$0xff]
          %v791 = vld [vmem:[%s279 + $0x5d8] sm:$0xff]
          %v792 = vld [vmem:[%s279 + $0x5e0] sm:$0xff]
          %v793 = vld [vmem:[%s279 + $0x5e8] sm:$0xff]
          %v794 = vld [vmem:[%s279 + $0x5f0] sm:$0xff]
          %v795 = vld [vmem:[%s279 + $0x5f8] sm:$0xff]
          %v796 = vld [vmem:[%s279 + $0x600] sm:$0xff]
          %v797 = vld [vmem:[%s279 + $0x608] sm:$0xff]
          %v798 = vld [vmem:[%s279 + $0x610] sm:$0xff]
          %v799 = vld [vmem:[%s279 + $0x618] sm:$0xff]
          %v800 = vld [vmem:[%s279 + $0x620] sm:$0xff]
          %v801 = vld [vmem:[%s279 + $0x628] sm:$0xff]
          %v802 = vld [vmem:[%s279 + $0x630] sm:$0xff]
          %v803 = vld [vmem:[%s279 + $0x638] sm:$0xff]
          %v804 = vld [vmem:[%s279 + $0x640] sm:$0xff]
          %v805 = vld [vmem:[%s279 + $0x648] sm:$0xff]
          %v806 = vld [vmem:[%s279 + $0x650] sm:$0xff]
          %v807 = vld [vmem:[%s279 + $0x658] sm:$0xff]
          %v808 = vld [vmem:[%s279 + $0x660] sm:$0xff]
          %v809 = vld [vmem:[%s279 + $0x668] sm:$0xff]
          %v810 = vld [vmem:[%s279 + $0x670] sm:$0xff]
          %v811 = vld [vmem:[%s279 + $0x678] sm:$0xff]
          %v812 = vld [vmem:[%s279 + $0x680] sm:$0xff]
          %v813 = vld [vmem:[%s279 + $0x688] sm:$0xff]
          %v814 = vld [vmem:[%s279 + $0x690] sm:$0xff]
          %v815 = vld [vmem:[%s279 + $0x698] sm:$0xff]
          %v816 = vld [vmem:[%s279 + $0x6a0] sm:$0xff]
          %v817 = vld [vmem:[%s279 + $0x6a8] sm:$0xff]
          %v818 = vld [vmem:[%s279 + $0x6b0] sm:$0xff]
          %v819 = vld [vmem:[%s279 + $0x6b8] sm:$0xff]
          %v820 = vld [vmem:[%s279 + $0x6c0] sm:$0xff]
          %v821 = vld [vmem:[%s279 + $0x6c8] sm:$0xff]
          %v822 = vld [vmem:[%s279 + $0x6d0] sm:$0xff]
          %v823 = vld [vmem:[%s279 + $0x6d8] sm:$0xff]
          %v824 = vld [vmem:[%s279 + $0x6e0] sm:$0xff]
          %v825 = vld [vmem:[%s279 + $0x6e8] sm:$0xff]
          %v826 = vld [vmem:[%s279 + $0x6f0] sm:$0xff]
          %v827 = vld [vmem:[%s279 + $0x6f8] sm:$0xff]
          %v828 = vld [vmem:[%s279 + $0x700] sm:$0xff]
          %v829 = vld [vmem:[%s279 + $0x708] sm:$0xff]
          %v830 = vld [vmem:[%s279 + $0x710] sm:$0xff]
          %v831 = vld [vmem:[%s279 + $0x718] sm:$0xff]
          %v832 = vld [vmem:[%s279 + $0x720] sm:$0xff]
          %v833 = vld [vmem:[%s279 + $0x728] sm:$0xff]
          %v834 = vld [vmem:[%s279 + $0x730] sm:$0xff]
          %v835 = vld [vmem:[%s279 + $0x738] sm:$0xff]
          %v836 = vld [vmem:[%s279 + $0x740] sm:$0xff]
          %v837 = vld [vmem:[%s279 + $0x748] sm:$0xff]
          %v838 = vld [vmem:[%s279 + $0x750] sm:$0xff]
          %v839 = vld [vmem:[%s279 + $0x758] sm:$0xff]
          %v840 = vld [vmem:[%s279 + $0x760] sm:$0xff]
          %v841 = vld [vmem:[%s279 + $0x768] sm:$0xff]
          %v842 = vld [vmem:[%s279 + $0x770] sm:$0xff]
          %v843 = vld [vmem:[%s279 + $0x778] sm:$0xff]
          %v844 = vld [vmem:[%s279 + $0x780] sm:$0xff]
          %v845 = vld [vmem:[%s279 + $0x788] sm:$0xff]
          %v846 = vld [vmem:[%s279 + $0x790] sm:$0xff]
          %v847 = vld [vmem:[%s279 + $0x798] sm:$0xff]
          %v848 = vld [vmem:[%s279 + $0x7a0] sm:$0xff]
          %v849 = vld [vmem:[%s279 + $0x7a8] sm:$0xff]
          %v850 = vld [vmem:[%s279 + $0x7b0] sm:$0xff]
          %v851 = vld [vmem:[%s279 + $0x7b8] sm:$0xff]
          %v852 = vld [vmem:[%s279 + $0x7c0] sm:$0xff]
          %v853 = vld [vmem:[%s279 + $0x7c8] sm:$0xff]
          %v854 = vld [vmem:[%s279 + $0x7d0] sm:$0xff]
          %v855 = vld [vmem:[%s279 + $0x7d8] sm:$0xff]
          %v856 = vld [vmem:[%s279 + $0x7e0] sm:$0xff]
          %v857 = vld [vmem:[%s279 + $0x7e8] sm:$0xff]
          %v858 = vld [vmem:[%s279 + $0x7f0] sm:$0xff]
          %v859 = vld [vmem:[%s279 + $0x7f8] sm:$0xff]
          %v860 = vld [vmem:[%s279 + $0x800] sm:$0xff]
          %v861 = vld [vmem:[%s279 + $0x808] sm:$0xff]
          %v862 = vld [vmem:[%s279 + $0x810] sm:$0xff]
          %v863 = vld [vmem:[%s279 + $0x818] sm:$0xff]
          %v864 = vld [vmem:[%s279 + $0x820] sm:$0xff]
          %v865 = vld [vmem:[%s279 + $0x828] sm:$0xff]
          %v866 = vld [vmem:[%s279 + $0x830] sm:$0xff]
          %v867 = vld [vmem:[%s279 + $0x838] sm:$0xff]
          %v868 = vld [vmem:[%s279 + $0x840] sm:$0xff]
          %v869 = vld [vmem:[%s279 + $0x848] sm:$0xff]
          %v870 = vld [vmem:[%s279 + $0x850] sm:$0xff]
          %v871 = vld [vmem:[%s279 + $0x858] sm:$0xff]
          %v872 = vld [vmem:[%s279 + $0x860] sm:$0xff]
          %v873 = vld [vmem:[%s279 + $0x868] sm:$0xff]
          %v874 = vld [vmem:[%s279 + $0x870] sm:$0xff]
          %v875 = vld [vmem:[%s279 + $0x878] sm:$0xff]
          %v876 = vld [vmem:[%s279 + $0x880] sm:$0xff]
          %v877 = vld [vmem:[%s279 + $0x888] sm:$0xff]
          %v878 = vld [vmem:[%s279 + $0x890] sm:$0xff]
          %v879 = vld [vmem:[%s279 + $0x898] sm:$0xff]
          %v880 = vld [vmem:[%s279 + $0x8a0] sm:$0xff]
          %v881 = vld [vmem:[%s279 + $0x8a8] sm:$0xff]
          %v882 = vld [vmem:[%s279 + $0x8b0] sm:$0xff]
          %v883 = vld [vmem:[%s279 + $0x8b8] sm:$0xff]
          %v884 = vld [vmem:[%s279 + $0x8c0] sm:$0xff]
          %v885 = vld [vmem:[%s279 + $0x8c8] sm:$0xff]
          %v886 = vld [vmem:[%s279 + $0x8d0] sm:$0xff]
          %v887 = vld [vmem:[%s279 + $0x8d8] sm:$0xff]
          %v888 = vld [vmem:[%s279 + $0x8e0] sm:$0xff]
          %v889 = vld [vmem:[%s279 + $0x8e8] sm:$0xff]
          %v890 = vld [vmem:[%s279 + $0x8f0] sm:$0xff]
          %v891 = vld [vmem:[%s279 + $0x8f8] sm:$0xff]
          %v892 = vld [vmem:[%s279 + $0x900] sm:$0xff]
          %v893 = vld [vmem:[%s279 + $0x908] sm:$0xff]
          %v894 = vld [vmem:[%s279 + $0x910] sm:$0xff]
          %v895 = vld [vmem:[%s279 + $0x918] sm:$0xff]
          %v896 = vld [vmem:[%s279 + $0x920] sm:$0xff]
          %v897 = vld [vmem:[%s279 + $0x928] sm:$0xff]
          %v898 = vld [vmem:[%s279 + $0x930] sm:$0xff]
          %v899 = vld [vmem:[%s279 + $0x938] sm:$0xff]
          %v900 = vld [vmem:[%s279 + $0x940] sm:$0xff]
          %v901 = vld [vmem:[%s279 + $0x948] sm:$0xff]
          %v902 = vld [vmem:[%s279 + $0x950] sm:$0xff]
          %v903 = vld [vmem:[%s279 + $0x958] sm:$0xff]
          %v904 = vld [vmem:[%s279 + $0x960] sm:$0xff]
          %v905 = vld [vmem:[%s279 + $0x968] sm:$0xff]
          %v906 = vld [vmem:[%s279 + $0x970] sm:$0xff]
          %v907 = vld [vmem:[%s279 + $0x978] sm:$0xff]
          %v908 = vld [vmem:[%s279 + $0x980] sm:$0xff]
          %v909 = vld [vmem:[%s279 + $0x988] sm:$0xff]
          %v910 = vld [vmem:[%s279 + $0x990] sm:$0xff]
          %v911 = vld [vmem:[%s279 + $0x998] sm:$0xff]
          %v912 = vld [vmem:[%s279 + $0x9a0] sm:$0xff]
          %v913 = vld [vmem:[%s279 + $0x9a8] sm:$0xff]
          %v914 = vld [vmem:[%s279 + $0x9b0] sm:$0xff]
          %v915 = vld [vmem:[%s279 + $0x9b8] sm:$0xff]
          %v916 = vld [vmem:[%s279 + $0x9c0] sm:$0xff]
          %v917 = vld [vmem:[%s279 + $0x9c8] sm:$0xff]
          %v918 = vld [vmem:[%s279 + $0x9d0] sm:$0xff]
          %v919 = vld [vmem:[%s279 + $0x9d8] sm:$0xff]
          %v920 = vld [vmem:[%s279 + $0x9e0] sm:$0xff]
          %v921 = vld [vmem:[%s279 + $0x9e8] sm:$0xff]
          %v922 = vld [vmem:[%s279 + $0x9f0] sm:$0xff]
          %v923 = vld [vmem:[%s279 + $0x9f8] sm:$0xff]
          %v924 = vld [vmem:[%s279 + $0xa00] sm:$0xff]
          %v925 = vld [vmem:[%s279 + $0xa08] sm:$0xff]
          %v926 = vld [vmem:[%s279 + $0xa10] sm:$0xff]
          %v927 = vld [vmem:[%s279 + $0xa18] sm:$0xff]
          %v928 = vld [vmem:[%s279 + $0xa20] sm:$0xff]
          %v929 = vld [vmem:[%s279 + $0xa28] sm:$0xff]
          %v930 = vld [vmem:[%s279 + $0xa30] sm:$0xff]
          %v931 = vld [vmem:[%s279 + $0xa38] sm:$0xff]
          %v932 = vld [vmem:[%s279 + $0xa40] sm:$0xff]
          %v933 = vld [vmem:[%s279 + $0xa48] sm:$0xff]
          %v934 = vld [vmem:[%s279 + $0xa50] sm:$0xff]
          %v935 = vld [vmem:[%s279 + $0xa58] sm:$0xff]
          %v936 = vld [vmem:[%s279 + $0xa60] sm:$0xff]
          %v937 = vld [vmem:[%s279 + $0xa68] sm:$0xff]
          %v938 = vld [vmem:[%s279 + $0xa70] sm:$0xff]
          %v939 = vld [vmem:[%s279 + $0xa78] sm:$0xff]
          %v940 = vld [vmem:[%s279 + $0xa80] sm:$0xff]
          %v941 = vld [vmem:[%s279 + $0xa88] sm:$0xff]
          %v942 = vld [vmem:[%s279 + $0xa90] sm:$0xff]
          %v943 = vld [vmem:[%s279 + $0xa98] sm:$0xff]
          %v944 = vld [vmem:[%s279 + $0xaa0] sm:$0xff]
          %v945 = vld [vmem:[%s279 + $0xaa8] sm:$0xff]
          %v946 = vld [vmem:[%s279 + $0xab0] sm:$0xff]
          %v947 = vld [vmem:[%s279 + $0xab8] sm:$0xff]
          %v948 = vld [vmem:[%s279 + $0xac0] sm:$0xff]
          %v949 = vld [vmem:[%s279 + $0xac8] sm:$0xff]
          %v950 = vld [vmem:[%s279 + $0xad0] sm:$0xff]
          %v951 = vld [vmem:[%s279 + $0xad8] sm:$0xff]
          %v952 = vld [vmem:[%s279 + $0xae0] sm:$0xff]
          %v953 = vld [vmem:[%s279 + $0xae8] sm:$0xff]
          %v954 = vld [vmem:[%s279 + $0xaf0] sm:$0xff]
          %v955 = vld [vmem:[%s279 + $0xaf8] sm:$0xff]
          %v956 = vld [vmem:[%s279 + $0xb00] sm:$0xff]
          %v957 = vld [vmem:[%s279 + $0xb08] sm:$0xff]
          %v958 = vld [vmem:[%s279 + $0xb10] sm:$0xff]
          %v959 = vld [vmem:[%s279 + $0xb18] sm:$0xff]
          %v960 = vld [vmem:[%s279 + $0xb20] sm:$0xff]
          %v961 = vld [vmem:[%s279 + $0xb28] sm:$0xff]
          %v962 = vld [vmem:[%s279 + $0xb30] sm:$0xff]
          %v963 = vld [vmem:[%s279 + $0xb38] sm:$0xff]
          %v964 = vld [vmem:[%s279 + $0xb40] sm:$0xff]
          %v965 = vld [vmem:[%s279 + $0xb48] sm:$0xff]
          %v966 = vld [vmem:[%s279 + $0xb50] sm:$0xff]
          %v967 = vld [vmem:[%s279 + $0xb58] sm:$0xff]
          %v968 = vld [vmem:[%s279 + $0xb60] sm:$0xff]
          %v969 = vld [vmem:[%s279 + $0xb68] sm:$0xff]
          %v970 = vld [vmem:[%s279 + $0xb70] sm:$0xff]
          %v971 = vld [vmem:[%s279 + $0xb78] sm:$0xff]
          %v972 = vld [vmem:[%s279 + $0xb80] sm:$0xff]
          %v973 = vld [vmem:[%s279 + $0xb88] sm:$0xff]
          %v974 = vld [vmem:[%s279 + $0xb90] sm:$0xff]
          %v975 = vld [vmem:[%s279 + $0xb98] sm:$0xff]
          %v976 = vld [vmem:[%s279 + $0xba0] sm:$0xff]
          %v977 = vld [vmem:[%s279 + $0xba8] sm:$0xff]
          %v978 = vld [vmem:[%s279 + $0xbb0] sm:$0xff]
          %v979 = vld [vmem:[%s279 + $0xbb8] sm:$0xff]
          %v980 = vld [vmem:[%s279 + $0xbc0] sm:$0xff]
          %v981 = vld [vmem:[%s279 + $0xbc8] sm:$0xff]
          %v982 = vld [vmem:[%s279 + $0xbd0] sm:$0xff]
          %v983 = vld [vmem:[%s279 + $0xbd8] sm:$0xff]
          %v984 = vld [vmem:[%s279 + $0xbe0] sm:$0xff]
          %v985 = vld [vmem:[%s279 + $0xbe8] sm:$0xff]
          %v986 = vld [vmem:[%s279 + $0xbf0] sm:$0xff]
          %v987 = vld [vmem:[%s279 + $0xbf8] sm:$0xff]
          %v988 = vld [vmem:[%s279 + $0xc00] sm:$0xff]
          %v989 = vld [vmem:[%s279 + $0xc08] sm:$0xff]
          %v990 = vld [vmem:[%s279 + $0xc10] sm:$0xff]
          %v991 = vld [vmem:[%s279 + $0xc18] sm:$0xff]
          %v992 = vld [vmem:[%s279 + $0xc20] sm:$0xff]
          %v993 = vld [vmem:[%s279 + $0xc28] sm:$0xff]
          %v994 = vld [vmem:[%s279 + $0xc30] sm:$0xff]
          %v995 = vld [vmem:[%s279 + $0xc38] sm:$0xff]
          %v996 = vld [vmem:[%s279 + $0xc40] sm:$0xff]
          %v997 = vld [vmem:[%s279 + $0xc48] sm:$0xff]
          %v998 = vld [vmem:[%s279 + $0xc50] sm:$0xff]
          %v999 = vld [vmem:[%s279 + $0xc58] sm:$0xff]
          %v1000 = vld [vmem:[%s279 + $0xc60] sm:$0xff]
          %v1001 = vld [vmem:[%s279 + $0xc68] sm:$0xff]
          %v1002 = vld [vmem:[%s279 + $0xc70] sm:$0xff]
          %v1003 = vld [vmem:[%s279 + $0xc78] sm:$0xff]
          %v1004 = vld [vmem:[%s279 + $0xc80] sm:$0xff]
          %v1005 = vld [vmem:[%s279 + $0xc88] sm:$0xff]
          %v1006 = vld [vmem:[%s279 + $0xc90] sm:$0xff]
          %v1007 = vld [vmem:[%s279 + $0xc98] sm:$0xff]
          %v1008 = vld [vmem:[%s279 + $0xca0] sm:$0xff]
          %v1009 = vld [vmem:[%s279 + $0xca8] sm:$0xff]
          %v1010 = vld [vmem:[%s279 + $0xcb0] sm:$0xff]
          %v1011 = vld [vmem:[%s279 + $0xcb8] sm:$0xff]
          %v1012 = vld [vmem:[%s279 + $0xcc0] sm:$0xff]
          %v1013 = vld [vmem:[%s279 + $0xcc8] sm:$0xff]
          %v1014 = vld [vmem:[%s279 + $0xcd0] sm:$0xff]
          %v1015 = vld [vmem:[%s279 + $0xcd8] sm:$0xff]
          %v1016 = vld [vmem:[%s279 + $0xce0] sm:$0xff]
          %v1017 = vld [vmem:[%s279 + $0xce8] sm:$0xff]
          %v1018 = vld [vmem:[%s279 + $0xcf0] sm:$0xff]
          %v1019 = vld [vmem:[%s279 + $0xcf8] sm:$0xff]
          %v1020 = vld [vmem:[%s279 + $0xd00] sm:$0xff]
          %v1021 = vld [vmem:[%s279 + $0xd08] sm:$0xff]
          %v1022 = vld [vmem:[%s279 + $0xd10] sm:$0xff]
          %v1023 = vld [vmem:[%s279 + $0xd18] sm:$0xff]
          %v1024 = vld [vmem:[%s279 + $0xd20] sm:$0xff]
          %v1025 = vld [vmem:[%s279 + $0xd28] sm:$0xff]
          %v1026 = vld [vmem:[%s279 + $0xd30] sm:$0xff]
          %v1027 = vld [vmem:[%s279 + $0xd38] sm:$0xff]
          %v1028 = vld [vmem:[%s279 + $0xd40] sm:$0xff]
          %v1029 = vld [vmem:[%s279 + $0xd48] sm:$0xff]
          %v1030 = vld [vmem:[%s279 + $0xd50] sm:$0xff]
          %v1031 = vld [vmem:[%s279 + $0xd58] sm:$0xff]
          %v1032 = vld [vmem:[%s279 + $0xd60] sm:$0xff]
          %v1033 = vld [vmem:[%s279 + $0xd68] sm:$0xff]
          %v1034 = vld [vmem:[%s279 + $0xd70] sm:$0xff]
          %v1035 = vld [vmem:[%s279 + $0xd78] sm:$0xff]
          %v1036 = vld [vmem:[%s279 + $0xd80] sm:$0xff]
          %v1037 = vld [vmem:[%s279 + $0xd88] sm:$0xff]
          %v1038 = vld [vmem:[%s279 + $0xd90] sm:$0xff]
          %v1039 = vld [vmem:[%s279 + $0xd98] sm:$0xff]
          %v1040 = vld [vmem:[%s279 + $0xda0] sm:$0xff]
          %v1041 = vld [vmem:[%s279 + $0xda8] sm:$0xff]
          %v1042 = vld [vmem:[%s279 + $0xdb0] sm:$0xff]
          %v1043 = vld [vmem:[%s279 + $0xdb8] sm:$0xff]
          %v1044 = vld [vmem:[%s279 + $0xdc0] sm:$0xff]
          %v1045 = vld [vmem:[%s279 + $0xdc8] sm:$0xff]
          %v1046 = vld [vmem:[%s279 + $0xdd0] sm:$0xff]
          %v1047 = vld [vmem:[%s279 + $0xdd8] sm:$0xff]
          %v1048 = vld [vmem:[%s279 + $0xde0] sm:$0xff]
          %v1049 = vld [vmem:[%s279 + $0xde8] sm:$0xff]
          %v1050 = vld [vmem:[%s279 + $0xdf0] sm:$0xff]
          %v1051 = vld [vmem:[%s279 + $0xdf8] sm:$0xff]
          %v1052 = vld [vmem:[%s279 + $0xe00] sm:$0xff]
          %v1053 = vld [vmem:[%s279 + $0xe08] sm:$0xff]
          %v1054 = vld [vmem:[%s279 + $0xe10] sm:$0xff]
          %v1055 = vld [vmem:[%s279 + $0xe18] sm:$0xff]
          %v1056 = vld [vmem:[%s279 + $0xe20] sm:$0xff]
          %v1057 = vld [vmem:[%s279 + $0xe28] sm:$0xff]
          %v1058 = vld [vmem:[%s279 + $0xe30] sm:$0xff]
          %v1059 = vld [vmem:[%s279 + $0xe38] sm:$0xff]
          %v1060 = vld [vmem:[%s279 + $0xe40] sm:$0xff]
          %v1061 = vld [vmem:[%s279 + $0xe48] sm:$0xff]
          %v1062 = vld [vmem:[%s279 + $0xe50] sm:$0xff]
          %v1063 = vld [vmem:[%s279 + $0xe58] sm:$0xff]
          %v1064 = vld [vmem:[%s279 + $0xe60] sm:$0xff]
          %v1065 = vld [vmem:[%s279 + $0xe68] sm:$0xff]
          %v1066 = vld [vmem:[%s279 + $0xe70] sm:$0xff]
          %v1067 = vld [vmem:[%s279 + $0xe78] sm:$0xff]
          %v1068 = vld [vmem:[%s279 + $0xe80] sm:$0xff]
          %v1069 = vld [vmem:[%s279 + $0xe88] sm:$0xff]
          %v1070 = vld [vmem:[%s279 + $0xe90] sm:$0xff]
          %v1071 = vld [vmem:[%s279 + $0xe98] sm:$0xff]
          %v1072 = vld [vmem:[%s279 + $0xea0] sm:$0xff]
          %v1073 = vld [vmem:[%s279 + $0xea8] sm:$0xff]
          %v1074 = vld [vmem:[%s279 + $0xeb0] sm:$0xff]
          %v1075 = vld [vmem:[%s279 + $0xeb8] sm:$0xff]
          %v1076 = vld [vmem:[%s279 + $0xec0] sm:$0xff]
          %v1077 = vld [vmem:[%s279 + $0xec8] sm:$0xff]
          %v1078 = vld [vmem:[%s279 + $0xed0] sm:$0xff]
          %v1079 = vld [vmem:[%s279 + $0xed8] sm:$0xff]
          %v1080 = vld [vmem:[%s279 + $0xee0] sm:$0xff]
          %v1081 = vld [vmem:[%s279 + $0xee8] sm:$0xff]
          %v1082 = vld [vmem:[%s279 + $0xef0] sm:$0xff]
          %v1083 = vld [vmem:[%s279 + $0xef8] sm:$0xff]
          %v1084 = vld [vmem:[%s279 + $0xf00] sm:$0xff]
          %v1085 = vld [vmem:[%s279 + $0xf08] sm:$0xff]
          %v1086 = vld [vmem:[%s279 + $0xf10] sm:$0xff]
          %v1087 = vld [vmem:[%s279 + $0xf18] sm:$0xff]
          %v1088 = vld [vmem:[%s279 + $0xf20] sm:$0xff]
          %v1089 = vld [vmem:[%s279 + $0xf28] sm:$0xff]
          %v1090 = vld [vmem:[%s279 + $0xf30] sm:$0xff]
          %v1091 = vld [vmem:[%s279 + $0xf38] sm:$0xff]
          %v1092 = vld [vmem:[%s279 + $0xf40] sm:$0xff]
          %v1093 = vld [vmem:[%s279 + $0xf48] sm:$0xff]
          %v1094 = vld [vmem:[%s279 + $0xf50] sm:$0xff]
          %v1095 = vld [vmem:[%s279 + $0xf58] sm:$0xff]
          %v1096 = vld [vmem:[%s279 + $0xf60] sm:$0xff]
          %v1097 = vld [vmem:[%s279 + $0xf68] sm:$0xff]
          %v1098 = vld [vmem:[%s279 + $0xf70] sm:$0xff]
          %v1099 = vld [vmem:[%s279 + $0xf78] sm:$0xff]
          %v1100 = vld [vmem:[%s279 + $0xf80] sm:$0xff]
          %v1101 = vld [vmem:[%s279 + $0xf88] sm:$0xff]
          %v1102 = vld [vmem:[%s279 + $0xf90] sm:$0xff]
          %v1103 = vld [vmem:[%s279 + $0xf98] sm:$0xff]
          %v1104 = vld [vmem:[%s279 + $0xfa0] sm:$0xff]
          %v1105 = vld [vmem:[%s279 + $0xfa8] sm:$0xff]
          %v1106 = vld [vmem:[%s279 + $0xfb0] sm:$0xff]
          %v1107 = vld [vmem:[%s279 + $0xfb8] sm:$0xff]
          %v1108 = vld [vmem:[%s279 + $0xfc0] sm:$0xff]
          %v1109 = vld [vmem:[%s279 + $0xfc8] sm:$0xff]
          %v1110 = vld [vmem:[%s279 + $0xfd0] sm:$0xff]
          %v1111 = vld [vmem:[%s279 + $0xfd8] sm:$0xff]
          %v1112 = vld [vmem:[%s279 + $0xfe0] sm:$0xff]
          %v1113 = vld [vmem:[%s279 + $0xfe8] sm:$0xff]
          %v1114 = vld [vmem:[%s279 + $0xff0] sm:$0xff]
          %v1115 = vld [vmem:[%s279 + $0xff8] sm:$0xff]
          %v1116 = vld [vmem:[%s288] sm:$0xf]
          %v1117 = vld [vmem:[%s288 + $0x4] sm:$0xf]
          %v1118 = vld [vmem:[%s288 + $0x8] sm:$0xf]
          %v1119 = vld [vmem:[%s288 + $0xc] sm:$0xf]
          %v1120 = vld [vmem:[%s288 + $0x10] sm:$0xf]
          %v1121 = vld [vmem:[%s288 + $0x14] sm:$0xf]
          %v1122 = vld [vmem:[%s288 + $0x18] sm:$0xf]
          %v1123 = vld [vmem:[%s288 + $0x1c] sm:$0xf]
          %v1124 = vld [vmem:[%s288 + $0x20] sm:$0xf]
          %v1125 = vld [vmem:[%s288 + $0x24] sm:$0xf]
          %v1126 = vld [vmem:[%s288 + $0x28] sm:$0xf]
          %v1127 = vld [vmem:[%s288 + $0x2c] sm:$0xf]
          %v1128 = vld [vmem:[%s288 + $0x30] sm:$0xf]
          %v1129 = vld [vmem:[%s288 + $0x34] sm:$0xf]
          %v1130 = vld [vmem:[%s288 + $0x38] sm:$0xf]
          %v1131 = vld [vmem:[%s288 + $0x3c] sm:$0xf]
          %v1132 = vld [vmem:[%s288 + $0x40] sm:$0xf]
          %v1133 = vld [vmem:[%s288 + $0x44] sm:$0xf]
          %v1134 = vld [vmem:[%s288 + $0x48] sm:$0xf]
          %v1135 = vld [vmem:[%s288 + $0x4c] sm:$0xf]
          %v1136 = vld [vmem:[%s288 + $0x50] sm:$0xf]
          %v1137 = vld [vmem:[%s288 + $0x54] sm:$0xf]
          %v1138 = vld [vmem:[%s288 + $0x58] sm:$0xf]
          %v1139 = vld [vmem:[%s288 + $0x5c] sm:$0xf]
          %v1140 = vld [vmem:[%s288 + $0x60] sm:$0xf]
          %v1141 = vld [vmem:[%s288 + $0x64] sm:$0xf]
          %v1142 = vld [vmem:[%s288 + $0x68] sm:$0xf]
          %v1143 = vld [vmem:[%s288 + $0x6c] sm:$0xf]
          %v1144 = vld [vmem:[%s288 + $0x70] sm:$0xf]
          %v1145 = vld [vmem:[%s288 + $0x74] sm:$0xf]
          %v1146 = vld [vmem:[%s288 + $0x78] sm:$0xf]
          %v1147 = vld [vmem:[%s288 + $0x7c] sm:$0xf]
          %v1148 = vld [vmem:[%s288 + $0x80] sm:$0xf]
          %v1149 = vld [vmem:[%s288 + $0x84] sm:$0xf]
          %v1150 = vld [vmem:[%s288 + $0x88] sm:$0xf]
          %v1151 = vld [vmem:[%s288 + $0x8c] sm:$0xf]
          %v1152 = vld [vmem:[%s288 + $0x90] sm:$0xf]
          %v1153 = vld [vmem:[%s288 + $0x94] sm:$0xf]
          %v1154 = vld [vmem:[%s288 + $0x98] sm:$0xf]
          %v1155 = vld [vmem:[%s288 + $0x9c] sm:$0xf]
          %v1156 = vld [vmem:[%s288 + $0xa0] sm:$0xf]
          %v1157 = vld [vmem:[%s288 + $0xa4] sm:$0xf]
          %v1158 = vld [vmem:[%s288 + $0xa8] sm:$0xf]
          %v1159 = vld [vmem:[%s288 + $0xac] sm:$0xf]
          %v1160 = vld [vmem:[%s288 + $0xb0] sm:$0xf]
          %v1161 = vld [vmem:[%s288 + $0xb4] sm:$0xf]
          %v1162 = vld [vmem:[%s288 + $0xb8] sm:$0xf]
          %v1163 = vld [vmem:[%s288 + $0xbc] sm:$0xf]
          %v1164 = vld [vmem:[%s288 + $0xc0] sm:$0xf]
          %v1165 = vld [vmem:[%s288 + $0xc4] sm:$0xf]
          %v1166 = vld [vmem:[%s288 + $0xc8] sm:$0xf]
          %v1167 = vld [vmem:[%s288 + $0xcc] sm:$0xf]
          %v1168 = vld [vmem:[%s288 + $0xd0] sm:$0xf]
          %v1169 = vld [vmem:[%s288 + $0xd4] sm:$0xf]
          %v1170 = vld [vmem:[%s288 + $0xd8] sm:$0xf]
          %v1171 = vld [vmem:[%s288 + $0xdc] sm:$0xf]
          %v1172 = vld [vmem:[%s288 + $0xe0] sm:$0xf]
          %v1173 = vld [vmem:[%s288 + $0xe4] sm:$0xf]
          %v1174 = vld [vmem:[%s288 + $0xe8] sm:$0xf]
          %v1175 = vld [vmem:[%s288 + $0xec] sm:$0xf]
          %v1176 = vld [vmem:[%s288 + $0xf0] sm:$0xf]
          %v1177 = vld [vmem:[%s288 + $0xf4] sm:$0xf]
          %v1178 = vld [vmem:[%s288 + $0xf8] sm:$0xf]
          %v1179 = vld [vmem:[%s288 + $0xfc] sm:$0xf]
          %v1180 = vld [vmem:[%s288 + $0x100] sm:$0xf]
          %v1181 = vld [vmem:[%s288 + $0x104] sm:$0xf]
          %v1182 = vld [vmem:[%s288 + $0x108] sm:$0xf]
          %v1183 = vld [vmem:[%s288 + $0x10c] sm:$0xf]
          %v1184 = vld [vmem:[%s288 + $0x110] sm:$0xf]
          %v1185 = vld [vmem:[%s288 + $0x114] sm:$0xf]
          %v1186 = vld [vmem:[%s288 + $0x118] sm:$0xf]
          %v1187 = vld [vmem:[%s288 + $0x11c] sm:$0xf]
          %v1188 = vld [vmem:[%s288 + $0x120] sm:$0xf]
          %v1189 = vld [vmem:[%s288 + $0x124] sm:$0xf]
          %v1190 = vld [vmem:[%s288 + $0x128] sm:$0xf]
          %v1191 = vld [vmem:[%s288 + $0x12c] sm:$0xf]
          %v1192 = vld [vmem:[%s288 + $0x130] sm:$0xf]
          %v1193 = vld [vmem:[%s288 + $0x134] sm:$0xf]
          %v1194 = vld [vmem:[%s288 + $0x138] sm:$0xf]
          %v1195 = vld [vmem:[%s288 + $0x13c] sm:$0xf]
          %v1196 = vld [vmem:[%s288 + $0x140] sm:$0xf]
          %v1197 = vld [vmem:[%s288 + $0x144] sm:$0xf]
          %v1198 = vld [vmem:[%s288 + $0x148] sm:$0xf]
          %v1199 = vld [vmem:[%s288 + $0x14c] sm:$0xf]
          %v1200 = vld [vmem:[%s288 + $0x150] sm:$0xf]
          %v1201 = vld [vmem:[%s288 + $0x154] sm:$0xf]
          %v1202 = vld [vmem:[%s288 + $0x158] sm:$0xf]
          %v1203 = vld [vmem:[%s288 + $0x15c] sm:$0xf]
          %v1204 = vld [vmem:[%s288 + $0x160] sm:$0xf]
          %v1205 = vld [vmem:[%s288 + $0x164] sm:$0xf]
          %v1206 = vld [vmem:[%s288 + $0x168] sm:$0xf]
          %v1207 = vld [vmem:[%s288 + $0x16c] sm:$0xf]
          %v1208 = vld [vmem:[%s288 + $0x170] sm:$0xf]
          %v1209 = vld [vmem:[%s288 + $0x174] sm:$0xf]
          %v1210 = vld [vmem:[%s288 + $0x178] sm:$0xf]
          %v1211 = vld [vmem:[%s288 + $0x17c] sm:$0xf]
          %v1212 = vld [vmem:[%s288 + $0x180] sm:$0xf]
          %v1213 = vld [vmem:[%s288 + $0x184] sm:$0xf]
          %v1214 = vld [vmem:[%s288 + $0x188] sm:$0xf]
          %v1215 = vld [vmem:[%s288 + $0x18c] sm:$0xf]
          %v1216 = vld [vmem:[%s288 + $0x190] sm:$0xf]
          %v1217 = vld [vmem:[%s288 + $0x194] sm:$0xf]
          %v1218 = vld [vmem:[%s288 + $0x198] sm:$0xf]
          %v1219 = vld [vmem:[%s288 + $0x19c] sm:$0xf]
          %v1220 = vld [vmem:[%s288 + $0x1a0] sm:$0xf]
          %v1221 = vld [vmem:[%s288 + $0x1a4] sm:$0xf]
          %v1222 = vld [vmem:[%s288 + $0x1a8] sm:$0xf]
          %v1223 = vld [vmem:[%s288 + $0x1ac] sm:$0xf]
          %v1224 = vld [vmem:[%s288 + $0x1b0] sm:$0xf]
          %v1225 = vld [vmem:[%s288 + $0x1b4] sm:$0xf]
          %v1226 = vld [vmem:[%s288 + $0x1b8] sm:$0xf]
          %v1227 = vld [vmem:[%s288 + $0x1bc] sm:$0xf]
          %v1228 = vld [vmem:[%s288 + $0x1c0] sm:$0xf]
          %v1229 = vld [vmem:[%s288 + $0x1c4] sm:$0xf]
          %v1230 = vld [vmem:[%s288 + $0x1c8] sm:$0xf]
          %v1231 = vld [vmem:[%s288 + $0x1cc] sm:$0xf]
          %v1232 = vld [vmem:[%s288 + $0x1d0] sm:$0xf]
          %v1233 = vld [vmem:[%s288 + $0x1d4] sm:$0xf]
          %v1234 = vld [vmem:[%s288 + $0x1d8] sm:$0xf]
          %v1235 = vld [vmem:[%s288 + $0x1dc] sm:$0xf]
          %v1236 = vld [vmem:[%s288 + $0x1e0] sm:$0xf]
          %v1237 = vld [vmem:[%s288 + $0x1e4] sm:$0xf]
          %v1238 = vld [vmem:[%s288 + $0x1e8] sm:$0xf]
          %v1239 = vld [vmem:[%s288 + $0x1ec] sm:$0xf]
          %v1240 = vld [vmem:[%s288 + $0x1f0] sm:$0xf]
          %v1241 = vld [vmem:[%s288 + $0x1f4] sm:$0xf]
          %v1242 = vld [vmem:[%s288 + $0x1f8] sm:$0xf]
          %v1243 = vld [vmem:[%s288 + $0x1fc] sm:$0xf]
          %v1756 = vunpack.c.l.b16 %v604
          %v1757 = vunpack.c.h.b16 %v604
          %v1758 = vunpack.c.l.b16 %v605
          %v1759 = vunpack.c.h.b16 %v605
          %v1760 = vunpack.c.l.b16 %v606
          %v1761 = vunpack.c.h.b16 %v606
          %v1762 = vunpack.c.l.b16 %v607
          %v1763 = vunpack.c.h.b16 %v607
          %v1764 = vunpack.c.l.b16 %v608
          %v1765 = vunpack.c.h.b16 %v608
          %v1766 = vunpack.c.l.b16 %v609
          %v1767 = vunpack.c.h.b16 %v609
          %v1768 = vunpack.c.l.b16 %v610
          %v1769 = vunpack.c.h.b16 %v610
          %v1770 = vunpack.c.l.b16 %v611
          %v1771 = vunpack.c.h.b16 %v611
          %v1772 = vunpack.c.l.b16 %v612
          %v1773 = vunpack.c.h.b16 %v612
          %v1774 = vunpack.c.l.b16 %v613
          %v1775 = vunpack.c.h.b16 %v613
          %v1776 = vunpack.c.l.b16 %v614
          %v1777 = vunpack.c.h.b16 %v614
          %v1778 = vunpack.c.l.b16 %v615
          %v1779 = vunpack.c.h.b16 %v615
          %v1780 = vunpack.c.l.b16 %v616
          %v1781 = vunpack.c.h.b16 %v616
          %v1782 = vunpack.c.l.b16 %v617
          %v1783 = vunpack.c.h.b16 %v617
          %v1784 = vunpack.c.l.b16 %v618
          %v1785 = vunpack.c.h.b16 %v618
          %v1786 = vunpack.c.l.b16 %v619
          %v1787 = vunpack.c.h.b16 %v619
          %v1788 = vunpack.c.l.b16 %v620
          %v1789 = vunpack.c.h.b16 %v620
          %v1790 = vunpack.c.l.b16 %v621
          %v1791 = vunpack.c.h.b16 %v621
          %v1792 = vunpack.c.l.b16 %v622
          %v1793 = vunpack.c.h.b16 %v622
          %v1794 = vunpack.c.l.b16 %v623
          %v1795 = vunpack.c.h.b16 %v623
          %v1796 = vunpack.c.l.b16 %v624
          %v1797 = vunpack.c.h.b16 %v624
          %v1798 = vunpack.c.l.b16 %v625
          %v1799 = vunpack.c.h.b16 %v625
          %v1800 = vunpack.c.l.b16 %v626
          %v1801 = vunpack.c.h.b16 %v626
          %v1802 = vunpack.c.l.b16 %v627
          %v1803 = vunpack.c.h.b16 %v627
          %v1804 = vunpack.c.l.b16 %v628
          %v1805 = vunpack.c.h.b16 %v628
          %v1806 = vunpack.c.l.b16 %v629
          %v1807 = vunpack.c.h.b16 %v629
          %v1808 = vunpack.c.l.b16 %v630
          %v1809 = vunpack.c.h.b16 %v630
          %v1810 = vunpack.c.l.b16 %v631
          %v1811 = vunpack.c.h.b16 %v631
          %v1812 = vunpack.c.l.b16 %v632
          %v1813 = vunpack.c.h.b16 %v632
          %v1814 = vunpack.c.l.b16 %v633
          %v1815 = vunpack.c.h.b16 %v633
          %v1816 = vunpack.c.l.b16 %v634
          %v1817 = vunpack.c.h.b16 %v634
          %v1818 = vunpack.c.l.b16 %v635
          %v1819 = vunpack.c.h.b16 %v635
          %v1820 = vunpack.c.l.b16 %v636
          %v1821 = vunpack.c.h.b16 %v636
          %v1822 = vunpack.c.l.b16 %v637
          %v1823 = vunpack.c.h.b16 %v637
          %v1824 = vunpack.c.l.b16 %v638
          %v1825 = vunpack.c.h.b16 %v638
          %v1826 = vunpack.c.l.b16 %v639
          %v1827 = vunpack.c.h.b16 %v639
          %v1828 = vunpack.c.l.b16 %v640
          %v1829 = vunpack.c.h.b16 %v640
          %v1830 = vunpack.c.l.b16 %v641
          %v1831 = vunpack.c.h.b16 %v641
          %v1832 = vunpack.c.l.b16 %v642
          %v1833 = vunpack.c.h.b16 %v642
          %v1834 = vunpack.c.l.b16 %v643
          %v1835 = vunpack.c.h.b16 %v643
          %v1836 = vunpack.c.l.b16 %v644
          %v1837 = vunpack.c.h.b16 %v644
          %v1838 = vunpack.c.l.b16 %v645
          %v1839 = vunpack.c.h.b16 %v645
          %v1840 = vunpack.c.l.b16 %v646
          %v1841 = vunpack.c.h.b16 %v646
          %v1842 = vunpack.c.l.b16 %v647
          %v1843 = vunpack.c.h.b16 %v647
          %v1844 = vunpack.c.l.b16 %v648
          %v1845 = vunpack.c.h.b16 %v648
          %v1846 = vunpack.c.l.b16 %v649
          %v1847 = vunpack.c.h.b16 %v649
          %v1848 = vunpack.c.l.b16 %v650
          %v1849 = vunpack.c.h.b16 %v650
          %v1850 = vunpack.c.l.b16 %v651
          %v1851 = vunpack.c.h.b16 %v651
          %v1852 = vunpack.c.l.b16 %v652
          %v1853 = vunpack.c.h.b16 %v652
          %v1854 = vunpack.c.l.b16 %v653
          %v1855 = vunpack.c.h.b16 %v653
          %v1856 = vunpack.c.l.b16 %v654
          %v1857 = vunpack.c.h.b16 %v654
          %v1858 = vunpack.c.l.b16 %v655
          %v1859 = vunpack.c.h.b16 %v655
          %v1860 = vunpack.c.l.b16 %v656
          %v1861 = vunpack.c.h.b16 %v656
          %v1862 = vunpack.c.l.b16 %v657
          %v1863 = vunpack.c.h.b16 %v657
          %v1864 = vunpack.c.l.b16 %v658
          %v1865 = vunpack.c.h.b16 %v658
          %v1866 = vunpack.c.l.b16 %v659
          %v1867 = vunpack.c.h.b16 %v659
          %v1868 = vunpack.c.l.b16 %v660
          %v1869 = vunpack.c.h.b16 %v660
          %v1870 = vunpack.c.l.b16 %v661
          %v1871 = vunpack.c.h.b16 %v661
          %v1872 = vunpack.c.l.b16 %v662
          %v1873 = vunpack.c.h.b16 %v662
          %v1874 = vunpack.c.l.b16 %v663
          %v1875 = vunpack.c.h.b16 %v663
          %v1876 = vunpack.c.l.b16 %v664
          %v1877 = vunpack.c.h.b16 %v664
          %v1878 = vunpack.c.l.b16 %v665
          %v1879 = vunpack.c.h.b16 %v665
          %v1880 = vunpack.c.l.b16 %v666
          %v1881 = vunpack.c.h.b16 %v666
          %v1882 = vunpack.c.l.b16 %v667
          %v1883 = vunpack.c.h.b16 %v667
          %v1884 = vunpack.c.l.b16 %v668
          %v1885 = vunpack.c.h.b16 %v668
          %v1886 = vunpack.c.l.b16 %v669
          %v1887 = vunpack.c.h.b16 %v669
          %v1888 = vunpack.c.l.b16 %v670
          %v1889 = vunpack.c.h.b16 %v670
          %v1890 = vunpack.c.l.b16 %v671
          %v1891 = vunpack.c.h.b16 %v671
          %v1892 = vunpack.c.l.b16 %v672
          %v1893 = vunpack.c.h.b16 %v672
          %v1894 = vunpack.c.l.b16 %v673
          %v1895 = vunpack.c.h.b16 %v673
          %v1896 = vunpack.c.l.b16 %v674
          %v1897 = vunpack.c.h.b16 %v674
          %v1898 = vunpack.c.l.b16 %v675
          %v1899 = vunpack.c.h.b16 %v675
          %v1900 = vunpack.c.l.b16 %v676
          %v1901 = vunpack.c.h.b16 %v676
          %v1902 = vunpack.c.l.b16 %v677
          %v1903 = vunpack.c.h.b16 %v677
          %v1904 = vunpack.c.l.b16 %v678
          %v1905 = vunpack.c.h.b16 %v678
          %v1906 = vunpack.c.l.b16 %v679
          %v1907 = vunpack.c.h.b16 %v679
          %v1908 = vunpack.c.l.b16 %v680
          %v1909 = vunpack.c.h.b16 %v680
          %v1910 = vunpack.c.l.b16 %v681
          %v1911 = vunpack.c.h.b16 %v681
          %v1912 = vunpack.c.l.b16 %v682
          %v1913 = vunpack.c.h.b16 %v682
          %v1914 = vunpack.c.l.b16 %v683
          %v1915 = vunpack.c.h.b16 %v683
          %v1916 = vunpack.c.l.b16 %v684
          %v1917 = vunpack.c.h.b16 %v684
          %v1918 = vunpack.c.l.b16 %v685
          %v1919 = vunpack.c.h.b16 %v685
          %v1920 = vunpack.c.l.b16 %v686
          %v1921 = vunpack.c.h.b16 %v686
          %v1922 = vunpack.c.l.b16 %v687
          %v1923 = vunpack.c.h.b16 %v687
          %v1924 = vunpack.c.l.b16 %v688
          %v1925 = vunpack.c.h.b16 %v688
          %v1926 = vunpack.c.l.b16 %v689
          %v1927 = vunpack.c.h.b16 %v689
          %v1928 = vunpack.c.l.b16 %v690
          %v1929 = vunpack.c.h.b16 %v690
          %v1930 = vunpack.c.l.b16 %v691
          %v1931 = vunpack.c.h.b16 %v691
          %v1932 = vunpack.c.l.b16 %v692
          %v1933 = vunpack.c.h.b16 %v692
          %v1934 = vunpack.c.l.b16 %v693
          %v1935 = vunpack.c.h.b16 %v693
          %v1936 = vunpack.c.l.b16 %v694
          %v1937 = vunpack.c.h.b16 %v694
          %v1938 = vunpack.c.l.b16 %v695
          %v1939 = vunpack.c.h.b16 %v695
          %v1940 = vunpack.c.l.b16 %v696
          %v1941 = vunpack.c.h.b16 %v696
          %v1942 = vunpack.c.l.b16 %v697
          %v1943 = vunpack.c.h.b16 %v697
          %v1944 = vunpack.c.l.b16 %v698
          %v1945 = vunpack.c.h.b16 %v698
          %v1946 = vunpack.c.l.b16 %v699
          %v1947 = vunpack.c.h.b16 %v699
          %v1948 = vunpack.c.l.b16 %v700
          %v1949 = vunpack.c.h.b16 %v700
          %v1950 = vunpack.c.l.b16 %v701
          %v1951 = vunpack.c.h.b16 %v701
          %v1952 = vunpack.c.l.b16 %v702
          %v1953 = vunpack.c.h.b16 %v702
          %v1954 = vunpack.c.l.b16 %v703
          %v1955 = vunpack.c.h.b16 %v703
          %v1956 = vunpack.c.l.b16 %v704
          %v1957 = vunpack.c.h.b16 %v704
          %v1958 = vunpack.c.l.b16 %v705
          %v1959 = vunpack.c.h.b16 %v705
          %v1960 = vunpack.c.l.b16 %v706
          %v1961 = vunpack.c.h.b16 %v706
          %v1962 = vunpack.c.l.b16 %v707
          %v1963 = vunpack.c.h.b16 %v707
          %v1964 = vunpack.c.l.b16 %v708
          %v1965 = vunpack.c.h.b16 %v708
          %v1966 = vunpack.c.l.b16 %v709
          %v1967 = vunpack.c.h.b16 %v709
          %v1968 = vunpack.c.l.b16 %v710
          %v1969 = vunpack.c.h.b16 %v710
          %v1970 = vunpack.c.l.b16 %v711
          %v1971 = vunpack.c.h.b16 %v711
          %v1972 = vunpack.c.l.b16 %v712
          %v1973 = vunpack.c.h.b16 %v712
          %v1974 = vunpack.c.l.b16 %v713
          %v1975 = vunpack.c.h.b16 %v713
          %v1976 = vunpack.c.l.b16 %v714
          %v1977 = vunpack.c.h.b16 %v714
          %v1978 = vunpack.c.l.b16 %v715
          %v1979 = vunpack.c.h.b16 %v715
          %v1980 = vunpack.c.l.b16 %v716
          %v1981 = vunpack.c.h.b16 %v716
          %v1982 = vunpack.c.l.b16 %v717
          %v1983 = vunpack.c.h.b16 %v717
          %v1984 = vunpack.c.l.b16 %v718
          %v1985 = vunpack.c.h.b16 %v718
          %v1986 = vunpack.c.l.b16 %v719
          %v1987 = vunpack.c.h.b16 %v719
          %v1988 = vunpack.c.l.b16 %v720
          %v1989 = vunpack.c.h.b16 %v720
          %v1990 = vunpack.c.l.b16 %v721
          %v1991 = vunpack.c.h.b16 %v721
          %v1992 = vunpack.c.l.b16 %v722
          %v1993 = vunpack.c.h.b16 %v722
          %v1994 = vunpack.c.l.b16 %v723
          %v1995 = vunpack.c.h.b16 %v723
          %v1996 = vunpack.c.l.b16 %v724
          %v1997 = vunpack.c.h.b16 %v724
          %v1998 = vunpack.c.l.b16 %v725
          %v1999 = vunpack.c.h.b16 %v725
          %v2000 = vunpack.c.l.b16 %v726
          %v2001 = vunpack.c.h.b16 %v726
          %v2002 = vunpack.c.l.b16 %v727
          %v2003 = vunpack.c.h.b16 %v727
          %v2004 = vunpack.c.l.b16 %v728
          %v2005 = vunpack.c.h.b16 %v728
          %v2006 = vunpack.c.l.b16 %v729
          %v2007 = vunpack.c.h.b16 %v729
          %v2008 = vunpack.c.l.b16 %v730
          %v2009 = vunpack.c.h.b16 %v730
          %v2010 = vunpack.c.l.b16 %v731
          %v2011 = vunpack.c.h.b16 %v731
          %v2012 = vunpack.c.l.b16 %v732
          %v2013 = vunpack.c.h.b16 %v732
          %v2014 = vunpack.c.l.b16 %v733
          %v2015 = vunpack.c.h.b16 %v733
          %v2016 = vunpack.c.l.b16 %v734
          %v2017 = vunpack.c.h.b16 %v734
          %v2018 = vunpack.c.l.b16 %v735
          %v2019 = vunpack.c.h.b16 %v735
          %v2020 = vunpack.c.l.b16 %v736
          %v2021 = vunpack.c.h.b16 %v736
          %v2022 = vunpack.c.l.b16 %v737
          %v2023 = vunpack.c.h.b16 %v737
          %v2024 = vunpack.c.l.b16 %v738
          %v2025 = vunpack.c.h.b16 %v738
          %v2026 = vunpack.c.l.b16 %v739
          %v2027 = vunpack.c.h.b16 %v739
          %v2028 = vunpack.c.l.b16 %v740
          %v2029 = vunpack.c.h.b16 %v740
          %v2030 = vunpack.c.l.b16 %v741
          %v2031 = vunpack.c.h.b16 %v741
          %v2032 = vunpack.c.l.b16 %v742
          %v2033 = vunpack.c.h.b16 %v742
          %v2034 = vunpack.c.l.b16 %v743
          %v2035 = vunpack.c.h.b16 %v743
          %v2036 = vunpack.c.l.b16 %v744
          %v2037 = vunpack.c.h.b16 %v744
          %v2038 = vunpack.c.l.b16 %v745
          %v2039 = vunpack.c.h.b16 %v745
          %v2040 = vunpack.c.l.b16 %v746
          %v2041 = vunpack.c.h.b16 %v746
          %v2042 = vunpack.c.l.b16 %v747
          %v2043 = vunpack.c.h.b16 %v747
          %v2044 = vunpack.c.l.b16 %v748
          %v2045 = vunpack.c.h.b16 %v748
          %v2046 = vunpack.c.l.b16 %v749
          %v2047 = vunpack.c.h.b16 %v749
          %v2048 = vunpack.c.l.b16 %v750
          %v2049 = vunpack.c.h.b16 %v750
          %v2050 = vunpack.c.l.b16 %v751
          %v2051 = vunpack.c.h.b16 %v751
          %v2052 = vunpack.c.l.b16 %v752
          %v2053 = vunpack.c.h.b16 %v752
          %v2054 = vunpack.c.l.b16 %v753
          %v2055 = vunpack.c.h.b16 %v753
          %v2056 = vunpack.c.l.b16 %v754
          %v2057 = vunpack.c.h.b16 %v754
          %v2058 = vunpack.c.l.b16 %v755
          %v2059 = vunpack.c.h.b16 %v755
          %v2060 = vunpack.c.l.b16 %v756
          %v2061 = vunpack.c.h.b16 %v756
          %v2062 = vunpack.c.l.b16 %v757
          %v2063 = vunpack.c.h.b16 %v757
          %v2064 = vunpack.c.l.b16 %v758
          %v2065 = vunpack.c.h.b16 %v758
          %v2066 = vunpack.c.l.b16 %v759
          %v2067 = vunpack.c.h.b16 %v759
          %v2068 = vunpack.c.l.b16 %v760
          %v2069 = vunpack.c.h.b16 %v760
          %v2070 = vunpack.c.l.b16 %v761
          %v2071 = vunpack.c.h.b16 %v761
          %v2072 = vunpack.c.l.b16 %v762
          %v2073 = vunpack.c.h.b16 %v762
          %v2074 = vunpack.c.l.b16 %v763
          %v2075 = vunpack.c.h.b16 %v763
          %v2076 = vunpack.c.l.b16 %v764
          %v2077 = vunpack.c.h.b16 %v764
          %v2078 = vunpack.c.l.b16 %v765
          %v2079 = vunpack.c.h.b16 %v765
          %v2080 = vunpack.c.l.b16 %v766
          %v2081 = vunpack.c.h.b16 %v766
          %v2082 = vunpack.c.l.b16 %v767
          %v2083 = vunpack.c.h.b16 %v767
          %v2084 = vunpack.c.l.b16 %v768
          %v2085 = vunpack.c.h.b16 %v768
          %v2086 = vunpack.c.l.b16 %v769
          %v2087 = vunpack.c.h.b16 %v769
          %v2088 = vunpack.c.l.b16 %v770
          %v2089 = vunpack.c.h.b16 %v770
          %v2090 = vunpack.c.l.b16 %v771
          %v2091 = vunpack.c.h.b16 %v771
          %v2092 = vunpack.c.l.b16 %v772
          %v2093 = vunpack.c.h.b16 %v772
          %v2094 = vunpack.c.l.b16 %v773
          %v2095 = vunpack.c.h.b16 %v773
          %v2096 = vunpack.c.l.b16 %v774
          %v2097 = vunpack.c.h.b16 %v774
          %v2098 = vunpack.c.l.b16 %v775
          %v2099 = vunpack.c.h.b16 %v775
          %v2100 = vunpack.c.l.b16 %v776
          %v2101 = vunpack.c.h.b16 %v776
          %v2102 = vunpack.c.l.b16 %v777
          %v2103 = vunpack.c.h.b16 %v777
          %v2104 = vunpack.c.l.b16 %v778
          %v2105 = vunpack.c.h.b16 %v778
          %v2106 = vunpack.c.l.b16 %v779
          %v2107 = vunpack.c.h.b16 %v779
          %v2108 = vunpack.c.l.b16 %v780
          %v2109 = vunpack.c.h.b16 %v780
          %v2110 = vunpack.c.l.b16 %v781
          %v2111 = vunpack.c.h.b16 %v781
          %v2112 = vunpack.c.l.b16 %v782
          %v2113 = vunpack.c.h.b16 %v782
          %v2114 = vunpack.c.l.b16 %v783
          %v2115 = vunpack.c.h.b16 %v783
          %v2116 = vunpack.c.l.b16 %v784
          %v2117 = vunpack.c.h.b16 %v784
          %v2118 = vunpack.c.l.b16 %v785
          %v2119 = vunpack.c.h.b16 %v785
          %v2120 = vunpack.c.l.b16 %v786
          %v2121 = vunpack.c.h.b16 %v786
          %v2122 = vunpack.c.l.b16 %v787
          %v2123 = vunpack.c.h.b16 %v787
          %v2124 = vunpack.c.l.b16 %v788
          %v2125 = vunpack.c.h.b16 %v788
          %v2126 = vunpack.c.l.b16 %v789
          %v2127 = vunpack.c.h.b16 %v789
          %v2128 = vunpack.c.l.b16 %v790
          %v2129 = vunpack.c.h.b16 %v790
          %v2130 = vunpack.c.l.b16 %v791
          %v2131 = vunpack.c.h.b16 %v791
          %v2132 = vunpack.c.l.b16 %v792
          %v2133 = vunpack.c.h.b16 %v792
          %v2134 = vunpack.c.l.b16 %v793
          %v2135 = vunpack.c.h.b16 %v793
          %v2136 = vunpack.c.l.b16 %v794
          %v2137 = vunpack.c.h.b16 %v794
          %v2138 = vunpack.c.l.b16 %v795
          %v2139 = vunpack.c.h.b16 %v795
          %v2140 = vunpack.c.l.b16 %v796
          %v2141 = vunpack.c.h.b16 %v796
          %v2142 = vunpack.c.l.b16 %v797
          %v2143 = vunpack.c.h.b16 %v797
          %v2144 = vunpack.c.l.b16 %v798
          %v2145 = vunpack.c.h.b16 %v798
          %v2146 = vunpack.c.l.b16 %v799
          %v2147 = vunpack.c.h.b16 %v799
          %v2148 = vunpack.c.l.b16 %v800
          %v2149 = vunpack.c.h.b16 %v800
          %v2150 = vunpack.c.l.b16 %v801
          %v2151 = vunpack.c.h.b16 %v801
          %v2152 = vunpack.c.l.b16 %v802
          %v2153 = vunpack.c.h.b16 %v802
          %v2154 = vunpack.c.l.b16 %v803
          %v2155 = vunpack.c.h.b16 %v803
          %v2156 = vunpack.c.l.b16 %v804
          %v2157 = vunpack.c.h.b16 %v804
          %v2158 = vunpack.c.l.b16 %v805
          %v2159 = vunpack.c.h.b16 %v805
          %v2160 = vunpack.c.l.b16 %v806
          %v2161 = vunpack.c.h.b16 %v806
          %v2162 = vunpack.c.l.b16 %v807
          %v2163 = vunpack.c.h.b16 %v807
          %v2164 = vunpack.c.l.b16 %v808
          %v2165 = vunpack.c.h.b16 %v808
          %v2166 = vunpack.c.l.b16 %v809
          %v2167 = vunpack.c.h.b16 %v809
          %v2168 = vunpack.c.l.b16 %v810
          %v2169 = vunpack.c.h.b16 %v810
          %v2170 = vunpack.c.l.b16 %v811
          %v2171 = vunpack.c.h.b16 %v811
          %v2172 = vunpack.c.l.b16 %v812
          %v2173 = vunpack.c.h.b16 %v812
          %v2174 = vunpack.c.l.b16 %v813
          %v2175 = vunpack.c.h.b16 %v813
          %v2176 = vunpack.c.l.b16 %v814
          %v2177 = vunpack.c.h.b16 %v814
          %v2178 = vunpack.c.l.b16 %v815
          %v2179 = vunpack.c.h.b16 %v815
          %v2180 = vunpack.c.l.b16 %v816
          %v2181 = vunpack.c.h.b16 %v816
          %v2182 = vunpack.c.l.b16 %v817
          %v2183 = vunpack.c.h.b16 %v817
          %v2184 = vunpack.c.l.b16 %v818
          %v2185 = vunpack.c.h.b16 %v818
          %v2186 = vunpack.c.l.b16 %v819
          %v2187 = vunpack.c.h.b16 %v819
          %v2188 = vunpack.c.l.b16 %v820
          %v2189 = vunpack.c.h.b16 %v820
          %v2190 = vunpack.c.l.b16 %v821
          %v2191 = vunpack.c.h.b16 %v821
          %v2192 = vunpack.c.l.b16 %v822
          %v2193 = vunpack.c.h.b16 %v822
          %v2194 = vunpack.c.l.b16 %v823
          %v2195 = vunpack.c.h.b16 %v823
          %v2196 = vunpack.c.l.b16 %v824
          %v2197 = vunpack.c.h.b16 %v824
          %v2198 = vunpack.c.l.b16 %v825
          %v2199 = vunpack.c.h.b16 %v825
          %v2200 = vunpack.c.l.b16 %v826
          %v2201 = vunpack.c.h.b16 %v826
          %v2202 = vunpack.c.l.b16 %v827
          %v2203 = vunpack.c.h.b16 %v827
          %v2204 = vunpack.c.l.b16 %v828
          %v2205 = vunpack.c.h.b16 %v828
          %v2206 = vunpack.c.l.b16 %v829
          %v2207 = vunpack.c.h.b16 %v829
          %v2208 = vunpack.c.l.b16 %v830
          %v2209 = vunpack.c.h.b16 %v830
          %v2210 = vunpack.c.l.b16 %v831
          %v2211 = vunpack.c.h.b16 %v831
          %v2212 = vunpack.c.l.b16 %v832
          %v2213 = vunpack.c.h.b16 %v832
          %v2214 = vunpack.c.l.b16 %v833
          %v2215 = vunpack.c.h.b16 %v833
          %v2216 = vunpack.c.l.b16 %v834
          %v2217 = vunpack.c.h.b16 %v834
          %v2218 = vunpack.c.l.b16 %v835
          %v2219 = vunpack.c.h.b16 %v835
          %v2220 = vunpack.c.l.b16 %v836
          %v2221 = vunpack.c.h.b16 %v836
          %v2222 = vunpack.c.l.b16 %v837
          %v2223 = vunpack.c.h.b16 %v837
          %v2224 = vunpack.c.l.b16 %v838
          %v2225 = vunpack.c.h.b16 %v838
          %v2226 = vunpack.c.l.b16 %v839
          %v2227 = vunpack.c.h.b16 %v839
          %v2228 = vunpack.c.l.b16 %v840
          %v2229 = vunpack.c.h.b16 %v840
          %v2230 = vunpack.c.l.b16 %v841
          %v2231 = vunpack.c.h.b16 %v841
          %v2232 = vunpack.c.l.b16 %v842
          %v2233 = vunpack.c.h.b16 %v842
          %v2234 = vunpack.c.l.b16 %v843
          %v2235 = vunpack.c.h.b16 %v843
          %v2236 = vunpack.c.l.b16 %v844
          %v2237 = vunpack.c.h.b16 %v844
          %v2238 = vunpack.c.l.b16 %v845
          %v2239 = vunpack.c.h.b16 %v845
          %v2240 = vunpack.c.l.b16 %v846
          %v2241 = vunpack.c.h.b16 %v846
          %v2242 = vunpack.c.l.b16 %v847
          %v2243 = vunpack.c.h.b16 %v847
          %v2244 = vunpack.c.l.b16 %v848
          %v2245 = vunpack.c.h.b16 %v848
          %v2246 = vunpack.c.l.b16 %v849
          %v2247 = vunpack.c.h.b16 %v849
          %v2248 = vunpack.c.l.b16 %v850
          %v2249 = vunpack.c.h.b16 %v850
          %v2250 = vunpack.c.l.b16 %v851
          %v2251 = vunpack.c.h.b16 %v851
          %v2252 = vunpack.c.l.b16 %v852
          %v2253 = vunpack.c.h.b16 %v852
          %v2254 = vunpack.c.l.b16 %v853
          %v2255 = vunpack.c.h.b16 %v853
          %v2256 = vunpack.c.l.b16 %v854
          %v2257 = vunpack.c.h.b16 %v854
          %v2258 = vunpack.c.l.b16 %v855
          %v2259 = vunpack.c.h.b16 %v855
          %v2260 = vunpack.c.l.b16 %v856
          %v2261 = vunpack.c.h.b16 %v856
          %v2262 = vunpack.c.l.b16 %v857
          %v2263 = vunpack.c.h.b16 %v857
          %v2264 = vunpack.c.l.b16 %v858
          %v2265 = vunpack.c.h.b16 %v858
          %v2266 = vunpack.c.l.b16 %v859
          %v2267 = vunpack.c.h.b16 %v859
          %v2268 = vunpack.c.l.b16 %v860
          %v2269 = vunpack.c.h.b16 %v860
          %v2270 = vunpack.c.l.b16 %v861
          %v2271 = vunpack.c.h.b16 %v861
          %v2272 = vunpack.c.l.b16 %v862
          %v2273 = vunpack.c.h.b16 %v862
          %v2274 = vunpack.c.l.b16 %v863
          %v2275 = vunpack.c.h.b16 %v863
          %v2276 = vunpack.c.l.b16 %v864
          %v2277 = vunpack.c.h.b16 %v864
          %v2278 = vunpack.c.l.b16 %v865
          %v2279 = vunpack.c.h.b16 %v865
          %v2280 = vunpack.c.l.b16 %v866
          %v2281 = vunpack.c.h.b16 %v866
          %v2282 = vunpack.c.l.b16 %v867
          %v2283 = vunpack.c.h.b16 %v867
          %v2284 = vunpack.c.l.b16 %v868
          %v2285 = vunpack.c.h.b16 %v868
          %v2286 = vunpack.c.l.b16 %v869
          %v2287 = vunpack.c.h.b16 %v869
          %v2288 = vunpack.c.l.b16 %v870
          %v2289 = vunpack.c.h.b16 %v870
          %v2290 = vunpack.c.l.b16 %v871
          %v2291 = vunpack.c.h.b16 %v871
          %v2292 = vunpack.c.l.b16 %v872
          %v2293 = vunpack.c.h.b16 %v872
          %v2294 = vunpack.c.l.b16 %v873
          %v2295 = vunpack.c.h.b16 %v873
          %v2296 = vunpack.c.l.b16 %v874
          %v2297 = vunpack.c.h.b16 %v874
          %v2298 = vunpack.c.l.b16 %v875
          %v2299 = vunpack.c.h.b16 %v875
          %v2300 = vunpack.c.l.b16 %v876
          %v2301 = vunpack.c.h.b16 %v876
          %v2302 = vunpack.c.l.b16 %v877
          %v2303 = vunpack.c.h.b16 %v877
          %v2304 = vunpack.c.l.b16 %v878
          %v2305 = vunpack.c.h.b16 %v878
          %v2306 = vunpack.c.l.b16 %v879
          %v2307 = vunpack.c.h.b16 %v879
          %v2308 = vunpack.c.l.b16 %v880
          %v2309 = vunpack.c.h.b16 %v880
          %v2310 = vunpack.c.l.b16 %v881
          %v2311 = vunpack.c.h.b16 %v881
          %v2312 = vunpack.c.l.b16 %v882
          %v2313 = vunpack.c.h.b16 %v882
          %v2314 = vunpack.c.l.b16 %v883
          %v2315 = vunpack.c.h.b16 %v883
          %v2316 = vunpack.c.l.b16 %v884
          %v2317 = vunpack.c.h.b16 %v884
          %v2318 = vunpack.c.l.b16 %v885
          %v2319 = vunpack.c.h.b16 %v885
          %v2320 = vunpack.c.l.b16 %v886
          %v2321 = vunpack.c.h.b16 %v886
          %v2322 = vunpack.c.l.b16 %v887
          %v2323 = vunpack.c.h.b16 %v887
          %v2324 = vunpack.c.l.b16 %v888
          %v2325 = vunpack.c.h.b16 %v888
          %v2326 = vunpack.c.l.b16 %v889
          %v2327 = vunpack.c.h.b16 %v889
          %v2328 = vunpack.c.l.b16 %v890
          %v2329 = vunpack.c.h.b16 %v890
          %v2330 = vunpack.c.l.b16 %v891
          %v2331 = vunpack.c.h.b16 %v891
          %v2332 = vunpack.c.l.b16 %v892
          %v2333 = vunpack.c.h.b16 %v892
          %v2334 = vunpack.c.l.b16 %v893
          %v2335 = vunpack.c.h.b16 %v893
          %v2336 = vunpack.c.l.b16 %v894
          %v2337 = vunpack.c.h.b16 %v894
          %v2338 = vunpack.c.l.b16 %v895
          %v2339 = vunpack.c.h.b16 %v895
          %v2340 = vunpack.c.l.b16 %v896
          %v2341 = vunpack.c.h.b16 %v896
          %v2342 = vunpack.c.l.b16 %v897
          %v2343 = vunpack.c.h.b16 %v897
          %v2344 = vunpack.c.l.b16 %v898
          %v2345 = vunpack.c.h.b16 %v898
          %v2346 = vunpack.c.l.b16 %v899
          %v2347 = vunpack.c.h.b16 %v899
          %v2348 = vunpack.c.l.b16 %v900
          %v2349 = vunpack.c.h.b16 %v900
          %v2350 = vunpack.c.l.b16 %v901
          %v2351 = vunpack.c.h.b16 %v901
          %v2352 = vunpack.c.l.b16 %v902
          %v2353 = vunpack.c.h.b16 %v902
          %v2354 = vunpack.c.l.b16 %v903
          %v2355 = vunpack.c.h.b16 %v903
          %v2356 = vunpack.c.l.b16 %v904
          %v2357 = vunpack.c.h.b16 %v904
          %v2358 = vunpack.c.l.b16 %v905
          %v2359 = vunpack.c.h.b16 %v905
          %v2360 = vunpack.c.l.b16 %v906
          %v2361 = vunpack.c.h.b16 %v906
          %v2362 = vunpack.c.l.b16 %v907
          %v2363 = vunpack.c.h.b16 %v907
          %v2364 = vunpack.c.l.b16 %v908
          %v2365 = vunpack.c.h.b16 %v908
          %v2366 = vunpack.c.l.b16 %v909
          %v2367 = vunpack.c.h.b16 %v909
          %v2368 = vunpack.c.l.b16 %v910
          %v2369 = vunpack.c.h.b16 %v910
          %v2370 = vunpack.c.l.b16 %v911
          %v2371 = vunpack.c.h.b16 %v911
          %v2372 = vunpack.c.l.b16 %v912
          %v2373 = vunpack.c.h.b16 %v912
          %v2374 = vunpack.c.l.b16 %v913
          %v2375 = vunpack.c.h.b16 %v913
          %v2376 = vunpack.c.l.b16 %v914
          %v2377 = vunpack.c.h.b16 %v914
          %v2378 = vunpack.c.l.b16 %v915
          %v2379 = vunpack.c.h.b16 %v915
          %v2380 = vunpack.c.l.b16 %v916
          %v2381 = vunpack.c.h.b16 %v916
          %v2382 = vunpack.c.l.b16 %v917
          %v2383 = vunpack.c.h.b16 %v917
          %v2384 = vunpack.c.l.b16 %v918
          %v2385 = vunpack.c.h.b16 %v918
          %v2386 = vunpack.c.l.b16 %v919
          %v2387 = vunpack.c.h.b16 %v919
          %v2388 = vunpack.c.l.b16 %v920
          %v2389 = vunpack.c.h.b16 %v920
          %v2390 = vunpack.c.l.b16 %v921
          %v2391 = vunpack.c.h.b16 %v921
          %v2392 = vunpack.c.l.b16 %v922
          %v2393 = vunpack.c.h.b16 %v922
          %v2394 = vunpack.c.l.b16 %v923
          %v2395 = vunpack.c.h.b16 %v923
          %v2396 = vunpack.c.l.b16 %v924
          %v2397 = vunpack.c.h.b16 %v924
          %v2398 = vunpack.c.l.b16 %v925
          %v2399 = vunpack.c.h.b16 %v925
          %v2400 = vunpack.c.l.b16 %v926
          %v2401 = vunpack.c.h.b16 %v926
          %v2402 = vunpack.c.l.b16 %v927
          %v2403 = vunpack.c.h.b16 %v927
          %v2404 = vunpack.c.l.b16 %v928
          %v2405 = vunpack.c.h.b16 %v928
          %v2406 = vunpack.c.l.b16 %v929
          %v2407 = vunpack.c.h.b16 %v929
          %v2408 = vunpack.c.l.b16 %v930
          %v2409 = vunpack.c.h.b16 %v930
          %v2410 = vunpack.c.l.b16 %v931
          %v2411 = vunpack.c.h.b16 %v931
          %v2412 = vunpack.c.l.b16 %v932
          %v2413 = vunpack.c.h.b16 %v932
          %v2414 = vunpack.c.l.b16 %v933
          %v2415 = vunpack.c.h.b16 %v933
          %v2416 = vunpack.c.l.b16 %v934
          %v2417 = vunpack.c.h.b16 %v934
          %v2418 = vunpack.c.l.b16 %v935
          %v2419 = vunpack.c.h.b16 %v935
          %v2420 = vunpack.c.l.b16 %v936
          %v2421 = vunpack.c.h.b16 %v936
          %v2422 = vunpack.c.l.b16 %v937
          %v2423 = vunpack.c.h.b16 %v937
          %v2424 = vunpack.c.l.b16 %v938
          %v2425 = vunpack.c.h.b16 %v938
          %v2426 = vunpack.c.l.b16 %v939
          %v2427 = vunpack.c.h.b16 %v939
          %v2428 = vunpack.c.l.b16 %v940
          %v2429 = vunpack.c.h.b16 %v940
          %v2430 = vunpack.c.l.b16 %v941
          %v2431 = vunpack.c.h.b16 %v941
          %v2432 = vunpack.c.l.b16 %v942
          %v2433 = vunpack.c.h.b16 %v942
          %v2434 = vunpack.c.l.b16 %v943
          %v2435 = vunpack.c.h.b16 %v943
          %v2436 = vunpack.c.l.b16 %v944
          %v2437 = vunpack.c.h.b16 %v944
          %v2438 = vunpack.c.l.b16 %v945
          %v2439 = vunpack.c.h.b16 %v945
          %v2440 = vunpack.c.l.b16 %v946
          %v2441 = vunpack.c.h.b16 %v946
          %v2442 = vunpack.c.l.b16 %v947
          %v2443 = vunpack.c.h.b16 %v947
          %v2444 = vunpack.c.l.b16 %v948
          %v2445 = vunpack.c.h.b16 %v948
          %v2446 = vunpack.c.l.b16 %v949
          %v2447 = vunpack.c.h.b16 %v949
          %v2448 = vunpack.c.l.b16 %v950
          %v2449 = vunpack.c.h.b16 %v950
          %v2450 = vunpack.c.l.b16 %v951
          %v2451 = vunpack.c.h.b16 %v951
          %v2452 = vunpack.c.l.b16 %v952
          %v2453 = vunpack.c.h.b16 %v952
          %v2454 = vunpack.c.l.b16 %v953
          %v2455 = vunpack.c.h.b16 %v953
          %v2456 = vunpack.c.l.b16 %v954
          %v2457 = vunpack.c.h.b16 %v954
          %v2458 = vunpack.c.l.b16 %v955
          %v2459 = vunpack.c.h.b16 %v955
          %v2460 = vunpack.c.l.b16 %v956
          %v2461 = vunpack.c.h.b16 %v956
          %v2462 = vunpack.c.l.b16 %v957
          %v2463 = vunpack.c.h.b16 %v957
          %v2464 = vunpack.c.l.b16 %v958
          %v2465 = vunpack.c.h.b16 %v958
          %v2466 = vunpack.c.l.b16 %v959
          %v2467 = vunpack.c.h.b16 %v959
          %v2468 = vunpack.c.l.b16 %v960
          %v2469 = vunpack.c.h.b16 %v960
          %v2470 = vunpack.c.l.b16 %v961
          %v2471 = vunpack.c.h.b16 %v961
          %v2472 = vunpack.c.l.b16 %v962
          %v2473 = vunpack.c.h.b16 %v962
          %v2474 = vunpack.c.l.b16 %v963
          %v2475 = vunpack.c.h.b16 %v963
          %v2476 = vunpack.c.l.b16 %v964
          %v2477 = vunpack.c.h.b16 %v964
          %v2478 = vunpack.c.l.b16 %v965
          %v2479 = vunpack.c.h.b16 %v965
          %v2480 = vunpack.c.l.b16 %v966
          %v2481 = vunpack.c.h.b16 %v966
          %v2482 = vunpack.c.l.b16 %v967
          %v2483 = vunpack.c.h.b16 %v967
          %v2484 = vunpack.c.l.b16 %v968
          %v2485 = vunpack.c.h.b16 %v968
          %v2486 = vunpack.c.l.b16 %v969
          %v2487 = vunpack.c.h.b16 %v969
          %v2488 = vunpack.c.l.b16 %v970
          %v2489 = vunpack.c.h.b16 %v970
          %v2490 = vunpack.c.l.b16 %v971
          %v2491 = vunpack.c.h.b16 %v971
          %v2492 = vunpack.c.l.b16 %v972
          %v2493 = vunpack.c.h.b16 %v972
          %v2494 = vunpack.c.l.b16 %v973
          %v2495 = vunpack.c.h.b16 %v973
          %v2496 = vunpack.c.l.b16 %v974
          %v2497 = vunpack.c.h.b16 %v974
          %v2498 = vunpack.c.l.b16 %v975
          %v2499 = vunpack.c.h.b16 %v975
          %v2500 = vunpack.c.l.b16 %v976
          %v2501 = vunpack.c.h.b16 %v976
          %v2502 = vunpack.c.l.b16 %v977
          %v2503 = vunpack.c.h.b16 %v977
          %v2504 = vunpack.c.l.b16 %v978
          %v2505 = vunpack.c.h.b16 %v978
          %v2506 = vunpack.c.l.b16 %v979
          %v2507 = vunpack.c.h.b16 %v979
          %v2508 = vunpack.c.l.b16 %v980
          %v2509 = vunpack.c.h.b16 %v980
          %v2510 = vunpack.c.l.b16 %v981
          %v2511 = vunpack.c.h.b16 %v981
          %v2512 = vunpack.c.l.b16 %v982
          %v2513 = vunpack.c.h.b16 %v982
          %v2514 = vunpack.c.l.b16 %v983
          %v2515 = vunpack.c.h.b16 %v983
          %v2516 = vunpack.c.l.b16 %v984
          %v2517 = vunpack.c.h.b16 %v984
          %v2518 = vunpack.c.l.b16 %v985
          %v2519 = vunpack.c.h.b16 %v985
          %v2520 = vunpack.c.l.b16 %v986
          %v2521 = vunpack.c.h.b16 %v986
          %v2522 = vunpack.c.l.b16 %v987
          %v2523 = vunpack.c.h.b16 %v987
          %v2524 = vunpack.c.l.b16 %v988
          %v2525 = vunpack.c.h.b16 %v988
          %v2526 = vunpack.c.l.b16 %v989
          %v2527 = vunpack.c.h.b16 %v989
          %v2528 = vunpack.c.l.b16 %v990
          %v2529 = vunpack.c.h.b16 %v990
          %v2530 = vunpack.c.l.b16 %v991
          %v2531 = vunpack.c.h.b16 %v991
          %v2532 = vunpack.c.l.b16 %v992
          %v2533 = vunpack.c.h.b16 %v992
          %v2534 = vunpack.c.l.b16 %v993
          %v2535 = vunpack.c.h.b16 %v993
          %v2536 = vunpack.c.l.b16 %v994
          %v2537 = vunpack.c.h.b16 %v994
          %v2538 = vunpack.c.l.b16 %v995
          %v2539 = vunpack.c.h.b16 %v995
          %v2540 = vunpack.c.l.b16 %v996
          %v2541 = vunpack.c.h.b16 %v996
          %v2542 = vunpack.c.l.b16 %v997
          %v2543 = vunpack.c.h.b16 %v997
          %v2544 = vunpack.c.l.b16 %v998
          %v2545 = vunpack.c.h.b16 %v998
          %v2546 = vunpack.c.l.b16 %v999
          %v2547 = vunpack.c.h.b16 %v999
          %v2548 = vunpack.c.l.b16 %v1000
          %v2549 = vunpack.c.h.b16 %v1000
          %v2550 = vunpack.c.l.b16 %v1001
          %v2551 = vunpack.c.h.b16 %v1001
          %v2552 = vunpack.c.l.b16 %v1002
          %v2553 = vunpack.c.h.b16 %v1002
          %v2554 = vunpack.c.l.b16 %v1003
          %v2555 = vunpack.c.h.b16 %v1003
          %v2556 = vunpack.c.l.b16 %v1004
          %v2557 = vunpack.c.h.b16 %v1004
          %v2558 = vunpack.c.l.b16 %v1005
          %v2559 = vunpack.c.h.b16 %v1005
          %v2560 = vunpack.c.l.b16 %v1006
          %v2561 = vunpack.c.h.b16 %v1006
          %v2562 = vunpack.c.l.b16 %v1007
          %v2563 = vunpack.c.h.b16 %v1007
          %v2564 = vunpack.c.l.b16 %v1008
          %v2565 = vunpack.c.h.b16 %v1008
          %v2566 = vunpack.c.l.b16 %v1009
          %v2567 = vunpack.c.h.b16 %v1009
          %v2568 = vunpack.c.l.b16 %v1010
          %v2569 = vunpack.c.h.b16 %v1010
          %v2570 = vunpack.c.l.b16 %v1011
          %v2571 = vunpack.c.h.b16 %v1011
          %v2572 = vunpack.c.l.b16 %v1012
          %v2573 = vunpack.c.h.b16 %v1012
          %v2574 = vunpack.c.l.b16 %v1013
          %v2575 = vunpack.c.h.b16 %v1013
          %v2576 = vunpack.c.l.b16 %v1014
          %v2577 = vunpack.c.h.b16 %v1014
          %v2578 = vunpack.c.l.b16 %v1015
          %v2579 = vunpack.c.h.b16 %v1015
          %v2580 = vunpack.c.l.b16 %v1016
          %v2581 = vunpack.c.h.b16 %v1016
          %v2582 = vunpack.c.l.b16 %v1017
          %v2583 = vunpack.c.h.b16 %v1017
          %v2584 = vunpack.c.l.b16 %v1018
          %v2585 = vunpack.c.h.b16 %v1018
          %v2586 = vunpack.c.l.b16 %v1019
          %v2587 = vunpack.c.h.b16 %v1019
          %v2588 = vunpack.c.l.b16 %v1020
          %v2589 = vunpack.c.h.b16 %v1020
          %v2590 = vunpack.c.l.b16 %v1021
          %v2591 = vunpack.c.h.b16 %v1021
          %v2592 = vunpack.c.l.b16 %v1022
          %v2593 = vunpack.c.h.b16 %v1022
          %v2594 = vunpack.c.l.b16 %v1023
          %v2595 = vunpack.c.h.b16 %v1023
          %v2596 = vunpack.c.l.b16 %v1024
          %v2597 = vunpack.c.h.b16 %v1024
          %v2598 = vunpack.c.l.b16 %v1025
          %v2599 = vunpack.c.h.b16 %v1025
          %v2600 = vunpack.c.l.b16 %v1026
          %v2601 = vunpack.c.h.b16 %v1026
          %v2602 = vunpack.c.l.b16 %v1027
          %v2603 = vunpack.c.h.b16 %v1027
          %v2604 = vunpack.c.l.b16 %v1028
          %v2605 = vunpack.c.h.b16 %v1028
          %v2606 = vunpack.c.l.b16 %v1029
          %v2607 = vunpack.c.h.b16 %v1029
          %v2608 = vunpack.c.l.b16 %v1030
          %v2609 = vunpack.c.h.b16 %v1030
          %v2610 = vunpack.c.l.b16 %v1031
          %v2611 = vunpack.c.h.b16 %v1031
          %v2612 = vunpack.c.l.b16 %v1032
          %v2613 = vunpack.c.h.b16 %v1032
          %v2614 = vunpack.c.l.b16 %v1033
          %v2615 = vunpack.c.h.b16 %v1033
          %v2616 = vunpack.c.l.b16 %v1034
          %v2617 = vunpack.c.h.b16 %v1034
          %v2618 = vunpack.c.l.b16 %v1035
          %v2619 = vunpack.c.h.b16 %v1035
          %v2620 = vunpack.c.l.b16 %v1036
          %v2621 = vunpack.c.h.b16 %v1036
          %v2622 = vunpack.c.l.b16 %v1037
          %v2623 = vunpack.c.h.b16 %v1037
          %v2624 = vunpack.c.l.b16 %v1038
          %v2625 = vunpack.c.h.b16 %v1038
          %v2626 = vunpack.c.l.b16 %v1039
          %v2627 = vunpack.c.h.b16 %v1039
          %v2628 = vunpack.c.l.b16 %v1040
          %v2629 = vunpack.c.h.b16 %v1040
          %v2630 = vunpack.c.l.b16 %v1041
          %v2631 = vunpack.c.h.b16 %v1041
          %v2632 = vunpack.c.l.b16 %v1042
          %v2633 = vunpack.c.h.b16 %v1042
          %v2634 = vunpack.c.l.b16 %v1043
          %v2635 = vunpack.c.h.b16 %v1043
          %v2636 = vunpack.c.l.b16 %v1044
          %v2637 = vunpack.c.h.b16 %v1044
          %v2638 = vunpack.c.l.b16 %v1045
          %v2639 = vunpack.c.h.b16 %v1045
          %v2640 = vunpack.c.l.b16 %v1046
          %v2641 = vunpack.c.h.b16 %v1046
          %v2642 = vunpack.c.l.b16 %v1047
          %v2643 = vunpack.c.h.b16 %v1047
          %v2644 = vunpack.c.l.b16 %v1048
          %v2645 = vunpack.c.h.b16 %v1048
          %v2646 = vunpack.c.l.b16 %v1049
          %v2647 = vunpack.c.h.b16 %v1049
          %v2648 = vunpack.c.l.b16 %v1050
          %v2649 = vunpack.c.h.b16 %v1050
          %v2650 = vunpack.c.l.b16 %v1051
          %v2651 = vunpack.c.h.b16 %v1051
          %v2652 = vunpack.c.l.b16 %v1052
          %v2653 = vunpack.c.h.b16 %v1052
          %v2654 = vunpack.c.l.b16 %v1053
          %v2655 = vunpack.c.h.b16 %v1053
          %v2656 = vunpack.c.l.b16 %v1054
          %v2657 = vunpack.c.h.b16 %v1054
          %v2658 = vunpack.c.l.b16 %v1055
          %v2659 = vunpack.c.h.b16 %v1055
          %v2660 = vunpack.c.l.b16 %v1056
          %v2661 = vunpack.c.h.b16 %v1056
          %v2662 = vunpack.c.l.b16 %v1057
          %v2663 = vunpack.c.h.b16 %v1057
          %v2664 = vunpack.c.l.b16 %v1058
          %v2665 = vunpack.c.h.b16 %v1058
          %v2666 = vunpack.c.l.b16 %v1059
          %v2667 = vunpack.c.h.b16 %v1059
          %v2668 = vunpack.c.l.b16 %v1060
          %v2669 = vunpack.c.h.b16 %v1060
          %v2670 = vunpack.c.l.b16 %v1061
          %v2671 = vunpack.c.h.b16 %v1061
          %v2672 = vunpack.c.l.b16 %v1062
          %v2673 = vunpack.c.h.b16 %v1062
          %v2674 = vunpack.c.l.b16 %v1063
          %v2675 = vunpack.c.h.b16 %v1063
          %v2676 = vunpack.c.l.b16 %v1064
          %v2677 = vunpack.c.h.b16 %v1064
          %v2678 = vunpack.c.l.b16 %v1065
          %v2679 = vunpack.c.h.b16 %v1065
          %v2680 = vunpack.c.l.b16 %v1066
          %v2681 = vunpack.c.h.b16 %v1066
          %v2682 = vunpack.c.l.b16 %v1067
          %v2683 = vunpack.c.h.b16 %v1067
          %v2684 = vunpack.c.l.b16 %v1068
          %v2685 = vunpack.c.h.b16 %v1068
          %v2686 = vunpack.c.l.b16 %v1069
          %v2687 = vunpack.c.h.b16 %v1069
          %v2688 = vunpack.c.l.b16 %v1070
          %v2689 = vunpack.c.h.b16 %v1070
          %v2690 = vunpack.c.l.b16 %v1071
          %v2691 = vunpack.c.h.b16 %v1071
          %v2692 = vunpack.c.l.b16 %v1072
          %v2693 = vunpack.c.h.b16 %v1072
          %v2694 = vunpack.c.l.b16 %v1073
          %v2695 = vunpack.c.h.b16 %v1073
          %v2696 = vunpack.c.l.b16 %v1074
          %v2697 = vunpack.c.h.b16 %v1074
          %v2698 = vunpack.c.l.b16 %v1075
          %v2699 = vunpack.c.h.b16 %v1075
          %v2700 = vunpack.c.l.b16 %v1076
          %v2701 = vunpack.c.h.b16 %v1076
          %v2702 = vunpack.c.l.b16 %v1077
          %v2703 = vunpack.c.h.b16 %v1077
          %v2704 = vunpack.c.l.b16 %v1078
          %v2705 = vunpack.c.h.b16 %v1078
          %v2706 = vunpack.c.l.b16 %v1079
          %v2707 = vunpack.c.h.b16 %v1079
          %v2708 = vunpack.c.l.b16 %v1080
          %v2709 = vunpack.c.h.b16 %v1080
          %v2710 = vunpack.c.l.b16 %v1081
          %v2711 = vunpack.c.h.b16 %v1081
          %v2712 = vunpack.c.l.b16 %v1082
          %v2713 = vunpack.c.h.b16 %v1082
          %v2714 = vunpack.c.l.b16 %v1083
          %v2715 = vunpack.c.h.b16 %v1083
          %v2716 = vunpack.c.l.b16 %v1084
          %v2717 = vunpack.c.h.b16 %v1084
          %v2718 = vunpack.c.l.b16 %v1085
          %v2719 = vunpack.c.h.b16 %v1085
          %v2720 = vunpack.c.l.b16 %v1086
          %v2721 = vunpack.c.h.b16 %v1086
          %v2722 = vunpack.c.l.b16 %v1087
          %v2723 = vunpack.c.h.b16 %v1087
          %v2724 = vunpack.c.l.b16 %v1088
          %v2725 = vunpack.c.h.b16 %v1088
          %v2726 = vunpack.c.l.b16 %v1089
          %v2727 = vunpack.c.h.b16 %v1089
          %v2728 = vunpack.c.l.b16 %v1090
          %v2729 = vunpack.c.h.b16 %v1090
          %v2730 = vunpack.c.l.b16 %v1091
          %v2731 = vunpack.c.h.b16 %v1091
          %v2732 = vunpack.c.l.b16 %v1092
          %v2733 = vunpack.c.h.b16 %v1092
          %v2734 = vunpack.c.l.b16 %v1093
          %v2735 = vunpack.c.h.b16 %v1093
          %v2736 = vunpack.c.l.b16 %v1094
          %v2737 = vunpack.c.h.b16 %v1094
          %v2738 = vunpack.c.l.b16 %v1095
          %v2739 = vunpack.c.h.b16 %v1095
          %v2740 = vunpack.c.l.b16 %v1096
          %v2741 = vunpack.c.h.b16 %v1096
          %v2742 = vunpack.c.l.b16 %v1097
          %v2743 = vunpack.c.h.b16 %v1097
          %v2744 = vunpack.c.l.b16 %v1098
          %v2745 = vunpack.c.h.b16 %v1098
          %v2746 = vunpack.c.l.b16 %v1099
          %v2747 = vunpack.c.h.b16 %v1099
          %v2748 = vunpack.c.l.b16 %v1100
          %v2749 = vunpack.c.h.b16 %v1100
          %v2750 = vunpack.c.l.b16 %v1101
          %v2751 = vunpack.c.h.b16 %v1101
          %v2752 = vunpack.c.l.b16 %v1102
          %v2753 = vunpack.c.h.b16 %v1102
          %v2754 = vunpack.c.l.b16 %v1103
          %v2755 = vunpack.c.h.b16 %v1103
          %v2756 = vunpack.c.l.b16 %v1104
          %v2757 = vunpack.c.h.b16 %v1104
          %v2758 = vunpack.c.l.b16 %v1105
          %v2759 = vunpack.c.h.b16 %v1105
          %v2760 = vunpack.c.l.b16 %v1106
          %v2761 = vunpack.c.h.b16 %v1106
          %v2762 = vunpack.c.l.b16 %v1107
          %v2763 = vunpack.c.h.b16 %v1107
          %v2764 = vunpack.c.l.b16 %v1108
          %v2765 = vunpack.c.h.b16 %v1108
          %v2766 = vunpack.c.l.b16 %v1109
          %v2767 = vunpack.c.h.b16 %v1109
          %v2768 = vunpack.c.l.b16 %v1110
          %v2769 = vunpack.c.h.b16 %v1110
          %v2770 = vunpack.c.l.b16 %v1111
          %v2771 = vunpack.c.h.b16 %v1111
          %v2772 = vunpack.c.l.b16 %v1112
          %v2773 = vunpack.c.h.b16 %v1112
          %v2774 = vunpack.c.l.b16 %v1113
          %v2775 = vunpack.c.h.b16 %v1113
          %v2776 = vunpack.c.l.b16 %v1114
          %v2777 = vunpack.c.h.b16 %v1114
          %v2778 = vunpack.c.l.b16 %v1115
          %v2779 = vunpack.c.h.b16 %v1115
          %v2780 = vpack.c.b16 %v1764, %v1756
          %v2781 = vpack.c.b16 %v1765, %v1757
          %v2782 = vpack.c.b16 %v1766, %v1758
          %v2783 = vpack.c.b16 %v1767, %v1759
          %v2784 = vpack.c.b16 %v1768, %v1760
          %v2785 = vpack.c.b16 %v1769, %v1761
          %v2786 = vpack.c.b16 %v1770, %v1762
          %v2787 = vpack.c.b16 %v1771, %v1763
          %v2788 = vpack.c.b16 %v1780, %v1772
          %v2789 = vpack.c.b16 %v1781, %v1773
          %v2790 = vpack.c.b16 %v1782, %v1774
          %v2791 = vpack.c.b16 %v1783, %v1775
          %v2792 = vpack.c.b16 %v1784, %v1776
          %v2793 = vpack.c.b16 %v1785, %v1777
          %v2794 = vpack.c.b16 %v1786, %v1778
          %v2795 = vpack.c.b16 %v1787, %v1779
          %v2796 = vpack.c.b16 %v1796, %v1788
          %v2797 = vpack.c.b16 %v1797, %v1789
          %v2798 = vpack.c.b16 %v1798, %v1790
          %v2799 = vpack.c.b16 %v1799, %v1791
          %v2800 = vpack.c.b16 %v1800, %v1792
          %v2801 = vpack.c.b16 %v1801, %v1793
          %v2802 = vpack.c.b16 %v1802, %v1794
          %v2803 = vpack.c.b16 %v1803, %v1795
          %v2804 = vpack.c.b16 %v1812, %v1804
          %v2805 = vpack.c.b16 %v1813, %v1805
          %v2806 = vpack.c.b16 %v1814, %v1806
          %v2807 = vpack.c.b16 %v1815, %v1807
          %v2808 = vpack.c.b16 %v1816, %v1808
          %v2809 = vpack.c.b16 %v1817, %v1809
          %v2810 = vpack.c.b16 %v1818, %v1810
          %v2811 = vpack.c.b16 %v1819, %v1811
          %v2812 = vpack.c.b16 %v1828, %v1820
          %v2813 = vpack.c.b16 %v1829, %v1821
          %v2814 = vpack.c.b16 %v1830, %v1822
          %v2815 = vpack.c.b16 %v1831, %v1823
          %v2816 = vpack.c.b16 %v1832, %v1824
          %v2817 = vpack.c.b16 %v1833, %v1825
          %v2818 = vpack.c.b16 %v1834, %v1826
          %v2819 = vpack.c.b16 %v1835, %v1827
          %v2820 = vpack.c.b16 %v1844, %v1836
          %v2821 = vpack.c.b16 %v1845, %v1837
          %v2822 = vpack.c.b16 %v1846, %v1838
          %v2823 = vpack.c.b16 %v1847, %v1839
          %v2824 = vpack.c.b16 %v1848, %v1840
          %v2825 = vpack.c.b16 %v1849, %v1841
          %v2826 = vpack.c.b16 %v1850, %v1842
          %v2827 = vpack.c.b16 %v1851, %v1843
          %v2828 = vpack.c.b16 %v1860, %v1852
          %v2829 = vpack.c.b16 %v1861, %v1853
          %v2830 = vpack.c.b16 %v1862, %v1854
          %v2831 = vpack.c.b16 %v1863, %v1855
          %v2832 = vpack.c.b16 %v1864, %v1856
          %v2833 = vpack.c.b16 %v1865, %v1857
          %v2834 = vpack.c.b16 %v1866, %v1858
          %v2835 = vpack.c.b16 %v1867, %v1859
          %v2836 = vpack.c.b16 %v1876, %v1868
          %v2837 = vpack.c.b16 %v1877, %v1869
          %v2838 = vpack.c.b16 %v1878, %v1870
          %v2839 = vpack.c.b16 %v1879, %v1871
          %v2840 = vpack.c.b16 %v1880, %v1872
          %v2841 = vpack.c.b16 %v1881, %v1873
          %v2842 = vpack.c.b16 %v1882, %v1874
          %v2843 = vpack.c.b16 %v1883, %v1875
          %v2844 = vpack.c.b16 %v1892, %v1884
          %v2845 = vpack.c.b16 %v1893, %v1885
          %v2846 = vpack.c.b16 %v1894, %v1886
          %v2847 = vpack.c.b16 %v1895, %v1887
          %v2848 = vpack.c.b16 %v1896, %v1888
          %v2849 = vpack.c.b16 %v1897, %v1889
          %v2850 = vpack.c.b16 %v1898, %v1890
          %v2851 = vpack.c.b16 %v1899, %v1891
          %v2852 = vpack.c.b16 %v1908, %v1900
          %v2853 = vpack.c.b16 %v1909, %v1901
          %v2854 = vpack.c.b16 %v1910, %v1902
          %v2855 = vpack.c.b16 %v1911, %v1903
          %v2856 = vpack.c.b16 %v1912, %v1904
          %v2857 = vpack.c.b16 %v1913, %v1905
          %v2858 = vpack.c.b16 %v1914, %v1906
          %v2859 = vpack.c.b16 %v1915, %v1907
          %v2860 = vpack.c.b16 %v1924, %v1916
          %v2861 = vpack.c.b16 %v1925, %v1917
          %v2862 = vpack.c.b16 %v1926, %v1918
          %v2863 = vpack.c.b16 %v1927, %v1919
          %v2864 = vpack.c.b16 %v1928, %v1920
          %v2865 = vpack.c.b16 %v1929, %v1921
          %v2866 = vpack.c.b16 %v1930, %v1922
          %v2867 = vpack.c.b16 %v1931, %v1923
          %v2868 = vpack.c.b16 %v1940, %v1932
          %v2869 = vpack.c.b16 %v1941, %v1933
          %v2870 = vpack.c.b16 %v1942, %v1934
          %v2871 = vpack.c.b16 %v1943, %v1935
          %v2872 = vpack.c.b16 %v1944, %v1936
          %v2873 = vpack.c.b16 %v1945, %v1937
          %v2874 = vpack.c.b16 %v1946, %v1938
          %v2875 = vpack.c.b16 %v1947, %v1939
          %v2876 = vpack.c.b16 %v1956, %v1948
          %v2877 = vpack.c.b16 %v1957, %v1949
          %v2878 = vpack.c.b16 %v1958, %v1950
          %v2879 = vpack.c.b16 %v1959, %v1951
          %v2880 = vpack.c.b16 %v1960, %v1952
          %v2881 = vpack.c.b16 %v1961, %v1953
          %v2882 = vpack.c.b16 %v1962, %v1954
          %v2883 = vpack.c.b16 %v1963, %v1955
          %v2884 = vpack.c.b16 %v1972, %v1964
          %v2885 = vpack.c.b16 %v1973, %v1965
          %v2886 = vpack.c.b16 %v1974, %v1966
          %v2887 = vpack.c.b16 %v1975, %v1967
          %v2888 = vpack.c.b16 %v1976, %v1968
          %v2889 = vpack.c.b16 %v1977, %v1969
          %v2890 = vpack.c.b16 %v1978, %v1970
          %v2891 = vpack.c.b16 %v1979, %v1971
          %v2892 = vpack.c.b16 %v1988, %v1980
          %v2893 = vpack.c.b16 %v1989, %v1981
          %v2894 = vpack.c.b16 %v1990, %v1982
          %v2895 = vpack.c.b16 %v1991, %v1983
          %v2896 = vpack.c.b16 %v1992, %v1984
          %v2897 = vpack.c.b16 %v1993, %v1985
          %v2898 = vpack.c.b16 %v1994, %v1986
          %v2899 = vpack.c.b16 %v1995, %v1987
          %v2900 = vpack.c.b16 %v2004, %v1996
          %v2901 = vpack.c.b16 %v2005, %v1997
          %v2902 = vpack.c.b16 %v2006, %v1998
          %v2903 = vpack.c.b16 %v2007, %v1999
          %v2904 = vpack.c.b16 %v2008, %v2000
          %v2905 = vpack.c.b16 %v2009, %v2001
          %v2906 = vpack.c.b16 %v2010, %v2002
          %v2907 = vpack.c.b16 %v2011, %v2003
          %v2908 = vpack.c.b16 %v2020, %v2012
          %v2909 = vpack.c.b16 %v2021, %v2013
          %v2910 = vpack.c.b16 %v2022, %v2014
          %v2911 = vpack.c.b16 %v2023, %v2015
          %v2912 = vpack.c.b16 %v2024, %v2016
          %v2913 = vpack.c.b16 %v2025, %v2017
          %v2914 = vpack.c.b16 %v2026, %v2018
          %v2915 = vpack.c.b16 %v2027, %v2019
          %v2916 = vpack.c.b16 %v2036, %v2028
          %v2917 = vpack.c.b16 %v2037, %v2029
          %v2918 = vpack.c.b16 %v2038, %v2030
          %v2919 = vpack.c.b16 %v2039, %v2031
          %v2920 = vpack.c.b16 %v2040, %v2032
          %v2921 = vpack.c.b16 %v2041, %v2033
          %v2922 = vpack.c.b16 %v2042, %v2034
          %v2923 = vpack.c.b16 %v2043, %v2035
          %v2924 = vpack.c.b16 %v2052, %v2044
          %v2925 = vpack.c.b16 %v2053, %v2045
          %v2926 = vpack.c.b16 %v2054, %v2046
          %v2927 = vpack.c.b16 %v2055, %v2047
          %v2928 = vpack.c.b16 %v2056, %v2048
          %v2929 = vpack.c.b16 %v2057, %v2049
          %v2930 = vpack.c.b16 %v2058, %v2050
          %v2931 = vpack.c.b16 %v2059, %v2051
          %v2932 = vpack.c.b16 %v2068, %v2060
          %v2933 = vpack.c.b16 %v2069, %v2061
          %v2934 = vpack.c.b16 %v2070, %v2062
          %v2935 = vpack.c.b16 %v2071, %v2063
          %v2936 = vpack.c.b16 %v2072, %v2064
          %v2937 = vpack.c.b16 %v2073, %v2065
          %v2938 = vpack.c.b16 %v2074, %v2066
          %v2939 = vpack.c.b16 %v2075, %v2067
          %v2940 = vpack.c.b16 %v2084, %v2076
          %v2941 = vpack.c.b16 %v2085, %v2077
          %v2942 = vpack.c.b16 %v2086, %v2078
          %v2943 = vpack.c.b16 %v2087, %v2079
          %v2944 = vpack.c.b16 %v2088, %v2080
          %v2945 = vpack.c.b16 %v2089, %v2081
          %v2946 = vpack.c.b16 %v2090, %v2082
          %v2947 = vpack.c.b16 %v2091, %v2083
          %v2948 = vpack.c.b16 %v2100, %v2092
          %v2949 = vpack.c.b16 %v2101, %v2093
          %v2950 = vpack.c.b16 %v2102, %v2094
          %v2951 = vpack.c.b16 %v2103, %v2095
          %v2952 = vpack.c.b16 %v2104, %v2096
          %v2953 = vpack.c.b16 %v2105, %v2097
          %v2954 = vpack.c.b16 %v2106, %v2098
          %v2955 = vpack.c.b16 %v2107, %v2099
          %v2956 = vpack.c.b16 %v2116, %v2108
          %v2957 = vpack.c.b16 %v2117, %v2109
          %v2958 = vpack.c.b16 %v2118, %v2110
          %v2959 = vpack.c.b16 %v2119, %v2111
          %v2960 = vpack.c.b16 %v2120, %v2112
          %v2961 = vpack.c.b16 %v2121, %v2113
          %v2962 = vpack.c.b16 %v2122, %v2114
          %v2963 = vpack.c.b16 %v2123, %v2115
          %v2964 = vpack.c.b16 %v2132, %v2124
          %v2965 = vpack.c.b16 %v2133, %v2125
          %v2966 = vpack.c.b16 %v2134, %v2126
          %v2967 = vpack.c.b16 %v2135, %v2127
          %v2968 = vpack.c.b16 %v2136, %v2128
          %v2969 = vpack.c.b16 %v2137, %v2129
          %v2970 = vpack.c.b16 %v2138, %v2130
          %v2971 = vpack.c.b16 %v2139, %v2131
          %v2972 = vpack.c.b16 %v2148, %v2140
          %v2973 = vpack.c.b16 %v2149, %v2141
          %v2974 = vpack.c.b16 %v2150, %v2142
          %v2975 = vpack.c.b16 %v2151, %v2143
          %v2976 = vpack.c.b16 %v2152, %v2144
          %v2977 = vpack.c.b16 %v2153, %v2145
          %v2978 = vpack.c.b16 %v2154, %v2146
          %v2979 = vpack.c.b16 %v2155, %v2147
          %v2980 = vpack.c.b16 %v2164, %v2156
          %v2981 = vpack.c.b16 %v2165, %v2157
          %v2982 = vpack.c.b16 %v2166, %v2158
          %v2983 = vpack.c.b16 %v2167, %v2159
          %v2984 = vpack.c.b16 %v2168, %v2160
          %v2985 = vpack.c.b16 %v2169, %v2161
          %v2986 = vpack.c.b16 %v2170, %v2162
          %v2987 = vpack.c.b16 %v2171, %v2163
          %v2988 = vpack.c.b16 %v2180, %v2172
          %v2989 = vpack.c.b16 %v2181, %v2173
          %v2990 = vpack.c.b16 %v2182, %v2174
          %v2991 = vpack.c.b16 %v2183, %v2175
          %v2992 = vpack.c.b16 %v2184, %v2176
          %v2993 = vpack.c.b16 %v2185, %v2177
          %v2994 = vpack.c.b16 %v2186, %v2178
          %v2995 = vpack.c.b16 %v2187, %v2179
          %v2996 = vpack.c.b16 %v2196, %v2188
          %v2997 = vpack.c.b16 %v2197, %v2189
          %v2998 = vpack.c.b16 %v2198, %v2190
          %v2999 = vpack.c.b16 %v2199, %v2191
          %v3000 = vpack.c.b16 %v2200, %v2192
          %v3001 = vpack.c.b16 %v2201, %v2193
          %v3002 = vpack.c.b16 %v2202, %v2194
          %v3003 = vpack.c.b16 %v2203, %v2195
          %v3004 = vpack.c.b16 %v2212, %v2204
          %v3005 = vpack.c.b16 %v2213, %v2205
          %v3006 = vpack.c.b16 %v2214, %v2206
          %v3007 = vpack.c.b16 %v2215, %v2207
          %v3008 = vpack.c.b16 %v2216, %v2208
          %v3009 = vpack.c.b16 %v2217, %v2209
          %v3010 = vpack.c.b16 %v2218, %v2210
          %v3011 = vpack.c.b16 %v2219, %v2211
          %v3012 = vpack.c.b16 %v2228, %v2220
          %v3013 = vpack.c.b16 %v2229, %v2221
          %v3014 = vpack.c.b16 %v2230, %v2222
          %v3015 = vpack.c.b16 %v2231, %v2223
          %v3016 = vpack.c.b16 %v2232, %v2224
          %v3017 = vpack.c.b16 %v2233, %v2225
          %v3018 = vpack.c.b16 %v2234, %v2226
          %v3019 = vpack.c.b16 %v2235, %v2227
          %v3020 = vpack.c.b16 %v2244, %v2236
          %v3021 = vpack.c.b16 %v2245, %v2237
          %v3022 = vpack.c.b16 %v2246, %v2238
          %v3023 = vpack.c.b16 %v2247, %v2239
          %v3024 = vpack.c.b16 %v2248, %v2240
          %v3025 = vpack.c.b16 %v2249, %v2241
          %v3026 = vpack.c.b16 %v2250, %v2242
          %v3027 = vpack.c.b16 %v2251, %v2243
          %v3028 = vpack.c.b16 %v2260, %v2252
          %v3029 = vpack.c.b16 %v2261, %v2253
          %v3030 = vpack.c.b16 %v2262, %v2254
          %v3031 = vpack.c.b16 %v2263, %v2255
          %v3032 = vpack.c.b16 %v2264, %v2256
          %v3033 = vpack.c.b16 %v2265, %v2257
          %v3034 = vpack.c.b16 %v2266, %v2258
          %v3035 = vpack.c.b16 %v2267, %v2259
          %v3036 = vpack.c.b16 %v2276, %v2268
          %v3037 = vpack.c.b16 %v2277, %v2269
          %v3038 = vpack.c.b16 %v2278, %v2270
          %v3039 = vpack.c.b16 %v2279, %v2271
          %v3040 = vpack.c.b16 %v2280, %v2272
          %v3041 = vpack.c.b16 %v2281, %v2273
          %v3042 = vpack.c.b16 %v2282, %v2274
          %v3043 = vpack.c.b16 %v2283, %v2275
          %v3044 = vpack.c.b16 %v2292, %v2284
          %v3045 = vpack.c.b16 %v2293, %v2285
          %v3046 = vpack.c.b16 %v2294, %v2286
          %v3047 = vpack.c.b16 %v2295, %v2287
          %v3048 = vpack.c.b16 %v2296, %v2288
          %v3049 = vpack.c.b16 %v2297, %v2289
          %v3050 = vpack.c.b16 %v2298, %v2290
          %v3051 = vpack.c.b16 %v2299, %v2291
          %v3052 = vpack.c.b16 %v2308, %v2300
          %v3053 = vpack.c.b16 %v2309, %v2301
          %v3054 = vpack.c.b16 %v2310, %v2302
          %v3055 = vpack.c.b16 %v2311, %v2303
          %v3056 = vpack.c.b16 %v2312, %v2304
          %v3057 = vpack.c.b16 %v2313, %v2305
          %v3058 = vpack.c.b16 %v2314, %v2306
          %v3059 = vpack.c.b16 %v2315, %v2307
          %v3060 = vpack.c.b16 %v2324, %v2316
          %v3061 = vpack.c.b16 %v2325, %v2317
          %v3062 = vpack.c.b16 %v2326, %v2318
          %v3063 = vpack.c.b16 %v2327, %v2319
          %v3064 = vpack.c.b16 %v2328, %v2320
          %v3065 = vpack.c.b16 %v2329, %v2321
          %v3066 = vpack.c.b16 %v2330, %v2322
          %v3067 = vpack.c.b16 %v2331, %v2323
          %v3068 = vpack.c.b16 %v2340, %v2332
          %v3069 = vpack.c.b16 %v2341, %v2333
          %v3070 = vpack.c.b16 %v2342, %v2334
          %v3071 = vpack.c.b16 %v2343, %v2335
          %v3072 = vpack.c.b16 %v2344, %v2336
          %v3073 = vpack.c.b16 %v2345, %v2337
          %v3074 = vpack.c.b16 %v2346, %v2338
          %v3075 = vpack.c.b16 %v2347, %v2339
          %v3076 = vpack.c.b16 %v2356, %v2348
          %v3077 = vpack.c.b16 %v2357, %v2349
          %v3078 = vpack.c.b16 %v2358, %v2350
          %v3079 = vpack.c.b16 %v2359, %v2351
          %v3080 = vpack.c.b16 %v2360, %v2352
          %v3081 = vpack.c.b16 %v2361, %v2353
          %v3082 = vpack.c.b16 %v2362, %v2354
          %v3083 = vpack.c.b16 %v2363, %v2355
          %v3084 = vpack.c.b16 %v2372, %v2364
          %v3085 = vpack.c.b16 %v2373, %v2365
          %v3086 = vpack.c.b16 %v2374, %v2366
          %v3087 = vpack.c.b16 %v2375, %v2367
          %v3088 = vpack.c.b16 %v2376, %v2368
          %v3089 = vpack.c.b16 %v2377, %v2369
          %v3090 = vpack.c.b16 %v2378, %v2370
          %v3091 = vpack.c.b16 %v2379, %v2371
          %v3092 = vpack.c.b16 %v2388, %v2380
          %v3093 = vpack.c.b16 %v2389, %v2381
          %v3094 = vpack.c.b16 %v2390, %v2382
          %v3095 = vpack.c.b16 %v2391, %v2383
          %v3096 = vpack.c.b16 %v2392, %v2384
          %v3097 = vpack.c.b16 %v2393, %v2385
          %v3098 = vpack.c.b16 %v2394, %v2386
          %v3099 = vpack.c.b16 %v2395, %v2387
          %v3100 = vpack.c.b16 %v2404, %v2396
          %v3101 = vpack.c.b16 %v2405, %v2397
          %v3102 = vpack.c.b16 %v2406, %v2398
          %v3103 = vpack.c.b16 %v2407, %v2399
          %v3104 = vpack.c.b16 %v2408, %v2400
          %v3105 = vpack.c.b16 %v2409, %v2401
          %v3106 = vpack.c.b16 %v2410, %v2402
          %v3107 = vpack.c.b16 %v2411, %v2403
          %v3108 = vpack.c.b16 %v2420, %v2412
          %v3109 = vpack.c.b16 %v2421, %v2413
          %v3110 = vpack.c.b16 %v2422, %v2414
          %v3111 = vpack.c.b16 %v2423, %v2415
          %v3112 = vpack.c.b16 %v2424, %v2416
          %v3113 = vpack.c.b16 %v2425, %v2417
          %v3114 = vpack.c.b16 %v2426, %v2418
          %v3115 = vpack.c.b16 %v2427, %v2419
          %v3116 = vpack.c.b16 %v2436, %v2428
          %v3117 = vpack.c.b16 %v2437, %v2429
          %v3118 = vpack.c.b16 %v2438, %v2430
          %v3119 = vpack.c.b16 %v2439, %v2431
          %v3120 = vpack.c.b16 %v2440, %v2432
          %v3121 = vpack.c.b16 %v2441, %v2433
          %v3122 = vpack.c.b16 %v2442, %v2434
          %v3123 = vpack.c.b16 %v2443, %v2435
          %v3124 = vpack.c.b16 %v2452, %v2444
          %v3125 = vpack.c.b16 %v2453, %v2445
          %v3126 = vpack.c.b16 %v2454, %v2446
          %v3127 = vpack.c.b16 %v2455, %v2447
          %v3128 = vpack.c.b16 %v2456, %v2448
          %v3129 = vpack.c.b16 %v2457, %v2449
          %v3130 = vpack.c.b16 %v2458, %v2450
          %v3131 = vpack.c.b16 %v2459, %v2451
          %v3132 = vpack.c.b16 %v2468, %v2460
          %v3133 = vpack.c.b16 %v2469, %v2461
          %v3134 = vpack.c.b16 %v2470, %v2462
          %v3135 = vpack.c.b16 %v2471, %v2463
          %v3136 = vpack.c.b16 %v2472, %v2464
          %v3137 = vpack.c.b16 %v2473, %v2465
          %v3138 = vpack.c.b16 %v2474, %v2466
          %v3139 = vpack.c.b16 %v2475, %v2467
          %v3140 = vpack.c.b16 %v2484, %v2476
          %v3141 = vpack.c.b16 %v2485, %v2477
          %v3142 = vpack.c.b16 %v2486, %v2478
          %v3143 = vpack.c.b16 %v2487, %v2479
          %v3144 = vpack.c.b16 %v2488, %v2480
          %v3145 = vpack.c.b16 %v2489, %v2481
          %v3146 = vpack.c.b16 %v2490, %v2482
          %v3147 = vpack.c.b16 %v2491, %v2483
          %v3148 = vpack.c.b16 %v2500, %v2492
          %v3149 = vpack.c.b16 %v2501, %v2493
          %v3150 = vpack.c.b16 %v2502, %v2494
          %v3151 = vpack.c.b16 %v2503, %v2495
          %v3152 = vpack.c.b16 %v2504, %v2496
          %v3153 = vpack.c.b16 %v2505, %v2497
          %v3154 = vpack.c.b16 %v2506, %v2498
          %v3155 = vpack.c.b16 %v2507, %v2499
          %v3156 = vpack.c.b16 %v2516, %v2508
          %v3157 = vpack.c.b16 %v2517, %v2509
          %v3158 = vpack.c.b16 %v2518, %v2510
          %v3159 = vpack.c.b16 %v2519, %v2511
          %v3160 = vpack.c.b16 %v2520, %v2512
          %v3161 = vpack.c.b16 %v2521, %v2513
          %v3162 = vpack.c.b16 %v2522, %v2514
          %v3163 = vpack.c.b16 %v2523, %v2515
          %v3164 = vpack.c.b16 %v2532, %v2524
          %v3165 = vpack.c.b16 %v2533, %v2525
          %v3166 = vpack.c.b16 %v2534, %v2526
          %v3167 = vpack.c.b16 %v2535, %v2527
          %v3168 = vpack.c.b16 %v2536, %v2528
          %v3169 = vpack.c.b16 %v2537, %v2529
          %v3170 = vpack.c.b16 %v2538, %v2530
          %v3171 = vpack.c.b16 %v2539, %v2531
          %v3172 = vpack.c.b16 %v2548, %v2540
          %v3173 = vpack.c.b16 %v2549, %v2541
          %v3174 = vpack.c.b16 %v2550, %v2542
          %v3175 = vpack.c.b16 %v2551, %v2543
          %v3176 = vpack.c.b16 %v2552, %v2544
          %v3177 = vpack.c.b16 %v2553, %v2545
          %v3178 = vpack.c.b16 %v2554, %v2546
          %v3179 = vpack.c.b16 %v2555, %v2547
          %v3180 = vpack.c.b16 %v2564, %v2556
          %v3181 = vpack.c.b16 %v2565, %v2557
          %v3182 = vpack.c.b16 %v2566, %v2558
          %v3183 = vpack.c.b16 %v2567, %v2559
          %v3184 = vpack.c.b16 %v2568, %v2560
          %v3185 = vpack.c.b16 %v2569, %v2561
          %v3186 = vpack.c.b16 %v2570, %v2562
          %v3187 = vpack.c.b16 %v2571, %v2563
          %v3188 = vpack.c.b16 %v2580, %v2572
          %v3189 = vpack.c.b16 %v2581, %v2573
          %v3190 = vpack.c.b16 %v2582, %v2574
          %v3191 = vpack.c.b16 %v2583, %v2575
          %v3192 = vpack.c.b16 %v2584, %v2576
          %v3193 = vpack.c.b16 %v2585, %v2577
          %v3194 = vpack.c.b16 %v2586, %v2578
          %v3195 = vpack.c.b16 %v2587, %v2579
          %v3196 = vpack.c.b16 %v2596, %v2588
          %v3197 = vpack.c.b16 %v2597, %v2589
          %v3198 = vpack.c.b16 %v2598, %v2590
          %v3199 = vpack.c.b16 %v2599, %v2591
          %v3200 = vpack.c.b16 %v2600, %v2592
          %v3201 = vpack.c.b16 %v2601, %v2593
          %v3202 = vpack.c.b16 %v2602, %v2594
          %v3203 = vpack.c.b16 %v2603, %v2595
          %v3204 = vpack.c.b16 %v2612, %v2604
          %v3205 = vpack.c.b16 %v2613, %v2605
          %v3206 = vpack.c.b16 %v2614, %v2606
          %v3207 = vpack.c.b16 %v2615, %v2607
          %v3208 = vpack.c.b16 %v2616, %v2608
          %v3209 = vpack.c.b16 %v2617, %v2609
          %v3210 = vpack.c.b16 %v2618, %v2610
          %v3211 = vpack.c.b16 %v2619, %v2611
          %v3212 = vpack.c.b16 %v2628, %v2620
          %v3213 = vpack.c.b16 %v2629, %v2621
          %v3214 = vpack.c.b16 %v2630, %v2622
          %v3215 = vpack.c.b16 %v2631, %v2623
          %v3216 = vpack.c.b16 %v2632, %v2624
          %v3217 = vpack.c.b16 %v2633, %v2625
          %v3218 = vpack.c.b16 %v2634, %v2626
          %v3219 = vpack.c.b16 %v2635, %v2627
          %v3220 = vpack.c.b16 %v2644, %v2636
          %v3221 = vpack.c.b16 %v2645, %v2637
          %v3222 = vpack.c.b16 %v2646, %v2638
          %v3223 = vpack.c.b16 %v2647, %v2639
          %v3224 = vpack.c.b16 %v2648, %v2640
          %v3225 = vpack.c.b16 %v2649, %v2641
          %v3226 = vpack.c.b16 %v2650, %v2642
          %v3227 = vpack.c.b16 %v2651, %v2643
          %v3228 = vpack.c.b16 %v2660, %v2652
          %v3229 = vpack.c.b16 %v2661, %v2653
          %v3230 = vpack.c.b16 %v2662, %v2654
          %v3231 = vpack.c.b16 %v2663, %v2655
          %v3232 = vpack.c.b16 %v2664, %v2656
          %v3233 = vpack.c.b16 %v2665, %v2657
          %v3234 = vpack.c.b16 %v2666, %v2658
          %v3235 = vpack.c.b16 %v2667, %v2659
          %v3236 = vpack.c.b16 %v2676, %v2668
          %v3237 = vpack.c.b16 %v2677, %v2669
          %v3238 = vpack.c.b16 %v2678, %v2670
          %v3239 = vpack.c.b16 %v2679, %v2671
          %v3240 = vpack.c.b16 %v2680, %v2672
          %v3241 = vpack.c.b16 %v2681, %v2673
          %v3242 = vpack.c.b16 %v2682, %v2674
          %v3243 = vpack.c.b16 %v2683, %v2675
          %v3244 = vpack.c.b16 %v2692, %v2684
          %v3245 = vpack.c.b16 %v2693, %v2685
          %v3246 = vpack.c.b16 %v2694, %v2686
          %v3247 = vpack.c.b16 %v2695, %v2687
          %v3248 = vpack.c.b16 %v2696, %v2688
          %v3249 = vpack.c.b16 %v2697, %v2689
          %v3250 = vpack.c.b16 %v2698, %v2690
          %v3251 = vpack.c.b16 %v2699, %v2691
          %v3252 = vpack.c.b16 %v2708, %v2700
          %v3253 = vpack.c.b16 %v2709, %v2701
          %v3254 = vpack.c.b16 %v2710, %v2702
          %v3255 = vpack.c.b16 %v2711, %v2703
          %v3256 = vpack.c.b16 %v2712, %v2704
          %v3257 = vpack.c.b16 %v2713, %v2705
          %v3258 = vpack.c.b16 %v2714, %v2706
          %v3259 = vpack.c.b16 %v2715, %v2707
          %v3260 = vpack.c.b16 %v2724, %v2716
          %v3261 = vpack.c.b16 %v2725, %v2717
          %v3262 = vpack.c.b16 %v2726, %v2718
          %v3263 = vpack.c.b16 %v2727, %v2719
          %v3264 = vpack.c.b16 %v2728, %v2720
          %v3265 = vpack.c.b16 %v2729, %v2721
          %v3266 = vpack.c.b16 %v2730, %v2722
          %v3267 = vpack.c.b16 %v2731, %v2723
          %v3268 = vpack.c.b16 %v2740, %v2732
          %v3269 = vpack.c.b16 %v2741, %v2733
          %v3270 = vpack.c.b16 %v2742, %v2734
          %v3271 = vpack.c.b16 %v2743, %v2735
          %v3272 = vpack.c.b16 %v2744, %v2736
          %v3273 = vpack.c.b16 %v2745, %v2737
          %v3274 = vpack.c.b16 %v2746, %v2738
          %v3275 = vpack.c.b16 %v2747, %v2739
          %v3276 = vpack.c.b16 %v2756, %v2748
          %v3277 = vpack.c.b16 %v2757, %v2749
          %v3278 = vpack.c.b16 %v2758, %v2750
          %v3279 = vpack.c.b16 %v2759, %v2751
          %v3280 = vpack.c.b16 %v2760, %v2752
          %v3281 = vpack.c.b16 %v2761, %v2753
          %v3282 = vpack.c.b16 %v2762, %v2754
          %v3283 = vpack.c.b16 %v2763, %v2755
          %v3284 = vpack.c.b16 %v2772, %v2764
          %v3285 = vpack.c.b16 %v2773, %v2765
          %v3286 = vpack.c.b16 %v2774, %v2766
          %v3287 = vpack.c.b16 %v2775, %v2767
          %v3288 = vpack.c.b16 %v2776, %v2768
          %v3289 = vpack.c.b16 %v2777, %v2769
          %v3290 = vpack.c.b16 %v2778, %v2770
          %v3291 = vpack.c.b16 %v2779, %v2771
          %v3932 = vunpack.c.l.b16 %v1116
          %v3933 = vunpack.c.l.b16 %v1117
          %v3934 = vunpack.c.l.b16 %v1118
          %v3935 = vunpack.c.l.b16 %v1119
          %v3936 = vunpack.c.l.b16 %v1120
          %v3937 = vunpack.c.l.b16 %v1121
          %v3938 = vunpack.c.l.b16 %v1122
          %v3939 = vunpack.c.l.b16 %v1123
          %v3940 = vunpack.c.l.b16 %v1124
          %v3941 = vunpack.c.l.b16 %v1125
          %v3942 = vunpack.c.l.b16 %v1126
          %v3943 = vunpack.c.l.b16 %v1127
          %v3944 = vunpack.c.l.b16 %v1128
          %v3945 = vunpack.c.l.b16 %v1129
          %v3946 = vunpack.c.l.b16 %v1130
          %v3947 = vunpack.c.l.b16 %v1131
          %v3948 = vunpack.c.l.b16 %v1132
          %v3949 = vunpack.c.l.b16 %v1133
          %v3950 = vunpack.c.l.b16 %v1134
          %v3951 = vunpack.c.l.b16 %v1135
          %v3952 = vunpack.c.l.b16 %v1136
          %v3953 = vunpack.c.l.b16 %v1137
          %v3954 = vunpack.c.l.b16 %v1138
          %v3955 = vunpack.c.l.b16 %v1139
          %v3956 = vunpack.c.l.b16 %v1140
          %v3957 = vunpack.c.l.b16 %v1141
          %v3958 = vunpack.c.l.b16 %v1142
          %v3959 = vunpack.c.l.b16 %v1143
          %v3960 = vunpack.c.l.b16 %v1144
          %v3961 = vunpack.c.l.b16 %v1145
          %v3962 = vunpack.c.l.b16 %v1146
          %v3963 = vunpack.c.l.b16 %v1147
          %v3964 = vunpack.c.l.b16 %v1148
          %v3965 = vunpack.c.l.b16 %v1149
          %v3966 = vunpack.c.l.b16 %v1150
          %v3967 = vunpack.c.l.b16 %v1151
          %v3968 = vunpack.c.l.b16 %v1152
          %v3969 = vunpack.c.l.b16 %v1153
          %v3970 = vunpack.c.l.b16 %v1154
          %v3971 = vunpack.c.l.b16 %v1155
          %v3972 = vunpack.c.l.b16 %v1156
          %v3973 = vunpack.c.l.b16 %v1157
          %v3974 = vunpack.c.l.b16 %v1158
          %v3975 = vunpack.c.l.b16 %v1159
          %v3976 = vunpack.c.l.b16 %v1160
          %v3977 = vunpack.c.l.b16 %v1161
          %v3978 = vunpack.c.l.b16 %v1162
          %v3979 = vunpack.c.l.b16 %v1163
          %v3980 = vunpack.c.l.b16 %v1164
          %v3981 = vunpack.c.l.b16 %v1165
          %v3982 = vunpack.c.l.b16 %v1166
          %v3983 = vunpack.c.l.b16 %v1167
          %v3984 = vunpack.c.l.b16 %v1168
          %v3985 = vunpack.c.l.b16 %v1169
          %v3986 = vunpack.c.l.b16 %v1170
          %v3987 = vunpack.c.l.b16 %v1171
          %v3988 = vunpack.c.l.b16 %v1172
          %v3989 = vunpack.c.l.b16 %v1173
          %v3990 = vunpack.c.l.b16 %v1174
          %v3991 = vunpack.c.l.b16 %v1175
          %v3992 = vunpack.c.l.b16 %v1176
          %v3993 = vunpack.c.l.b16 %v1177
          %v3994 = vunpack.c.l.b16 %v1178
          %v3995 = vunpack.c.l.b16 %v1179
          %v3996 = vunpack.c.l.b16 %v1180
          %v3997 = vunpack.c.l.b16 %v1181
          %v3998 = vunpack.c.l.b16 %v1182
          %v3999 = vunpack.c.l.b16 %v1183
          %v4000 = vunpack.c.l.b16 %v1184
          %v4001 = vunpack.c.l.b16 %v1185
          %v4002 = vunpack.c.l.b16 %v1186
          %v4003 = vunpack.c.l.b16 %v1187
          %v4004 = vunpack.c.l.b16 %v1188
          %v4005 = vunpack.c.l.b16 %v1189
          %v4006 = vunpack.c.l.b16 %v1190
          %v4007 = vunpack.c.l.b16 %v1191
          %v4008 = vunpack.c.l.b16 %v1192
          %v4009 = vunpack.c.l.b16 %v1193
          %v4010 = vunpack.c.l.b16 %v1194
          %v4011 = vunpack.c.l.b16 %v1195
          %v4012 = vunpack.c.l.b16 %v1196
          %v4013 = vunpack.c.l.b16 %v1197
          %v4014 = vunpack.c.l.b16 %v1198
          %v4015 = vunpack.c.l.b16 %v1199
          %v4016 = vunpack.c.l.b16 %v1200
          %v4017 = vunpack.c.l.b16 %v1201
          %v4018 = vunpack.c.l.b16 %v1202
          %v4019 = vunpack.c.l.b16 %v1203
          %v4020 = vunpack.c.l.b16 %v1204
          %v4021 = vunpack.c.l.b16 %v1205
          %v4022 = vunpack.c.l.b16 %v1206
          %v4023 = vunpack.c.l.b16 %v1207
          %v4024 = vunpack.c.l.b16 %v1208
          %v4025 = vunpack.c.l.b16 %v1209
          %v4026 = vunpack.c.l.b16 %v1210
          %v4027 = vunpack.c.l.b16 %v1211
          %v4028 = vunpack.c.l.b16 %v1212
          %v4029 = vunpack.c.l.b16 %v1213
          %v4030 = vunpack.c.l.b16 %v1214
          %v4031 = vunpack.c.l.b16 %v1215
          %v4032 = vunpack.c.l.b16 %v1216
          %v4033 = vunpack.c.l.b16 %v1217
          %v4034 = vunpack.c.l.b16 %v1218
          %v4035 = vunpack.c.l.b16 %v1219
          %v4036 = vunpack.c.l.b16 %v1220
          %v4037 = vunpack.c.l.b16 %v1221
          %v4038 = vunpack.c.l.b16 %v1222
          %v4039 = vunpack.c.l.b16 %v1223
          %v4040 = vunpack.c.l.b16 %v1224
          %v4041 = vunpack.c.l.b16 %v1225
          %v4042 = vunpack.c.l.b16 %v1226
          %v4043 = vunpack.c.l.b16 %v1227
          %v4044 = vunpack.c.l.b16 %v1228
          %v4045 = vunpack.c.l.b16 %v1229
          %v4046 = vunpack.c.l.b16 %v1230
          %v4047 = vunpack.c.l.b16 %v1231
          %v4048 = vunpack.c.l.b16 %v1232
          %v4049 = vunpack.c.l.b16 %v1233
          %v4050 = vunpack.c.l.b16 %v1234
          %v4051 = vunpack.c.l.b16 %v1235
          %v4052 = vunpack.c.l.b16 %v1236
          %v4053 = vunpack.c.l.b16 %v1237
          %v4054 = vunpack.c.l.b16 %v1238
          %v4055 = vunpack.c.l.b16 %v1239
          %v4056 = vunpack.c.l.b16 %v1240
          %v4057 = vunpack.c.l.b16 %v1241
          %v4058 = vunpack.c.l.b16 %v1242
          %v4059 = vunpack.c.l.b16 %v1243
          %v4060 = vpack.c.b16 %v3933, %v3932
          %v4061 = vpack.c.b16 %v3935, %v3934
          %v4062 = vpack.c.b16 %v3937, %v3936
          %v4063 = vpack.c.b16 %v3939, %v3938
          %v4064 = vpack.c.b16 %v3941, %v3940
          %v4065 = vpack.c.b16 %v3943, %v3942
          %v4066 = vpack.c.b16 %v3945, %v3944
          %v4067 = vpack.c.b16 %v3947, %v3946
          %v4068 = vpack.c.b16 %v3949, %v3948
          %v4069 = vpack.c.b16 %v3951, %v3950
          %v4070 = vpack.c.b16 %v3953, %v3952
          %v4071 = vpack.c.b16 %v3955, %v3954
          %v4072 = vpack.c.b16 %v3957, %v3956
          %v4073 = vpack.c.b16 %v3959, %v3958
          %v4074 = vpack.c.b16 %v3961, %v3960
          %v4075 = vpack.c.b16 %v3963, %v3962
          %v4076 = vpack.c.b16 %v3965, %v3964
          %v4077 = vpack.c.b16 %v3967, %v3966
          %v4078 = vpack.c.b16 %v3969, %v3968
          %v4079 = vpack.c.b16 %v3971, %v3970
          %v4080 = vpack.c.b16 %v3973, %v3972
          %v4081 = vpack.c.b16 %v3975, %v3974
          %v4082 = vpack.c.b16 %v3977, %v3976
          %v4083 = vpack.c.b16 %v3979, %v3978
          %v4084 = vpack.c.b16 %v3981, %v3980
          %v4085 = vpack.c.b16 %v3983, %v3982
          %v4086 = vpack.c.b16 %v3985, %v3984
          %v4087 = vpack.c.b16 %v3987, %v3986
          %v4088 = vpack.c.b16 %v3989, %v3988
          %v4089 = vpack.c.b16 %v3991, %v3990
          %v4090 = vpack.c.b16 %v3993, %v3992
          %v4091 = vpack.c.b16 %v3995, %v3994
          %v4092 = vpack.c.b16 %v3997, %v3996
          %v4093 = vpack.c.b16 %v3999, %v3998
          %v4094 = vpack.c.b16 %v4001, %v4000
          %v4095 = vpack.c.b16 %v4003, %v4002
          %v4096 = vpack.c.b16 %v4005, %v4004
          %v4097 = vpack.c.b16 %v4007, %v4006
          %v4098 = vpack.c.b16 %v4009, %v4008
          %v4099 = vpack.c.b16 %v4011, %v4010
          %v4100 = vpack.c.b16 %v4013, %v4012
          %v4101 = vpack.c.b16 %v4015, %v4014
          %v4102 = vpack.c.b16 %v4017, %v4016
          %v4103 = vpack.c.b16 %v4019, %v4018
          %v4104 = vpack.c.b16 %v4021, %v4020
          %v4105 = vpack.c.b16 %v4023, %v4022
          %v4106 = vpack.c.b16 %v4025, %v4024
          %v4107 = vpack.c.b16 %v4027, %v4026
          %v4108 = vpack.c.b16 %v4029, %v4028
          %v4109 = vpack.c.b16 %v4031, %v4030
          %v4110 = vpack.c.b16 %v4033, %v4032
          %v4111 = vpack.c.b16 %v4035, %v4034
          %v4112 = vpack.c.b16 %v4037, %v4036
          %v4113 = vpack.c.b16 %v4039, %v4038
          %v4114 = vpack.c.b16 %v4041, %v4040
          %v4115 = vpack.c.b16 %v4043, %v4042
          %v4116 = vpack.c.b16 %v4045, %v4044
          %v4117 = vpack.c.b16 %v4047, %v4046
          %v4118 = vpack.c.b16 %v4049, %v4048
          %v4119 = vpack.c.b16 %v4051, %v4050
          %v4120 = vpack.c.b16 %v4053, %v4052
          %v4121 = vpack.c.b16 %v4055, %v4054
          %v4122 = vpack.c.b16 %v4057, %v4056
          %v4123 = vpack.c.b16 %v4059, %v4058
          %4188 = vmatprep.subr.bf16.mxu0 0
          %4189 = vmatpush1.bf16.msra.mxu0 %v4060
          %4190 = vmatprep.subr.bf16.mxu0 0
          %4191 = vmatpush1.bf16.msra.mxu0 %v4061
          %4192 = vmatprep.subr.bf16.mxu0 0
          %4193 = vmatpush1.bf16.msra.mxu0 %v4062
          %4194 = vmatprep.subr.bf16.mxu0 0
          %4195 = vmatpush1.bf16.msra.mxu0 %v4063
          %4196 = vmatprep.subr.bf16.mxu0 0
          %4197 = vmatpush1.bf16.msra.mxu0 %v4064
          %4198 = vmatprep.subr.bf16.mxu0 0
          %4199 = vmatpush1.bf16.msra.mxu0 %v4065
          %4200 = vmatprep.subr.bf16.mxu0 0
          %4201 = vmatpush1.bf16.msra.mxu0 %v4066
          %4202 = vmatprep.subr.bf16.mxu0 0
          %4203 = vmatpush1.bf16.msra.mxu0 %v4067
          %4204 = vmatprep.subr.bf16.mxu0 0
          %4205 = vmatpush1.bf16.msra.mxu0 %v4068
          %4206 = vmatprep.subr.bf16.mxu0 0
          %4207 = vmatpush1.bf16.msra.mxu0 %v4069
          %4208 = vmatprep.subr.bf16.mxu0 0
          %4209 = vmatpush1.bf16.msra.mxu0 %v4070
          %4210 = vmatprep.subr.bf16.mxu0 0
          %4211 = vmatpush1.bf16.msra.mxu0 %v4071
          %4212 = vmatprep.subr.bf16.mxu0 0
          %4213 = vmatpush1.bf16.msra.mxu0 %v4072
          %4214 = vmatprep.subr.bf16.mxu0 0
          %4215 = vmatpush1.bf16.msra.mxu0 %v4073
          %4216 = vmatprep.subr.bf16.mxu0 0
          %4217 = vmatpush1.bf16.msra.mxu0 %v4074
          %4218 = vmatprep.subr.bf16.mxu0 0
          %4219 = vmatpush1.bf16.msra.mxu0 %v4075
          %4220 = vmatprep.mubr.bf16.mxu0 %v2781
          %4221 = vmatmul.mubr.bf16.gmra.mrb[0].mxu0 %v2780
          %v4222 = vpop.f32.mrb[0].mxu0
          %v4223 = vadd.f32 0.0, %v4222
          %v4224 = vpop.f32.mrb[0].mxu0
          %v4225 = vpop.f32.mrb[0].mxu0
          %v4226 = vadd.f32 0.0, %v4225
          %v4227 = vpop.f32.mrb[0].mxu0
          %4228 = vmatprep.mubr.bf16.mxu0 %v2789
          %4229 = vmatmul.mubr.bf16.gmra.mrb[0].mxu0 %v2788
          %v4230 = vpop.f32.mrb[0].mxu0
          %v4231 = vadd.f32 0.0, %v4230
          %v4232 = vpop.f32.mrb[0].mxu0
          %v4233 = vpop.f32.mrb[0].mxu0
          %v4234 = vadd.f32 0.0, %v4233
          %v4235 = vpop.f32.mrb[0].mxu0
          %4236 = vmatprep.mubr.bf16.mxu0 %v2797
          %4237 = vmatmul.mubr.bf16.gmra.mrb[0].mxu0 %v2796
          %v4238 = vpop.f32.mrb[0].mxu0
          %v4239 = vadd.f32 0.0, %v4238
          %v4240 = vpop.f32.mrb[0].mxu0
          %v4241 = vpop.f32.mrb[0].mxu0
          %v4242 = vadd.f32 0.0, %v4241
          %v4243 = vpop.f32.mrb[0].mxu0
          %4244 = vmatprep.mubr.bf16.mxu0 %v2805
          %4245 = vmatmul.mubr.bf16.gmra.mrb[0].mxu0 %v2804
          %v4246 = vpop.f32.mrb[0].mxu0
          %v4247 = vadd.f32 0.0, %v4246
          %v4248 = vpop.f32.mrb[0].mxu0
          %v4249 = vpop.f32.mrb[0].mxu0
          %v4250 = vadd.f32 0.0, %v4249
          %v4251 = vpop.f32.mrb[0].mxu0
          %4252 = vmatprep.mubr.bf16.mxu0 %v2813
          %4253 = vmatmul.mubr.bf16.gmra.mrb[0].mxu0 %v2812
          %v4254 = vpop.f32.mrb[0].mxu0
          %v4255 = vadd.f32 0.0, %v4254
          %v4256 = vpop.f32.mrb[0].mxu0
          %v4257 = vpop.f32.mrb[0].mxu0
          %v4258 = vadd.f32 0.0, %v4257
          %v4259 = vpop.f32.mrb[0].mxu0
          %4260 = vmatprep.mubr.bf16.mxu0 %v2821
          %4261 = vmatmul.mubr.bf16.gmra.mrb[0].mxu0 %v2820
          %v4262 = vpop.f32.mrb[0].mxu0
          %v4263 = vadd.f32 0.0, %v4262
          %v4264 = vpop.f32.mrb[0].mxu0
          %v4265 = vpop.f32.mrb[0].mxu0
          %v4266 = vadd.f32 0.0, %v4265
          %v4267 = vpop.f32.mrb[0].mxu0
          %4268 = vmatprep.mubr.bf16.mxu0 %v2829
          %4269 = vmatmul.mubr.bf16.gmra.mrb[0].mxu0 %v2828
          %v4270 = vpop.f32.mrb[0].mxu0
          %v4271 = vadd.f32 0.0, %v4270
          %v4272 = vpop.f32.mrb[0].mxu0
          %v4273 = vpop.f32.mrb[0].mxu0
          %v4274 = vadd.f32 0.0, %v4273
          %v4275 = vpop.f32.mrb[0].mxu0
          %4276 = vmatprep.mubr.bf16.mxu0 %v2837
          %4277 = vmatmul.mubr.bf16.gmra.mrb[0].mxu0 %v2836
          %v4278 = vpop.f32.mrb[0].mxu0
          %v4279 = vadd.f32 0.0, %v4278
          %v4280 = vpop.f32.mrb[0].mxu0
          %v4281 = vpop.f32.mrb[0].mxu0
          %v4282 = vadd.f32 0.0, %v4281
          %v4283 = vpop.f32.mrb[0].mxu0
          %4284 = vmatprep.mubr.bf16.mxu0 %v2845
          %4285 = vmatmul.mubr.bf16.gmra.mrb[0].mxu0 %v2844
          %v4286 = vpop.f32.mrb[0].mxu0
          %v4287 = vadd.f32 0.0, %v4286
          %v4288 = vpop.f32.mrb[0].mxu0
          %v4289 = vpop.f32.mrb[0].mxu0
          %v4290 = vadd.f32 0.0, %v4289
          %v4291 = vpop.f32.mrb[0].mxu0
          %4292 = vmatprep.mubr.bf16.mxu0 %v2853
          %4293 = vmatmul.mubr.bf16.gmra.mrb[0].mxu0 %v2852
          %v4294 = vpop.f32.mrb[0].mxu0
          %v4295 = vadd.f32 0.0, %v4294
          %v4296 = vpop.f32.mrb[0].mxu0
          %v4297 = vpop.f32.mrb[0].mxu0
          %v4298 = vadd.f32 0.0, %v4297
          %v4299 = vpop.f32.mrb[0].mxu0
          %4300 = vmatprep.mubr.bf16.mxu0 %v2861
          %4301 = vmatmul.mubr.bf16.gmra.mrb[0].mxu0 %v2860
          %v4302 = vpop.f32.mrb[0].mxu0
          %v4303 = vadd.f32 0.0, %v4302
          %v4304 = vpop.f32.mrb[0].mxu0
          %v4305 = vpop.f32.mrb[0].mxu0
          %v4306 = vadd.f32 0.0, %v4305
          %v4307 = vpop.f32.mrb[0].mxu0
          %4308 = vmatprep.mubr.bf16.mxu0 %v2869
          %4309 = vmatmul.mubr.bf16.gmra.mrb[0].mxu0 %v2868
          %v4310 = vpop.f32.mrb[0].mxu0
          %v4311 = vadd.f32 0.0, %v4310
          %v4312 = vpop.f32.mrb[0].mxu0
          %v4313 = vpop.f32.mrb[0].mxu0
          %v4314 = vadd.f32 0.0, %v4313
          %v4315 = vpop.f32.mrb[0].mxu0
          %4316 = vmatprep.mubr.bf16.mxu0 %v2877
          %4317 = vmatmul.mubr.bf16.gmra.mrb[0].mxu0 %v2876
          %v4318 = vpop.f32.mrb[0].mxu0
          %v4319 = vadd.f32 0.0, %v4318
          %v4320 = vpop.f32.mrb[0].mxu0
          %v4321 = vpop.f32.mrb[0].mxu0
          %v4322 = vadd.f32 0.0, %v4321
          %v4323 = vpop.f32.mrb[0].mxu0
          %4324 = vmatprep.mubr.bf16.mxu0 %v2885
          %4325 = vmatmul.mubr.bf16.gmra.mrb[0].mxu0 %v2884
          %v4326 = vpop.f32.mrb[0].mxu0
          %v4327 = vadd.f32 0.0, %v4326
          %v4328 = vpop.f32.mrb[0].mxu0
          %v4329 = vpop.f32.mrb[0].mxu0
          %v4330 = vadd.f32 0.0, %v4329
          %v4331 = vpop.f32.mrb[0].mxu0
          %4332 = vmatprep.mubr.bf16.mxu0 %v2893
          %4333 = vmatmul.mubr.bf16.gmra.mrb[0].mxu0 %v2892
          %v4334 = vpop.f32.mrb[0].mxu0
          %v4335 = vadd.f32 0.0, %v4334
          %v4336 = vpop.f32.mrb[0].mxu0
          %v4337 = vpop.f32.mrb[0].mxu0
          %v4338 = vadd.f32 0.0, %v4337
          %v4339 = vpop.f32.mrb[0].mxu0
          %4340 = vmatprep.mubr.bf16.mxu0 %v2901
          %4341 = vmatmul.mubr.bf16.gmra.mrb[0].mxu0 %v2900
          %v4342 = vpop.f32.mrb[0].mxu0
          %v4343 = vadd.f32 0.0, %v4342
          %v4344 = vpop.f32.mrb[0].mxu0
          %v4345 = vpop.f32.mrb[0].mxu0
          %v4346 = vadd.f32 0.0, %v4345
          %v4347 = vpop.f32.mrb[0].mxu0
          %4348 = vmatprep.mubr.bf16.mxu0 %v2909
          %4349 = vmatmul.mubr.bf16.gmra.mrb[0].mxu0 %v2908
          %v4350 = vpop.f32.mrb[0].mxu0
          %v4351 = vadd.f32 0.0, %v4350
          %v4352 = vpop.f32.mrb[0].mxu0
          %v4353 = vpop.f32.mrb[0].mxu0
          %v4354 = vadd.f32 0.0, %v4353
          %v4355 = vpop.f32.mrb[0].mxu0
          %4356 = vmatprep.mubr.bf16.mxu0 %v2917
          %4357 = vmatmul.mubr.bf16.gmra.mrb[0].mxu0 %v2916
          %v4358 = vpop.f32.mrb[0].mxu0
          %v4359 = vadd.f32 0.0, %v4358
          %v4360 = vpop.f32.mrb[0].mxu0
          %v4361 = vpop.f32.mrb[0].mxu0
          %v4362 = vadd.f32 0.0, %v4361
          %v4363 = vpop.f32.mrb[0].mxu0
          %4364 = vmatprep.mubr.bf16.mxu0 %v2925
          %4365 = vmatmul.mubr.bf16.gmra.mrb[0].mxu0 %v2924
          %v4366 = vpop.f32.mrb[0].mxu0
          %v4367 = vadd.f32 0.0, %v4366
          %v4368 = vpop.f32.mrb[0].mxu0
          %v4369 = vpop.f32.mrb[0].mxu0
          %v4370 = vadd.f32 0.0, %v4369
          %v4371 = vpop.f32.mrb[0].mxu0
          %4372 = vmatprep.mubr.bf16.mxu0 %v2933
          %4373 = vmatmul.mubr.bf16.gmra.mrb[0].mxu0 %v2932
          %v4374 = vpop.f32.mrb[0].mxu0
          %v4375 = vadd.f32 0.0, %v4374
          %v4376 = vpop.f32.mrb[0].mxu0
          %v4377 = vpop.f32.mrb[0].mxu0
          %v4378 = vadd.f32 0.0, %v4377
          %v4379 = vpop.f32.mrb[0].mxu0
          %4380 = vmatprep.mubr.bf16.mxu0 %v2941
          %4381 = vmatmul.mubr.bf16.gmra.mrb[0].mxu0 %v2940
          %v4382 = vpop.f32.mrb[0].mxu0
          %v4383 = vadd.f32 0.0, %v4382
          %v4384 = vpop.f32.mrb[0].mxu0
          %v4385 = vpop.f32.mrb[0].mxu0
          %v4386 = vadd.f32 0.0, %v4385
          %v4387 = vpop.f32.mrb[0].mxu0
          %4388 = vmatprep.mubr.bf16.mxu0 %v2949
          %4389 = vmatmul.mubr.bf16.gmra.mrb[0].mxu0 %v2948
          %v4390 = vpop.f32.mrb[0].mxu0
          %v4391 = vadd.f32 0.0, %v4390
          %v4392 = vpop.f32.mrb[0].mxu0
          %v4393 = vpop.f32.mrb[0].mxu0
          %v4394 = vadd.f32 0.0, %v4393
          %v4395 = vpop.f32.mrb[0].mxu0
          %4396 = vmatprep.mubr.bf16.mxu0 %v2957
          %4397 = vmatmul.mubr.bf16.gmra.mrb[0].mxu0 %v2956
          %v4398 = vpop.f32.mrb[0].mxu0
          %v4399 = vadd.f32 0.0, %v4398
          %v4400 = vpop.f32.mrb[0].mxu0
          %v4401 = vpop.f32.mrb[0].mxu0
          %v4402 = vadd.f32 0.0, %v4401
          %v4403 = vpop.f32.mrb[0].mxu0
          %4404 = vmatprep.mubr.bf16.mxu0 %v2965
          %4405 = vmatmul.mubr.bf16.gmra.mrb[0].mxu0 %v2964
          %v4406 = vpop.f32.mrb[0].mxu0
          %v4407 = vadd.f32 0.0, %v4406
          %v4408 = vpop.f32.mrb[0].mxu0
          %v4409 = vpop.f32.mrb[0].mxu0
          %v4410 = vadd.f32 0.0, %v4409
          %v4411 = vpop.f32.mrb[0].mxu0
          %4412 = vmatprep.mubr.bf16.mxu0 %v2973
          %4413 = vmatmul.mubr.bf16.gmra.mrb[0].mxu0 %v2972
          %v4414 = vpop.f32.mrb[0].mxu0
          %v4415 = vadd.f32 0.0, %v4414
          %v4416 = vpop.f32.mrb[0].mxu0
          %v4417 = vpop.f32.mrb[0].mxu0
          %v4418 = vadd.f32 0.0, %v4417
          %v4419 = vpop.f32.mrb[0].mxu0
          %4420 = vmatprep.mubr.bf16.mxu0 %v2981
          %4421 = vmatmul.mubr.bf16.gmra.mrb[0].mxu0 %v2980
          %v4422 = vpop.f32.mrb[0].mxu0
          %v4423 = vadd.f32 0.0, %v4422
          %v4424 = vpop.f32.mrb[0].mxu0
          %v4425 = vpop.f32.mrb[0].mxu0
          %v4426 = vadd.f32 0.0, %v4425
          %v4427 = vpop.f32.mrb[0].mxu0
          %4428 = vmatprep.mubr.bf16.mxu0 %v2989
          %4429 = vmatmul.mubr.bf16.gmra.mrb[0].mxu0 %v2988
          %v4430 = vpop.f32.mrb[0].mxu0
          %v4431 = vadd.f32 0.0, %v4430
          %v4432 = vpop.f32.mrb[0].mxu0
          %v4433 = vpop.f32.mrb[0].mxu0
          %v4434 = vadd.f32 0.0, %v4433
          %v4435 = vpop.f32.mrb[0].mxu0
          %4436 = vmatprep.mubr.bf16.mxu0 %v2997
          %4437 = vmatmul.mubr.bf16.gmra.mrb[0].mxu0 %v2996
          %v4438 = vpop.f32.mrb[0].mxu0
          %v4439 = vadd.f32 0.0, %v4438
          %v4440 = vpop.f32.mrb[0].mxu0
          %v4441 = vpop.f32.mrb[0].mxu0
          %v4442 = vadd.f32 0.0, %v4441
          %v4443 = vpop.f32.mrb[0].mxu0
          %4444 = vmatprep.mubr.bf16.mxu0 %v3005
          %4445 = vmatmul.mubr.bf16.gmra.mrb[0].mxu0 %v3004
          %v4446 = vpop.f32.mrb[0].mxu0
          %v4447 = vadd.f32 0.0, %v4446
          %v4448 = vpop.f32.mrb[0].mxu0
          %v4449 = vpop.f32.mrb[0].mxu0
          %v4450 = vadd.f32 0.0, %v4449
          %v4451 = vpop.f32.mrb[0].mxu0
          %4452 = vmatprep.mubr.bf16.mxu0 %v3013
          %4453 = vmatmul.mubr.bf16.gmra.mrb[0].mxu0 %v3012
          %v4454 = vpop.f32.mrb[0].mxu0
          %v4455 = vadd.f32 0.0, %v4454
          %v4456 = vpop.f32.mrb[0].mxu0
          %v4457 = vpop.f32.mrb[0].mxu0
          %v4458 = vadd.f32 0.0, %v4457
          %v4459 = vpop.f32.mrb[0].mxu0
          %4460 = vmatprep.mubr.bf16.mxu0 %v3021
          %4461 = vmatmul.mubr.bf16.gmra.mrb[0].mxu0 %v3020
          %v4462 = vpop.f32.mrb[0].mxu0
          %v4463 = vadd.f32 0.0, %v4462
          %v4464 = vpop.f32.mrb[0].mxu0
          %v4465 = vpop.f32.mrb[0].mxu0
          %v4466 = vadd.f32 0.0, %v4465
          %v4467 = vpop.f32.mrb[0].mxu0
          %4468 = vmatprep.mubr.bf16.mxu0 %v3029
          %4469 = vmatmul.mubr.bf16.gmra.mrb[0].mxu0 %v3028
          %v4470 = vpop.f32.mrb[0].mxu0
          %v4471 = vadd.f32 0.0, %v4470
          %v4472 = vpop.f32.mrb[0].mxu0
          %v4473 = vpop.f32.mrb[0].mxu0
          %v4474 = vadd.f32 0.0, %v4473
          %v4475 = vpop.f32.mrb[0].mxu0
          %4476 = vmatprep.mubr.bf16.mxu0 %v3037
          %4477 = vmatmul.mubr.bf16.gmra.mrb[0].mxu0 %v3036
          %v4478 = vpop.f32.mrb[0].mxu0
          %v4479 = vadd.f32 0.0, %v4478
          %v4480 = vpop.f32.mrb[0].mxu0
          %v4481 = vpop.f32.mrb[0].mxu0
          %v4482 = vadd.f32 0.0, %v4481
          %v4483 = vpop.f32.mrb[0].mxu0
          %4484 = vmatprep.mubr.bf16.mxu0 %v3045
          %4485 = vmatmul.mubr.bf16.gmra.mrb[0].mxu0 %v3044
          %v4486 = vpop.f32.mrb[0].mxu0
          %v4487 = vadd.f32 0.0, %v4486
          %v4488 = vpop.f32.mrb[0].mxu0
          %v4489 = vpop.f32.mrb[0].mxu0
          %v4490 = vadd.f32 0.0, %v4489
          %v4491 = vpop.f32.mrb[0].mxu0
          %4492 = vmatprep.mubr.bf16.mxu0 %v3053
          %4493 = vmatmul.mubr.bf16.gmra.mrb[0].mxu0 %v3052
          %v4494 = vpop.f32.mrb[0].mxu0
          %v4495 = vadd.f32 0.0, %v4494
          %v4496 = vpop.f32.mrb[0].mxu0
          %v4497 = vpop.f32.mrb[0].mxu0
          %v4498 = vadd.f32 0.0, %v4497
          %v4499 = vpop.f32.mrb[0].mxu0
          %4500 = vmatprep.mubr.bf16.mxu0 %v3061
          %4501 = vmatmul.mubr.bf16.gmra.mrb[0].mxu0 %v3060
          %v4502 = vpop.f32.mrb[0].mxu0
          %v4503 = vadd.f32 0.0, %v4502
          %v4504 = vpop.f32.mrb[0].mxu0
          %v4505 = vpop.f32.mrb[0].mxu0
          %v4506 = vadd.f32 0.0, %v4505
          %v4507 = vpop.f32.mrb[0].mxu0
          %4508 = vmatprep.mubr.bf16.mxu0 %v3069
          %4509 = vmatmul.mubr.bf16.gmra.mrb[0].mxu0 %v3068
          %v4510 = vpop.f32.mrb[0].mxu0
          %v4511 = vadd.f32 0.0, %v4510
          %v4512 = vpop.f32.mrb[0].mxu0
          %v4513 = vpop.f32.mrb[0].mxu0
          %v4514 = vadd.f32 0.0, %v4513
          %v4515 = vpop.f32.mrb[0].mxu0
          %4516 = vmatprep.mubr.bf16.mxu0 %v3077
          %4517 = vmatmul.mubr.bf16.gmra.mrb[0].mxu0 %v3076
          %v4518 = vpop.f32.mrb[0].mxu0
          %v4519 = vadd.f32 0.0, %v4518
          %v4520 = vpop.f32.mrb[0].mxu0
          %v4521 = vpop.f32.mrb[0].mxu0
          %v4522 = vadd.f32 0.0, %v4521
          %v4523 = vpop.f32.mrb[0].mxu0
          %4524 = vmatprep.mubr.bf16.mxu0 %v3085
          %4525 = vmatmul.mubr.bf16.gmra.mrb[0].mxu0 %v3084
          %v4526 = vpop.f32.mrb[0].mxu0
          %v4527 = vadd.f32 0.0, %v4526
          %v4528 = vpop.f32.mrb[0].mxu0
          %v4529 = vpop.f32.mrb[0].mxu0
          %v4530 = vadd.f32 0.0, %v4529
          %v4531 = vpop.f32.mrb[0].mxu0
          %4532 = vmatprep.mubr.bf16.mxu0 %v3093
          %4533 = vmatmul.mubr.bf16.gmra.mrb[0].mxu0 %v3092
          %v4534 = vpop.f32.mrb[0].mxu0
          %v4535 = vadd.f32 0.0, %v4534
          %v4536 = vpop.f32.mrb[0].mxu0
          %v4537 = vpop.f32.mrb[0].mxu0
          %v4538 = vadd.f32 0.0, %v4537
          %v4539 = vpop.f32.mrb[0].mxu0
          %4540 = vmatprep.mubr.bf16.mxu0 %v3101
          %4541 = vmatmul.mubr.bf16.gmra.mrb[0].mxu0 %v3100
          %v4542 = vpop.f32.mrb[0].mxu0
          %v4543 = vadd.f32 0.0, %v4542
          %v4544 = vpop.f32.mrb[0].mxu0
          %v4545 = vpop.f32.mrb[0].mxu0
          %v4546 = vadd.f32 0.0, %v4545
          %v4547 = vpop.f32.mrb[0].mxu0
          %4548 = vmatprep.mubr.bf16.mxu0 %v3109
          %4549 = vmatmul.mubr.bf16.gmra.mrb[0].mxu0 %v3108
          %v4550 = vpop.f32.mrb[0].mxu0
          %v4551 = vadd.f32 0.0, %v4550
          %v4552 = vpop.f32.mrb[0].mxu0
          %v4553 = vpop.f32.mrb[0].mxu0
          %v4554 = vadd.f32 0.0, %v4553
          %v4555 = vpop.f32.mrb[0].mxu0
          %4556 = vmatprep.mubr.bf16.mxu0 %v3117
          %4557 = vmatmul.mubr.bf16.gmra.mrb[0].mxu0 %v3116
          %v4558 = vpop.f32.mrb[0].mxu0
          %v4559 = vadd.f32 0.0, %v4558
          %v4560 = vpop.f32.mrb[0].mxu0
          %v4561 = vpop.f32.mrb[0].mxu0
          %v4562 = vadd.f32 0.0, %v4561
          %v4563 = vpop.f32.mrb[0].mxu0
          %4564 = vmatprep.mubr.bf16.mxu0 %v3125
          %4565 = vmatmul.mubr.bf16.gmra.mrb[0].mxu0 %v3124
          %v4566 = vpop.f32.mrb[0].mxu0
          %v4567 = vadd.f32 0.0, %v4566
          %v4568 = vpop.f32.mrb[0].mxu0
          %v4569 = vpop.f32.mrb[0].mxu0
          %v4570 = vadd.f32 0.0, %v4569
          %v4571 = vpop.f32.mrb[0].mxu0
          %4572 = vmatprep.mubr.bf16.mxu0 %v3133
          %4573 = vmatmul.mubr.bf16.gmra.mrb[0].mxu0 %v3132
          %v4574 = vpop.f32.mrb[0].mxu0
          %v4575 = vadd.f32 0.0, %v4574
          %v4576 = vpop.f32.mrb[0].mxu0
          %v4577 = vpop.f32.mrb[0].mxu0
          %v4578 = vadd.f32 0.0, %v4577
          %v4579 = vpop.f32.mrb[0].mxu0
          %4580 = vmatprep.mubr.bf16.mxu0 %v3141
          %4581 = vmatmul.mubr.bf16.gmra.mrb[0].mxu0 %v3140
          %v4582 = vpop.f32.mrb[0].mxu0
          %v4583 = vadd.f32 0.0, %v4582
          %v4584 = vpop.f32.mrb[0].mxu0
          %v4585 = vpop.f32.mrb[0].mxu0
          %v4586 = vadd.f32 0.0, %v4585
          %v4587 = vpop.f32.mrb[0].mxu0
          %4588 = vmatprep.mubr.bf16.mxu0 %v3149
          %4589 = vmatmul.mubr.bf16.gmra.mrb[0].mxu0 %v3148
          %v4590 = vpop.f32.mrb[0].mxu0
          %v4591 = vadd.f32 0.0, %v4590
          %v4592 = vpop.f32.mrb[0].mxu0
          %v4593 = vpop.f32.mrb[0].mxu0
          %v4594 = vadd.f32 0.0, %v4593
          %v4595 = vpop.f32.mrb[0].mxu0
          %4596 = vmatprep.mubr.bf16.mxu0 %v3157
          %4597 = vmatmul.mubr.bf16.gmra.mrb[0].mxu0 %v3156
          %v4598 = vpop.f32.mrb[0].mxu0
          %v4599 = vadd.f32 0.0, %v4598
          %v4600 = vpop.f32.mrb[0].mxu0
          %v4601 = vpop.f32.mrb[0].mxu0
          %v4602 = vadd.f32 0.0, %v4601
          %v4603 = vpop.f32.mrb[0].mxu0
          %4604 = vmatprep.mubr.bf16.mxu0 %v3165
          %4605 = vmatmul.mubr.bf16.gmra.mrb[0].mxu0 %v3164
          %v4606 = vpop.f32.mrb[0].mxu0
          %v4607 = vadd.f32 0.0, %v4606
          %v4608 = vpop.f32.mrb[0].mxu0
          %v4609 = vpop.f32.mrb[0].mxu0
          %v4610 = vadd.f32 0.0, %v4609
          %v4611 = vpop.f32.mrb[0].mxu0
          %4612 = vmatprep.mubr.bf16.mxu0 %v3173
          %4613 = vmatmul.mubr.bf16.gmra.mrb[0].mxu0 %v3172
          %v4614 = vpop.f32.mrb[0].mxu0
          %v4615 = vadd.f32 0.0, %v4614
          %v4616 = vpop.f32.mrb[0].mxu0
          %v4617 = vpop.f32.mrb[0].mxu0
          %v4618 = vadd.f32 0.0, %v4617
          %v4619 = vpop.f32.mrb[0].mxu0
          %4620 = vmatprep.mubr.bf16.mxu0 %v3181
          %4621 = vmatmul.mubr.bf16.gmra.mrb[0].mxu0 %v3180
          %v4622 = vpop.f32.mrb[0].mxu0
          %v4623 = vadd.f32 0.0, %v4622
          %v4624 = vpop.f32.mrb[0].mxu0
          %v4625 = vpop.f32.mrb[0].mxu0
          %v4626 = vadd.f32 0.0, %v4625
          %v4627 = vpop.f32.mrb[0].mxu0
          %4628 = vmatprep.mubr.bf16.mxu0 %v3189
          %4629 = vmatmul.mubr.bf16.gmra.mrb[0].mxu0 %v3188
          %v4630 = vpop.f32.mrb[0].mxu0
          %v4631 = vadd.f32 0.0, %v4630
          %v4632 = vpop.f32.mrb[0].mxu0
          %v4633 = vpop.f32.mrb[0].mxu0
          %v4634 = vadd.f32 0.0, %v4633
          %v4635 = vpop.f32.mrb[0].mxu0
          %4636 = vmatprep.mubr.bf16.mxu0 %v3197
          %4637 = vmatmul.mubr.bf16.gmra.mrb[0].mxu0 %v3196
          %v4638 = vpop.f32.mrb[0].mxu0
          %v4639 = vadd.f32 0.0, %v4638
          %v4640 = vpop.f32.mrb[0].mxu0
          %v4641 = vpop.f32.mrb[0].mxu0
          %v4642 = vadd.f32 0.0, %v4641
          %v4643 = vpop.f32.mrb[0].mxu0
          %4644 = vmatprep.mubr.bf16.mxu0 %v3205
          %4645 = vmatmul.mubr.bf16.gmra.mrb[0].mxu0 %v3204
          %v4646 = vpop.f32.mrb[0].mxu0
          %v4647 = vadd.f32 0.0, %v4646
          %v4648 = vpop.f32.mrb[0].mxu0
          %v4649 = vpop.f32.mrb[0].mxu0
          %v4650 = vadd.f32 0.0, %v4649
          %v4651 = vpop.f32.mrb[0].mxu0
          %4652 = vmatprep.mubr.bf16.mxu0 %v3213
          %4653 = vmatmul.mubr.bf16.gmra.mrb[0].mxu0 %v3212
          %v4654 = vpop.f32.mrb[0].mxu0
          %v4655 = vadd.f32 0.0, %v4654
          %v4656 = vpop.f32.mrb[0].mxu0
          %v4657 = vpop.f32.mrb[0].mxu0
          %v4658 = vadd.f32 0.0, %v4657
          %v4659 = vpop.f32.mrb[0].mxu0
          %4660 = vmatprep.mubr.bf16.mxu0 %v3221
          %4661 = vmatmul.mubr.bf16.gmra.mrb[0].mxu0 %v3220
          %v4662 = vpop.f32.mrb[0].mxu0
          %v4663 = vadd.f32 0.0, %v4662
          %v4664 = vpop.f32.mrb[0].mxu0
          %v4665 = vpop.f32.mrb[0].mxu0
          %v4666 = vadd.f32 0.0, %v4665
          %v4667 = vpop.f32.mrb[0].mxu0
          %4668 = vmatprep.mubr.bf16.mxu0 %v3229
          %4669 = vmatmul.mubr.bf16.gmra.mrb[0].mxu0 %v3228
          %v4670 = vpop.f32.mrb[0].mxu0
          %v4671 = vadd.f32 0.0, %v4670
          %v4672 = vpop.f32.mrb[0].mxu0
          %v4673 = vpop.f32.mrb[0].mxu0
          %v4674 = vadd.f32 0.0, %v4673
          %v4675 = vpop.f32.mrb[0].mxu0
          %4676 = vmatprep.mubr.bf16.mxu0 %v3237
          %4677 = vmatmul.mubr.bf16.gmra.mrb[0].mxu0 %v3236
          %v4678 = vpop.f32.mrb[0].mxu0
          %v4679 = vadd.f32 0.0, %v4678
          %v4680 = vpop.f32.mrb[0].mxu0
          %v4681 = vpop.f32.mrb[0].mxu0
          %v4682 = vadd.f32 0.0, %v4681
          %v4683 = vpop.f32.mrb[0].mxu0
          %4684 = vmatprep.mubr.bf16.mxu0 %v3245
          %4685 = vmatmul.mubr.bf16.gmra.mrb[0].mxu0 %v3244
          %v4686 = vpop.f32.mrb[0].mxu0
          %v4687 = vadd.f32 0.0, %v4686
          %v4688 = vpop.f32.mrb[0].mxu0
          %v4689 = vpop.f32.mrb[0].mxu0
          %v4690 = vadd.f32 0.0, %v4689
          %v4691 = vpop.f32.mrb[0].mxu0
          %4692 = vmatprep.mubr.bf16.mxu0 %v3253
          %4693 = vmatmul.mubr.bf16.gmra.mrb[0].mxu0 %v3252
          %v4694 = vpop.f32.mrb[0].mxu0
          %v4695 = vadd.f32 0.0, %v4694
          %v4696 = vpop.f32.mrb[0].mxu0
          %v4697 = vpop.f32.mrb[0].mxu0
          %v4698 = vadd.f32 0.0, %v4697
          %v4699 = vpop.f32.mrb[0].mxu0
          %4700 = vmatprep.mubr.bf16.mxu0 %v3261
          %4701 = vmatmul.mubr.bf16.gmra.mrb[0].mxu0 %v3260
          %v4702 = vpop.f32.mrb[0].mxu0
          %v4703 = vadd.f32 0.0, %v4702
          %v4704 = vpop.f32.mrb[0].mxu0
          %v4705 = vpop.f32.mrb[0].mxu0
          %v4706 = vadd.f32 0.0, %v4705
          %v4707 = vpop.f32.mrb[0].mxu0
          %4708 = vmatprep.mubr.bf16.mxu0 %v3269
          %4709 = vmatmul.mubr.bf16.gmra.mrb[0].mxu0 %v3268
          %v4710 = vpop.f32.mrb[0].mxu0
          %v4711 = vadd.f32 0.0, %v4710
          %v4712 = vpop.f32.mrb[0].mxu0
          %v4713 = vpop.f32.mrb[0].mxu0
          %v4714 = vadd.f32 0.0, %v4713
          %v4715 = vpop.f32.mrb[0].mxu0
          %4716 = vmatprep.mubr.bf16.mxu0 %v3277
          %4717 = vmatmul.mubr.bf16.gmra.mrb[0].mxu0 %v3276
          %v4718 = vpop.f32.mrb[0].mxu0
          %v4719 = vadd.f32 0.0, %v4718
          %v4720 = vpop.f32.mrb[0].mxu0
          %v4721 = vpop.f32.mrb[0].mxu0
          %v4722 = vadd.f32 0.0, %v4721
          %v4723 = vpop.f32.mrb[0].mxu0
          %4724 = vmatprep.mubr.bf16.mxu0 %v3285
          %4725 = vmatmul.mubr.bf16.gmra.mrb[0].mxu0 %v3284
          %v4726 = vpop.f32.mrb[0].mxu0
          %v4727 = vadd.f32 0.0, %v4726
          %v4728 = vpop.f32.mrb[0].mxu0
          %v4729 = vpop.f32.mrb[0].mxu0
          %v4730 = vadd.f32 0.0, %v4729
          %v4731 = vpop.f32.mrb[0].mxu0
          %4732 = vdwg.mxu0
          %4733 = vmatprep.subr.bf16.mxu0 0
          %4734 = vmatpush1.bf16.msra.mxu0 %v4076
          %4735 = vmatprep.subr.bf16.mxu0 0
          %4736 = vmatpush1.bf16.msra.mxu0 %v4077
          %4737 = vmatprep.subr.bf16.mxu0 0
          %4738 = vmatpush1.bf16.msra.mxu0 %v4078
          %4739 = vmatprep.subr.bf16.mxu0 0
          %4740 = vmatpush1.bf16.msra.mxu0 %v4079
          %4741 = vmatprep.subr.bf16.mxu0 0
          %4742 = vmatpush1.bf16.msra.mxu0 %v4080
          %4743 = vmatprep.subr.bf16.mxu0 0
          %4744 = vmatpush1.bf16.msra.mxu0 %v4081
          %4745 = vmatprep.subr.bf16.mxu0 0
          %4746 = vmatpush1.bf16.msra.mxu0 %v4082
          %4747 = vmatprep.subr.bf16.mxu0 0
          %4748 = vmatpush1.bf16.msra.mxu0 %v4083
          %4749 = vmatprep.subr.bf16.mxu0 0
          %4750 = vmatpush1.bf16.msra.mxu0 %v4084
          %4751 = vmatprep.subr.bf16.mxu0 0
          %4752 = vmatpush1.bf16.msra.mxu0 %v4085
          %4753 = vmatprep.subr.bf16.mxu0 0
          %4754 = vmatpush1.bf16.msra.mxu0 %v4086
          %4755 = vmatprep.subr.bf16.mxu0 0
          %4756 = vmatpush1.bf16.msra.mxu0 %v4087
          %4757 = vmatprep.subr.bf16.mxu0 0
          %4758 = vmatpush1.bf16.msra.mxu0 %v4088
          %4759 = vmatprep.subr.bf16.mxu0 0
          %4760 = vmatpush1.bf16.msra.mxu0 %v4089
          %4761 = vmatprep.subr.bf16.mxu0 0
          %4762 = vmatpush1.bf16.msra.mxu0 %v4090
          %4763 = vmatprep.subr.bf16.mxu0 0
          %4764 = vmatpush1.bf16.msra.mxu0 %v4091
          %4765 = vmatprep.mubr.bf16.mxu0 %v2783
          %4766 = vmatmul.mubr.bf16.gmra.mrb[0].mxu0 %v2782
          %v4767 = vpop.f32.mrb[0].mxu0
          %v4768 = vadd.f32 %v4223, %v4767
          %v4769 = vpop.f32.mrb[0].mxu0
          %v4770 = vpop.f32.mrb[0].mxu0
          %v4771 = vadd.f32 %v4226, %v4770
          %v4772 = vpop.f32.mrb[0].mxu0
          %4773 = vmatprep.mubr.bf16.mxu0 %v2791
          %4774 = vmatmul.mubr.bf16.gmra.mrb[0].mxu0 %v2790
          %v4775 = vpop.f32.mrb[0].mxu0
          %v4776 = vadd.f32 %v4231, %v4775
          %v4777 = vpop.f32.mrb[0].mxu0
          %v4778 = vpop.f32.mrb[0].mxu0
          %v4779 = vadd.f32 %v4234, %v4778
          %v4780 = vpop.f32.mrb[0].mxu0
          %4781 = vmatprep.mubr.bf16.mxu0 %v2799
          %4782 = vmatmul.mubr.bf16.gmra.mrb[0].mxu0 %v2798
          %v4783 = vpop.f32.mrb[0].mxu0
          %v4784 = vadd.f32 %v4239, %v4783
          %v4785 = vpop.f32.mrb[0].mxu0
          %v4786 = vpop.f32.mrb[0].mxu0
          %v4787 = vadd.f32 %v4242, %v4786
          %v4788 = vpop.f32.mrb[0].mxu0
          %4789 = vmatprep.mubr.bf16.mxu0 %v2807
          %4790 = vmatmul.mubr.bf16.gmra.mrb[0].mxu0 %v2806
          %v4791 = vpop.f32.mrb[0].mxu0
          %v4792 = vadd.f32 %v4247, %v4791
          %v4793 = vpop.f32.mrb[0].mxu0
          %v4794 = vpop.f32.mrb[0].mxu0
          %v4795 = vadd.f32 %v4250, %v4794
          %v4796 = vpop.f32.mrb[0].mxu0
          %4797 = vmatprep.mubr.bf16.mxu0 %v2815
          %4798 = vmatmul.mubr.bf16.gmra.mrb[0].mxu0 %v2814
          %v4799 = vpop.f32.mrb[0].mxu0
          %v4800 = vadd.f32 %v4255, %v4799
          %v4801 = vpop.f32.mrb[0].mxu0
          %v4802 = vpop.f32.mrb[0].mxu0
          %v4803 = vadd.f32 %v4258, %v4802
          %v4804 = vpop.f32.mrb[0].mxu0
          %4805 = vmatprep.mubr.bf16.mxu0 %v2823
          %4806 = vmatmul.mubr.bf16.gmra.mrb[0].mxu0 %v2822
          %v4807 = vpop.f32.mrb[0].mxu0
          %v4808 = vadd.f32 %v4263, %v4807
          %v4809 = vpop.f32.mrb[0].mxu0
          %v4810 = vpop.f32.mrb[0].mxu0
          %v4811 = vadd.f32 %v4266, %v4810
          %v4812 = vpop.f32.mrb[0].mxu0
          %4813 = vmatprep.mubr.bf16.mxu0 %v2831
          %4814 = vmatmul.mubr.bf16.gmra.mrb[0].mxu0 %v2830
          %v4815 = vpop.f32.mrb[0].mxu0
          %v4816 = vadd.f32 %v4271, %v4815
          %v4817 = vpop.f32.mrb[0].mxu0
          %v4818 = vpop.f32.mrb[0].mxu0
          %v4819 = vadd.f32 %v4274, %v4818
          %v4820 = vpop.f32.mrb[0].mxu0
          %4821 = vmatprep.mubr.bf16.mxu0 %v2839
          %4822 = vmatmul.mubr.bf16.gmra.mrb[0].mxu0 %v2838
          %v4823 = vpop.f32.mrb[0].mxu0
          %v4824 = vadd.f32 %v4279, %v4823
          %v4825 = vpop.f32.mrb[0].mxu0
          %v4826 = vpop.f32.mrb[0].mxu0
          %v4827 = vadd.f32 %v4282, %v4826
          %v4828 = vpop.f32.mrb[0].mxu0
          %4829 = vmatprep.mubr.bf16.mxu0 %v2847
          %4830 = vmatmul.mubr.bf16.gmra.mrb[0].mxu0 %v2846
          %v4831 = vpop.f32.mrb[0].mxu0
          %v4832 = vadd.f32 %v4287, %v4831
          %v4833 = vpop.f32.mrb[0].mxu0
          %v4834 = vpop.f32.mrb[0].mxu0
          %v4835 = vadd.f32 %v4290, %v4834
          %v4836 = vpop.f32.mrb[0].mxu0
          %4837 = vmatprep.mubr.bf16.mxu0 %v2855
          %4838 = vmatmul.mubr.bf16.gmra.mrb[0].mxu0 %v2854
          %v4839 = vpop.f32.mrb[0].mxu0
          %v4840 = vadd.f32 %v4295, %v4839
          %v4841 = vpop.f32.mrb[0].mxu0
          %v4842 = vpop.f32.mrb[0].mxu0
          %v4843 = vadd.f32 %v4298, %v4842
          %v4844 = vpop.f32.mrb[0].mxu0
          %4845 = vmatprep.mubr.bf16.mxu0 %v2863
          %4846 = vmatmul.mubr.bf16.gmra.mrb[0].mxu0 %v2862
          %v4847 = vpop.f32.mrb[0].mxu0
          %v4848 = vadd.f32 %v4303, %v4847
          %v4849 = vpop.f32.mrb[0].mxu0
          %v4850 = vpop.f32.mrb[0].mxu0
          %v4851 = vadd.f32 %v4306, %v4850
          %v4852 = vpop.f32.mrb[0].mxu0
          %4853 = vmatprep.mubr.bf16.mxu0 %v2871
          %4854 = vmatmul.mubr.bf16.gmra.mrb[0].mxu0 %v2870
          %v4855 = vpop.f32.mrb[0].mxu0
          %v4856 = vadd.f32 %v4311, %v4855
          %v4857 = vpop.f32.mrb[0].mxu0
          %v4858 = vpop.f32.mrb[0].mxu0
          %v4859 = vadd.f32 %v4314, %v4858
          %v4860 = vpop.f32.mrb[0].mxu0
          %4861 = vmatprep.mubr.bf16.mxu0 %v2879
          %4862 = vmatmul.mubr.bf16.gmra.mrb[0].mxu0 %v2878
          %v4863 = vpop.f32.mrb[0].mxu0
          %v4864 = vadd.f32 %v4319, %v4863
          %v4865 = vpop.f32.mrb[0].mxu0
          %v4866 = vpop.f32.mrb[0].mxu0
          %v4867 = vadd.f32 %v4322, %v4866
          %v4868 = vpop.f32.mrb[0].mxu0
          %4869 = vmatprep.mubr.bf16.mxu0 %v2887
          %4870 = vmatmul.mubr.bf16.gmra.mrb[0].mxu0 %v2886
          %v4871 = vpop.f32.mrb[0].mxu0
          %v4872 = vadd.f32 %v4327, %v4871
          %v4873 = vpop.f32.mrb[0].mxu0
          %v4874 = vpop.f32.mrb[0].mxu0
          %v4875 = vadd.f32 %v4330, %v4874
          %v4876 = vpop.f32.mrb[0].mxu0
          %4877 = vmatprep.mubr.bf16.mxu0 %v2895
          %4878 = vmatmul.mubr.bf16.gmra.mrb[0].mxu0 %v2894
          %v4879 = vpop.f32.mrb[0].mxu0
          %v4880 = vadd.f32 %v4335, %v4879
          %v4881 = vpop.f32.mrb[0].mxu0
          %v4882 = vpop.f32.mrb[0].mxu0
          %v4883 = vadd.f32 %v4338, %v4882
          %v4884 = vpop.f32.mrb[0].mxu0
          %4885 = vmatprep.mubr.bf16.mxu0 %v2903
          %4886 = vmatmul.mubr.bf16.gmra.mrb[0].mxu0 %v2902
          %v4887 = vpop.f32.mrb[0].mxu0
          %v4888 = vadd.f32 %v4343, %v4887
          %v4889 = vpop.f32.mrb[0].mxu0
          %v4890 = vpop.f32.mrb[0].mxu0
          %v4891 = vadd.f32 %v4346, %v4890
          %v4892 = vpop.f32.mrb[0].mxu0
          %4893 = vmatprep.mubr.bf16.mxu0 %v2911
          %4894 = vmatmul.mubr.bf16.gmra.mrb[0].mxu0 %v2910
          %v4895 = vpop.f32.mrb[0].mxu0
          %v4896 = vadd.f32 %v4351, %v4895
          %v4897 = vpop.f32.mrb[0].mxu0
          %v4898 = vpop.f32.mrb[0].mxu0
          %v4899 = vadd.f32 %v4354, %v4898
          %v4900 = vpop.f32.mrb[0].mxu0
          %4901 = vmatprep.mubr.bf16.mxu0 %v2919
          %4902 = vmatmul.mubr.bf16.gmra.mrb[0].mxu0 %v2918
          %v4903 = vpop.f32.mrb[0].mxu0
          %v4904 = vadd.f32 %v4359, %v4903
          %v4905 = vpop.f32.mrb[0].mxu0
          %v4906 = vpop.f32.mrb[0].mxu0
          %v4907 = vadd.f32 %v4362, %v4906
          %v4908 = vpop.f32.mrb[0].mxu0
          %4909 = vmatprep.mubr.bf16.mxu0 %v2927
          %4910 = vmatmul.mubr.bf16.gmra.mrb[0].mxu0 %v2926
          %v4911 = vpop.f32.mrb[0].mxu0
          %v4912 = vadd.f32 %v4367, %v4911
          %v4913 = vpop.f32.mrb[0].mxu0
          %v4914 = vpop.f32.mrb[0].mxu0
          %v4915 = vadd.f32 %v4370, %v4914
          %v4916 = vpop.f32.mrb[0].mxu0
          %4917 = vmatprep.mubr.bf16.mxu0 %v2935
          %4918 = vmatmul.mubr.bf16.gmra.mrb[0].mxu0 %v2934
          %v4919 = vpop.f32.mrb[0].mxu0
          %v4920 = vadd.f32 %v4375, %v4919
          %v4921 = vpop.f32.mrb[0].mxu0
          %v4922 = vpop.f32.mrb[0].mxu0
          %v4923 = vadd.f32 %v4378, %v4922
          %v4924 = vpop.f32.mrb[0].mxu0
          %4925 = vmatprep.mubr.bf16.mxu0 %v2943
          %4926 = vmatmul.mubr.bf16.gmra.mrb[0].mxu0 %v2942
          %v4927 = vpop.f32.mrb[0].mxu0
          %v4928 = vadd.f32 %v4383, %v4927
          %v4929 = vpop.f32.mrb[0].mxu0
          %v4930 = vpop.f32.mrb[0].mxu0
          %v4931 = vadd.f32 %v4386, %v4930
          %v4932 = vpop.f32.mrb[0].mxu0
          %4933 = vmatprep.mubr.bf16.mxu0 %v2951
          %4934 = vmatmul.mubr.bf16.gmra.mrb[0].mxu0 %v2950
          %v4935 = vpop.f32.mrb[0].mxu0
          %v4936 = vadd.f32 %v4391, %v4935
          %v4937 = vpop.f32.mrb[0].mxu0
          %v4938 = vpop.f32.mrb[0].mxu0
          %v4939 = vadd.f32 %v4394, %v4938
          %v4940 = vpop.f32.mrb[0].mxu0
          %4941 = vmatprep.mubr.bf16.mxu0 %v2959
          %4942 = vmatmul.mubr.bf16.gmra.mrb[0].mxu0 %v2958
          %v4943 = vpop.f32.mrb[0].mxu0
          %v4944 = vadd.f32 %v4399, %v4943
          %v4945 = vpop.f32.mrb[0].mxu0
          %v4946 = vpop.f32.mrb[0].mxu0
          %v4947 = vadd.f32 %v4402, %v4946
          %v4948 = vpop.f32.mrb[0].mxu0
          %4949 = vmatprep.mubr.bf16.mxu0 %v2967
          %4950 = vmatmul.mubr.bf16.gmra.mrb[0].mxu0 %v2966
          %v4951 = vpop.f32.mrb[0].mxu0
          %v4952 = vadd.f32 %v4407, %v4951
          %v4953 = vpop.f32.mrb[0].mxu0
          %v4954 = vpop.f32.mrb[0].mxu0
          %v4955 = vadd.f32 %v4410, %v4954
          %v4956 = vpop.f32.mrb[0].mxu0
          %4957 = vmatprep.mubr.bf16.mxu0 %v2975
          %4958 = vmatmul.mubr.bf16.gmra.mrb[0].mxu0 %v2974
          %v4959 = vpop.f32.mrb[0].mxu0
          %v4960 = vadd.f32 %v4415, %v4959
          %v4961 = vpop.f32.mrb[0].mxu0
          %v4962 = vpop.f32.mrb[0].mxu0
          %v4963 = vadd.f32 %v4418, %v4962
          %v4964 = vpop.f32.mrb[0].mxu0
          %4965 = vmatprep.mubr.bf16.mxu0 %v2983
          %4966 = vmatmul.mubr.bf16.gmra.mrb[0].mxu0 %v2982
          %v4967 = vpop.f32.mrb[0].mxu0
          %v4968 = vadd.f32 %v4423, %v4967
          %v4969 = vpop.f32.mrb[0].mxu0
          %v4970 = vpop.f32.mrb[0].mxu0
          %v4971 = vadd.f32 %v4426, %v4970
          %v4972 = vpop.f32.mrb[0].mxu0
          %4973 = vmatprep.mubr.bf16.mxu0 %v2991
          %4974 = vmatmul.mubr.bf16.gmra.mrb[0].mxu0 %v2990
          %v4975 = vpop.f32.mrb[0].mxu0
          %v4976 = vadd.f32 %v4431, %v4975
          %v4977 = vpop.f32.mrb[0].mxu0
          %v4978 = vpop.f32.mrb[0].mxu0
          %v4979 = vadd.f32 %v4434, %v4978
          %v4980 = vpop.f32.mrb[0].mxu0
          %4981 = vmatprep.mubr.bf16.mxu0 %v2999
          %4982 = vmatmul.mubr.bf16.gmra.mrb[0].mxu0 %v2998
          %v4983 = vpop.f32.mrb[0].mxu0
          %v4984 = vadd.f32 %v4439, %v4983
          %v4985 = vpop.f32.mrb[0].mxu0
          %v4986 = vpop.f32.mrb[0].mxu0
          %v4987 = vadd.f32 %v4442, %v4986
          %v4988 = vpop.f32.mrb[0].mxu0
          %4989 = vmatprep.mubr.bf16.mxu0 %v3007
          %4990 = vmatmul.mubr.bf16.gmra.mrb[0].mxu0 %v3006
          %v4991 = vpop.f32.mrb[0].mxu0
          %v4992 = vadd.f32 %v4447, %v4991
          %v4993 = vpop.f32.mrb[0].mxu0
          %v4994 = vpop.f32.mrb[0].mxu0
          %v4995 = vadd.f32 %v4450, %v4994
          %v4996 = vpop.f32.mrb[0].mxu0
          %4997 = vmatprep.mubr.bf16.mxu0 %v3015
          %4998 = vmatmul.mubr.bf16.gmra.mrb[0].mxu0 %v3014
          %v4999 = vpop.f32.mrb[0].mxu0
          %v5000 = vadd.f32 %v4455, %v4999
          %v5001 = vpop.f32.mrb[0].mxu0
          %v5002 = vpop.f32.mrb[0].mxu0
          %v5003 = vadd.f32 %v4458, %v5002
          %v5004 = vpop.f32.mrb[0].mxu0
          %5005 = vmatprep.mubr.bf16.mxu0 %v3023
          %5006 = vmatmul.mubr.bf16.gmra.mrb[0].mxu0 %v3022
          %v5007 = vpop.f32.mrb[0].mxu0
          %v5008 = vadd.f32 %v4463, %v5007
          %v5009 = vpop.f32.mrb[0].mxu0
          %v5010 = vpop.f32.mrb[0].mxu0
          %v5011 = vadd.f32 %v4466, %v5010
          %v5012 = vpop.f32.mrb[0].mxu0
          %5013 = vmatprep.mubr.bf16.mxu0 %v3031
          %5014 = vmatmul.mubr.bf16.gmra.mrb[0].mxu0 %v3030
          %v5015 = vpop.f32.mrb[0].mxu0
          %v5016 = vadd.f32 %v4471, %v5015
          %v5017 = vpop.f32.mrb[0].mxu0
          %v5018 = vpop.f32.mrb[0].mxu0
          %v5019 = vadd.f32 %v4474, %v5018
          %v5020 = vpop.f32.mrb[0].mxu0
          %5021 = vmatprep.mubr.bf16.mxu0 %v3039
          %5022 = vmatmul.mubr.bf16.gmra.mrb[0].mxu0 %v3038
          %v5023 = vpop.f32.mrb[0].mxu0
          %v5024 = vadd.f32 %v4479, %v5023
          %v5025 = vpop.f32.mrb[0].mxu0
          %v5026 = vpop.f32.mrb[0].mxu0
          %v5027 = vadd.f32 %v4482, %v5026
          %v5028 = vpop.f32.mrb[0].mxu0
          %5029 = vmatprep.mubr.bf16.mxu0 %v3047
          %5030 = vmatmul.mubr.bf16.gmra.mrb[0].mxu0 %v3046
          %v5031 = vpop.f32.mrb[0].mxu0
          %v5032 = vadd.f32 %v4487, %v5031
          %v5033 = vpop.f32.mrb[0].mxu0
          %v5034 = vpop.f32.mrb[0].mxu0
          %v5035 = vadd.f32 %v4490, %v5034
          %v5036 = vpop.f32.mrb[0].mxu0
          %5037 = vmatprep.mubr.bf16.mxu0 %v3055
          %5038 = vmatmul.mubr.bf16.gmra.mrb[0].mxu0 %v3054
          %v5039 = vpop.f32.mrb[0].mxu0
          %v5040 = vadd.f32 %v4495, %v5039
          %v5041 = vpop.f32.mrb[0].mxu0
          %v5042 = vpop.f32.mrb[0].mxu0
          %v5043 = vadd.f32 %v4498, %v5042
          %v5044 = vpop.f32.mrb[0].mxu0
          %5045 = vmatprep.mubr.bf16.mxu0 %v3063
          %5046 = vmatmul.mubr.bf16.gmra.mrb[0].mxu0 %v3062
          %v5047 = vpop.f32.mrb[0].mxu0
          %v5048 = vadd.f32 %v4503, %v5047
          %v5049 = vpop.f32.mrb[0].mxu0
          %v5050 = vpop.f32.mrb[0].mxu0
          %v5051 = vadd.f32 %v4506, %v5050
          %v5052 = vpop.f32.mrb[0].mxu0
          %5053 = vmatprep.mubr.bf16.mxu0 %v3071
          %5054 = vmatmul.mubr.bf16.gmra.mrb[0].mxu0 %v3070
          %v5055 = vpop.f32.mrb[0].mxu0
          %v5056 = vadd.f32 %v4511, %v5055
          %v5057 = vpop.f32.mrb[0].mxu0
          %v5058 = vpop.f32.mrb[0].mxu0
          %v5059 = vadd.f32 %v4514, %v5058
          %v5060 = vpop.f32.mrb[0].mxu0
          %5061 = vmatprep.mubr.bf16.mxu0 %v3079
          %5062 = vmatmul.mubr.bf16.gmra.mrb[0].mxu0 %v3078
          %v5063 = vpop.f32.mrb[0].mxu0
          %v5064 = vadd.f32 %v4519, %v5063
          %v5065 = vpop.f32.mrb[0].mxu0
          %v5066 = vpop.f32.mrb[0].mxu0
          %v5067 = vadd.f32 %v4522, %v5066
          %v5068 = vpop.f32.mrb[0].mxu0
          %5069 = vmatprep.mubr.bf16.mxu0 %v3087
          %5070 = vmatmul.mubr.bf16.gmra.mrb[0].mxu0 %v3086
          %v5071 = vpop.f32.mrb[0].mxu0
          %v5072 = vadd.f32 %v4527, %v5071
          %v5073 = vpop.f32.mrb[0].mxu0
          %v5074 = vpop.f32.mrb[0].mxu0
          %v5075 = vadd.f32 %v4530, %v5074
          %v5076 = vpop.f32.mrb[0].mxu0
          %5077 = vmatprep.mubr.bf16.mxu0 %v3095
          %5078 = vmatmul.mubr.bf16.gmra.mrb[0].mxu0 %v3094
          %v5079 = vpop.f32.mrb[0].mxu0
          %v5080 = vadd.f32 %v4535, %v5079
          %v5081 = vpop.f32.mrb[0].mxu0
          %v5082 = vpop.f32.mrb[0].mxu0
          %v5083 = vadd.f32 %v4538, %v5082
          %v5084 = vpop.f32.mrb[0].mxu0
          %5085 = vmatprep.mubr.bf16.mxu0 %v3103
          %5086 = vmatmul.mubr.bf16.gmra.mrb[0].mxu0 %v3102
          %v5087 = vpop.f32.mrb[0].mxu0
          %v5088 = vadd.f32 %v4543, %v5087
          %v5089 = vpop.f32.mrb[0].mxu0
          %v5090 = vpop.f32.mrb[0].mxu0
          %v5091 = vadd.f32 %v4546, %v5090
          %v5092 = vpop.f32.mrb[0].mxu0
          %5093 = vmatprep.mubr.bf16.mxu0 %v3111
          %5094 = vmatmul.mubr.bf16.gmra.mrb[0].mxu0 %v3110
          %v5095 = vpop.f32.mrb[0].mxu0
          %v5096 = vadd.f32 %v4551, %v5095
          %v5097 = vpop.f32.mrb[0].mxu0
          %v5098 = vpop.f32.mrb[0].mxu0
          %v5099 = vadd.f32 %v4554, %v5098
          %v5100 = vpop.f32.mrb[0].mxu0
          %5101 = vmatprep.mubr.bf16.mxu0 %v3119
          %5102 = vmatmul.mubr.bf16.gmra.mrb[0].mxu0 %v3118
          %v5103 = vpop.f32.mrb[0].mxu0
          %v5104 = vadd.f32 %v4559, %v5103
          %v5105 = vpop.f32.mrb[0].mxu0
          %v5106 = vpop.f32.mrb[0].mxu0
          %v5107 = vadd.f32 %v4562, %v5106
          %v5108 = vpop.f32.mrb[0].mxu0
          %5109 = vmatprep.mubr.bf16.mxu0 %v3127
          %5110 = vmatmul.mubr.bf16.gmra.mrb[0].mxu0 %v3126
          %v5111 = vpop.f32.mrb[0].mxu0
          %v5112 = vadd.f32 %v4567, %v5111
          %v5113 = vpop.f32.mrb[0].mxu0
          %v5114 = vpop.f32.mrb[0].mxu0
          %v5115 = vadd.f32 %v4570, %v5114
          %v5116 = vpop.f32.mrb[0].mxu0
          %5117 = vmatprep.mubr.bf16.mxu0 %v3135
          %5118 = vmatmul.mubr.bf16.gmra.mrb[0].mxu0 %v3134
          %v5119 = vpop.f32.mrb[0].mxu0
          %v5120 = vadd.f32 %v4575, %v5119
          %v5121 = vpop.f32.mrb[0].mxu0
          %v5122 = vpop.f32.mrb[0].mxu0
          %v5123 = vadd.f32 %v4578, %v5122
          %v5124 = vpop.f32.mrb[0].mxu0
          %5125 = vmatprep.mubr.bf16.mxu0 %v3143
          %5126 = vmatmul.mubr.bf16.gmra.mrb[0].mxu0 %v3142
          %v5127 = vpop.f32.mrb[0].mxu0
          %v5128 = vadd.f32 %v4583, %v5127
          %v5129 = vpop.f32.mrb[0].mxu0
          %v5130 = vpop.f32.mrb[0].mxu0
          %v5131 = vadd.f32 %v4586, %v5130
          %v5132 = vpop.f32.mrb[0].mxu0
          %5133 = vmatprep.mubr.bf16.mxu0 %v3151
          %5134 = vmatmul.mubr.bf16.gmra.mrb[0].mxu0 %v3150
          %v5135 = vpop.f32.mrb[0].mxu0
          %v5136 = vadd.f32 %v4591, %v5135
          %v5137 = vpop.f32.mrb[0].mxu0
          %v5138 = vpop.f32.mrb[0].mxu0
          %v5139 = vadd.f32 %v4594, %v5138
          %v5140 = vpop.f32.mrb[0].mxu0
          %5141 = vmatprep.mubr.bf16.mxu0 %v3159
          %5142 = vmatmul.mubr.bf16.gmra.mrb[0].mxu0 %v3158
          %v5143 = vpop.f32.mrb[0].mxu0
          %v5144 = vadd.f32 %v4599, %v5143
          %v5145 = vpop.f32.mrb[0].mxu0
          %v5146 = vpop.f32.mrb[0].mxu0
          %v5147 = vadd.f32 %v4602, %v5146
          %v5148 = vpop.f32.mrb[0].mxu0
          %5149 = vmatprep.mubr.bf16.mxu0 %v3167
          %5150 = vmatmul.mubr.bf16.gmra.mrb[0].mxu0 %v3166
          %v5151 = vpop.f32.mrb[0].mxu0
          %v5152 = vadd.f32 %v4607, %v5151
          %v5153 = vpop.f32.mrb[0].mxu0
          %v5154 = vpop.f32.mrb[0].mxu0
          %v5155 = vadd.f32 %v4610, %v5154
          %v5156 = vpop.f32.mrb[0].mxu0
          %5157 = vmatprep.mubr.bf16.mxu0 %v3175
          %5158 = vmatmul.mubr.bf16.gmra.mrb[0].mxu0 %v3174
          %v5159 = vpop.f32.mrb[0].mxu0
          %v5160 = vadd.f32 %v4615, %v5159
          %v5161 = vpop.f32.mrb[0].mxu0
          %v5162 = vpop.f32.mrb[0].mxu0
          %v5163 = vadd.f32 %v4618, %v5162
          %v5164 = vpop.f32.mrb[0].mxu0
          %5165 = vmatprep.mubr.bf16.mxu0 %v3183
          %5166 = vmatmul.mubr.bf16.gmra.mrb[0].mxu0 %v3182
          %v5167 = vpop.f32.mrb[0].mxu0
          %v5168 = vadd.f32 %v4623, %v5167
          %v5169 = vpop.f32.mrb[0].mxu0
          %v5170 = vpop.f32.mrb[0].mxu0
          %v5171 = vadd.f32 %v4626, %v5170
          %v5172 = vpop.f32.mrb[0].mxu0
          %5173 = vmatprep.mubr.bf16.mxu0 %v3191
          %5174 = vmatmul.mubr.bf16.gmra.mrb[0].mxu0 %v3190
          %v5175 = vpop.f32.mrb[0].mxu0
          %v5176 = vadd.f32 %v4631, %v5175
          %v5177 = vpop.f32.mrb[0].mxu0
          %v5178 = vpop.f32.mrb[0].mxu0
          %v5179 = vadd.f32 %v4634, %v5178
          %v5180 = vpop.f32.mrb[0].mxu0
          %5181 = vmatprep.mubr.bf16.mxu0 %v3199
          %5182 = vmatmul.mubr.bf16.gmra.mrb[0].mxu0 %v3198
          %v5183 = vpop.f32.mrb[0].mxu0
          %v5184 = vadd.f32 %v4639, %v5183
          %v5185 = vpop.f32.mrb[0].mxu0
          %v5186 = vpop.f32.mrb[0].mxu0
          %v5187 = vadd.f32 %v4642, %v5186
          %v5188 = vpop.f32.mrb[0].mxu0
          %5189 = vmatprep.mubr.bf16.mxu0 %v3207
          %5190 = vmatmul.mubr.bf16.gmra.mrb[0].mxu0 %v3206
          %v5191 = vpop.f32.mrb[0].mxu0
          %v5192 = vadd.f32 %v4647, %v5191
          %v5193 = vpop.f32.mrb[0].mxu0
          %v5194 = vpop.f32.mrb[0].mxu0
          %v5195 = vadd.f32 %v4650, %v5194
          %v5196 = vpop.f32.mrb[0].mxu0
          %5197 = vmatprep.mubr.bf16.mxu0 %v3215
          %5198 = vmatmul.mubr.bf16.gmra.mrb[0].mxu0 %v3214
          %v5199 = vpop.f32.mrb[0].mxu0
          %v5200 = vadd.f32 %v4655, %v5199
          %v5201 = vpop.f32.mrb[0].mxu0
          %v5202 = vpop.f32.mrb[0].mxu0
          %v5203 = vadd.f32 %v4658, %v5202
          %v5204 = vpop.f32.mrb[0].mxu0
          %5205 = vmatprep.mubr.bf16.mxu0 %v3223
          %5206 = vmatmul.mubr.bf16.gmra.mrb[0].mxu0 %v3222
          %v5207 = vpop.f32.mrb[0].mxu0
          %v5208 = vadd.f32 %v4663, %v5207
          %v5209 = vpop.f32.mrb[0].mxu0
          %v5210 = vpop.f32.mrb[0].mxu0
          %v5211 = vadd.f32 %v4666, %v5210
          %v5212 = vpop.f32.mrb[0].mxu0
          %5213 = vmatprep.mubr.bf16.mxu0 %v3231
          %5214 = vmatmul.mubr.bf16.gmra.mrb[0].mxu0 %v3230
          %v5215 = vpop.f32.mrb[0].mxu0
          %v5216 = vadd.f32 %v4671, %v5215
          %v5217 = vpop.f32.mrb[0].mxu0
          %v5218 = vpop.f32.mrb[0].mxu0
          %v5219 = vadd.f32 %v4674, %v5218
          %v5220 = vpop.f32.mrb[0].mxu0
          %5221 = vmatprep.mubr.bf16.mxu0 %v3239
          %5222 = vmatmul.mubr.bf16.gmra.mrb[0].mxu0 %v3238
          %v5223 = vpop.f32.mrb[0].mxu0
          %v5224 = vadd.f32 %v4679, %v5223
          %v5225 = vpop.f32.mrb[0].mxu0
          %v5226 = vpop.f32.mrb[0].mxu0
          %v5227 = vadd.f32 %v4682, %v5226
          %v5228 = vpop.f32.mrb[0].mxu0
          %5229 = vmatprep.mubr.bf16.mxu0 %v3247
          %5230 = vmatmul.mubr.bf16.gmra.mrb[0].mxu0 %v3246
          %v5231 = vpop.f32.mrb[0].mxu0
          %v5232 = vadd.f32 %v4687, %v5231
          %v5233 = vpop.f32.mrb[0].mxu0
          %v5234 = vpop.f32.mrb[0].mxu0
          %v5235 = vadd.f32 %v4690, %v5234
          %v5236 = vpop.f32.mrb[0].mxu0
          %5237 = vmatprep.mubr.bf16.mxu0 %v3255
          %5238 = vmatmul.mubr.bf16.gmra.mrb[0].mxu0 %v3254
          %v5239 = vpop.f32.mrb[0].mxu0
          %v5240 = vadd.f32 %v4695, %v5239
          %v5241 = vpop.f32.mrb[0].mxu0
          %v5242 = vpop.f32.mrb[0].mxu0
          %v5243 = vadd.f32 %v4698, %v5242
          %v5244 = vpop.f32.mrb[0].mxu0
          %5245 = vmatprep.mubr.bf16.mxu0 %v3263
          %5246 = vmatmul.mubr.bf16.gmra.mrb[0].mxu0 %v3262
          %v5247 = vpop.f32.mrb[0].mxu0
          %v5248 = vadd.f32 %v4703, %v5247
          %v5249 = vpop.f32.mrb[0].mxu0
          %v5250 = vpop.f32.mrb[0].mxu0
          %v5251 = vadd.f32 %v4706, %v5250
          %v5252 = vpop.f32.mrb[0].mxu0
          %5253 = vmatprep.mubr.bf16.mxu0 %v3271
          %5254 = vmatmul.mubr.bf16.gmra.mrb[0].mxu0 %v3270
          %v5255 = vpop.f32.mrb[0].mxu0
          %v5256 = vadd.f32 %v4711, %v5255
          %v5257 = vpop.f32.mrb[0].mxu0
          %v5258 = vpop.f32.mrb[0].mxu0
          %v5259 = vadd.f32 %v4714, %v5258
          %v5260 = vpop.f32.mrb[0].mxu0
          %5261 = vmatprep.mubr.bf16.mxu0 %v3279
          %5262 = vmatmul.mubr.bf16.gmra.mrb[0].mxu0 %v3278
          %v5263 = vpop.f32.mrb[0].mxu0
          %v5264 = vadd.f32 %v4719, %v5263
          %v5265 = vpop.f32.mrb[0].mxu0
          %v5266 = vpop.f32.mrb[0].mxu0
          %v5267 = vadd.f32 %v4722, %v5266
          %v5268 = vpop.f32.mrb[0].mxu0
          %5269 = vmatprep.mubr.bf16.mxu0 %v3287
          %5270 = vmatmul.mubr.bf16.gmra.mrb[0].mxu0 %v3286
          %v5271 = vpop.f32.mrb[0].mxu0
          %v5272 = vadd.f32 %v4727, %v5271
          %v5273 = vpop.f32.mrb[0].mxu0
          %v5274 = vpop.f32.mrb[0].mxu0
          %v5275 = vadd.f32 %v4730, %v5274
          %v5276 = vpop.f32.mrb[0].mxu0
          %5277 = vdwg.mxu0
          %5278 = vmatprep.subr.bf16.mxu0 0
          %5279 = vmatpush1.bf16.msra.mxu0 %v4092
          %5280 = vmatprep.subr.bf16.mxu0 0
          %5281 = vmatpush1.bf16.msra.mxu0 %v4093
          %5282 = vmatprep.subr.bf16.mxu0 0
          %5283 = vmatpush1.bf16.msra.mxu0 %v4094
          %5284 = vmatprep.subr.bf16.mxu0 0
          %5285 = vmatpush1.bf16.msra.mxu0 %v4095
          %5286 = vmatprep.subr.bf16.mxu0 0
          %5287 = vmatpush1.bf16.msra.mxu0 %v4096
          %5288 = vmatprep.subr.bf16.mxu0 0
          %5289 = vmatpush1.bf16.msra.mxu0 %v4097
          %5290 = vmatprep.subr.bf16.mxu0 0
          %5291 = vmatpush1.bf16.msra.mxu0 %v4098
          %5292 = vmatprep.subr.bf16.mxu0 0
          %5293 = vmatpush1.bf16.msra.mxu0 %v4099
          %5294 = vmatprep.subr.bf16.mxu0 0
          %5295 = vmatpush1.bf16.msra.mxu0 %v4100
          %5296 = vmatprep.subr.bf16.mxu0 0
          %5297 = vmatpush1.bf16.msra.mxu0 %v4101
          %5298 = vmatprep.subr.bf16.mxu0 0
          %5299 = vmatpush1.bf16.msra.mxu0 %v4102
          %5300 = vmatprep.subr.bf16.mxu0 0
          %5301 = vmatpush1.bf16.msra.mxu0 %v4103
          %5302 = vmatprep.subr.bf16.mxu0 0
          %5303 = vmatpush1.bf16.msra.mxu0 %v4104
          %5304 = vmatprep.subr.bf16.mxu0 0
          %5305 = vmatpush1.bf16.msra.mxu0 %v4105
          %5306 = vmatprep.subr.bf16.mxu0 0
          %5307 = vmatpush1.bf16.msra.mxu0 %v4106
          %5308 = vmatprep.subr.bf16.mxu0 0
          %5309 = vmatpush1.bf16.msra.mxu0 %v4107
          %5310 = vmatprep.mubr.bf16.mxu0 %v2785
          %5311 = vmatmul.mubr.bf16.gmra.mrb[0].mxu0 %v2784
          %v5312 = vpop.f32.mrb[0].mxu0
          %v5313 = vadd.f32 %v4768, %v5312
          %v5314 = vpop.f32.mrb[0].mxu0
          %v5315 = vpop.f32.mrb[0].mxu0
          %v5316 = vadd.f32 %v4771, %v5315
          %v5317 = vpop.f32.mrb[0].mxu0
          %5318 = vmatprep.mubr.bf16.mxu0 %v2793
          %5319 = vmatmul.mubr.bf16.gmra.mrb[0].mxu0 %v2792
          %v5320 = vpop.f32.mrb[0].mxu0
          %v5321 = vadd.f32 %v4776, %v5320
          %v5322 = vpop.f32.mrb[0].mxu0
          %v5323 = vpop.f32.mrb[0].mxu0
          %v5324 = vadd.f32 %v4779, %v5323
          %v5325 = vpop.f32.mrb[0].mxu0
          %5326 = vmatprep.mubr.bf16.mxu0 %v2801
          %5327 = vmatmul.mubr.bf16.gmra.mrb[0].mxu0 %v2800
          %v5328 = vpop.f32.mrb[0].mxu0
          %v5329 = vadd.f32 %v4784, %v5328
          %v5330 = vpop.f32.mrb[0].mxu0
          %v5331 = vpop.f32.mrb[0].mxu0
          %v5332 = vadd.f32 %v4787, %v5331
          %v5333 = vpop.f32.mrb[0].mxu0
          %5334 = vmatprep.mubr.bf16.mxu0 %v2809
          %5335 = vmatmul.mubr.bf16.gmra.mrb[0].mxu0 %v2808
          %v5336 = vpop.f32.mrb[0].mxu0
          %v5337 = vadd.f32 %v4792, %v5336
          %v5338 = vpop.f32.mrb[0].mxu0
          %v5339 = vpop.f32.mrb[0].mxu0
          %v5340 = vadd.f32 %v4795, %v5339
          %v5341 = vpop.f32.mrb[0].mxu0
          %5342 = vmatprep.mubr.bf16.mxu0 %v2817
          %5343 = vmatmul.mubr.bf16.gmra.mrb[0].mxu0 %v2816
          %v5344 = vpop.f32.mrb[0].mxu0
          %v5345 = vadd.f32 %v4800, %v5344
          %v5346 = vpop.f32.mrb[0].mxu0
          %v5347 = vpop.f32.mrb[0].mxu0
          %v5348 = vadd.f32 %v4803, %v5347
          %v5349 = vpop.f32.mrb[0].mxu0
          %5350 = vmatprep.mubr.bf16.mxu0 %v2825
          %5351 = vmatmul.mubr.bf16.gmra.mrb[0].mxu0 %v2824
          %v5352 = vpop.f32.mrb[0].mxu0
          %v5353 = vadd.f32 %v4808, %v5352
          %v5354 = vpop.f32.mrb[0].mxu0
          %v5355 = vpop.f32.mrb[0].mxu0
          %v5356 = vadd.f32 %v4811, %v5355
          %v5357 = vpop.f32.mrb[0].mxu0
          %5358 = vmatprep.mubr.bf16.mxu0 %v2833
          %5359 = vmatmul.mubr.bf16.gmra.mrb[0].mxu0 %v2832
          %v5360 = vpop.f32.mrb[0].mxu0
          %v5361 = vadd.f32 %v4816, %v5360
          %v5362 = vpop.f32.mrb[0].mxu0
          %v5363 = vpop.f32.mrb[0].mxu0
          %v5364 = vadd.f32 %v4819, %v5363
          %v5365 = vpop.f32.mrb[0].mxu0
          %5366 = vmatprep.mubr.bf16.mxu0 %v2841
          %5367 = vmatmul.mubr.bf16.gmra.mrb[0].mxu0 %v2840
          %v5368 = vpop.f32.mrb[0].mxu0
          %v5369 = vadd.f32 %v4824, %v5368
          %v5370 = vpop.f32.mrb[0].mxu0
          %v5371 = vpop.f32.mrb[0].mxu0
          %v5372 = vadd.f32 %v4827, %v5371
          %v5373 = vpop.f32.mrb[0].mxu0
          %5374 = vmatprep.mubr.bf16.mxu0 %v2849
          %5375 = vmatmul.mubr.bf16.gmra.mrb[0].mxu0 %v2848
          %v5376 = vpop.f32.mrb[0].mxu0
          %v5377 = vadd.f32 %v4832, %v5376
          %v5378 = vpop.f32.mrb[0].mxu0
          %v5379 = vpop.f32.mrb[0].mxu0
          %v5380 = vadd.f32 %v4835, %v5379
          %v5381 = vpop.f32.mrb[0].mxu0
          %5382 = vmatprep.mubr.bf16.mxu0 %v2857
          %5383 = vmatmul.mubr.bf16.gmra.mrb[0].mxu0 %v2856
          %v5384 = vpop.f32.mrb[0].mxu0
          %v5385 = vadd.f32 %v4840, %v5384
          %v5386 = vpop.f32.mrb[0].mxu0
          %v5387 = vpop.f32.mrb[0].mxu0
          %v5388 = vadd.f32 %v4843, %v5387
          %v5389 = vpop.f32.mrb[0].mxu0
          %5390 = vmatprep.mubr.bf16.mxu0 %v2865
          %5391 = vmatmul.mubr.bf16.gmra.mrb[0].mxu0 %v2864
          %v5392 = vpop.f32.mrb[0].mxu0
          %v5393 = vadd.f32 %v4848, %v5392
          %v5394 = vpop.f32.mrb[0].mxu0
          %v5395 = vpop.f32.mrb[0].mxu0
          %v5396 = vadd.f32 %v4851, %v5395
          %v5397 = vpop.f32.mrb[0].mxu0
          %5398 = vmatprep.mubr.bf16.mxu0 %v2873
          %5399 = vmatmul.mubr.bf16.gmra.mrb[0].mxu0 %v2872
          %v5400 = vpop.f32.mrb[0].mxu0
          %v5401 = vadd.f32 %v4856, %v5400
          %v5402 = vpop.f32.mrb[0].mxu0
          %v5403 = vpop.f32.mrb[0].mxu0
          %v5404 = vadd.f32 %v4859, %v5403
          %v5405 = vpop.f32.mrb[0].mxu0
          %5406 = vmatprep.mubr.bf16.mxu0 %v2881
          %5407 = vmatmul.mubr.bf16.gmra.mrb[0].mxu0 %v2880
          %v5408 = vpop.f32.mrb[0].mxu0
          %v5409 = vadd.f32 %v4864, %v5408
          %v5410 = vpop.f32.mrb[0].mxu0
          %v5411 = vpop.f32.mrb[0].mxu0
          %v5412 = vadd.f32 %v4867, %v5411
          %v5413 = vpop.f32.mrb[0].mxu0
          %5414 = vmatprep.mubr.bf16.mxu0 %v2889
          %5415 = vmatmul.mubr.bf16.gmra.mrb[0].mxu0 %v2888
          %v5416 = vpop.f32.mrb[0].mxu0
          %v5417 = vadd.f32 %v4872, %v5416
          %v5418 = vpop.f32.mrb[0].mxu0
          %v5419 = vpop.f32.mrb[0].mxu0
          %v5420 = vadd.f32 %v4875, %v5419
          %v5421 = vpop.f32.mrb[0].mxu0
          %5422 = vmatprep.mubr.bf16.mxu0 %v2897
          %5423 = vmatmul.mubr.bf16.gmra.mrb[0].mxu0 %v2896
          %v5424 = vpop.f32.mrb[0].mxu0
          %v5425 = vadd.f32 %v4880, %v5424
          %v5426 = vpop.f32.mrb[0].mxu0
          %v5427 = vpop.f32.mrb[0].mxu0
          %v5428 = vadd.f32 %v4883, %v5427
          %v5429 = vpop.f32.mrb[0].mxu0
          %5430 = vmatprep.mubr.bf16.mxu0 %v2905
          %5431 = vmatmul.mubr.bf16.gmra.mrb[0].mxu0 %v2904
          %v5432 = vpop.f32.mrb[0].mxu0
          %v5433 = vadd.f32 %v4888, %v5432
          %v5434 = vpop.f32.mrb[0].mxu0
          %v5435 = vpop.f32.mrb[0].mxu0
          %v5436 = vadd.f32 %v4891, %v5435
          %v5437 = vpop.f32.mrb[0].mxu0
          %5438 = vmatprep.mubr.bf16.mxu0 %v2913
          %5439 = vmatmul.mubr.bf16.gmra.mrb[0].mxu0 %v2912
          %v5440 = vpop.f32.mrb[0].mxu0
          %v5441 = vadd.f32 %v4896, %v5440
          %v5442 = vpop.f32.mrb[0].mxu0
          %v5443 = vpop.f32.mrb[0].mxu0
          %v5444 = vadd.f32 %v4899, %v5443
          %v5445 = vpop.f32.mrb[0].mxu0
          %5446 = vmatprep.mubr.bf16.mxu0 %v2921
          %5447 = vmatmul.mubr.bf16.gmra.mrb[0].mxu0 %v2920
          %v5448 = vpop.f32.mrb[0].mxu0
          %v5449 = vadd.f32 %v4904, %v5448
          %v5450 = vpop.f32.mrb[0].mxu0
          %v5451 = vpop.f32.mrb[0].mxu0
          %v5452 = vadd.f32 %v4907, %v5451
          %v5453 = vpop.f32.mrb[0].mxu0
          %5454 = vmatprep.mubr.bf16.mxu0 %v2929
          %5455 = vmatmul.mubr.bf16.gmra.mrb[0].mxu0 %v2928
          %v5456 = vpop.f32.mrb[0].mxu0
          %v5457 = vadd.f32 %v4912, %v5456
          %v5458 = vpop.f32.mrb[0].mxu0
          %v5459 = vpop.f32.mrb[0].mxu0
          %v5460 = vadd.f32 %v4915, %v5459
          %v5461 = vpop.f32.mrb[0].mxu0
          %5462 = vmatprep.mubr.bf16.mxu0 %v2937
          %5463 = vmatmul.mubr.bf16.gmra.mrb[0].mxu0 %v2936
          %v5464 = vpop.f32.mrb[0].mxu0
          %v5465 = vadd.f32 %v4920, %v5464
          %v5466 = vpop.f32.mrb[0].mxu0
          %v5467 = vpop.f32.mrb[0].mxu0
          %v5468 = vadd.f32 %v4923, %v5467
          %v5469 = vpop.f32.mrb[0].mxu0
          %5470 = vmatprep.mubr.bf16.mxu0 %v2945
          %5471 = vmatmul.mubr.bf16.gmra.mrb[0].mxu0 %v2944
          %v5472 = vpop.f32.mrb[0].mxu0
          %v5473 = vadd.f32 %v4928, %v5472
          %v5474 = vpop.f32.mrb[0].mxu0
          %v5475 = vpop.f32.mrb[0].mxu0
          %v5476 = vadd.f32 %v4931, %v5475
          %v5477 = vpop.f32.mrb[0].mxu0
          %5478 = vmatprep.mubr.bf16.mxu0 %v2953
          %5479 = vmatmul.mubr.bf16.gmra.mrb[0].mxu0 %v2952
          %v5480 = vpop.f32.mrb[0].mxu0
          %v5481 = vadd.f32 %v4936, %v5480
          %v5482 = vpop.f32.mrb[0].mxu0
          %v5483 = vpop.f32.mrb[0].mxu0
          %v5484 = vadd.f32 %v4939, %v5483
          %v5485 = vpop.f32.mrb[0].mxu0
          %5486 = vmatprep.mubr.bf16.mxu0 %v2961
          %5487 = vmatmul.mubr.bf16.gmra.mrb[0].mxu0 %v2960
          %v5488 = vpop.f32.mrb[0].mxu0
          %v5489 = vadd.f32 %v4944, %v5488
          %v5490 = vpop.f32.mrb[0].mxu0
          %v5491 = vpop.f32.mrb[0].mxu0
          %v5492 = vadd.f32 %v4947, %v5491
          %v5493 = vpop.f32.mrb[0].mxu0
          %5494 = vmatprep.mubr.bf16.mxu0 %v2969
          %5495 = vmatmul.mubr.bf16.gmra.mrb[0].mxu0 %v2968
          %v5496 = vpop.f32.mrb[0].mxu0
          %v5497 = vadd.f32 %v4952, %v5496
          %v5498 = vpop.f32.mrb[0].mxu0
          %v5499 = vpop.f32.mrb[0].mxu0
          %v5500 = vadd.f32 %v4955, %v5499
          %v5501 = vpop.f32.mrb[0].mxu0
          %5502 = vmatprep.mubr.bf16.mxu0 %v2977
          %5503 = vmatmul.mubr.bf16.gmra.mrb[0].mxu0 %v2976
          %v5504 = vpop.f32.mrb[0].mxu0
          %v5505 = vadd.f32 %v4960, %v5504
          %v5506 = vpop.f32.mrb[0].mxu0
          %v5507 = vpop.f32.mrb[0].mxu0
          %v5508 = vadd.f32 %v4963, %v5507
          %v5509 = vpop.f32.mrb[0].mxu0
          %5510 = vmatprep.mubr.bf16.mxu0 %v2985
          %5511 = vmatmul.mubr.bf16.gmra.mrb[0].mxu0 %v2984
          %v5512 = vpop.f32.mrb[0].mxu0
          %v5513 = vadd.f32 %v4968, %v5512
          %v5514 = vpop.f32.mrb[0].mxu0
          %v5515 = vpop.f32.mrb[0].mxu0
          %v5516 = vadd.f32 %v4971, %v5515
          %v5517 = vpop.f32.mrb[0].mxu0
          %5518 = vmatprep.mubr.bf16.mxu0 %v2993
          %5519 = vmatmul.mubr.bf16.gmra.mrb[0].mxu0 %v2992
          %v5520 = vpop.f32.mrb[0].mxu0
          %v5521 = vadd.f32 %v4976, %v5520
          %v5522 = vpop.f32.mrb[0].mxu0
          %v5523 = vpop.f32.mrb[0].mxu0
          %v5524 = vadd.f32 %v4979, %v5523
          %v5525 = vpop.f32.mrb[0].mxu0
          %5526 = vmatprep.mubr.bf16.mxu0 %v3001
          %5527 = vmatmul.mubr.bf16.gmra.mrb[0].mxu0 %v3000
          %v5528 = vpop.f32.mrb[0].mxu0
          %v5529 = vadd.f32 %v4984, %v5528
          %v5530 = vpop.f32.mrb[0].mxu0
          %v5531 = vpop.f32.mrb[0].mxu0
          %v5532 = vadd.f32 %v4987, %v5531
          %v5533 = vpop.f32.mrb[0].mxu0
          %5534 = vmatprep.mubr.bf16.mxu0 %v3009
          %5535 = vmatmul.mubr.bf16.gmra.mrb[0].mxu0 %v3008
          %v5536 = vpop.f32.mrb[0].mxu0
          %v5537 = vadd.f32 %v4992, %v5536
          %v5538 = vpop.f32.mrb[0].mxu0
          %v5539 = vpop.f32.mrb[0].mxu0
          %v5540 = vadd.f32 %v4995, %v5539
          %v5541 = vpop.f32.mrb[0].mxu0
          %5542 = vmatprep.mubr.bf16.mxu0 %v3017
          %5543 = vmatmul.mubr.bf16.gmra.mrb[0].mxu0 %v3016
          %v5544 = vpop.f32.mrb[0].mxu0
          %v5545 = vadd.f32 %v5000, %v5544
          %v5546 = vpop.f32.mrb[0].mxu0
          %v5547 = vpop.f32.mrb[0].mxu0
          %v5548 = vadd.f32 %v5003, %v5547
          %v5549 = vpop.f32.mrb[0].mxu0
          %5550 = vmatprep.mubr.bf16.mxu0 %v3025
          %5551 = vmatmul.mubr.bf16.gmra.mrb[0].mxu0 %v3024
          %v5552 = vpop.f32.mrb[0].mxu0
          %v5553 = vadd.f32 %v5008, %v5552
          %v5554 = vpop.f32.mrb[0].mxu0
          %v5555 = vpop.f32.mrb[0].mxu0
          %v5556 = vadd.f32 %v5011, %v5555
          %v5557 = vpop.f32.mrb[0].mxu0
          %5558 = vmatprep.mubr.bf16.mxu0 %v3033
          %5559 = vmatmul.mubr.bf16.gmra.mrb[0].mxu0 %v3032
          %v5560 = vpop.f32.mrb[0].mxu0
          %v5561 = vadd.f32 %v5016, %v5560
          %v5562 = vpop.f32.mrb[0].mxu0
          %v5563 = vpop.f32.mrb[0].mxu0
          %v5564 = vadd.f32 %v5019, %v5563
          %v5565 = vpop.f32.mrb[0].mxu0
          %5566 = vmatprep.mubr.bf16.mxu0 %v3041
          %5567 = vmatmul.mubr.bf16.gmra.mrb[0].mxu0 %v3040
          %v5568 = vpop.f32.mrb[0].mxu0
          %v5569 = vadd.f32 %v5024, %v5568
          %v5570 = vpop.f32.mrb[0].mxu0
          %v5571 = vpop.f32.mrb[0].mxu0
          %v5572 = vadd.f32 %v5027, %v5571
          %v5573 = vpop.f32.mrb[0].mxu0
          %5574 = vmatprep.mubr.bf16.mxu0 %v3049
          %5575 = vmatmul.mubr.bf16.gmra.mrb[0].mxu0 %v3048
          %v5576 = vpop.f32.mrb[0].mxu0
          %v5577 = vadd.f32 %v5032, %v5576
          %v5578 = vpop.f32.mrb[0].mxu0
          %v5579 = vpop.f32.mrb[0].mxu0
          %v5580 = vadd.f32 %v5035, %v5579
          %v5581 = vpop.f32.mrb[0].mxu0
          %5582 = vmatprep.mubr.bf16.mxu0 %v3057
          %5583 = vmatmul.mubr.bf16.gmra.mrb[0].mxu0 %v3056
          %v5584 = vpop.f32.mrb[0].mxu0
          %v5585 = vadd.f32 %v5040, %v5584
          %v5586 = vpop.f32.mrb[0].mxu0
          %v5587 = vpop.f32.mrb[0].mxu0
          %v5588 = vadd.f32 %v5043, %v5587
          %v5589 = vpop.f32.mrb[0].mxu0
          %5590 = vmatprep.mubr.bf16.mxu0 %v3065
          %5591 = vmatmul.mubr.bf16.gmra.mrb[0].mxu0 %v3064
          %v5592 = vpop.f32.mrb[0].mxu0
          %v5593 = vadd.f32 %v5048, %v5592
          %v5594 = vpop.f32.mrb[0].mxu0
          %v5595 = vpop.f32.mrb[0].mxu0
          %v5596 = vadd.f32 %v5051, %v5595
          %v5597 = vpop.f32.mrb[0].mxu0
          %5598 = vmatprep.mubr.bf16.mxu0 %v3073
          %5599 = vmatmul.mubr.bf16.gmra.mrb[0].mxu0 %v3072
          %v5600 = vpop.f32.mrb[0].mxu0
          %v5601 = vadd.f32 %v5056, %v5600
          %v5602 = vpop.f32.mrb[0].mxu0
          %v5603 = vpop.f32.mrb[0].mxu0
          %v5604 = vadd.f32 %v5059, %v5603
          %v5605 = vpop.f32.mrb[0].mxu0
          %5606 = vmatprep.mubr.bf16.mxu0 %v3081
          %5607 = vmatmul.mubr.bf16.gmra.mrb[0].mxu0 %v3080
          %v5608 = vpop.f32.mrb[0].mxu0
          %v5609 = vadd.f32 %v5064, %v5608
          %v5610 = vpop.f32.mrb[0].mxu0
          %v5611 = vpop.f32.mrb[0].mxu0
          %v5612 = vadd.f32 %v5067, %v5611
          %v5613 = vpop.f32.mrb[0].mxu0
          %5614 = vmatprep.mubr.bf16.mxu0 %v3089
          %5615 = vmatmul.mubr.bf16.gmra.mrb[0].mxu0 %v3088
          %v5616 = vpop.f32.mrb[0].mxu0
          %v5617 = vadd.f32 %v5072, %v5616
          %v5618 = vpop.f32.mrb[0].mxu0
          %v5619 = vpop.f32.mrb[0].mxu0
          %v5620 = vadd.f32 %v5075, %v5619
          %v5621 = vpop.f32.mrb[0].mxu0
          %5622 = vmatprep.mubr.bf16.mxu0 %v3097
          %5623 = vmatmul.mubr.bf16.gmra.mrb[0].mxu0 %v3096
          %v5624 = vpop.f32.mrb[0].mxu0
          %v5625 = vadd.f32 %v5080, %v5624
          %v5626 = vpop.f32.mrb[0].mxu0
          %v5627 = vpop.f32.mrb[0].mxu0
          %v5628 = vadd.f32 %v5083, %v5627
          %v5629 = vpop.f32.mrb[0].mxu0
          %5630 = vmatprep.mubr.bf16.mxu0 %v3105
          %5631 = vmatmul.mubr.bf16.gmra.mrb[0].mxu0 %v3104
          %v5632 = vpop.f32.mrb[0].mxu0
          %v5633 = vadd.f32 %v5088, %v5632
          %v5634 = vpop.f32.mrb[0].mxu0
          %v5635 = vpop.f32.mrb[0].mxu0
          %v5636 = vadd.f32 %v5091, %v5635
          %v5637 = vpop.f32.mrb[0].mxu0
          %5638 = vmatprep.mubr.bf16.mxu0 %v3113
          %5639 = vmatmul.mubr.bf16.gmra.mrb[0].mxu0 %v3112
          %v5640 = vpop.f32.mrb[0].mxu0
          %v5641 = vadd.f32 %v5096, %v5640
          %v5642 = vpop.f32.mrb[0].mxu0
          %v5643 = vpop.f32.mrb[0].mxu0
          %v5644 = vadd.f32 %v5099, %v5643
          %v5645 = vpop.f32.mrb[0].mxu0
          %5646 = vmatprep.mubr.bf16.mxu0 %v3121
          %5647 = vmatmul.mubr.bf16.gmra.mrb[0].mxu0 %v3120
          %v5648 = vpop.f32.mrb[0].mxu0
          %v5649 = vadd.f32 %v5104, %v5648
          %v5650 = vpop.f32.mrb[0].mxu0
          %v5651 = vpop.f32.mrb[0].mxu0
          %v5652 = vadd.f32 %v5107, %v5651
          %v5653 = vpop.f32.mrb[0].mxu0
          %5654 = vmatprep.mubr.bf16.mxu0 %v3129
          %5655 = vmatmul.mubr.bf16.gmra.mrb[0].mxu0 %v3128
          %v5656 = vpop.f32.mrb[0].mxu0
          %v5657 = vadd.f32 %v5112, %v5656
          %v5658 = vpop.f32.mrb[0].mxu0
          %v5659 = vpop.f32.mrb[0].mxu0
          %v5660 = vadd.f32 %v5115, %v5659
          %v5661 = vpop.f32.mrb[0].mxu0
          %5662 = vmatprep.mubr.bf16.mxu0 %v3137
          %5663 = vmatmul.mubr.bf16.gmra.mrb[0].mxu0 %v3136
          %v5664 = vpop.f32.mrb[0].mxu0
          %v5665 = vadd.f32 %v5120, %v5664
          %v5666 = vpop.f32.mrb[0].mxu0
          %v5667 = vpop.f32.mrb[0].mxu0
          %v5668 = vadd.f32 %v5123, %v5667
          %v5669 = vpop.f32.mrb[0].mxu0
          %5670 = vmatprep.mubr.bf16.mxu0 %v3145
          %5671 = vmatmul.mubr.bf16.gmra.mrb[0].mxu0 %v3144
          %v5672 = vpop.f32.mrb[0].mxu0
          %v5673 = vadd.f32 %v5128, %v5672
          %v5674 = vpop.f32.mrb[0].mxu0
          %v5675 = vpop.f32.mrb[0].mxu0
          %v5676 = vadd.f32 %v5131, %v5675
          %v5677 = vpop.f32.mrb[0].mxu0
          %5678 = vmatprep.mubr.bf16.mxu0 %v3153
          %5679 = vmatmul.mubr.bf16.gmra.mrb[0].mxu0 %v3152
          %v5680 = vpop.f32.mrb[0].mxu0
          %v5681 = vadd.f32 %v5136, %v5680
          %v5682 = vpop.f32.mrb[0].mxu0
          %v5683 = vpop.f32.mrb[0].mxu0
          %v5684 = vadd.f32 %v5139, %v5683
          %v5685 = vpop.f32.mrb[0].mxu0
          %5686 = vmatprep.mubr.bf16.mxu0 %v3161
          %5687 = vmatmul.mubr.bf16.gmra.mrb[0].mxu0 %v3160
          %v5688 = vpop.f32.mrb[0].mxu0
          %v5689 = vadd.f32 %v5144, %v5688
          %v5690 = vpop.f32.mrb[0].mxu0
          %v5691 = vpop.f32.mrb[0].mxu0
          %v5692 = vadd.f32 %v5147, %v5691
          %v5693 = vpop.f32.mrb[0].mxu0
          %5694 = vmatprep.mubr.bf16.mxu0 %v3169
          %5695 = vmatmul.mubr.bf16.gmra.mrb[0].mxu0 %v3168
          %v5696 = vpop.f32.mrb[0].mxu0
          %v5697 = vadd.f32 %v5152, %v5696
          %v5698 = vpop.f32.mrb[0].mxu0
          %v5699 = vpop.f32.mrb[0].mxu0
          %v5700 = vadd.f32 %v5155, %v5699
          %v5701 = vpop.f32.mrb[0].mxu0
          %5702 = vmatprep.mubr.bf16.mxu0 %v3177
          %5703 = vmatmul.mubr.bf16.gmra.mrb[0].mxu0 %v3176
          %v5704 = vpop.f32.mrb[0].mxu0
          %v5705 = vadd.f32 %v5160, %v5704
          %v5706 = vpop.f32.mrb[0].mxu0
          %v5707 = vpop.f32.mrb[0].mxu0
          %v5708 = vadd.f32 %v5163, %v5707
          %v5709 = vpop.f32.mrb[0].mxu0
          %5710 = vmatprep.mubr.bf16.mxu0 %v3185
          %5711 = vmatmul.mubr.bf16.gmra.mrb[0].mxu0 %v3184
          %v5712 = vpop.f32.mrb[0].mxu0
          %v5713 = vadd.f32 %v5168, %v5712
          %v5714 = vpop.f32.mrb[0].mxu0
          %v5715 = vpop.f32.mrb[0].mxu0
          %v5716 = vadd.f32 %v5171, %v5715
          %v5717 = vpop.f32.mrb[0].mxu0
          %5718 = vmatprep.mubr.bf16.mxu0 %v3193
          %5719 = vmatmul.mubr.bf16.gmra.mrb[0].mxu0 %v3192
          %v5720 = vpop.f32.mrb[0].mxu0
          %v5721 = vadd.f32 %v5176, %v5720
          %v5722 = vpop.f32.mrb[0].mxu0
          %v5723 = vpop.f32.mrb[0].mxu0
          %v5724 = vadd.f32 %v5179, %v5723
          %v5725 = vpop.f32.mrb[0].mxu0
          %5726 = vmatprep.mubr.bf16.mxu0 %v3201
          %5727 = vmatmul.mubr.bf16.gmra.mrb[0].mxu0 %v3200
          %v5728 = vpop.f32.mrb[0].mxu0
          %v5729 = vadd.f32 %v5184, %v5728
          %v5730 = vpop.f32.mrb[0].mxu0
          %v5731 = vpop.f32.mrb[0].mxu0
          %v5732 = vadd.f32 %v5187, %v5731
          %v5733 = vpop.f32.mrb[0].mxu0
          %5734 = vmatprep.mubr.bf16.mxu0 %v3209
          %5735 = vmatmul.mubr.bf16.gmra.mrb[0].mxu0 %v3208
          %v5736 = vpop.f32.mrb[0].mxu0
          %v5737 = vadd.f32 %v5192, %v5736
          %v5738 = vpop.f32.mrb[0].mxu0
          %v5739 = vpop.f32.mrb[0].mxu0
          %v5740 = vadd.f32 %v5195, %v5739
          %v5741 = vpop.f32.mrb[0].mxu0
          %5742 = vmatprep.mubr.bf16.mxu0 %v3217
          %5743 = vmatmul.mubr.bf16.gmra.mrb[0].mxu0 %v3216
          %v5744 = vpop.f32.mrb[0].mxu0
          %v5745 = vadd.f32 %v5200, %v5744
          %v5746 = vpop.f32.mrb[0].mxu0
          %v5747 = vpop.f32.mrb[0].mxu0
          %v5748 = vadd.f32 %v5203, %v5747
          %v5749 = vpop.f32.mrb[0].mxu0
          %5750 = vmatprep.mubr.bf16.mxu0 %v3225
          %5751 = vmatmul.mubr.bf16.gmra.mrb[0].mxu0 %v3224
          %v5752 = vpop.f32.mrb[0].mxu0
          %v5753 = vadd.f32 %v5208, %v5752
          %v5754 = vpop.f32.mrb[0].mxu0
          %v5755 = vpop.f32.mrb[0].mxu0
          %v5756 = vadd.f32 %v5211, %v5755
          %v5757 = vpop.f32.mrb[0].mxu0
          %5758 = vmatprep.mubr.bf16.mxu0 %v3233
          %5759 = vmatmul.mubr.bf16.gmra.mrb[0].mxu0 %v3232
          %v5760 = vpop.f32.mrb[0].mxu0
          %v5761 = vadd.f32 %v5216, %v5760
          %v5762 = vpop.f32.mrb[0].mxu0
          %v5763 = vpop.f32.mrb[0].mxu0
          %v5764 = vadd.f32 %v5219, %v5763
          %v5765 = vpop.f32.mrb[0].mxu0
          %5766 = vmatprep.mubr.bf16.mxu0 %v3241
          %5767 = vmatmul.mubr.bf16.gmra.mrb[0].mxu0 %v3240
          %v5768 = vpop.f32.mrb[0].mxu0
          %v5769 = vadd.f32 %v5224, %v5768
          %v5770 = vpop.f32.mrb[0].mxu0
          %v5771 = vpop.f32.mrb[0].mxu0
          %v5772 = vadd.f32 %v5227, %v5771
          %v5773 = vpop.f32.mrb[0].mxu0
          %5774 = vmatprep.mubr.bf16.mxu0 %v3249
          %5775 = vmatmul.mubr.bf16.gmra.mrb[0].mxu0 %v3248
          %v5776 = vpop.f32.mrb[0].mxu0
          %v5777 = vadd.f32 %v5232, %v5776
          %v5778 = vpop.f32.mrb[0].mxu0
          %v5779 = vpop.f32.mrb[0].mxu0
          %v5780 = vadd.f32 %v5235, %v5779
          %v5781 = vpop.f32.mrb[0].mxu0
          %5782 = vmatprep.mubr.bf16.mxu0 %v3257
          %5783 = vmatmul.mubr.bf16.gmra.mrb[0].mxu0 %v3256
          %v5784 = vpop.f32.mrb[0].mxu0
          %v5785 = vadd.f32 %v5240, %v5784
          %v5786 = vpop.f32.mrb[0].mxu0
          %v5787 = vpop.f32.mrb[0].mxu0
          %v5788 = vadd.f32 %v5243, %v5787
          %v5789 = vpop.f32.mrb[0].mxu0
          %5790 = vmatprep.mubr.bf16.mxu0 %v3265
          %5791 = vmatmul.mubr.bf16.gmra.mrb[0].mxu0 %v3264
          %v5792 = vpop.f32.mrb[0].mxu0
          %v5793 = vadd.f32 %v5248, %v5792
          %v5794 = vpop.f32.mrb[0].mxu0
          %v5795 = vpop.f32.mrb[0].mxu0
          %v5796 = vadd.f32 %v5251, %v5795
          %v5797 = vpop.f32.mrb[0].mxu0
          %5798 = vmatprep.mubr.bf16.mxu0 %v3273
          %5799 = vmatmul.mubr.bf16.gmra.mrb[0].mxu0 %v3272
          %v5800 = vpop.f32.mrb[0].mxu0
          %v5801 = vadd.f32 %v5256, %v5800
          %v5802 = vpop.f32.mrb[0].mxu0
          %v5803 = vpop.f32.mrb[0].mxu0
          %v5804 = vadd.f32 %v5259, %v5803
          %v5805 = vpop.f32.mrb[0].mxu0
          %5806 = vmatprep.mubr.bf16.mxu0 %v3281
          %5807 = vmatmul.mubr.bf16.gmra.mrb[0].mxu0 %v3280
          %v5808 = vpop.f32.mrb[0].mxu0
          %v5809 = vadd.f32 %v5264, %v5808
          %v5810 = vpop.f32.mrb[0].mxu0
          %v5811 = vpop.f32.mrb[0].mxu0
          %v5812 = vadd.f32 %v5267, %v5811
          %v5813 = vpop.f32.mrb[0].mxu0
          %5814 = vmatprep.mubr.bf16.mxu0 %v3289
          %5815 = vmatmul.mubr.bf16.gmra.mrb[0].mxu0 %v3288
          %v5816 = vpop.f32.mrb[0].mxu0
          %v5817 = vadd.f32 %v5272, %v5816
          %v5818 = vpop.f32.mrb[0].mxu0
          %v5819 = vpop.f32.mrb[0].mxu0
          %v5820 = vadd.f32 %v5275, %v5819
          %v5821 = vpop.f32.mrb[0].mxu0
          %5822 = vdwg.mxu0
          %5823 = vmatprep.subr.bf16.mxu0 0
          %5824 = vmatpush1.bf16.msra.mxu0 %v4108
          %5825 = vmatprep.subr.bf16.mxu0 0
          %5826 = vmatpush1.bf16.msra.mxu0 %v4109
          %5827 = vmatprep.subr.bf16.mxu0 0
          %5828 = vmatpush1.bf16.msra.mxu0 %v4110
          %5829 = vmatprep.subr.bf16.mxu0 0
          %5830 = vmatpush1.bf16.msra.mxu0 %v4111
          %5831 = vmatprep.subr.bf16.mxu0 0
          %5832 = vmatpush1.bf16.msra.mxu0 %v4112
          %5833 = vmatprep.subr.bf16.mxu0 0
          %5834 = vmatpush1.bf16.msra.mxu0 %v4113
          %5835 = vmatprep.subr.bf16.mxu0 0
          %5836 = vmatpush1.bf16.msra.mxu0 %v4114
          %5837 = vmatprep.subr.bf16.mxu0 0
          %5838 = vmatpush1.bf16.msra.mxu0 %v4115
          %5839 = vmatprep.subr.bf16.mxu0 0
          %5840 = vmatpush1.bf16.msra.mxu0 %v4116
          %5841 = vmatprep.subr.bf16.mxu0 0
          %5842 = vmatpush1.bf16.msra.mxu0 %v4117
          %5843 = vmatprep.subr.bf16.mxu0 0
          %5844 = vmatpush1.bf16.msra.mxu0 %v4118
          %5845 = vmatprep.subr.bf16.mxu0 0
          %5846 = vmatpush1.bf16.msra.mxu0 %v4119
          %5847 = vmatprep.subr.bf16.mxu0 0
          %5848 = vmatpush1.bf16.msra.mxu0 %v4120
          %5849 = vmatprep.subr.bf16.mxu0 0
          %5850 = vmatpush1.bf16.msra.mxu0 %v4121
          %5851 = vmatprep.subr.bf16.mxu0 0
          %5852 = vmatpush1.bf16.msra.mxu0 %v4122
          %5853 = vmatprep.subr.bf16.mxu0 0
          %5854 = vmatpush1.bf16.msra.mxu0 %v4123
          %5855 = vmatprep.mubr.bf16.mxu0 %v2787
          %5856 = vmatmul.mubr.bf16.gmra.mrb[0].mxu0 %v2786
          %v5857 = vpop.f32.mrb[0].mxu0
          %v5858 = vadd.f32 %v5313, %v5857
          %v5859 = vpop.f32.mrb[0].mxu0
          %v5860 = vpop.f32.mrb[0].mxu0
          %v5861 = vadd.f32 %v5316, %v5860
          %v5862 = vpop.f32.mrb[0].mxu0
          %5863 = vmatprep.mubr.bf16.mxu0 %v2795
          %5864 = vmatmul.mubr.bf16.gmra.mrb[0].mxu0 %v2794
          %v5865 = vpop.f32.mrb[0].mxu0
          %v5866 = vadd.f32 %v5321, %v5865
          %v5867 = vpop.f32.mrb[0].mxu0
          %v5868 = vpop.f32.mrb[0].mxu0
          %v5869 = vadd.f32 %v5324, %v5868
          %v5870 = vpop.f32.mrb[0].mxu0
          %5871 = vmatprep.mubr.bf16.mxu0 %v2803
          %5872 = vmatmul.mubr.bf16.gmra.mrb[0].mxu0 %v2802
          %v5873 = vpop.f32.mrb[0].mxu0
          %v5874 = vadd.f32 %v5329, %v5873
          %v5875 = vpop.f32.mrb[0].mxu0
          %v5876 = vpop.f32.mrb[0].mxu0
          %v5877 = vadd.f32 %v5332, %v5876
          %v5878 = vpop.f32.mrb[0].mxu0
          %5879 = vmatprep.mubr.bf16.mxu0 %v2811
          %5880 = vmatmul.mubr.bf16.gmra.mrb[0].mxu0 %v2810
          %v5881 = vpop.f32.mrb[0].mxu0
          %v5882 = vadd.f32 %v5337, %v5881
          %v5883 = vpop.f32.mrb[0].mxu0
          %v5884 = vpop.f32.mrb[0].mxu0
          %v5885 = vadd.f32 %v5340, %v5884
          %v5886 = vpop.f32.mrb[0].mxu0
          %5887 = vmatprep.mubr.bf16.mxu0 %v2819
          %5888 = vmatmul.mubr.bf16.gmra.mrb[0].mxu0 %v2818
          %v5889 = vpop.f32.mrb[0].mxu0
          %v5890 = vadd.f32 %v5345, %v5889
          %v5891 = vpop.f32.mrb[0].mxu0
          %v5892 = vpop.f32.mrb[0].mxu0
          %v5893 = vadd.f32 %v5348, %v5892
          %v5894 = vpop.f32.mrb[0].mxu0
          %5895 = vmatprep.mubr.bf16.mxu0 %v2827
          %5896 = vmatmul.mubr.bf16.gmra.mrb[0].mxu0 %v2826
          %v5897 = vpop.f32.mrb[0].mxu0
          %v5898 = vadd.f32 %v5353, %v5897
          %v5899 = vpop.f32.mrb[0].mxu0
          %v5900 = vpop.f32.mrb[0].mxu0
          %v5901 = vadd.f32 %v5356, %v5900
          %v5902 = vpop.f32.mrb[0].mxu0
          %5903 = vmatprep.mubr.bf16.mxu0 %v2835
          %5904 = vmatmul.mubr.bf16.gmra.mrb[0].mxu0 %v2834
          %v5905 = vpop.f32.mrb[0].mxu0
          %v5906 = vadd.f32 %v5361, %v5905
          %v5907 = vpop.f32.mrb[0].mxu0
          %v5908 = vpop.f32.mrb[0].mxu0
          %v5909 = vadd.f32 %v5364, %v5908
          %v5910 = vpop.f32.mrb[0].mxu0
          %5911 = vmatprep.mubr.bf16.mxu0 %v2843
          %5912 = vmatmul.mubr.bf16.gmra.mrb[0].mxu0 %v2842
          %v5913 = vpop.f32.mrb[0].mxu0
          %v5914 = vadd.f32 %v5369, %v5913
          %v5915 = vpop.f32.mrb[0].mxu0
          %v5916 = vpop.f32.mrb[0].mxu0
          %v5917 = vadd.f32 %v5372, %v5916
          %v5918 = vpop.f32.mrb[0].mxu0
          %5919 = vmatprep.mubr.bf16.mxu0 %v2851
          %5920 = vmatmul.mubr.bf16.gmra.mrb[0].mxu0 %v2850
          %v5921 = vpop.f32.mrb[0].mxu0
          %v5922 = vadd.f32 %v5377, %v5921
          %v5923 = vpop.f32.mrb[0].mxu0
          %v5924 = vpop.f32.mrb[0].mxu0
          %v5925 = vadd.f32 %v5380, %v5924
          %v5926 = vpop.f32.mrb[0].mxu0
          %5927 = vmatprep.mubr.bf16.mxu0 %v2859
          %5928 = vmatmul.mubr.bf16.gmra.mrb[0].mxu0 %v2858
          %v5929 = vpop.f32.mrb[0].mxu0
          %v5930 = vadd.f32 %v5385, %v5929
          %v5931 = vpop.f32.mrb[0].mxu0
          %v5932 = vpop.f32.mrb[0].mxu0
          %v5933 = vadd.f32 %v5388, %v5932
          %v5934 = vpop.f32.mrb[0].mxu0
          %5935 = vmatprep.mubr.bf16.mxu0 %v2867
          %5936 = vmatmul.mubr.bf16.gmra.mrb[0].mxu0 %v2866
          %v5937 = vpop.f32.mrb[0].mxu0
          %v5938 = vadd.f32 %v5393, %v5937
          %v5939 = vpop.f32.mrb[0].mxu0
          %v5940 = vpop.f32.mrb[0].mxu0
          %v5941 = vadd.f32 %v5396, %v5940
          %v5942 = vpop.f32.mrb[0].mxu0
          %5943 = vmatprep.mubr.bf16.mxu0 %v2875
          %5944 = vmatmul.mubr.bf16.gmra.mrb[0].mxu0 %v2874
          %v5945 = vpop.f32.mrb[0].mxu0
          %v5946 = vadd.f32 %v5401, %v5945
          %v5947 = vpop.f32.mrb[0].mxu0
          %v5948 = vpop.f32.mrb[0].mxu0
          %v5949 = vadd.f32 %v5404, %v5948
          %v5950 = vpop.f32.mrb[0].mxu0
          %5951 = vmatprep.mubr.bf16.mxu0 %v2883
          %5952 = vmatmul.mubr.bf16.gmra.mrb[0].mxu0 %v2882
          %v5953 = vpop.f32.mrb[0].mxu0
          %v5954 = vadd.f32 %v5409, %v5953
          %v5955 = vpop.f32.mrb[0].mxu0
          %v5956 = vpop.f32.mrb[0].mxu0
          %v5957 = vadd.f32 %v5412, %v5956
          %v5958 = vpop.f32.mrb[0].mxu0
          %5959 = vmatprep.mubr.bf16.mxu0 %v2891
          %5960 = vmatmul.mubr.bf16.gmra.mrb[0].mxu0 %v2890
          %v5961 = vpop.f32.mrb[0].mxu0
          %v5962 = vadd.f32 %v5417, %v5961
          %v5963 = vpop.f32.mrb[0].mxu0
          %v5964 = vpop.f32.mrb[0].mxu0
          %v5965 = vadd.f32 %v5420, %v5964
          %v5966 = vpop.f32.mrb[0].mxu0
          %5967 = vmatprep.mubr.bf16.mxu0 %v2899
          %5968 = vmatmul.mubr.bf16.gmra.mrb[0].mxu0 %v2898
          %v5969 = vpop.f32.mrb[0].mxu0
          %v5970 = vadd.f32 %v5425, %v5969
          %v5971 = vpop.f32.mrb[0].mxu0
          %v5972 = vpop.f32.mrb[0].mxu0
          %v5973 = vadd.f32 %v5428, %v5972
          %v5974 = vpop.f32.mrb[0].mxu0
          %5975 = vmatprep.mubr.bf16.mxu0 %v2907
          %5976 = vmatmul.mubr.bf16.gmra.mrb[0].mxu0 %v2906
          %v5977 = vpop.f32.mrb[0].mxu0
          %v5978 = vadd.f32 %v5433, %v5977
          %v5979 = vpop.f32.mrb[0].mxu0
          %v5980 = vpop.f32.mrb[0].mxu0
          %v5981 = vadd.f32 %v5436, %v5980
          %v5982 = vpop.f32.mrb[0].mxu0
          %5983 = vmatprep.mubr.bf16.mxu0 %v2915
          %5984 = vmatmul.mubr.bf16.gmra.mrb[0].mxu0 %v2914
          %v5985 = vpop.f32.mrb[0].mxu0
          %v5986 = vadd.f32 %v5441, %v5985
          %v5987 = vpop.f32.mrb[0].mxu0
          %v5988 = vpop.f32.mrb[0].mxu0
          %v5989 = vadd.f32 %v5444, %v5988
          %v5990 = vpop.f32.mrb[0].mxu0
          %5991 = vmatprep.mubr.bf16.mxu0 %v2923
          %5992 = vmatmul.mubr.bf16.gmra.mrb[0].mxu0 %v2922
          %v5993 = vpop.f32.mrb[0].mxu0
          %v5994 = vadd.f32 %v5449, %v5993
          %v5995 = vpop.f32.mrb[0].mxu0
          %v5996 = vpop.f32.mrb[0].mxu0
          %v5997 = vadd.f32 %v5452, %v5996
          %v5998 = vpop.f32.mrb[0].mxu0
          %5999 = vmatprep.mubr.bf16.mxu0 %v2931
          %6000 = vmatmul.mubr.bf16.gmra.mrb[0].mxu0 %v2930
          %v6001 = vpop.f32.mrb[0].mxu0
          %v6002 = vadd.f32 %v5457, %v6001
          %v6003 = vpop.f32.mrb[0].mxu0
          %v6004 = vpop.f32.mrb[0].mxu0
          %v6005 = vadd.f32 %v5460, %v6004
          %v6006 = vpop.f32.mrb[0].mxu0
          %6007 = vmatprep.mubr.bf16.mxu0 %v2939
          %6008 = vmatmul.mubr.bf16.gmra.mrb[0].mxu0 %v2938
          %v6009 = vpop.f32.mrb[0].mxu0
          %v6010 = vadd.f32 %v5465, %v6009
          %v6011 = vpop.f32.mrb[0].mxu0
          %v6012 = vpop.f32.mrb[0].mxu0
          %v6013 = vadd.f32 %v5468, %v6012
          %v6014 = vpop.f32.mrb[0].mxu0
          %6015 = vmatprep.mubr.bf16.mxu0 %v2947
          %6016 = vmatmul.mubr.bf16.gmra.mrb[0].mxu0 %v2946
          %v6017 = vpop.f32.mrb[0].mxu0
          %v6018 = vadd.f32 %v5473, %v6017
          %v6019 = vpop.f32.mrb[0].mxu0
          %v6020 = vpop.f32.mrb[0].mxu0
          %v6021 = vadd.f32 %v5476, %v6020
          %v6022 = vpop.f32.mrb[0].mxu0
          %6023 = vmatprep.mubr.bf16.mxu0 %v2955
          %6024 = vmatmul.mubr.bf16.gmra.mrb[0].mxu0 %v2954
          %v6025 = vpop.f32.mrb[0].mxu0
          %v6026 = vadd.f32 %v5481, %v6025
          %v6027 = vpop.f32.mrb[0].mxu0
          %v6028 = vpop.f32.mrb[0].mxu0
          %v6029 = vadd.f32 %v5484, %v6028
          %v6030 = vpop.f32.mrb[0].mxu0
          %6031 = vmatprep.mubr.bf16.mxu0 %v2963
          %6032 = vmatmul.mubr.bf16.gmra.mrb[0].mxu0 %v2962
          %v6033 = vpop.f32.mrb[0].mxu0
          %v6034 = vadd.f32 %v5489, %v6033
          %v6035 = vpop.f32.mrb[0].mxu0
          %v6036 = vpop.f32.mrb[0].mxu0
          %v6037 = vadd.f32 %v5492, %v6036
          %v6038 = vpop.f32.mrb[0].mxu0
          %6039 = vmatprep.mubr.bf16.mxu0 %v2971
          %6040 = vmatmul.mubr.bf16.gmra.mrb[0].mxu0 %v2970
          %v6041 = vpop.f32.mrb[0].mxu0
          %v6042 = vadd.f32 %v5497, %v6041
          %v6043 = vpop.f32.mrb[0].mxu0
          %v6044 = vpop.f32.mrb[0].mxu0
          %v6045 = vadd.f32 %v5500, %v6044
          %v6046 = vpop.f32.mrb[0].mxu0
          %6047 = vmatprep.mubr.bf16.mxu0 %v2979
          %6048 = vmatmul.mubr.bf16.gmra.mrb[0].mxu0 %v2978
          %v6049 = vpop.f32.mrb[0].mxu0
          %v6050 = vadd.f32 %v5505, %v6049
          %v6051 = vpop.f32.mrb[0].mxu0
          %v6052 = vpop.f32.mrb[0].mxu0
          %v6053 = vadd.f32 %v5508, %v6052
          %v6054 = vpop.f32.mrb[0].mxu0
          %6055 = vmatprep.mubr.bf16.mxu0 %v2987
          %6056 = vmatmul.mubr.bf16.gmra.mrb[0].mxu0 %v2986
          %v6057 = vpop.f32.mrb[0].mxu0
          %v6058 = vadd.f32 %v5513, %v6057
          %v6059 = vpop.f32.mrb[0].mxu0
          %v6060 = vpop.f32.mrb[0].mxu0
          %v6061 = vadd.f32 %v5516, %v6060
          %v6062 = vpop.f32.mrb[0].mxu0
          %6063 = vmatprep.mubr.bf16.mxu0 %v2995
          %6064 = vmatmul.mubr.bf16.gmra.mrb[0].mxu0 %v2994
          %v6065 = vpop.f32.mrb[0].mxu0
          %v6066 = vadd.f32 %v5521, %v6065
          %v6067 = vpop.f32.mrb[0].mxu0
          %v6068 = vpop.f32.mrb[0].mxu0
          %v6069 = vadd.f32 %v5524, %v6068
          %v6070 = vpop.f32.mrb[0].mxu0
          %6071 = vmatprep.mubr.bf16.mxu0 %v3003
          %6072 = vmatmul.mubr.bf16.gmra.mrb[0].mxu0 %v3002
          %v6073 = vpop.f32.mrb[0].mxu0
          %v6074 = vadd.f32 %v5529, %v6073
          %v6075 = vpop.f32.mrb[0].mxu0
          %v6076 = vpop.f32.mrb[0].mxu0
          %v6077 = vadd.f32 %v5532, %v6076
          %v6078 = vpop.f32.mrb[0].mxu0
          %6079 = vmatprep.mubr.bf16.mxu0 %v3011
          %6080 = vmatmul.mubr.bf16.gmra.mrb[0].mxu0 %v3010
          %v6081 = vpop.f32.mrb[0].mxu0
          %v6082 = vadd.f32 %v5537, %v6081
          %v6083 = vpop.f32.mrb[0].mxu0
          %v6084 = vpop.f32.mrb[0].mxu0
          %v6085 = vadd.f32 %v5540, %v6084
          %v6086 = vpop.f32.mrb[0].mxu0
          %6087 = vmatprep.mubr.bf16.mxu0 %v3019
          %6088 = vmatmul.mubr.bf16.gmra.mrb[0].mxu0 %v3018
          %v6089 = vpop.f32.mrb[0].mxu0
          %v6090 = vadd.f32 %v5545, %v6089
          %v6091 = vpop.f32.mrb[0].mxu0
          %v6092 = vpop.f32.mrb[0].mxu0
          %v6093 = vadd.f32 %v5548, %v6092
          %v6094 = vpop.f32.mrb[0].mxu0
          %6095 = vmatprep.mubr.bf16.mxu0 %v3027
          %6096 = vmatmul.mubr.bf16.gmra.mrb[0].mxu0 %v3026
          %v6097 = vpop.f32.mrb[0].mxu0
          %v6098 = vadd.f32 %v5553, %v6097
          %v6099 = vpop.f32.mrb[0].mxu0
          %v6100 = vpop.f32.mrb[0].mxu0
          %v6101 = vadd.f32 %v5556, %v6100
          %v6102 = vpop.f32.mrb[0].mxu0
          %6103 = vmatprep.mubr.bf16.mxu0 %v3035
          %6104 = vmatmul.mubr.bf16.gmra.mrb[0].mxu0 %v3034
          %v6105 = vpop.f32.mrb[0].mxu0
          %v6106 = vadd.f32 %v5561, %v6105
          %v6107 = vpop.f32.mrb[0].mxu0
          %v6108 = vpop.f32.mrb[0].mxu0
          %v6109 = vadd.f32 %v5564, %v6108
          %v6110 = vpop.f32.mrb[0].mxu0
          %6111 = vmatprep.mubr.bf16.mxu0 %v3043
          %6112 = vmatmul.mubr.bf16.gmra.mrb[0].mxu0 %v3042
          %v6113 = vpop.f32.mrb[0].mxu0
          %v6114 = vadd.f32 %v5569, %v6113
          %v6115 = vpop.f32.mrb[0].mxu0
          %v6116 = vpop.f32.mrb[0].mxu0
          %v6117 = vadd.f32 %v5572, %v6116
          %v6118 = vpop.f32.mrb[0].mxu0
          %6119 = vmatprep.mubr.bf16.mxu0 %v3051
          %6120 = vmatmul.mubr.bf16.gmra.mrb[0].mxu0 %v3050
          %v6121 = vpop.f32.mrb[0].mxu0
          %v6122 = vadd.f32 %v5577, %v6121
          %v6123 = vpop.f32.mrb[0].mxu0
          %v6124 = vpop.f32.mrb[0].mxu0
          %v6125 = vadd.f32 %v5580, %v6124
          %v6126 = vpop.f32.mrb[0].mxu0
          %6127 = vmatprep.mubr.bf16.mxu0 %v3059
          %6128 = vmatmul.mubr.bf16.gmra.mrb[0].mxu0 %v3058
          %v6129 = vpop.f32.mrb[0].mxu0
          %v6130 = vadd.f32 %v5585, %v6129
          %v6131 = vpop.f32.mrb[0].mxu0
          %v6132 = vpop.f32.mrb[0].mxu0
          %v6133 = vadd.f32 %v5588, %v6132
          %v6134 = vpop.f32.mrb[0].mxu0
          %6135 = vmatprep.mubr.bf16.mxu0 %v3067
          %6136 = vmatmul.mubr.bf16.gmra.mrb[0].mxu0 %v3066
          %v6137 = vpop.f32.mrb[0].mxu0
          %v6138 = vadd.f32 %v5593, %v6137
          %v6139 = vpop.f32.mrb[0].mxu0
          %v6140 = vpop.f32.mrb[0].mxu0
          %v6141 = vadd.f32 %v5596, %v6140
          %v6142 = vpop.f32.mrb[0].mxu0
          %6143 = vmatprep.mubr.bf16.mxu0 %v3075
          %6144 = vmatmul.mubr.bf16.gmra.mrb[0].mxu0 %v3074
          %v6145 = vpop.f32.mrb[0].mxu0
          %v6146 = vadd.f32 %v5601, %v6145
          %v6147 = vpop.f32.mrb[0].mxu0
          %v6148 = vpop.f32.mrb[0].mxu0
          %v6149 = vadd.f32 %v5604, %v6148
          %v6150 = vpop.f32.mrb[0].mxu0
          %6151 = vmatprep.mubr.bf16.mxu0 %v3083
          %6152 = vmatmul.mubr.bf16.gmra.mrb[0].mxu0 %v3082
          %v6153 = vpop.f32.mrb[0].mxu0
          %v6154 = vadd.f32 %v5609, %v6153
          %v6155 = vpop.f32.mrb[0].mxu0
          %v6156 = vpop.f32.mrb[0].mxu0
          %v6157 = vadd.f32 %v5612, %v6156
          %v6158 = vpop.f32.mrb[0].mxu0
          %6159 = vmatprep.mubr.bf16.mxu0 %v3091
          %6160 = vmatmul.mubr.bf16.gmra.mrb[0].mxu0 %v3090
          %v6161 = vpop.f32.mrb[0].mxu0
          %v6162 = vadd.f32 %v5617, %v6161
          %v6163 = vpop.f32.mrb[0].mxu0
          %v6164 = vpop.f32.mrb[0].mxu0
          %v6165 = vadd.f32 %v5620, %v6164
          %v6166 = vpop.f32.mrb[0].mxu0
          %6167 = vmatprep.mubr.bf16.mxu0 %v3099
          %6168 = vmatmul.mubr.bf16.gmra.mrb[0].mxu0 %v3098
          %v6169 = vpop.f32.mrb[0].mxu0
          %v6170 = vadd.f32 %v5625, %v6169
          %v6171 = vpop.f32.mrb[0].mxu0
          %v6172 = vpop.f32.mrb[0].mxu0
          %v6173 = vadd.f32 %v5628, %v6172
          %v6174 = vpop.f32.mrb[0].mxu0
          %6175 = vmatprep.mubr.bf16.mxu0 %v3107
          %6176 = vmatmul.mubr.bf16.gmra.mrb[0].mxu0 %v3106
          %v6177 = vpop.f32.mrb[0].mxu0
          %v6178 = vadd.f32 %v5633, %v6177
          %v6179 = vpop.f32.mrb[0].mxu0
          %v6180 = vpop.f32.mrb[0].mxu0
          %v6181 = vadd.f32 %v5636, %v6180
          %v6182 = vpop.f32.mrb[0].mxu0
          %6183 = vmatprep.mubr.bf16.mxu0 %v3115
          %6184 = vmatmul.mubr.bf16.gmra.mrb[0].mxu0 %v3114
          %v6185 = vpop.f32.mrb[0].mxu0
          %v6186 = vadd.f32 %v5641, %v6185
          %v6187 = vpop.f32.mrb[0].mxu0
          %v6188 = vpop.f32.mrb[0].mxu0
          %v6189 = vadd.f32 %v5644, %v6188
          %v6190 = vpop.f32.mrb[0].mxu0
          %6191 = vmatprep.mubr.bf16.mxu0 %v3123
          %6192 = vmatmul.mubr.bf16.gmra.mrb[0].mxu0 %v3122
          %v6193 = vpop.f32.mrb[0].mxu0
          %v6194 = vadd.f32 %v5649, %v6193
          %v6195 = vpop.f32.mrb[0].mxu0
          %v6196 = vpop.f32.mrb[0].mxu0
          %v6197 = vadd.f32 %v5652, %v6196
          %v6198 = vpop.f32.mrb[0].mxu0
          %6199 = vmatprep.mubr.bf16.mxu0 %v3131
          %6200 = vmatmul.mubr.bf16.gmra.mrb[0].mxu0 %v3130
          %v6201 = vpop.f32.mrb[0].mxu0
          %v6202 = vadd.f32 %v5657, %v6201
          %v6203 = vpop.f32.mrb[0].mxu0
          %v6204 = vpop.f32.mrb[0].mxu0
          %v6205 = vadd.f32 %v5660, %v6204
          %v6206 = vpop.f32.mrb[0].mxu0
          %6207 = vmatprep.mubr.bf16.mxu0 %v3139
          %6208 = vmatmul.mubr.bf16.gmra.mrb[0].mxu0 %v3138
          %v6209 = vpop.f32.mrb[0].mxu0
          %v6210 = vadd.f32 %v5665, %v6209
          %v6211 = vpop.f32.mrb[0].mxu0
          %v6212 = vpop.f32.mrb[0].mxu0
          %v6213 = vadd.f32 %v5668, %v6212
          %v6214 = vpop.f32.mrb[0].mxu0
          %6215 = vmatprep.mubr.bf16.mxu0 %v3147
          %6216 = vmatmul.mubr.bf16.gmra.mrb[0].mxu0 %v3146
          %v6217 = vpop.f32.mrb[0].mxu0
          %v6218 = vadd.f32 %v5673, %v6217
          %v6219 = vpop.f32.mrb[0].mxu0
          %v6220 = vpop.f32.mrb[0].mxu0
          %v6221 = vadd.f32 %v5676, %v6220
          %v6222 = vpop.f32.mrb[0].mxu0
          %6223 = vmatprep.mubr.bf16.mxu0 %v3155
          %6224 = vmatmul.mubr.bf16.gmra.mrb[0].mxu0 %v3154
          %v6225 = vpop.f32.mrb[0].mxu0
          %v6226 = vadd.f32 %v5681, %v6225
          %v6227 = vpop.f32.mrb[0].mxu0
          %v6228 = vpop.f32.mrb[0].mxu0
          %v6229 = vadd.f32 %v5684, %v6228
          %v6230 = vpop.f32.mrb[0].mxu0
          %6231 = vmatprep.mubr.bf16.mxu0 %v3163
          %6232 = vmatmul.mubr.bf16.gmra.mrb[0].mxu0 %v3162
          %v6233 = vpop.f32.mrb[0].mxu0
          %v6234 = vadd.f32 %v5689, %v6233
          %v6235 = vpop.f32.mrb[0].mxu0
          %v6236 = vpop.f32.mrb[0].mxu0
          %v6237 = vadd.f32 %v5692, %v6236
          %v6238 = vpop.f32.mrb[0].mxu0
          %6239 = vmatprep.mubr.bf16.mxu0 %v3171
          %6240 = vmatmul.mubr.bf16.gmra.mrb[0].mxu0 %v3170
          %v6241 = vpop.f32.mrb[0].mxu0
          %v6242 = vadd.f32 %v5697, %v6241
          %v6243 = vpop.f32.mrb[0].mxu0
          %v6244 = vpop.f32.mrb[0].mxu0
          %v6245 = vadd.f32 %v5700, %v6244
          %v6246 = vpop.f32.mrb[0].mxu0
          %6247 = vmatprep.mubr.bf16.mxu0 %v3179
          %6248 = vmatmul.mubr.bf16.gmra.mrb[0].mxu0 %v3178
          %v6249 = vpop.f32.mrb[0].mxu0
          %v6250 = vadd.f32 %v5705, %v6249
          %v6251 = vpop.f32.mrb[0].mxu0
          %v6252 = vpop.f32.mrb[0].mxu0
          %v6253 = vadd.f32 %v5708, %v6252
          %v6254 = vpop.f32.mrb[0].mxu0
          %6255 = vmatprep.mubr.bf16.mxu0 %v3187
          %6256 = vmatmul.mubr.bf16.gmra.mrb[0].mxu0 %v3186
          %v6257 = vpop.f32.mrb[0].mxu0
          %v6258 = vadd.f32 %v5713, %v6257
          %v6259 = vpop.f32.mrb[0].mxu0
          %v6260 = vpop.f32.mrb[0].mxu0
          %v6261 = vadd.f32 %v5716, %v6260
          %v6262 = vpop.f32.mrb[0].mxu0
          %6263 = vmatprep.mubr.bf16.mxu0 %v3195
          %6264 = vmatmul.mubr.bf16.gmra.mrb[0].mxu0 %v3194
          %v6265 = vpop.f32.mrb[0].mxu0
          %v6266 = vadd.f32 %v5721, %v6265
          %v6267 = vpop.f32.mrb[0].mxu0
          %v6268 = vpop.f32.mrb[0].mxu0
          %v6269 = vadd.f32 %v5724, %v6268
          %v6270 = vpop.f32.mrb[0].mxu0
          %6271 = vmatprep.mubr.bf16.mxu0 %v3203
          %6272 = vmatmul.mubr.bf16.gmra.mrb[0].mxu0 %v3202
          %v6273 = vpop.f32.mrb[0].mxu0
          %v6274 = vadd.f32 %v5729, %v6273
          %v6275 = vpop.f32.mrb[0].mxu0
          %v6276 = vpop.f32.mrb[0].mxu0
          %v6277 = vadd.f32 %v5732, %v6276
          %v6278 = vpop.f32.mrb[0].mxu0
          %6279 = vmatprep.mubr.bf16.mxu0 %v3211
          %6280 = vmatmul.mubr.bf16.gmra.mrb[0].mxu0 %v3210
          %v6281 = vpop.f32.mrb[0].mxu0
          %v6282 = vadd.f32 %v5737, %v6281
          %v6283 = vpop.f32.mrb[0].mxu0
          %v6284 = vpop.f32.mrb[0].mxu0
          %v6285 = vadd.f32 %v5740, %v6284
          %v6286 = vpop.f32.mrb[0].mxu0
          %6287 = vmatprep.mubr.bf16.mxu0 %v3219
          %6288 = vmatmul.mubr.bf16.gmra.mrb[0].mxu0 %v3218
          %v6289 = vpop.f32.mrb[0].mxu0
          %v6290 = vadd.f32 %v5745, %v6289
          %v6291 = vpop.f32.mrb[0].mxu0
          %v6292 = vpop.f32.mrb[0].mxu0
          %v6293 = vadd.f32 %v5748, %v6292
          %v6294 = vpop.f32.mrb[0].mxu0
          %6295 = vmatprep.mubr.bf16.mxu0 %v3227
          %6296 = vmatmul.mubr.bf16.gmra.mrb[0].mxu0 %v3226
          %v6297 = vpop.f32.mrb[0].mxu0
          %v6298 = vadd.f32 %v5753, %v6297
          %v6299 = vpop.f32.mrb[0].mxu0
          %v6300 = vpop.f32.mrb[0].mxu0
          %v6301 = vadd.f32 %v5756, %v6300
          %v6302 = vpop.f32.mrb[0].mxu0
          %6303 = vmatprep.mubr.bf16.mxu0 %v3235
          %6304 = vmatmul.mubr.bf16.gmra.mrb[0].mxu0 %v3234
          %v6305 = vpop.f32.mrb[0].mxu0
          %v6306 = vadd.f32 %v5761, %v6305
          %v6307 = vpop.f32.mrb[0].mxu0
          %v6308 = vpop.f32.mrb[0].mxu0
          %v6309 = vadd.f32 %v5764, %v6308
          %v6310 = vpop.f32.mrb[0].mxu0
          %6311 = vmatprep.mubr.bf16.mxu0 %v3243
          %6312 = vmatmul.mubr.bf16.gmra.mrb[0].mxu0 %v3242
          %v6313 = vpop.f32.mrb[0].mxu0
          %v6314 = vadd.f32 %v5769, %v6313
          %v6315 = vpop.f32.mrb[0].mxu0
          %v6316 = vpop.f32.mrb[0].mxu0
          %v6317 = vadd.f32 %v5772, %v6316
          %v6318 = vpop.f32.mrb[0].mxu0
          %6319 = vmatprep.mubr.bf16.mxu0 %v3251
          %6320 = vmatmul.mubr.bf16.gmra.mrb[0].mxu0 %v3250
          %v6321 = vpop.f32.mrb[0].mxu0
          %v6322 = vadd.f32 %v5777, %v6321
          %v6323 = vpop.f32.mrb[0].mxu0
          %v6324 = vpop.f32.mrb[0].mxu0
          %v6325 = vadd.f32 %v5780, %v6324
          %v6326 = vpop.f32.mrb[0].mxu0
          %6327 = vmatprep.mubr.bf16.mxu0 %v3259
          %6328 = vmatmul.mubr.bf16.gmra.mrb[0].mxu0 %v3258
          %v6329 = vpop.f32.mrb[0].mxu0
          %v6330 = vadd.f32 %v5785, %v6329
          %v6331 = vpop.f32.mrb[0].mxu0
          %v6332 = vpop.f32.mrb[0].mxu0
          %v6333 = vadd.f32 %v5788, %v6332
          %v6334 = vpop.f32.mrb[0].mxu0
          %6335 = vmatprep.mubr.bf16.mxu0 %v3267
          %6336 = vmatmul.mubr.bf16.gmra.mrb[0].mxu0 %v3266
          %v6337 = vpop.f32.mrb[0].mxu0
          %v6338 = vadd.f32 %v5793, %v6337
          %v6339 = vpop.f32.mrb[0].mxu0
          %v6340 = vpop.f32.mrb[0].mxu0
          %v6341 = vadd.f32 %v5796, %v6340
          %v6342 = vpop.f32.mrb[0].mxu0
          %6343 = vmatprep.mubr.bf16.mxu0 %v3275
          %6344 = vmatmul.mubr.bf16.gmra.mrb[0].mxu0 %v3274
          %v6345 = vpop.f32.mrb[0].mxu0
          %v6346 = vadd.f32 %v5801, %v6345
          %v6347 = vpop.f32.mrb[0].mxu0
          %v6348 = vpop.f32.mrb[0].mxu0
          %v6349 = vadd.f32 %v5804, %v6348
          %v6350 = vpop.f32.mrb[0].mxu0
          %6351 = vmatprep.mubr.bf16.mxu0 %v3283
          %6352 = vmatmul.mubr.bf16.gmra.mrb[0].mxu0 %v3282
          %v6353 = vpop.f32.mrb[0].mxu0
          %v6354 = vadd.f32 %v5809, %v6353
          %v6355 = vpop.f32.mrb[0].mxu0
          %v6356 = vpop.f32.mrb[0].mxu0
          %v6357 = vadd.f32 %v5812, %v6356
          %v6358 = vpop.f32.mrb[0].mxu0
          %6359 = vmatprep.mubr.bf16.mxu0 %v3291
          %6360 = vmatmul.mubr.bf16.gmra.mrb[0].mxu0 %v3290
          %v6361 = vpop.f32.mrb[0].mxu0
          %v6362 = vadd.f32 %v5817, %v6361
          %v6363 = vpop.f32.mrb[0].mxu0
          %v6364 = vpop.f32.mrb[0].mxu0
          %v6365 = vadd.f32 %v5820, %v6364
          %v6366 = vpop.f32.mrb[0].mxu0
          %6367 = vdwg.mxu0
          %v6368 = vadd.f32 %v476, %v5858
          %v6369 = vadd.f32 %v477, %v5861
          %v6370 = vadd.f32 %v478, %v5866
          %v6371 = vadd.f32 %v479, %v5869
          %v6372 = vadd.f32 %v480, %v5874
          %v6373 = vadd.f32 %v481, %v5877
          %v6374 = vadd.f32 %v482, %v5882
          %v6375 = vadd.f32 %v483, %v5885
          %v6376 = vadd.f32 %v484, %v5890
          %v6377 = vadd.f32 %v485, %v5893
          %v6378 = vadd.f32 %v486, %v5898
          %v6379 = vadd.f32 %v487, %v5901
          %v6380 = vadd.f32 %v488, %v5906
          %v6381 = vadd.f32 %v489, %v5909
          %v6382 = vadd.f32 %v490, %v5914
          %v6383 = vadd.f32 %v491, %v5917
          %v6384 = vadd.f32 %v492, %v5922
          %v6385 = vadd.f32 %v493, %v5925
          %v6386 = vadd.f32 %v494, %v5930
          %v6387 = vadd.f32 %v495, %v5933
          %v6388 = vadd.f32 %v496, %v5938
          %v6389 = vadd.f32 %v497, %v5941
          %v6390 = vadd.f32 %v498, %v5946
          %v6391 = vadd.f32 %v499, %v5949
          %v6392 = vadd.f32 %v500, %v5954
          %v6393 = vadd.f32 %v501, %v5957
          %v6394 = vadd.f32 %v502, %v5962
          %v6395 = vadd.f32 %v503, %v5965
          %v6396 = vadd.f32 %v504, %v5970
          %v6397 = vadd.f32 %v505, %v5973
          %v6398 = vadd.f32 %v506, %v5978
          %v6399 = vadd.f32 %v507, %v5981
          %v6400 = vadd.f32 %v508, %v5986
          %v6401 = vadd.f32 %v509, %v5989
          %v6402 = vadd.f32 %v510, %v5994
          %v6403 = vadd.f32 %v511, %v5997
          %v6404 = vadd.f32 %v512, %v6002
          %v6405 = vadd.f32 %v513, %v6005
          %v6406 = vadd.f32 %v514, %v6010
          %v6407 = vadd.f32 %v515, %v6013
          %v6408 = vadd.f32 %v516, %v6018
          %v6409 = vadd.f32 %v517, %v6021
          %v6410 = vadd.f32 %v518, %v6026
          %v6411 = vadd.f32 %v519, %v6029
          %v6412 = vadd.f32 %v520, %v6034
          %v6413 = vadd.f32 %v521, %v6037
          %v6414 = vadd.f32 %v522, %v6042
          %v6415 = vadd.f32 %v523, %v6045
          %v6416 = vadd.f32 %v524, %v6050
          %v6417 = vadd.f32 %v525, %v6053
          %v6418 = vadd.f32 %v526, %v6058
          %v6419 = vadd.f32 %v527, %v6061
          %v6420 = vadd.f32 %v528, %v6066
          %v6421 = vadd.f32 %v529, %v6069
          %v6422 = vadd.f32 %v530, %v6074
          %v6423 = vadd.f32 %v531, %v6077
          %v6424 = vadd.f32 %v532, %v6082
          %v6425 = vadd.f32 %v533, %v6085
          %v6426 = vadd.f32 %v534, %v6090
          %v6427 = vadd.f32 %v535, %v6093
          %v6428 = vadd.f32 %v536, %v6098
          %v6429 = vadd.f32 %v537, %v6101
          %v6430 = vadd.f32 %v538, %v6106
          %v6431 = vadd.f32 %v539, %v6109
          %v6432 = vadd.f32 %v540, %v6114
          %v6433 = vadd.f32 %v541, %v6117
          %v6434 = vadd.f32 %v542, %v6122
          %v6435 = vadd.f32 %v543, %v6125
          %v6436 = vadd.f32 %v544, %v6130
          %v6437 = vadd.f32 %v545, %v6133
          %v6438 = vadd.f32 %v546, %v6138
          %v6439 = vadd.f32 %v547, %v6141
          %v6440 = vadd.f32 %v548, %v6146
          %v6441 = vadd.f32 %v549, %v6149
          %v6442 = vadd.f32 %v550, %v6154
          %v6443 = vadd.f32 %v551, %v6157
          %v6444 = vadd.f32 %v552, %v6162
          %v6445 = vadd.f32 %v553, %v6165
          %v6446 = vadd.f32 %v554, %v6170
          %v6447 = vadd.f32 %v555, %v6173
          %v6448 = vadd.f32 %v556, %v6178
          %v6449 = vadd.f32 %v557, %v6181
          %v6450 = vadd.f32 %v558, %v6186
          %v6451 = vadd.f32 %v559, %v6189
          %v6452 = vadd.f32 %v560, %v6194
          %v6453 = vadd.f32 %v561, %v6197
          %v6454 = vadd.f32 %v562, %v6202
          %v6455 = vadd.f32 %v563, %v6205
          %v6456 = vadd.f32 %v564, %v6210
          %v6457 = vadd.f32 %v565, %v6213
          %v6458 = vadd.f32 %v566, %v6218
          %v6459 = vadd.f32 %v567, %v6221
          %v6460 = vadd.f32 %v568, %v6226
          %v6461 = vadd.f32 %v569, %v6229
          %v6462 = vadd.f32 %v570, %v6234
          %v6463 = vadd.f32 %v571, %v6237
          %v6464 = vadd.f32 %v572, %v6242
          %v6465 = vadd.f32 %v573, %v6245
          %v6466 = vadd.f32 %v574, %v6250
          %v6467 = vadd.f32 %v575, %v6253
          %v6468 = vadd.f32 %v576, %v6258
          %v6469 = vadd.f32 %v577, %v6261
          %v6470 = vadd.f32 %v578, %v6266
          %v6471 = vadd.f32 %v579, %v6269
          %v6472 = vadd.f32 %v580, %v6274
          %v6473 = vadd.f32 %v581, %v6277
          %v6474 = vadd.f32 %v582, %v6282
          %v6475 = vadd.f32 %v583, %v6285
          %v6476 = vadd.f32 %v584, %v6290
          %v6477 = vadd.f32 %v585, %v6293
          %v6478 = vadd.f32 %v586, %v6298
          %v6479 = vadd.f32 %v587, %v6301
          %v6480 = vadd.f32 %v588, %v6306
          %v6481 = vadd.f32 %v589, %v6309
          %v6482 = vadd.f32 %v590, %v6314
          %v6483 = vadd.f32 %v591, %v6317
          %v6484 = vadd.f32 %v592, %v6322
          %v6485 = vadd.f32 %v593, %v6325
          %v6486 = vadd.f32 %v594, %v6330
          %v6487 = vadd.f32 %v595, %v6333
          %v6488 = vadd.f32 %v596, %v6338
          %v6489 = vadd.f32 %v597, %v6341
          %v6490 = vadd.f32 %v598, %v6346
          %v6491 = vadd.f32 %v599, %v6349
          %v6492 = vadd.f32 %v600, %v6354
          %v6493 = vadd.f32 %v601, %v6357
          %v6494 = vadd.f32 %v602, %v6362
          %v6495 = vadd.f32 %v603, %v6365
          %6496 = vst [vmem:[#allocation2] sm:$0xff] %v6368
          %6497 = vst [vmem:[#allocation2 + $0x8] sm:$0xff] %v6369
          %6498 = vst [vmem:[#allocation2 + $0x10] sm:$0xff] %v6370
          %6499 = vst [vmem:[#allocation2 + $0x18] sm:$0xff] %v6371
          %6500 = vst [vmem:[#allocation2 + $0x20] sm:$0xff] %v6372
          %6501 = vst [vmem:[#allocation2 + $0x28] sm:$0xff] %v6373
          %6502 = vst [vmem:[#allocation2 + $0x30] sm:$0xff] %v6374
          %6503 = vst [vmem:[#allocation2 + $0x38] sm:$0xff] %v6375
          %6504 = vst [vmem:[#allocation2 + $0x40] sm:$0xff] %v6376
          %6505 = vst [vmem:[#allocation2 + $0x48] sm:$0xff] %v6377
          %6506 = vst [vmem:[#allocation2 + $0x50] sm:$0xff] %v6378
          %6507 = vst [vmem:[#allocation2 + $0x58] sm:$0xff] %v6379
          %6508 = vst [vmem:[#allocation2 + $0x60] sm:$0xff] %v6380
          %6509 = vst [vmem:[#allocation2 + $0x68] sm:$0xff] %v6381
          %6510 = vst [vmem:[#allocation2 + $0x70] sm:$0xff] %v6382
          %6511 = vst [vmem:[#allocation2 + $0x78] sm:$0xff] %v6383
          %6512 = vst [vmem:[#allocation2 + $0x80] sm:$0xff] %v6384
          %6513 = vst [vmem:[#allocation2 + $0x88] sm:$0xff] %v6385
          %6514 = vst [vmem:[#allocation2 + $0x90] sm:$0xff] %v6386
          %6515 = vst [vmem:[#allocation2 + $0x98] sm:$0xff] %v6387
          %6516 = vst [vmem:[#allocation2 + $0xa0] sm:$0xff] %v6388
          %6517 = vst [vmem:[#allocation2 + $0xa8] sm:$0xff] %v6389
          %6518 = vst [vmem:[#allocation2 + $0xb0] sm:$0xff] %v6390
          %6519 = vst [vmem:[#allocation2 + $0xb8] sm:$0xff] %v6391
          %6520 = vst [vmem:[#allocation2 + $0xc0] sm:$0xff] %v6392
          %6521 = vst [vmem:[#allocation2 + $0xc8] sm:$0xff] %v6393
          %6522 = vst [vmem:[#allocation2 + $0xd0] sm:$0xff] %v6394
          %6523 = vst [vmem:[#allocation2 + $0xd8] sm:$0xff] %v6395
          %6524 = vst [vmem:[#allocation2 + $0xe0] sm:$0xff] %v6396
          %6525 = vst [vmem:[#allocation2 + $0xe8] sm:$0xff] %v6397
          %6526 = vst [vmem:[#allocation2 + $0xf0] sm:$0xff] %v6398
          %6527 = vst [vmem:[#allocation2 + $0xf8] sm:$0xff] %v6399
          %6528 = vst [vmem:[#allocation2 + $0x100] sm:$0xff] %v6400
          %6529 = vst [vmem:[#allocation2 + $0x108] sm:$0xff] %v6401
          %6530 = vst [vmem:[#allocation2 + $0x110] sm:$0xff] %v6402
          %6531 = vst [vmem:[#allocation2 + $0x118] sm:$0xff] %v6403
          %6532 = vst [vmem:[#allocation2 + $0x120] sm:$0xff] %v6404
          %6533 = vst [vmem:[#allocation2 + $0x128] sm:$0xff] %v6405
          %6534 = vst [vmem:[#allocation2 + $0x130] sm:$0xff] %v6406
          %6535 = vst [vmem:[#allocation2 + $0x138] sm:$0xff] %v6407
          %6536 = vst [vmem:[#allocation2 + $0x140] sm:$0xff] %v6408
          %6537 = vst [vmem:[#allocation2 + $0x148] sm:$0xff] %v6409
          %6538 = vst [vmem:[#allocation2 + $0x150] sm:$0xff] %v6410
          %6539 = vst [vmem:[#allocation2 + $0x158] sm:$0xff] %v6411
          %6540 = vst [vmem:[#allocation2 + $0x160] sm:$0xff] %v6412
          %6541 = vst [vmem:[#allocation2 + $0x168] sm:$0xff] %v6413
          %6542 = vst [vmem:[#allocation2 + $0x170] sm:$0xff] %v6414
          %6543 = vst [vmem:[#allocation2 + $0x178] sm:$0xff] %v6415
          %6544 = vst [vmem:[#allocation2 + $0x180] sm:$0xff] %v6416
          %6545 = vst [vmem:[#allocation2 + $0x188] sm:$0xff] %v6417
          %6546 = vst [vmem:[#allocation2 + $0x190] sm:$0xff] %v6418
          %6547 = vst [vmem:[#allocation2 + $0x198] sm:$0xff] %v6419
          %6548 = vst [vmem:[#allocation2 + $0x1a0] sm:$0xff] %v6420
          %6549 = vst [vmem:[#allocation2 + $0x1a8] sm:$0xff] %v6421
          %6550 = vst [vmem:[#allocation2 + $0x1b0] sm:$0xff] %v6422
          %6551 = vst [vmem:[#allocation2 + $0x1b8] sm:$0xff] %v6423
          %6552 = vst [vmem:[#allocation2 + $0x1c0] sm:$0xff] %v6424
          %6553 = vst [vmem:[#allocation2 + $0x1c8] sm:$0xff] %v6425
          %6554 = vst [vmem:[#allocation2 + $0x1d0] sm:$0xff] %v6426
          %6555 = vst [vmem:[#allocation2 + $0x1d8] sm:$0xff] %v6427
          %6556 = vst [vmem:[#allocation2 + $0x1e0] sm:$0xff] %v6428
          %6557 = vst [vmem:[#allocation2 + $0x1e8] sm:$0xff] %v6429
          %6558 = vst [vmem:[#allocation2 + $0x1f0] sm:$0xff] %v6430
          %6559 = vst [vmem:[#allocation2 + $0x1f8] sm:$0xff] %v6431
          %6560 = vst [vmem:[#allocation2 + $0x200] sm:$0xff] %v6432
          %6561 = vst [vmem:[#allocation2 + $0x208] sm:$0xff] %v6433
          %6562 = vst [vmem:[#allocation2 + $0x210] sm:$0xff] %v6434
          %6563 = vst [vmem:[#allocation2 + $0x218] sm:$0xff] %v6435
          %6564 = vst [vmem:[#allocation2 + $0x220] sm:$0xff] %v6436
          %6565 = vst [vmem:[#allocation2 + $0x228] sm:$0xff] %v6437
          %6566 = vst [vmem:[#allocation2 + $0x230] sm:$0xff] %v6438
          %6567 = vst [vmem:[#allocation2 + $0x238] sm:$0xff] %v6439
          %6568 = vst [vmem:[#allocation2 + $0x240] sm:$0xff] %v6440
          %6569 = vst [vmem:[#allocation2 + $0x248] sm:$0xff] %v6441
          %6570 = vst [vmem:[#allocation2 + $0x250] sm:$0xff] %v6442
          %6571 = vst [vmem:[#allocation2 + $0x258] sm:$0xff] %v6443
          %6572 = vst [vmem:[#allocation2 + $0x260] sm:$0xff] %v6444
          %6573 = vst [vmem:[#allocation2 + $0x268] sm:$0xff] %v6445
          %6574 = vst [vmem:[#allocation2 + $0x270] sm:$0xff] %v6446
          %6575 = vst [vmem:[#allocation2 + $0x278] sm:$0xff] %v6447
          %6576 = vst [vmem:[#allocation2 + $0x280] sm:$0xff] %v6448
          %6577 = vst [vmem:[#allocation2 + $0x288] sm:$0xff] %v6449
          %6578 = vst [vmem:[#allocation2 + $0x290] sm:$0xff] %v6450
          %6579 = vst [vmem:[#allocation2 + $0x298] sm:$0xff] %v6451
          %6580 = vst [vmem:[#allocation2 + $0x2a0] sm:$0xff] %v6452
          %6581 = vst [vmem:[#allocation2 + $0x2a8] sm:$0xff] %v6453
          %6582 = vst [vmem:[#allocation2 + $0x2b0] sm:$0xff] %v6454
          %6583 = vst [vmem:[#allocation2 + $0x2b8] sm:$0xff] %v6455
          %6584 = vst [vmem:[#allocation2 + $0x2c0] sm:$0xff] %v6456
          %6585 = vst [vmem:[#allocation2 + $0x2c8] sm:$0xff] %v6457
          %6586 = vst [vmem:[#allocation2 + $0x2d0] sm:$0xff] %v6458
          %6587 = vst [vmem:[#allocation2 + $0x2d8] sm:$0xff] %v6459
          %6588 = vst [vmem:[#allocation2 + $0x2e0] sm:$0xff] %v6460
          %6589 = vst [vmem:[#allocation2 + $0x2e8] sm:$0xff] %v6461
          %6590 = vst [vmem:[#allocation2 + $0x2f0] sm:$0xff] %v6462
          %6591 = vst [vmem:[#allocation2 + $0x2f8] sm:$0xff] %v6463
          %6592 = vst [vmem:[#allocation2 + $0x300] sm:$0xff] %v6464
          %6593 = vst [vmem:[#allocation2 + $0x308] sm:$0xff] %v6465
          %6594 = vst [vmem:[#allocation2 + $0x310] sm:$0xff] %v6466
          %6595 = vst [vmem:[#allocation2 + $0x318] sm:$0xff] %v6467
          %6596 = vst [vmem:[#allocation2 + $0x320] sm:$0xff] %v6468
          %6597 = vst [vmem:[#allocation2 + $0x328] sm:$0xff] %v6469
          %6598 = vst [vmem:[#allocation2 + $0x330] sm:$0xff] %v6470
          %6599 = vst [vmem:[#allocation2 + $0x338] sm:$0xff] %v6471
          %6600 = vst [vmem:[#allocation2 + $0x340] sm:$0xff] %v6472
          %6601 = vst [vmem:[#allocation2 + $0x348] sm:$0xff] %v6473
          %6602 = vst [vmem:[#allocation2 + $0x350] sm:$0xff] %v6474
          %6603 = vst [vmem:[#allocation2 + $0x358] sm:$0xff] %v6475
          %6604 = vst [vmem:[#allocation2 + $0x360] sm:$0xff] %v6476
          %6605 = vst [vmem:[#allocation2 + $0x368] sm:$0xff] %v6477
          %6606 = vst [vmem:[#allocation2 + $0x370] sm:$0xff] %v6478
          %6607 = vst [vmem:[#allocation2 + $0x378] sm:$0xff] %v6479
          %6608 = vst [vmem:[#allocation2 + $0x380] sm:$0xff] %v6480
          %6609 = vst [vmem:[#allocation2 + $0x388] sm:$0xff] %v6481
          %6610 = vst [vmem:[#allocation2 + $0x390] sm:$0xff] %v6482
          %6611 = vst [vmem:[#allocation2 + $0x398] sm:$0xff] %v6483
          %6612 = vst [vmem:[#allocation2 + $0x3a0] sm:$0xff] %v6484
          %6613 = vst [vmem:[#allocation2 + $0x3a8] sm:$0xff] %v6485
          %6614 = vst [vmem:[#allocation2 + $0x3b0] sm:$0xff] %v6486
          %6615 = vst [vmem:[#allocation2 + $0x3b8] sm:$0xff] %v6487
          %6616 = vst [vmem:[#allocation2 + $0x3c0] sm:$0xff] %v6488
          %6617 = vst [vmem:[#allocation2 + $0x3c8] sm:$0xff] %v6489
          %6618 = vst [vmem:[#allocation2 + $0x3d0] sm:$0xff] %v6490
          %6619 = vst [vmem:[#allocation2 + $0x3d8] sm:$0xff] %v6491
          %6620 = vst [vmem:[#allocation2 + $0x3e0] sm:$0xff] %v6492
          %6621 = vst [vmem:[#allocation2 + $0x3e8] sm:$0xff] %v6493
          %6622 = vst [vmem:[#allocation2 + $0x3f0] sm:$0xff] %v6494
          %6623 = vst [vmem:[#allocation2 + $0x3f8] sm:$0xff] %v6495
        $region60: #{tpu_custom_call.1} parent=35 // pred_fallthru
          _
        %p6624 = scmp.eq.s32.totalorder %s38, 1
        // Predicated region
        $region61: #{tpu_custom_call.1} parent=35 // pred_check
          %p6625 = pneg %p6624
        $region62: #{tpu_custom_call.1} parent=35 // pred_check_branch
          %6627 = sbr.rel (%p6625) target = $region64
        $region63: #{tpu_custom_call.1} parent=35 // pred_region
          %v6628 = vld [vmem:[#allocation2] sm:$0xff]
          %v6629 = vld [vmem:[#allocation2 + $0x8] sm:$0xff]
          %v6630 = vld [vmem:[#allocation2 + $0x10] sm:$0xff]
          %v6631 = vld [vmem:[#allocation2 + $0x18] sm:$0xff]
          %v6632 = vld [vmem:[#allocation2 + $0x20] sm:$0xff]
          %v6633 = vld [vmem:[#allocation2 + $0x28] sm:$0xff]
          %v6634 = vld [vmem:[#allocation2 + $0x30] sm:$0xff]
          %v6635 = vld [vmem:[#allocation2 + $0x38] sm:$0xff]
          %v6636 = vld [vmem:[#allocation2 + $0x40] sm:$0xff]
          %v6637 = vld [vmem:[#allocation2 + $0x48] sm:$0xff]
          %v6638 = vld [vmem:[#allocation2 + $0x50] sm:$0xff]
          %v6639 = vld [vmem:[#allocation2 + $0x58] sm:$0xff]
          %v6640 = vld [vmem:[#allocation2 + $0x60] sm:$0xff]
          %v6641 = vld [vmem:[#allocation2 + $0x68] sm:$0xff]
          %v6642 = vld [vmem:[#allocation2 + $0x70] sm:$0xff]
          %v6643 = vld [vmem:[#allocation2 + $0x78] sm:$0xff]
          %v6644 = vld [vmem:[#allocation2 + $0x80] sm:$0xff]
          %v6645 = vld [vmem:[#allocation2 + $0x88] sm:$0xff]
          %v6646 = vld [vmem:[#allocation2 + $0x90] sm:$0xff]
          %v6647 = vld [vmem:[#allocation2 + $0x98] sm:$0xff]
          %v6648 = vld [vmem:[#allocation2 + $0xa0] sm:$0xff]
          %v6649 = vld [vmem:[#allocation2 + $0xa8] sm:$0xff]
          %v6650 = vld [vmem:[#allocation2 + $0xb0] sm:$0xff]
          %v6651 = vld [vmem:[#allocation2 + $0xb8] sm:$0xff]
          %v6652 = vld [vmem:[#allocation2 + $0xc0] sm:$0xff]
          %v6653 = vld [vmem:[#allocation2 + $0xc8] sm:$0xff]
          %v6654 = vld [vmem:[#allocation2 + $0xd0] sm:$0xff]
          %v6655 = vld [vmem:[#allocation2 + $0xd8] sm:$0xff]
          %v6656 = vld [vmem:[#allocation2 + $0xe0] sm:$0xff]
          %v6657 = vld [vmem:[#allocation2 + $0xe8] sm:$0xff]
          %v6658 = vld [vmem:[#allocation2 + $0xf0] sm:$0xff]
          %v6659 = vld [vmem:[#allocation2 + $0xf8] sm:$0xff]
          %v6660 = vld [vmem:[#allocation2 + $0x100] sm:$0xff]
          %v6661 = vld [vmem:[#allocation2 + $0x108] sm:$0xff]
          %v6662 = vld [vmem:[#allocation2 + $0x110] sm:$0xff]
          %v6663 = vld [vmem:[#allocation2 + $0x118] sm:$0xff]
          %v6664 = vld [vmem:[#allocation2 + $0x120] sm:$0xff]
          %v6665 = vld [vmem:[#allocation2 + $0x128] sm:$0xff]
          %v6666 = vld [vmem:[#allocation2 + $0x130] sm:$0xff]
          %v6667 = vld [vmem:[#allocation2 + $0x138] sm:$0xff]
          %v6668 = vld [vmem:[#allocation2 + $0x140] sm:$0xff]
          %v6669 = vld [vmem:[#allocation2 + $0x148] sm:$0xff]
          %v6670 = vld [vmem:[#allocation2 + $0x150] sm:$0xff]
          %v6671 = vld [vmem:[#allocation2 + $0x158] sm:$0xff]
          %v6672 = vld [vmem:[#allocation2 + $0x160] sm:$0xff]
          %v6673 = vld [vmem:[#allocation2 + $0x168] sm:$0xff]
          %v6674 = vld [vmem:[#allocation2 + $0x170] sm:$0xff]
          %v6675 = vld [vmem:[#allocation2 + $0x178] sm:$0xff]
          %v6676 = vld [vmem:[#allocation2 + $0x180] sm:$0xff]
          %v6677 = vld [vmem:[#allocation2 + $0x188] sm:$0xff]
          %v6678 = vld [vmem:[#allocation2 + $0x190] sm:$0xff]
          %v6679 = vld [vmem:[#allocation2 + $0x198] sm:$0xff]
          %v6680 = vld [vmem:[#allocation2 + $0x1a0] sm:$0xff]
          %v6681 = vld [vmem:[#allocation2 + $0x1a8] sm:$0xff]
          %v6682 = vld [vmem:[#allocation2 + $0x1b0] sm:$0xff]
          %v6683 = vld [vmem:[#allocation2 + $0x1b8] sm:$0xff]
          %v6684 = vld [vmem:[#allocation2 + $0x1c0] sm:$0xff]
          %v6685 = vld [vmem:[#allocation2 + $0x1c8] sm:$0xff]
          %v6686 = vld [vmem:[#allocation2 + $0x1d0] sm:$0xff]
          %v6687 = vld [vmem:[#allocation2 + $0x1d8] sm:$0xff]
          %v6688 = vld [vmem:[#allocation2 + $0x1e0] sm:$0xff]
          %v6689 = vld [vmem:[#allocation2 + $0x1e8] sm:$0xff]
          %v6690 = vld [vmem:[#allocation2 + $0x1f0] sm:$0xff]
          %v6691 = vld [vmem:[#allocation2 + $0x1f8] sm:$0xff]
          %v6692 = vld [vmem:[#allocation2 + $0x200] sm:$0xff]
          %v6693 = vld [vmem:[#allocation2 + $0x208] sm:$0xff]
          %v6694 = vld [vmem:[#allocation2 + $0x210] sm:$0xff]
          %v6695 = vld [vmem:[#allocation2 + $0x218] sm:$0xff]
          %v6696 = vld [vmem:[#allocation2 + $0x220] sm:$0xff]
          %v6697 = vld [vmem:[#allocation2 + $0x228] sm:$0xff]
          %v6698 = vld [vmem:[#allocation2 + $0x230] sm:$0xff]
          %v6699 = vld [vmem:[#allocation2 + $0x238] sm:$0xff]
          %v6700 = vld [vmem:[#allocation2 + $0x240] sm:$0xff]
          %v6701 = vld [vmem:[#allocation2 + $0x248] sm:$0xff]
          %v6702 = vld [vmem:[#allocation2 + $0x250] sm:$0xff]
          %v6703 = vld [vmem:[#allocation2 + $0x258] sm:$0xff]
          %v6704 = vld [vmem:[#allocation2 + $0x260] sm:$0xff]
          %v6705 = vld [vmem:[#allocation2 + $0x268] sm:$0xff]
          %v6706 = vld [vmem:[#allocation2 + $0x270] sm:$0xff]
          %v6707 = vld [vmem:[#allocation2 + $0x278] sm:$0xff]
          %v6708 = vld [vmem:[#allocation2 + $0x280] sm:$0xff]
          %v6709 = vld [vmem:[#allocation2 + $0x288] sm:$0xff]
          %v6710 = vld [vmem:[#allocation2 + $0x290] sm:$0xff]
          %v6711 = vld [vmem:[#allocation2 + $0x298] sm:$0xff]
          %v6712 = vld [vmem:[#allocation2 + $0x2a0] sm:$0xff]
          %v6713 = vld [vmem:[#allocation2 + $0x2a8] sm:$0xff]
          %v6714 = vld [vmem:[#allocation2 + $0x2b0] sm:$0xff]
          %v6715 = vld [vmem:[#allocation2 + $0x2b8] sm:$0xff]
          %v6716 = vld [vmem:[#allocation2 + $0x2c0] sm:$0xff]
          %v6717 = vld [vmem:[#allocation2 + $0x2c8] sm:$0xff]
          %v6718 = vld [vmem:[#allocation2 + $0x2d0] sm:$0xff]
          %v6719 = vld [vmem:[#allocation2 + $0x2d8] sm:$0xff]
          %v6720 = vld [vmem:[#allocation2 + $0x2e0] sm:$0xff]
          %v6721 = vld [vmem:[#allocation2 + $0x2e8] sm:$0xff]
          %v6722 = vld [vmem:[#allocation2 + $0x2f0] sm:$0xff]
          %v6723 = vld [vmem:[#allocation2 + $0x2f8] sm:$0xff]
          %v6724 = vld [vmem:[#allocation2 + $0x300] sm:$0xff]
          %v6725 = vld [vmem:[#allocation2 + $0x308] sm:$0xff]
          %v6726 = vld [vmem:[#allocation2 + $0x310] sm:$0xff]
          %v6727 = vld [vmem:[#allocation2 + $0x318] sm:$0xff]
          %v6728 = vld [vmem:[#allocation2 + $0x320] sm:$0xff]
          %v6729 = vld [vmem:[#allocation2 + $0x328] sm:$0xff]
          %v6730 = vld [vmem:[#allocation2 + $0x330] sm:$0xff]
          %v6731 = vld [vmem:[#allocation2 + $0x338] sm:$0xff]
          %v6732 = vld [vmem:[#allocation2 + $0x340] sm:$0xff]
          %v6733 = vld [vmem:[#allocation2 + $0x348] sm:$0xff]
          %v6734 = vld [vmem:[#allocation2 + $0x350] sm:$0xff]
          %v6735 = vld [vmem:[#allocation2 + $0x358] sm:$0xff]
          %v6736 = vld [vmem:[#allocation2 + $0x360] sm:$0xff]
          %v6737 = vld [vmem:[#allocation2 + $0x368] sm:$0xff]
          %v6738 = vld [vmem:[#allocation2 + $0x370] sm:$0xff]
          %v6739 = vld [vmem:[#allocation2 + $0x378] sm:$0xff]
          %v6740 = vld [vmem:[#allocation2 + $0x380] sm:$0xff]
          %v6741 = vld [vmem:[#allocation2 + $0x388] sm:$0xff]
          %v6742 = vld [vmem:[#allocation2 + $0x390] sm:$0xff]
          %v6743 = vld [vmem:[#allocation2 + $0x398] sm:$0xff]
          %v6744 = vld [vmem:[#allocation2 + $0x3a0] sm:$0xff]
          %v6745 = vld [vmem:[#allocation2 + $0x3a8] sm:$0xff]
          %v6746 = vld [vmem:[#allocation2 + $0x3b0] sm:$0xff]
          %v6747 = vld [vmem:[#allocation2 + $0x3b8] sm:$0xff]
          %v6748 = vld [vmem:[#allocation2 + $0x3c0] sm:$0xff]
          %v6749 = vld [vmem:[#allocation2 + $0x3c8] sm:$0xff]
          %v6750 = vld [vmem:[#allocation2 + $0x3d0] sm:$0xff]
          %v6751 = vld [vmem:[#allocation2 + $0x3d8] sm:$0xff]
          %v6752 = vld [vmem:[#allocation2 + $0x3e0] sm:$0xff]
          %v6753 = vld [vmem:[#allocation2 + $0x3e8] sm:$0xff]
          %v6754 = vld [vmem:[#allocation2 + $0x3f0] sm:$0xff]
          %v6755 = vld [vmem:[#allocation2 + $0x3f8] sm:$0xff]
          %v6756 = vpack.c.bf16 %v6629, %v6628
          %v6757 = vpack.c.bf16 %v6631, %v6630
          %v6758 = vpack.c.bf16 %v6633, %v6632
          %v6759 = vpack.c.bf16 %v6635, %v6634
          %v6760 = vpack.c.bf16 %v6637, %v6636
          %v6761 = vpack.c.bf16 %v6639, %v6638
          %v6762 = vpack.c.bf16 %v6641, %v6640
          %v6763 = vpack.c.bf16 %v6643, %v6642
          %v6764 = vpack.c.bf16 %v6645, %v6644
          %v6765 = vpack.c.bf16 %v6647, %v6646
          %v6766 = vpack.c.bf16 %v6649, %v6648
          %v6767 = vpack.c.bf16 %v6651, %v6650
          %v6768 = vpack.c.bf16 %v6653, %v6652
          %v6769 = vpack.c.bf16 %v6655, %v6654
          %v6770 = vpack.c.bf16 %v6657, %v6656
          %v6771 = vpack.c.bf16 %v6659, %v6658
          %v6772 = vpack.c.bf16 %v6661, %v6660
          %v6773 = vpack.c.bf16 %v6663, %v6662
          %v6774 = vpack.c.bf16 %v6665, %v6664
          %v6775 = vpack.c.bf16 %v6667, %v6666
          %v6776 = vpack.c.bf16 %v6669, %v6668
          %v6777 = vpack.c.bf16 %v6671, %v6670
          %v6778 = vpack.c.bf16 %v6673, %v6672
          %v6779 = vpack.c.bf16 %v6675, %v6674
          %v6780 = vpack.c.bf16 %v6677, %v6676
          %v6781 = vpack.c.bf16 %v6679, %v6678
          %v6782 = vpack.c.bf16 %v6681, %v6680
          %v6783 = vpack.c.bf16 %v6683, %v6682
          %v6784 = vpack.c.bf16 %v6685, %v6684
          %v6785 = vpack.c.bf16 %v6687, %v6686
          %v6786 = vpack.c.bf16 %v6689, %v6688
          %v6787 = vpack.c.bf16 %v6691, %v6690
          %v6788 = vpack.c.bf16 %v6693, %v6692
          %v6789 = vpack.c.bf16 %v6695, %v6694
          %v6790 = vpack.c.bf16 %v6697, %v6696
          %v6791 = vpack.c.bf16 %v6699, %v6698
          %v6792 = vpack.c.bf16 %v6701, %v6700
          %v6793 = vpack.c.bf16 %v6703, %v6702
          %v6794 = vpack.c.bf16 %v6705, %v6704
          %v6795 = vpack.c.bf16 %v6707, %v6706
          %v6796 = vpack.c.bf16 %v6709, %v6708
          %v6797 = vpack.c.bf16 %v6711, %v6710
          %v6798 = vpack.c.bf16 %v6713, %v6712
          %v6799 = vpack.c.bf16 %v6715, %v6714
          %v6800 = vpack.c.bf16 %v6717, %v6716
          %v6801 = vpack.c.bf16 %v6719, %v6718
          %v6802 = vpack.c.bf16 %v6721, %v6720
          %v6803 = vpack.c.bf16 %v6723, %v6722
          %v6804 = vpack.c.bf16 %v6725, %v6724
          %v6805 = vpack.c.bf16 %v6727, %v6726
          %v6806 = vpack.c.bf16 %v6729, %v6728
          %v6807 = vpack.c.bf16 %v6731, %v6730
          %v6808 = vpack.c.bf16 %v6733, %v6732
          %v6809 = vpack.c.bf16 %v6735, %v6734
          %v6810 = vpack.c.bf16 %v6737, %v6736
          %v6811 = vpack.c.bf16 %v6739, %v6738
          %v6812 = vpack.c.bf16 %v6741, %v6740
          %v6813 = vpack.c.bf16 %v6743, %v6742
          %v6814 = vpack.c.bf16 %v6745, %v6744
          %v6815 = vpack.c.bf16 %v6747, %v6746
          %v6816 = vpack.c.bf16 %v6749, %v6748
          %v6817 = vpack.c.bf16 %v6751, %v6750
          %v6818 = vpack.c.bf16 %v6753, %v6752
          %v6819 = vpack.c.bf16 %v6755, %v6754
          %v6820 = vld [vmem:[#allocation11] sm:$0xff]
          %v6821 = vld [vmem:[#allocation11 + $0x8] sm:$0xff]
          %v6822 = vld [vmem:[#allocation11 + $0x10] sm:$0xff]
          %v6823 = vld [vmem:[#allocation11 + $0x18] sm:$0xff]
          %v6824 = vld [vmem:[#allocation11 + $0x20] sm:$0xff]
          %v6825 = vld [vmem:[#allocation11 + $0x28] sm:$0xff]
          %v6826 = vld [vmem:[#allocation11 + $0x30] sm:$0xff]
          %v6827 = vld [vmem:[#allocation11 + $0x38] sm:$0xff]
          %v6828 = vld [vmem:[#allocation11 + $0x40] sm:$0xff]
          %v6829 = vld [vmem:[#allocation11 + $0x48] sm:$0xff]
          %v6830 = vld [vmem:[#allocation11 + $0x50] sm:$0xff]
          %v6831 = vld [vmem:[#allocation11 + $0x58] sm:$0xff]
          %v6832 = vld [vmem:[#allocation11 + $0x60] sm:$0xff]
          %v6833 = vld [vmem:[#allocation11 + $0x68] sm:$0xff]
          %v6834 = vld [vmem:[#allocation11 + $0x70] sm:$0xff]
          %v6835 = vld [vmem:[#allocation11 + $0x78] sm:$0xff]
          %v6836 = vld [vmem:[#allocation12] sm:$0x3]
          %v6838 = vlaneseq
          %v6839 = vshrl.u32 %v6838, 7
          %v6840 = vsub.s32 0, %v6839
          %v6841 = vrot.slane %v6836, %v6840
          %v6842 = vlaneseq
          %v6843 = vshrl.u32 %v6842, 7
          %v6844 = vsub.s32 1, %v6843
          %v6845 = vrot.slane %v6836, %v6844
          %v6864 = vunpack.c.l.b16 %v6820
          %v6865 = vunpack.c.h.b16 %v6820
          %v6866 = vunpack.c.l.b16 %v6821
          %v6867 = vunpack.c.h.b16 %v6821
          %v6868 = vunpack.c.l.b16 %v6822
          %v6869 = vunpack.c.h.b16 %v6822
          %v6870 = vunpack.c.l.b16 %v6823
          %v6871 = vunpack.c.h.b16 %v6823
          %v6872 = vunpack.c.l.b16 %v6824
          %v6873 = vunpack.c.h.b16 %v6824
          %v6874 = vunpack.c.l.b16 %v6825
          %v6875 = vunpack.c.h.b16 %v6825
          %v6876 = vunpack.c.l.b16 %v6826
          %v6877 = vunpack.c.h.b16 %v6826
          %v6878 = vunpack.c.l.b16 %v6827
          %v6879 = vunpack.c.h.b16 %v6827
          %v6880 = vunpack.c.l.b16 %v6828
          %v6881 = vunpack.c.h.b16 %v6828
          %v6882 = vunpack.c.l.b16 %v6829
          %v6883 = vunpack.c.h.b16 %v6829
          %v6884 = vunpack.c.l.b16 %v6830
          %v6885 = vunpack.c.h.b16 %v6830
          %v6886 = vunpack.c.l.b16 %v6831
          %v6887 = vunpack.c.h.b16 %v6831
          %v6888 = vunpack.c.l.b16 %v6832
          %v6889 = vunpack.c.h.b16 %v6832
          %v6890 = vunpack.c.l.b16 %v6833
          %v6891 = vunpack.c.h.b16 %v6833
          %v6892 = vunpack.c.l.b16 %v6834
          %v6893 = vunpack.c.h.b16 %v6834
          %v6894 = vunpack.c.l.b16 %v6835
          %v6895 = vunpack.c.h.b16 %v6835
          %v6896 = vpack.c.b16 %v6866, %v6864
          %v6897 = vpack.c.b16 %v6867, %v6865
          %v6898 = vpack.c.b16 %v6870, %v6868
          %v6899 = vpack.c.b16 %v6871, %v6869
          %v6900 = vpack.c.b16 %v6874, %v6872
          %v6901 = vpack.c.b16 %v6875, %v6873
          %v6902 = vpack.c.b16 %v6878, %v6876
          %v6903 = vpack.c.b16 %v6879, %v6877
          %v6904 = vpack.c.b16 %v6882, %v6880
          %v6905 = vpack.c.b16 %v6883, %v6881
          %v6906 = vpack.c.b16 %v6886, %v6884
          %v6907 = vpack.c.b16 %v6887, %v6885
          %v6908 = vpack.c.b16 %v6890, %v6888
          %v6909 = vpack.c.b16 %v6891, %v6889
          %v6910 = vpack.c.b16 %v6894, %v6892
          %v6911 = vpack.c.b16 %v6895, %v6893
          %6928 = vmatprep.subr.bf16.mxu0 %v6897
          %6929 = vmatpush1.bf16.msra.mxu0 %v6896
          %6930 = vmatprep.subr.bf16.mxu0 %v6899
          %6931 = vmatpush1.bf16.msra.mxu0 %v6898
          %6932 = vmatprep.subr.bf16.mxu0 %v6901
          %6933 = vmatpush1.bf16.msra.mxu0 %v6900
          %6934 = vmatprep.subr.bf16.mxu0 %v6903
          %6935 = vmatpush1.bf16.msra.mxu0 %v6902
          %6936 = vmatprep.subr.bf16.mxu0 %v6905
          %6937 = vmatpush1.bf16.msra.mxu0 %v6904
          %6938 = vmatprep.subr.bf16.mxu0 %v6907
          %6939 = vmatpush1.bf16.msra.mxu0 %v6906
          %6940 = vmatprep.subr.bf16.mxu0 %v6909
          %6941 = vmatpush1.bf16.msra.mxu0 %v6908
          %6942 = vmatprep.subr.bf16.mxu0 %v6911
          %6943 = vmatpush1.bf16.msra.mxu0 %v6910
          %6944 = vmatprep.subr.bf16.mxu0 0
          %6945 = vmatpush1.bf16.msra.mxu0 0
          %6946 = vmatprep.subr.bf16.mxu0 0
          %6947 = vmatpush1.bf16.msra.mxu0 0
          %6948 = vmatprep.subr.bf16.mxu0 0
          %6949 = vmatpush1.bf16.msra.mxu0 0
          %6950 = vmatprep.subr.bf16.mxu0 0
          %6951 = vmatpush1.bf16.msra.mxu0 0
          %6952 = vmatprep.subr.bf16.mxu0 0
          %6953 = vmatpush1.bf16.msra.mxu0 0
          %6954 = vmatprep.subr.bf16.mxu0 0
          %6955 = vmatpush1.bf16.msra.mxu0 0
          %6956 = vmatprep.subr.bf16.mxu0 0
          %6957 = vmatpush1.bf16.msra.mxu0 0
          %6958 = vmatprep.subr.bf16.mxu0 0
          %6959 = vmatpush1.bf16.msra.mxu0 0
          %6960 = vmatprep.mubr.bf16.mxu0 0
          %6961 = vmatmul.mubr.bf16.gmra.mrb[0].mxu0 %v6756
          %v6962 = vpop.f32.mrb[0].mxu0
          %v6963 = vadd.f32 %v6841, %v6962
          %v6964 = vpop.f32.mrb[0].mxu0
          %v6965 = vadd.f32 %v6845, %v6964
          %v6966 = vpop.f32.mrb[0].mxu0
          %v6967 = vadd.f32 %v6841, %v6966
          %v6968 = vpop.f32.mrb[0].mxu0
          %v6969 = vadd.f32 %v6845, %v6968
          %6970 = vmatprep.mubr.bf16.mxu0 0
          %6971 = vmatmul.mubr.bf16.gmra.mrb[0].mxu0 %v6757
          %v6972 = vpop.f32.mrb[0].mxu0
          %v6973 = vadd.f32 %v6841, %v6972
          %v6974 = vpop.f32.mrb[0].mxu0
          %v6975 = vadd.f32 %v6845, %v6974
          %v6976 = vpop.f32.mrb[0].mxu0
          %v6977 = vadd.f32 %v6841, %v6976
          %v6978 = vpop.f32.mrb[0].mxu0
          %v6979 = vadd.f32 %v6845, %v6978
          %6980 = vmatprep.mubr.bf16.mxu0 0
          %6981 = vmatmul.mubr.bf16.gmra.mrb[0].mxu0 %v6758
          %v6982 = vpop.f32.mrb[0].mxu0
          %v6983 = vadd.f32 %v6841, %v6982
          %v6984 = vpop.f32.mrb[0].mxu0
          %v6985 = vadd.f32 %v6845, %v6984
          %v6986 = vpop.f32.mrb[0].mxu0
          %v6987 = vadd.f32 %v6841, %v6986
          %v6988 = vpop.f32.mrb[0].mxu0
          %v6989 = vadd.f32 %v6845, %v6988
          %6990 = vmatprep.mubr.bf16.mxu0 0
          %6991 = vmatmul.mubr.bf16.gmra.mrb[0].mxu0 %v6759
          %v6992 = vpop.f32.mrb[0].mxu0
          %v6993 = vadd.f32 %v6841, %v6992
          %v6994 = vpop.f32.mrb[0].mxu0
          %v6995 = vadd.f32 %v6845, %v6994
          %v6996 = vpop.f32.mrb[0].mxu0
          %v6997 = vadd.f32 %v6841, %v6996
          %v6998 = vpop.f32.mrb[0].mxu0
          %v6999 = vadd.f32 %v6845, %v6998
          %7000 = vmatprep.mubr.bf16.mxu0 0
          %7001 = vmatmul.mubr.bf16.gmra.mrb[0].mxu0 %v6760
          %v7002 = vpop.f32.mrb[0].mxu0
          %v7003 = vadd.f32 %v6841, %v7002
          %v7004 = vpop.f32.mrb[0].mxu0
          %v7005 = vadd.f32 %v6845, %v7004
          %v7006 = vpop.f32.mrb[0].mxu0
          %v7007 = vadd.f32 %v6841, %v7006
          %v7008 = vpop.f32.mrb[0].mxu0
          %v7009 = vadd.f32 %v6845, %v7008
          %7010 = vmatprep.mubr.bf16.mxu0 0
          %7011 = vmatmul.mubr.bf16.gmra.mrb[0].mxu0 %v6761
          %v7012 = vpop.f32.mrb[0].mxu0
          %v7013 = vadd.f32 %v6841, %v7012
          %v7014 = vpop.f32.mrb[0].mxu0
          %v7015 = vadd.f32 %v6845, %v7014
          %v7016 = vpop.f32.mrb[0].mxu0
          %v7017 = vadd.f32 %v6841, %v7016
          %v7018 = vpop.f32.mrb[0].mxu0
          %v7019 = vadd.f32 %v6845, %v7018
          %7020 = vmatprep.mubr.bf16.mxu0 0
          %7021 = vmatmul.mubr.bf16.gmra.mrb[0].mxu0 %v6762
          %v7022 = vpop.f32.mrb[0].mxu0
          %v7023 = vadd.f32 %v6841, %v7022
          %v7024 = vpop.f32.mrb[0].mxu0
          %v7025 = vadd.f32 %v6845, %v7024
          %v7026 = vpop.f32.mrb[0].mxu0
          %v7027 = vadd.f32 %v6841, %v7026
          %v7028 = vpop.f32.mrb[0].mxu0
          %v7029 = vadd.f32 %v6845, %v7028
          %7030 = vmatprep.mubr.bf16.mxu0 0
          %7031 = vmatmul.mubr.bf16.gmra.mrb[0].mxu0 %v6763
          %v7032 = vpop.f32.mrb[0].mxu0
          %v7033 = vadd.f32 %v6841, %v7032
          %v7034 = vpop.f32.mrb[0].mxu0
          %v7035 = vadd.f32 %v6845, %v7034
          %v7036 = vpop.f32.mrb[0].mxu0
          %v7037 = vadd.f32 %v6841, %v7036
          %v7038 = vpop.f32.mrb[0].mxu0
          %v7039 = vadd.f32 %v6845, %v7038
          %7040 = vmatprep.mubr.bf16.mxu0 0
          %7041 = vmatmul.mubr.bf16.gmra.mrb[0].mxu0 %v6764
          %v7042 = vpop.f32.mrb[0].mxu0
          %v7043 = vadd.f32 %v6841, %v7042
          %v7044 = vpop.f32.mrb[0].mxu0
          %v7045 = vadd.f32 %v6845, %v7044
          %v7046 = vpop.f32.mrb[0].mxu0
          %v7047 = vadd.f32 %v6841, %v7046
          %v7048 = vpop.f32.mrb[0].mxu0
          %v7049 = vadd.f32 %v6845, %v7048
          %7050 = vmatprep.mubr.bf16.mxu0 0
          %7051 = vmatmul.mubr.bf16.gmra.mrb[0].mxu0 %v6765
          %v7052 = vpop.f32.mrb[0].mxu0
          %v7053 = vadd.f32 %v6841, %v7052
          %v7054 = vpop.f32.mrb[0].mxu0
          %v7055 = vadd.f32 %v6845, %v7054
          %v7056 = vpop.f32.mrb[0].mxu0
          %v7057 = vadd.f32 %v6841, %v7056
          %v7058 = vpop.f32.mrb[0].mxu0
          %v7059 = vadd.f32 %v6845, %v7058
          %7060 = vmatprep.mubr.bf16.mxu0 0
          %7061 = vmatmul.mubr.bf16.gmra.mrb[0].mxu0 %v6766
          %v7062 = vpop.f32.mrb[0].mxu0
          %v7063 = vadd.f32 %v6841, %v7062
          %v7064 = vpop.f32.mrb[0].mxu0
          %v7065 = vadd.f32 %v6845, %v7064
          %v7066 = vpop.f32.mrb[0].mxu0
          %v7067 = vadd.f32 %v6841, %v7066
          %v7068 = vpop.f32.mrb[0].mxu0
          %v7069 = vadd.f32 %v6845, %v7068
          %7070 = vmatprep.mubr.bf16.mxu0 0
          %7071 = vmatmul.mubr.bf16.gmra.mrb[0].mxu0 %v6767
          %v7072 = vpop.f32.mrb[0].mxu0
          %v7073 = vadd.f32 %v6841, %v7072
          %v7074 = vpop.f32.mrb[0].mxu0
          %v7075 = vadd.f32 %v6845, %v7074
          %v7076 = vpop.f32.mrb[0].mxu0
          %v7077 = vadd.f32 %v6841, %v7076
          %v7078 = vpop.f32.mrb[0].mxu0
          %v7079 = vadd.f32 %v6845, %v7078
          %7080 = vmatprep.mubr.bf16.mxu0 0
          %7081 = vmatmul.mubr.bf16.gmra.mrb[0].mxu0 %v6768
          %v7082 = vpop.f32.mrb[0].mxu0
          %v7083 = vadd.f32 %v6841, %v7082
          %v7084 = vpop.f32.mrb[0].mxu0
          %v7085 = vadd.f32 %v6845, %v7084
          %v7086 = vpop.f32.mrb[0].mxu0
          %v7087 = vadd.f32 %v6841, %v7086
          %v7088 = vpop.f32.mrb[0].mxu0
          %v7089 = vadd.f32 %v6845, %v7088
          %7090 = vmatprep.mubr.bf16.mxu0 0
          %7091 = vmatmul.mubr.bf16.gmra.mrb[0].mxu0 %v6769
          %v7092 = vpop.f32.mrb[0].mxu0
          %v7093 = vadd.f32 %v6841, %v7092
          %v7094 = vpop.f32.mrb[0].mxu0
          %v7095 = vadd.f32 %v6845, %v7094
          %v7096 = vpop.f32.mrb[0].mxu0
          %v7097 = vadd.f32 %v6841, %v7096
          %v7098 = vpop.f32.mrb[0].mxu0
          %v7099 = vadd.f32 %v6845, %v7098
          %7100 = vmatprep.mubr.bf16.mxu0 0
          %7101 = vmatmul.mubr.bf16.gmra.mrb[0].mxu0 %v6770
          %v7102 = vpop.f32.mrb[0].mxu0
          %v7103 = vadd.f32 %v6841, %v7102
          %v7104 = vpop.f32.mrb[0].mxu0
          %v7105 = vadd.f32 %v6845, %v7104
          %v7106 = vpop.f32.mrb[0].mxu0
          %v7107 = vadd.f32 %v6841, %v7106
          %v7108 = vpop.f32.mrb[0].mxu0
          %v7109 = vadd.f32 %v6845, %v7108
          %7110 = vmatprep.mubr.bf16.mxu0 0
          %7111 = vmatmul.mubr.bf16.gmra.mrb[0].mxu0 %v6771
          %v7112 = vpop.f32.mrb[0].mxu0
          %v7113 = vadd.f32 %v6841, %v7112
          %v7114 = vpop.f32.mrb[0].mxu0
          %v7115 = vadd.f32 %v6845, %v7114
          %v7116 = vpop.f32.mrb[0].mxu0
          %v7117 = vadd.f32 %v6841, %v7116
          %v7118 = vpop.f32.mrb[0].mxu0
          %v7119 = vadd.f32 %v6845, %v7118
          %7120 = vmatprep.mubr.bf16.mxu0 0
          %7121 = vmatmul.mubr.bf16.gmra.mrb[0].mxu0 %v6772
          %v7122 = vpop.f32.mrb[0].mxu0
          %v7123 = vadd.f32 %v6841, %v7122
          %v7124 = vpop.f32.mrb[0].mxu0
          %v7125 = vadd.f32 %v6845, %v7124
          %v7126 = vpop.f32.mrb[0].mxu0
          %v7127 = vadd.f32 %v6841, %v7126
          %v7128 = vpop.f32.mrb[0].mxu0
          %v7129 = vadd.f32 %v6845, %v7128
          %7130 = vmatprep.mubr.bf16.mxu0 0
          %7131 = vmatmul.mubr.bf16.gmra.mrb[0].mxu0 %v6773
          %v7132 = vpop.f32.mrb[0].mxu0
          %v7133 = vadd.f32 %v6841, %v7132
          %v7134 = vpop.f32.mrb[0].mxu0
          %v7135 = vadd.f32 %v6845, %v7134
          %v7136 = vpop.f32.mrb[0].mxu0
          %v7137 = vadd.f32 %v6841, %v7136
          %v7138 = vpop.f32.mrb[0].mxu0
          %v7139 = vadd.f32 %v6845, %v7138
          %7140 = vmatprep.mubr.bf16.mxu0 0
          %7141 = vmatmul.mubr.bf16.gmra.mrb[0].mxu0 %v6774
          %v7142 = vpop.f32.mrb[0].mxu0
          %v7143 = vadd.f32 %v6841, %v7142
          %v7144 = vpop.f32.mrb[0].mxu0
          %v7145 = vadd.f32 %v6845, %v7144
          %v7146 = vpop.f32.mrb[0].mxu0
          %v7147 = vadd.f32 %v6841, %v7146
          %v7148 = vpop.f32.mrb[0].mxu0
          %v7149 = vadd.f32 %v6845, %v7148
          %7150 = vmatprep.mubr.bf16.mxu0 0
          %7151 = vmatmul.mubr.bf16.gmra.mrb[0].mxu0 %v6775
          %v7152 = vpop.f32.mrb[0].mxu0
          %v7153 = vadd.f32 %v6841, %v7152
          %v7154 = vpop.f32.mrb[0].mxu0
          %v7155 = vadd.f32 %v6845, %v7154
          %v7156 = vpop.f32.mrb[0].mxu0
          %v7157 = vadd.f32 %v6841, %v7156
          %v7158 = vpop.f32.mrb[0].mxu0
          %v7159 = vadd.f32 %v6845, %v7158
          %7160 = vmatprep.mubr.bf16.mxu0 0
          %7161 = vmatmul.mubr.bf16.gmra.mrb[0].mxu0 %v6776
          %v7162 = vpop.f32.mrb[0].mxu0
          %v7163 = vadd.f32 %v6841, %v7162
          %v7164 = vpop.f32.mrb[0].mxu0
          %v7165 = vadd.f32 %v6845, %v7164
          %v7166 = vpop.f32.mrb[0].mxu0
          %v7167 = vadd.f32 %v6841, %v7166
          %v7168 = vpop.f32.mrb[0].mxu0
          %v7169 = vadd.f32 %v6845, %v7168
          %7170 = vmatprep.mubr.bf16.mxu0 0
          %7171 = vmatmul.mubr.bf16.gmra.mrb[0].mxu0 %v6777
          %v7172 = vpop.f32.mrb[0].mxu0
          %v7173 = vadd.f32 %v6841, %v7172
          %v7174 = vpop.f32.mrb[0].mxu0
          %v7175 = vadd.f32 %v6845, %v7174
          %v7176 = vpop.f32.mrb[0].mxu0
          %v7177 = vadd.f32 %v6841, %v7176
          %v7178 = vpop.f32.mrb[0].mxu0
          %v7179 = vadd.f32 %v6845, %v7178
          %7180 = vmatprep.mubr.bf16.mxu0 0
          %7181 = vmatmul.mubr.bf16.gmra.mrb[0].mxu0 %v6778
          %v7182 = vpop.f32.mrb[0].mxu0
          %v7183 = vadd.f32 %v6841, %v7182
          %v7184 = vpop.f32.mrb[0].mxu0
          %v7185 = vadd.f32 %v6845, %v7184
          %v7186 = vpop.f32.mrb[0].mxu0
          %v7187 = vadd.f32 %v6841, %v7186
          %v7188 = vpop.f32.mrb[0].mxu0
          %v7189 = vadd.f32 %v6845, %v7188
          %7190 = vmatprep.mubr.bf16.mxu0 0
          %7191 = vmatmul.mubr.bf16.gmra.mrb[0].mxu0 %v6779
          %v7192 = vpop.f32.mrb[0].mxu0
          %v7193 = vadd.f32 %v6841, %v7192
          %v7194 = vpop.f32.mrb[0].mxu0
          %v7195 = vadd.f32 %v6845, %v7194
          %v7196 = vpop.f32.mrb[0].mxu0
          %v7197 = vadd.f32 %v6841, %v7196
          %v7198 = vpop.f32.mrb[0].mxu0
          %v7199 = vadd.f32 %v6845, %v7198
          %7200 = vmatprep.mubr.bf16.mxu0 0
          %7201 = vmatmul.mubr.bf16.gmra.mrb[0].mxu0 %v6780
          %v7202 = vpop.f32.mrb[0].mxu0
          %v7203 = vadd.f32 %v6841, %v7202
          %v7204 = vpop.f32.mrb[0].mxu0
          %v7205 = vadd.f32 %v6845, %v7204
          %v7206 = vpop.f32.mrb[0].mxu0
          %v7207 = vadd.f32 %v6841, %v7206
          %v7208 = vpop.f32.mrb[0].mxu0
          %v7209 = vadd.f32 %v6845, %v7208
          %7210 = vmatprep.mubr.bf16.mxu0 0
          %7211 = vmatmul.mubr.bf16.gmra.mrb[0].mxu0 %v6781
          %v7212 = vpop.f32.mrb[0].mxu0
          %v7213 = vadd.f32 %v6841, %v7212
          %v7214 = vpop.f32.mrb[0].mxu0
          %v7215 = vadd.f32 %v6845, %v7214
          %v7216 = vpop.f32.mrb[0].mxu0
          %v7217 = vadd.f32 %v6841, %v7216
          %v7218 = vpop.f32.mrb[0].mxu0
          %v7219 = vadd.f32 %v6845, %v7218
          %7220 = vmatprep.mubr.bf16.mxu0 0
          %7221 = vmatmul.mubr.bf16.gmra.mrb[0].mxu0 %v6782
          %v7222 = vpop.f32.mrb[0].mxu0
          %v7223 = vadd.f32 %v6841, %v7222
          %v7224 = vpop.f32.mrb[0].mxu0
          %v7225 = vadd.f32 %v6845, %v7224
          %v7226 = vpop.f32.mrb[0].mxu0
          %v7227 = vadd.f32 %v6841, %v7226
          %v7228 = vpop.f32.mrb[0].mxu0
          %v7229 = vadd.f32 %v6845, %v7228
          %7230 = vmatprep.mubr.bf16.mxu0 0
          %7231 = vmatmul.mubr.bf16.gmra.mrb[0].mxu0 %v6783
          %v7232 = vpop.f32.mrb[0].mxu0
          %v7233 = vadd.f32 %v6841, %v7232
          %v7234 = vpop.f32.mrb[0].mxu0
          %v7235 = vadd.f32 %v6845, %v7234
          %v7236 = vpop.f32.mrb[0].mxu0
          %v7237 = vadd.f32 %v6841, %v7236
          %v7238 = vpop.f32.mrb[0].mxu0
          %v7239 = vadd.f32 %v6845, %v7238
          %7240 = vmatprep.mubr.bf16.mxu0 0
          %7241 = vmatmul.mubr.bf16.gmra.mrb[0].mxu0 %v6784
          %v7242 = vpop.f32.mrb[0].mxu0
          %v7243 = vadd.f32 %v6841, %v7242
          %v7244 = vpop.f32.mrb[0].mxu0
          %v7245 = vadd.f32 %v6845, %v7244
          %v7246 = vpop.f32.mrb[0].mxu0
          %v7247 = vadd.f32 %v6841, %v7246
          %v7248 = vpop.f32.mrb[0].mxu0
          %v7249 = vadd.f32 %v6845, %v7248
          %7250 = vmatprep.mubr.bf16.mxu0 0
          %7251 = vmatmul.mubr.bf16.gmra.mrb[0].mxu0 %v6785
          %v7252 = vpop.f32.mrb[0].mxu0
          %v7253 = vadd.f32 %v6841, %v7252
          %v7254 = vpop.f32.mrb[0].mxu0
          %v7255 = vadd.f32 %v6845, %v7254
          %v7256 = vpop.f32.mrb[0].mxu0
          %v7257 = vadd.f32 %v6841, %v7256
          %v7258 = vpop.f32.mrb[0].mxu0
          %v7259 = vadd.f32 %v6845, %v7258
          %7260 = vmatprep.mubr.bf16.mxu0 0
          %7261 = vmatmul.mubr.bf16.gmra.mrb[0].mxu0 %v6786
          %v7262 = vpop.f32.mrb[0].mxu0
          %v7263 = vadd.f32 %v6841, %v7262
          %v7264 = vpop.f32.mrb[0].mxu0
          %v7265 = vadd.f32 %v6845, %v7264
          %v7266 = vpop.f32.mrb[0].mxu0
          %v7267 = vadd.f32 %v6841, %v7266
          %v7268 = vpop.f32.mrb[0].mxu0
          %v7269 = vadd.f32 %v6845, %v7268
          %7270 = vmatprep.mubr.bf16.mxu0 0
          %7271 = vmatmul.mubr.bf16.gmra.mrb[0].mxu0 %v6787
          %v7272 = vpop.f32.mrb[0].mxu0
          %v7273 = vadd.f32 %v6841, %v7272
          %v7274 = vpop.f32.mrb[0].mxu0
          %v7275 = vadd.f32 %v6845, %v7274
          %v7276 = vpop.f32.mrb[0].mxu0
          %v7277 = vadd.f32 %v6841, %v7276
          %v7278 = vpop.f32.mrb[0].mxu0
          %v7279 = vadd.f32 %v6845, %v7278
          %7280 = vmatprep.mubr.bf16.mxu0 0
          %7281 = vmatmul.mubr.bf16.gmra.mrb[0].mxu0 %v6788
          %v7282 = vpop.f32.mrb[0].mxu0
          %v7283 = vadd.f32 %v6841, %v7282
          %v7284 = vpop.f32.mrb[0].mxu0
          %v7285 = vadd.f32 %v6845, %v7284
          %v7286 = vpop.f32.mrb[0].mxu0
          %v7287 = vadd.f32 %v6841, %v7286
          %v7288 = vpop.f32.mrb[0].mxu0
          %v7289 = vadd.f32 %v6845, %v7288
          %7290 = vmatprep.mubr.bf16.mxu0 0
          %7291 = vmatmul.mubr.bf16.gmra.mrb[0].mxu0 %v6789
          %v7292 = vpop.f32.mrb[0].mxu0
          %v7293 = vadd.f32 %v6841, %v7292
          %v7294 = vpop.f32.mrb[0].mxu0
          %v7295 = vadd.f32 %v6845, %v7294
          %v7296 = vpop.f32.mrb[0].mxu0
          %v7297 = vadd.f32 %v6841, %v7296
          %v7298 = vpop.f32.mrb[0].mxu0
          %v7299 = vadd.f32 %v6845, %v7298
          %7300 = vmatprep.mubr.bf16.mxu0 0
          %7301 = vmatmul.mubr.bf16.gmra.mrb[0].mxu0 %v6790
          %v7302 = vpop.f32.mrb[0].mxu0
          %v7303 = vadd.f32 %v6841, %v7302
          %v7304 = vpop.f32.mrb[0].mxu0
          %v7305 = vadd.f32 %v6845, %v7304
          %v7306 = vpop.f32.mrb[0].mxu0
          %v7307 = vadd.f32 %v6841, %v7306
          %v7308 = vpop.f32.mrb[0].mxu0
          %v7309 = vadd.f32 %v6845, %v7308
          %7310 = vmatprep.mubr.bf16.mxu0 0
          %7311 = vmatmul.mubr.bf16.gmra.mrb[0].mxu0 %v6791
          %v7312 = vpop.f32.mrb[0].mxu0
          %v7313 = vadd.f32 %v6841, %v7312
          %v7314 = vpop.f32.mrb[0].mxu0
          %v7315 = vadd.f32 %v6845, %v7314
          %v7316 = vpop.f32.mrb[0].mxu0
          %v7317 = vadd.f32 %v6841, %v7316
          %v7318 = vpop.f32.mrb[0].mxu0
          %v7319 = vadd.f32 %v6845, %v7318
          %7320 = vmatprep.mubr.bf16.mxu0 0
          %7321 = vmatmul.mubr.bf16.gmra.mrb[0].mxu0 %v6792
          %v7322 = vpop.f32.mrb[0].mxu0
          %v7323 = vadd.f32 %v6841, %v7322
          %v7324 = vpop.f32.mrb[0].mxu0
          %v7325 = vadd.f32 %v6845, %v7324
          %v7326 = vpop.f32.mrb[0].mxu0
          %v7327 = vadd.f32 %v6841, %v7326
          %v7328 = vpop.f32.mrb[0].mxu0
          %v7329 = vadd.f32 %v6845, %v7328
          %7330 = vmatprep.mubr.bf16.mxu0 0
          %7331 = vmatmul.mubr.bf16.gmra.mrb[0].mxu0 %v6793
          %v7332 = vpop.f32.mrb[0].mxu0
          %v7333 = vadd.f32 %v6841, %v7332
          %v7334 = vpop.f32.mrb[0].mxu0
          %v7335 = vadd.f32 %v6845, %v7334
          %v7336 = vpop.f32.mrb[0].mxu0
          %v7337 = vadd.f32 %v6841, %v7336
          %v7338 = vpop.f32.mrb[0].mxu0
          %v7339 = vadd.f32 %v6845, %v7338
          %7340 = vmatprep.mubr.bf16.mxu0 0
          %7341 = vmatmul.mubr.bf16.gmra.mrb[0].mxu0 %v6794
          %v7342 = vpop.f32.mrb[0].mxu0
          %v7343 = vadd.f32 %v6841, %v7342
          %v7344 = vpop.f32.mrb[0].mxu0
          %v7345 = vadd.f32 %v6845, %v7344
          %v7346 = vpop.f32.mrb[0].mxu0
          %v7347 = vadd.f32 %v6841, %v7346
          %v7348 = vpop.f32.mrb[0].mxu0
          %v7349 = vadd.f32 %v6845, %v7348
          %7350 = vmatprep.mubr.bf16.mxu0 0
          %7351 = vmatmul.mubr.bf16.gmra.mrb[0].mxu0 %v6795
          %v7352 = vpop.f32.mrb[0].mxu0
          %v7353 = vadd.f32 %v6841, %v7352
          %v7354 = vpop.f32.mrb[0].mxu0
          %v7355 = vadd.f32 %v6845, %v7354
          %v7356 = vpop.f32.mrb[0].mxu0
          %v7357 = vadd.f32 %v6841, %v7356
          %v7358 = vpop.f32.mrb[0].mxu0
          %v7359 = vadd.f32 %v6845, %v7358
          %7360 = vmatprep.mubr.bf16.mxu0 0
          %7361 = vmatmul.mubr.bf16.gmra.mrb[0].mxu0 %v6796
          %v7362 = vpop.f32.mrb[0].mxu0
          %v7363 = vadd.f32 %v6841, %v7362
          %v7364 = vpop.f32.mrb[0].mxu0
          %v7365 = vadd.f32 %v6845, %v7364
          %v7366 = vpop.f32.mrb[0].mxu0
          %v7367 = vadd.f32 %v6841, %v7366
          %v7368 = vpop.f32.mrb[0].mxu0
          %v7369 = vadd.f32 %v6845, %v7368
          %7370 = vmatprep.mubr.bf16.mxu0 0
          %7371 = vmatmul.mubr.bf16.gmra.mrb[0].mxu0 %v6797
          %v7372 = vpop.f32.mrb[0].mxu0
          %v7373 = vadd.f32 %v6841, %v7372
          %v7374 = vpop.f32.mrb[0].mxu0
          %v7375 = vadd.f32 %v6845, %v7374
          %v7376 = vpop.f32.mrb[0].mxu0
          %v7377 = vadd.f32 %v6841, %v7376
          %v7378 = vpop.f32.mrb[0].mxu0
          %v7379 = vadd.f32 %v6845, %v7378
          %7380 = vmatprep.mubr.bf16.mxu0 0
          %7381 = vmatmul.mubr.bf16.gmra.mrb[0].mxu0 %v6798
          %v7382 = vpop.f32.mrb[0].mxu0
          %v7383 = vadd.f32 %v6841, %v7382
          %v7384 = vpop.f32.mrb[0].mxu0
          %v7385 = vadd.f32 %v6845, %v7384
          %v7386 = vpop.f32.mrb[0].mxu0
          %v7387 = vadd.f32 %v6841, %v7386
          %v7388 = vpop.f32.mrb[0].mxu0
          %v7389 = vadd.f32 %v6845, %v7388
          %7390 = vmatprep.mubr.bf16.mxu0 0
          %7391 = vmatmul.mubr.bf16.gmra.mrb[0].mxu0 %v6799
          %v7392 = vpop.f32.mrb[0].mxu0
          %v7393 = vadd.f32 %v6841, %v7392
          %v7394 = vpop.f32.mrb[0].mxu0
          %v7395 = vadd.f32 %v6845, %v7394
          %v7396 = vpop.f32.mrb[0].mxu0
          %v7397 = vadd.f32 %v6841, %v7396
          %v7398 = vpop.f32.mrb[0].mxu0
          %v7399 = vadd.f32 %v6845, %v7398
          %7400 = vmatprep.mubr.bf16.mxu0 0
          %7401 = vmatmul.mubr.bf16.gmra.mrb[0].mxu0 %v6800
          %v7402 = vpop.f32.mrb[0].mxu0
          %v7403 = vadd.f32 %v6841, %v7402
          %v7404 = vpop.f32.mrb[0].mxu0
          %v7405 = vadd.f32 %v6845, %v7404
          %v7406 = vpop.f32.mrb[0].mxu0
          %v7407 = vadd.f32 %v6841, %v7406
          %v7408 = vpop.f32.mrb[0].mxu0
          %v7409 = vadd.f32 %v6845, %v7408
          %7410 = vmatprep.mubr.bf16.mxu0 0
          %7411 = vmatmul.mubr.bf16.gmra.mrb[0].mxu0 %v6801
          %v7412 = vpop.f32.mrb[0].mxu0
          %v7413 = vadd.f32 %v6841, %v7412
          %v7414 = vpop.f32.mrb[0].mxu0
          %v7415 = vadd.f32 %v6845, %v7414
          %v7416 = vpop.f32.mrb[0].mxu0
          %v7417 = vadd.f32 %v6841, %v7416
          %v7418 = vpop.f32.mrb[0].mxu0
          %v7419 = vadd.f32 %v6845, %v7418
          %7420 = vmatprep.mubr.bf16.mxu0 0
          %7421 = vmatmul.mubr.bf16.gmra.mrb[0].mxu0 %v6802
          %v7422 = vpop.f32.mrb[0].mxu0
          %v7423 = vadd.f32 %v6841, %v7422
          %v7424 = vpop.f32.mrb[0].mxu0
          %v7425 = vadd.f32 %v6845, %v7424
          %v7426 = vpop.f32.mrb[0].mxu0
          %v7427 = vadd.f32 %v6841, %v7426
          %v7428 = vpop.f32.mrb[0].mxu0
          %v7429 = vadd.f32 %v6845, %v7428
          %7430 = vmatprep.mubr.bf16.mxu0 0
          %7431 = vmatmul.mubr.bf16.gmra.mrb[0].mxu0 %v6803
          %v7432 = vpop.f32.mrb[0].mxu0
          %v7433 = vadd.f32 %v6841, %v7432
          %v7434 = vpop.f32.mrb[0].mxu0
          %v7435 = vadd.f32 %v6845, %v7434
          %v7436 = vpop.f32.mrb[0].mxu0
          %v7437 = vadd.f32 %v6841, %v7436
          %v7438 = vpop.f32.mrb[0].mxu0
          %v7439 = vadd.f32 %v6845, %v7438
          %7440 = vmatprep.mubr.bf16.mxu0 0
          %7441 = vmatmul.mubr.bf16.gmra.mrb[0].mxu0 %v6804
          %v7442 = vpop.f32.mrb[0].mxu0
          %v7443 = vadd.f32 %v6841, %v7442
          %v7444 = vpop.f32.mrb[0].mxu0
          %v7445 = vadd.f32 %v6845, %v7444
          %v7446 = vpop.f32.mrb[0].mxu0
          %v7447 = vadd.f32 %v6841, %v7446
          %v7448 = vpop.f32.mrb[0].mxu0
          %v7449 = vadd.f32 %v6845, %v7448
          %7450 = vmatprep.mubr.bf16.mxu0 0
          %7451 = vmatmul.mubr.bf16.gmra.mrb[0].mxu0 %v6805
          %v7452 = vpop.f32.mrb[0].mxu0
          %v7453 = vadd.f32 %v6841, %v7452
          %v7454 = vpop.f32.mrb[0].mxu0
          %v7455 = vadd.f32 %v6845, %v7454
          %v7456 = vpop.f32.mrb[0].mxu0
          %v7457 = vadd.f32 %v6841, %v7456
          %v7458 = vpop.f32.mrb[0].mxu0
          %v7459 = vadd.f32 %v6845, %v7458
          %7460 = vmatprep.mubr.bf16.mxu0 0
          %7461 = vmatmul.mubr.bf16.gmra.mrb[0].mxu0 %v6806
          %v7462 = vpop.f32.mrb[0].mxu0
          %v7463 = vadd.f32 %v6841, %v7462
          %v7464 = vpop.f32.mrb[0].mxu0
          %v7465 = vadd.f32 %v6845, %v7464
          %v7466 = vpop.f32.mrb[0].mxu0
          %v7467 = vadd.f32 %v6841, %v7466
          %v7468 = vpop.f32.mrb[0].mxu0
          %v7469 = vadd.f32 %v6845, %v7468
          %7470 = vmatprep.mubr.bf16.mxu0 0
          %7471 = vmatmul.mubr.bf16.gmra.mrb[0].mxu0 %v6807
          %v7472 = vpop.f32.mrb[0].mxu0
          %v7473 = vadd.f32 %v6841, %v7472
          %v7474 = vpop.f32.mrb[0].mxu0
          %v7475 = vadd.f32 %v6845, %v7474
          %v7476 = vpop.f32.mrb[0].mxu0
          %v7477 = vadd.f32 %v6841, %v7476
          %v7478 = vpop.f32.mrb[0].mxu0
          %v7479 = vadd.f32 %v6845, %v7478
          %7480 = vmatprep.mubr.bf16.mxu0 0
          %7481 = vmatmul.mubr.bf16.gmra.mrb[0].mxu0 %v6808
          %v7482 = vpop.f32.mrb[0].mxu0
          %v7483 = vadd.f32 %v6841, %v7482
          %v7484 = vpop.f32.mrb[0].mxu0
          %v7485 = vadd.f32 %v6845, %v7484
          %v7486 = vpop.f32.mrb[0].mxu0
          %v7487 = vadd.f32 %v6841, %v7486
          %v7488 = vpop.f32.mrb[0].mxu0
          %v7489 = vadd.f32 %v6845, %v7488
          %7490 = vmatprep.mubr.bf16.mxu0 0
          %7491 = vmatmul.mubr.bf16.gmra.mrb[0].mxu0 %v6809
          %v7492 = vpop.f32.mrb[0].mxu0
          %v7493 = vadd.f32 %v6841, %v7492
          %v7494 = vpop.f32.mrb[0].mxu0
          %v7495 = vadd.f32 %v6845, %v7494
          %v7496 = vpop.f32.mrb[0].mxu0
          %v7497 = vadd.f32 %v6841, %v7496
          %v7498 = vpop.f32.mrb[0].mxu0
          %v7499 = vadd.f32 %v6845, %v7498
          %7500 = vmatprep.mubr.bf16.mxu0 0
          %7501 = vmatmul.mubr.bf16.gmra.mrb[0].mxu0 %v6810
          %v7502 = vpop.f32.mrb[0].mxu0
          %v7503 = vadd.f32 %v6841, %v7502
          %v7504 = vpop.f32.mrb[0].mxu0
          %v7505 = vadd.f32 %v6845, %v7504
          %v7506 = vpop.f32.mrb[0].mxu0
          %v7507 = vadd.f32 %v6841, %v7506
          %v7508 = vpop.f32.mrb[0].mxu0
          %v7509 = vadd.f32 %v6845, %v7508
          %7510 = vmatprep.mubr.bf16.mxu0 0
          %7511 = vmatmul.mubr.bf16.gmra.mrb[0].mxu0 %v6811
          %v7512 = vpop.f32.mrb[0].mxu0
          %v7513 = vadd.f32 %v6841, %v7512
          %v7514 = vpop.f32.mrb[0].mxu0
          %v7515 = vadd.f32 %v6845, %v7514
          %v7516 = vpop.f32.mrb[0].mxu0
          %v7517 = vadd.f32 %v6841, %v7516
          %v7518 = vpop.f32.mrb[0].mxu0
          %v7519 = vadd.f32 %v6845, %v7518
          %7520 = vmatprep.mubr.bf16.mxu0 0
          %7521 = vmatmul.mubr.bf16.gmra.mrb[0].mxu0 %v6812
          %v7522 = vpop.f32.mrb[0].mxu0
          %v7523 = vadd.f32 %v6841, %v7522
          %v7524 = vpop.f32.mrb[0].mxu0
          %v7525 = vadd.f32 %v6845, %v7524
          %v7526 = vpop.f32.mrb[0].mxu0
          %v7527 = vadd.f32 %v6841, %v7526
          %v7528 = vpop.f32.mrb[0].mxu0
          %v7529 = vadd.f32 %v6845, %v7528
          %7530 = vmatprep.mubr.bf16.mxu0 0
          %7531 = vmatmul.mubr.bf16.gmra.mrb[0].mxu0 %v6813
          %v7532 = vpop.f32.mrb[0].mxu0
          %v7533 = vadd.f32 %v6841, %v7532
          %v7534 = vpop.f32.mrb[0].mxu0
          %v7535 = vadd.f32 %v6845, %v7534
          %v7536 = vpop.f32.mrb[0].mxu0
          %v7537 = vadd.f32 %v6841, %v7536
          %v7538 = vpop.f32.mrb[0].mxu0
          %v7539 = vadd.f32 %v6845, %v7538
          %7540 = vmatprep.mubr.bf16.mxu0 0
          %7541 = vmatmul.mubr.bf16.gmra.mrb[0].mxu0 %v6814
          %v7542 = vpop.f32.mrb[0].mxu0
          %v7543 = vadd.f32 %v6841, %v7542
          %v7544 = vpop.f32.mrb[0].mxu0
          %v7545 = vadd.f32 %v6845, %v7544
          %v7546 = vpop.f32.mrb[0].mxu0
          %v7547 = vadd.f32 %v6841, %v7546
          %v7548 = vpop.f32.mrb[0].mxu0
          %v7549 = vadd.f32 %v6845, %v7548
          %7550 = vmatprep.mubr.bf16.mxu0 0
          %7551 = vmatmul.mubr.bf16.gmra.mrb[0].mxu0 %v6815
          %v7552 = vpop.f32.mrb[0].mxu0
          %v7553 = vadd.f32 %v6841, %v7552
          %v7554 = vpop.f32.mrb[0].mxu0
          %v7555 = vadd.f32 %v6845, %v7554
          %v7556 = vpop.f32.mrb[0].mxu0
          %v7557 = vadd.f32 %v6841, %v7556
          %v7558 = vpop.f32.mrb[0].mxu0
          %v7559 = vadd.f32 %v6845, %v7558
          %7560 = vmatprep.mubr.bf16.mxu0 0
          %7561 = vmatmul.mubr.bf16.gmra.mrb[0].mxu0 %v6816
          %v7562 = vpop.f32.mrb[0].mxu0
          %v7563 = vadd.f32 %v6841, %v7562
          %v7564 = vpop.f32.mrb[0].mxu0
          %v7565 = vadd.f32 %v6845, %v7564
          %v7566 = vpop.f32.mrb[0].mxu0
          %v7567 = vadd.f32 %v6841, %v7566
          %v7568 = vpop.f32.mrb[0].mxu0
          %v7569 = vadd.f32 %v6845, %v7568
          %7570 = vmatprep.mubr.bf16.mxu0 0
          %7571 = vmatmul.mubr.bf16.gmra.mrb[0].mxu0 %v6817
          %v7572 = vpop.f32.mrb[0].mxu0
          %v7573 = vadd.f32 %v6841, %v7572
          %v7574 = vpop.f32.mrb[0].mxu0
          %v7575 = vadd.f32 %v6845, %v7574
          %v7576 = vpop.f32.mrb[0].mxu0
          %v7577 = vadd.f32 %v6841, %v7576
          %v7578 = vpop.f32.mrb[0].mxu0
          %v7579 = vadd.f32 %v6845, %v7578
          %7580 = vmatprep.mubr.bf16.mxu0 0
          %7581 = vmatmul.mubr.bf16.gmra.mrb[0].mxu0 %v6818
          %v7582 = vpop.f32.mrb[0].mxu0
          %v7583 = vadd.f32 %v6841, %v7582
          %v7584 = vpop.f32.mrb[0].mxu0
          %v7585 = vadd.f32 %v6845, %v7584
          %v7586 = vpop.f32.mrb[0].mxu0
          %v7587 = vadd.f32 %v6841, %v7586
          %v7588 = vpop.f32.mrb[0].mxu0
          %v7589 = vadd.f32 %v6845, %v7588
          %7590 = vmatprep.mubr.bf16.mxu0 0
          %7591 = vmatmul.mubr.bf16.gmra.mrb[0].mxu0 %v6819
          %v7592 = vpop.f32.mrb[0].mxu0
          %v7593 = vadd.f32 %v6841, %v7592
          %v7594 = vpop.f32.mrb[0].mxu0
          %v7595 = vadd.f32 %v6845, %v7594
          %v7596 = vpop.f32.mrb[0].mxu0
          %v7597 = vadd.f32 %v6841, %v7596
          %v7598 = vpop.f32.mrb[0].mxu0
          %v7599 = vadd.f32 %v6845, %v7598
          %7600 = vdwg.mxu0
          %v7601 = vmax.f32 %v6963, 0.0
          %v7602 = vmax.f32 %v6965, 0.0
          %v7603 = vmax.f32 %v6967, 0.0
          %v7604 = vmax.f32 %v6969, 0.0
          %v7605 = vmax.f32 %v6973, 0.0
          %v7606 = vmax.f32 %v6975, 0.0
          %v7607 = vmax.f32 %v6977, 0.0
          %v7608 = vmax.f32 %v6979, 0.0
          %v7609 = vmax.f32 %v6983, 0.0
          %v7610 = vmax.f32 %v6985, 0.0
          %v7611 = vmax.f32 %v6987, 0.0
          %v7612 = vmax.f32 %v6989, 0.0
          %v7613 = vmax.f32 %v6993, 0.0
          %v7614 = vmax.f32 %v6995, 0.0
          %v7615 = vmax.f32 %v6997, 0.0
          %v7616 = vmax.f32 %v6999, 0.0
          %v7617 = vmax.f32 %v7003, 0.0
          %v7618 = vmax.f32 %v7005, 0.0
          %v7619 = vmax.f32 %v7007, 0.0
          %v7620 = vmax.f32 %v7009, 0.0
          %v7621 = vmax.f32 %v7013, 0.0
          %v7622 = vmax.f32 %v7015, 0.0
          %v7623 = vmax.f32 %v7017, 0.0
          %v7624 = vmax.f32 %v7019, 0.0
          %v7625 = vmax.f32 %v7023, 0.0
          %v7626 = vmax.f32 %v7025, 0.0
          %v7627 = vmax.f32 %v7027, 0.0
          %v7628 = vmax.f32 %v7029, 0.0
          %v7629 = vmax.f32 %v7033, 0.0
          %v7630 = vmax.f32 %v7035, 0.0
          %v7631 = vmax.f32 %v7037, 0.0
          %v7632 = vmax.f32 %v7039, 0.0
          %v7633 = vmax.f32 %v7043, 0.0
          %v7634 = vmax.f32 %v7045, 0.0
          %v7635 = vmax.f32 %v7047, 0.0
          %v7636 = vmax.f32 %v7049, 0.0
          %v7637 = vmax.f32 %v7053, 0.0
          %v7638 = vmax.f32 %v7055, 0.0
          %v7639 = vmax.f32 %v7057, 0.0
          %v7640 = vmax.f32 %v7059, 0.0
          %v7641 = vmax.f32 %v7063, 0.0
          %v7642 = vmax.f32 %v7065, 0.0
          %v7643 = vmax.f32 %v7067, 0.0
          %v7644 = vmax.f32 %v7069, 0.0
          %v7645 = vmax.f32 %v7073, 0.0
          %v7646 = vmax.f32 %v7075, 0.0
          %v7647 = vmax.f32 %v7077, 0.0
          %v7648 = vmax.f32 %v7079, 0.0
          %v7649 = vmax.f32 %v7083, 0.0
          %v7650 = vmax.f32 %v7085, 0.0
          %v7651 = vmax.f32 %v7087, 0.0
          %v7652 = vmax.f32 %v7089, 0.0
          %v7653 = vmax.f32 %v7093, 0.0
          %v7654 = vmax.f32 %v7095, 0.0
          %v7655 = vmax.f32 %v7097, 0.0
          %v7656 = vmax.f32 %v7099, 0.0
          %v7657 = vmax.f32 %v7103, 0.0
          %v7658 = vmax.f32 %v7105, 0.0
          %v7659 = vmax.f32 %v7107, 0.0
          %v7660 = vmax.f32 %v7109, 0.0
          %v7661 = vmax.f32 %v7113, 0.0
          %v7662 = vmax.f32 %v7115, 0.0
          %v7663 = vmax.f32 %v7117, 0.0
          %v7664 = vmax.f32 %v7119, 0.0
          %v7665 = vmax.f32 %v7123, 0.0
          %v7666 = vmax.f32 %v7125, 0.0
          %v7667 = vmax.f32 %v7127, 0.0
          %v7668 = vmax.f32 %v7129, 0.0
          %v7669 = vmax.f32 %v7133, 0.0
          %v7670 = vmax.f32 %v7135, 0.0
          %v7671 = vmax.f32 %v7137, 0.0
          %v7672 = vmax.f32 %v7139, 0.0
          %v7673 = vmax.f32 %v7143, 0.0
          %v7674 = vmax.f32 %v7145, 0.0
          %v7675 = vmax.f32 %v7147, 0.0
          %v7676 = vmax.f32 %v7149, 0.0
          %v7677 = vmax.f32 %v7153, 0.0
          %v7678 = vmax.f32 %v7155, 0.0
          %v7679 = vmax.f32 %v7157, 0.0
          %v7680 = vmax.f32 %v7159, 0.0
          %v7681 = vmax.f32 %v7163, 0.0
          %v7682 = vmax.f32 %v7165, 0.0
          %v7683 = vmax.f32 %v7167, 0.0
          %v7684 = vmax.f32 %v7169, 0.0
          %v7685 = vmax.f32 %v7173, 0.0
          %v7686 = vmax.f32 %v7175, 0.0
          %v7687 = vmax.f32 %v7177, 0.0
          %v7688 = vmax.f32 %v7179, 0.0
          %v7689 = vmax.f32 %v7183, 0.0
          %v7690 = vmax.f32 %v7185, 0.0
          %v7691 = vmax.f32 %v7187, 0.0
          %v7692 = vmax.f32 %v7189, 0.0
          %v7693 = vmax.f32 %v7193, 0.0
          %v7694 = vmax.f32 %v7195, 0.0
          %v7695 = vmax.f32 %v7197, 0.0
          %v7696 = vmax.f32 %v7199, 0.0
          %v7697 = vmax.f32 %v7203, 0.0
          %v7698 = vmax.f32 %v7205, 0.0
          %v7699 = vmax.f32 %v7207, 0.0
          %v7700 = vmax.f32 %v7209, 0.0
          %v7701 = vmax.f32 %v7213, 0.0
          %v7702 = vmax.f32 %v7215, 0.0
          %v7703 = vmax.f32 %v7217, 0.0
          %v7704 = vmax.f32 %v7219, 0.0
          %v7705 = vmax.f32 %v7223, 0.0
          %v7706 = vmax.f32 %v7225, 0.0
          %v7707 = vmax.f32 %v7227, 0.0
          %v7708 = vmax.f32 %v7229, 0.0
          %v7709 = vmax.f32 %v7233, 0.0
          %v7710 = vmax.f32 %v7235, 0.0
          %v7711 = vmax.f32 %v7237, 0.0
          %v7712 = vmax.f32 %v7239, 0.0
          %v7713 = vmax.f32 %v7243, 0.0
          %v7714 = vmax.f32 %v7245, 0.0
          %v7715 = vmax.f32 %v7247, 0.0
          %v7716 = vmax.f32 %v7249, 0.0
          %v7717 = vmax.f32 %v7253, 0.0
          %v7718 = vmax.f32 %v7255, 0.0
          %v7719 = vmax.f32 %v7257, 0.0
          %v7720 = vmax.f32 %v7259, 0.0
          %v7721 = vmax.f32 %v7263, 0.0
          %v7722 = vmax.f32 %v7265, 0.0
          %v7723 = vmax.f32 %v7267, 0.0
          %v7724 = vmax.f32 %v7269, 0.0
          %v7725 = vmax.f32 %v7273, 0.0
          %v7726 = vmax.f32 %v7275, 0.0
          %v7727 = vmax.f32 %v7277, 0.0
          %v7728 = vmax.f32 %v7279, 0.0
          %v7729 = vmax.f32 %v7283, 0.0
          %v7730 = vmax.f32 %v7285, 0.0
          %v7731 = vmax.f32 %v7287, 0.0
          %v7732 = vmax.f32 %v7289, 0.0
          %v7733 = vmax.f32 %v7293, 0.0
          %v7734 = vmax.f32 %v7295, 0.0
          %v7735 = vmax.f32 %v7297, 0.0
          %v7736 = vmax.f32 %v7299, 0.0
          %v7737 = vmax.f32 %v7303, 0.0
          %v7738 = vmax.f32 %v7305, 0.0
          %v7739 = vmax.f32 %v7307, 0.0
          %v7740 = vmax.f32 %v7309, 0.0
          %v7741 = vmax.f32 %v7313, 0.0
          %v7742 = vmax.f32 %v7315, 0.0
          %v7743 = vmax.f32 %v7317, 0.0
          %v7744 = vmax.f32 %v7319, 0.0
          %v7745 = vmax.f32 %v7323, 0.0
          %v7746 = vmax.f32 %v7325, 0.0
          %v7747 = vmax.f32 %v7327, 0.0
          %v7748 = vmax.f32 %v7329, 0.0
          %v7749 = vmax.f32 %v7333, 0.0
          %v7750 = vmax.f32 %v7335, 0.0
          %v7751 = vmax.f32 %v7337, 0.0
          %v7752 = vmax.f32 %v7339, 0.0
          %v7753 = vmax.f32 %v7343, 0.0
          %v7754 = vmax.f32 %v7345, 0.0
          %v7755 = vmax.f32 %v7347, 0.0
          %v7756 = vmax.f32 %v7349, 0.0
          %v7757 = vmax.f32 %v7353, 0.0
          %v7758 = vmax.f32 %v7355, 0.0
          %v7759 = vmax.f32 %v7357, 0.0
          %v7760 = vmax.f32 %v7359, 0.0
          %v7761 = vmax.f32 %v7363, 0.0
          %v7762 = vmax.f32 %v7365, 0.0
          %v7763 = vmax.f32 %v7367, 0.0
          %v7764 = vmax.f32 %v7369, 0.0
          %v7765 = vmax.f32 %v7373, 0.0
          %v7766 = vmax.f32 %v7375, 0.0
          %v7767 = vmax.f32 %v7377, 0.0
          %v7768 = vmax.f32 %v7379, 0.0
          %v7769 = vmax.f32 %v7383, 0.0
          %v7770 = vmax.f32 %v7385, 0.0
          %v7771 = vmax.f32 %v7387, 0.0
          %v7772 = vmax.f32 %v7389, 0.0
          %v7773 = vmax.f32 %v7393, 0.0
          %v7774 = vmax.f32 %v7395, 0.0
          %v7775 = vmax.f32 %v7397, 0.0
          %v7776 = vmax.f32 %v7399, 0.0
          %v7777 = vmax.f32 %v7403, 0.0
          %v7778 = vmax.f32 %v7405, 0.0
          %v7779 = vmax.f32 %v7407, 0.0
          %v7780 = vmax.f32 %v7409, 0.0
          %v7781 = vmax.f32 %v7413, 0.0
          %v7782 = vmax.f32 %v7415, 0.0
          %v7783 = vmax.f32 %v7417, 0.0
          %v7784 = vmax.f32 %v7419, 0.0
          %v7785 = vmax.f32 %v7423, 0.0
          %v7786 = vmax.f32 %v7425, 0.0
          %v7787 = vmax.f32 %v7427, 0.0
          %v7788 = vmax.f32 %v7429, 0.0
          %v7789 = vmax.f32 %v7433, 0.0
          %v7790 = vmax.f32 %v7435, 0.0
          %v7791 = vmax.f32 %v7437, 0.0
          %v7792 = vmax.f32 %v7439, 0.0
          %v7793 = vmax.f32 %v7443, 0.0
          %v7794 = vmax.f32 %v7445, 0.0
          %v7795 = vmax.f32 %v7447, 0.0
          %v7796 = vmax.f32 %v7449, 0.0
          %v7797 = vmax.f32 %v7453, 0.0
          %v7798 = vmax.f32 %v7455, 0.0
          %v7799 = vmax.f32 %v7457, 0.0
          %v7800 = vmax.f32 %v7459, 0.0
          %v7801 = vmax.f32 %v7463, 0.0
          %v7802 = vmax.f32 %v7465, 0.0
          %v7803 = vmax.f32 %v7467, 0.0
          %v7804 = vmax.f32 %v7469, 0.0
          %v7805 = vmax.f32 %v7473, 0.0
          %v7806 = vmax.f32 %v7475, 0.0
          %v7807 = vmax.f32 %v7477, 0.0
          %v7808 = vmax.f32 %v7479, 0.0
          %v7809 = vmax.f32 %v7483, 0.0
          %v7810 = vmax.f32 %v7485, 0.0
          %v7811 = vmax.f32 %v7487, 0.0
          %v7812 = vmax.f32 %v7489, 0.0
          %v7813 = vmax.f32 %v7493, 0.0
          %v7814 = vmax.f32 %v7495, 0.0
          %v7815 = vmax.f32 %v7497, 0.0
          %v7816 = vmax.f32 %v7499, 0.0
          %v7817 = vmax.f32 %v7503, 0.0
          %v7818 = vmax.f32 %v7505, 0.0
          %v7819 = vmax.f32 %v7507, 0.0
          %v7820 = vmax.f32 %v7509, 0.0
          %v7821 = vmax.f32 %v7513, 0.0
          %v7822 = vmax.f32 %v7515, 0.0
          %v7823 = vmax.f32 %v7517, 0.0
          %v7824 = vmax.f32 %v7519, 0.0
          %v7825 = vmax.f32 %v7523, 0.0
          %v7826 = vmax.f32 %v7525, 0.0
          %v7827 = vmax.f32 %v7527, 0.0
          %v7828 = vmax.f32 %v7529, 0.0
          %v7829 = vmax.f32 %v7533, 0.0
          %v7830 = vmax.f32 %v7535, 0.0
          %v7831 = vmax.f32 %v7537, 0.0
          %v7832 = vmax.f32 %v7539, 0.0
          %v7833 = vmax.f32 %v7543, 0.0
          %v7834 = vmax.f32 %v7545, 0.0
          %v7835 = vmax.f32 %v7547, 0.0
          %v7836 = vmax.f32 %v7549, 0.0
          %v7837 = vmax.f32 %v7553, 0.0
          %v7838 = vmax.f32 %v7555, 0.0
          %v7839 = vmax.f32 %v7557, 0.0
          %v7840 = vmax.f32 %v7559, 0.0
          %v7841 = vmax.f32 %v7563, 0.0
          %v7842 = vmax.f32 %v7565, 0.0
          %v7843 = vmax.f32 %v7567, 0.0
          %v7844 = vmax.f32 %v7569, 0.0
          %v7845 = vmax.f32 %v7573, 0.0
          %v7846 = vmax.f32 %v7575, 0.0
          %v7847 = vmax.f32 %v7577, 0.0
          %v7848 = vmax.f32 %v7579, 0.0
          %v7849 = vmax.f32 %v7583, 0.0
          %v7850 = vmax.f32 %v7585, 0.0
          %v7851 = vmax.f32 %v7587, 0.0
          %v7852 = vmax.f32 %v7589, 0.0
          %v7853 = vmax.f32 %v7593, 0.0
          %v7854 = vmax.f32 %v7595, 0.0
          %v7855 = vmax.f32 %v7597, 0.0
          %v7856 = vmax.f32 %v7599, 0.0
          %v7857 = vpack.c.bf16 %v7603, %v7601
          %v7858 = vpack.c.bf16 %v7604, %v7602
          %v7859 = vpack.c.bf16 %v7607, %v7605
          %v7860 = vpack.c.bf16 %v7608, %v7606
          %v7861 = vpack.c.bf16 %v7611, %v7609
          %v7862 = vpack.c.bf16 %v7612, %v7610
          %v7863 = vpack.c.bf16 %v7615, %v7613
          %v7864 = vpack.c.bf16 %v7616, %v7614
          %v7865 = vpack.c.bf16 %v7619, %v7617
          %v7866 = vpack.c.bf16 %v7620, %v7618
          %v7867 = vpack.c.bf16 %v7623, %v7621
          %v7868 = vpack.c.bf16 %v7624, %v7622
          %v7869 = vpack.c.bf16 %v7627, %v7625
          %v7870 = vpack.c.bf16 %v7628, %v7626
          %v7871 = vpack.c.bf16 %v7631, %v7629
          %v7872 = vpack.c.bf16 %v7632, %v7630
          %v7873 = vpack.c.bf16 %v7635, %v7633
          %v7874 = vpack.c.bf16 %v7636, %v7634
          %v7875 = vpack.c.bf16 %v7639, %v7637
          %v7876 = vpack.c.bf16 %v7640, %v7638
          %v7877 = vpack.c.bf16 %v7643, %v7641
          %v7878 = vpack.c.bf16 %v7644, %v7642
          %v7879 = vpack.c.bf16 %v7647, %v7645
          %v7880 = vpack.c.bf16 %v7648, %v7646
          %v7881 = vpack.c.bf16 %v7651, %v7649
          %v7882 = vpack.c.bf16 %v7652, %v7650
          %v7883 = vpack.c.bf16 %v7655, %v7653
          %v7884 = vpack.c.bf16 %v7656, %v7654
          %v7885 = vpack.c.bf16 %v7659, %v7657
          %v7886 = vpack.c.bf16 %v7660, %v7658
          %v7887 = vpack.c.bf16 %v7663, %v7661
          %v7888 = vpack.c.bf16 %v7664, %v7662
          %v7889 = vpack.c.bf16 %v7667, %v7665
          %v7890 = vpack.c.bf16 %v7668, %v7666
          %v7891 = vpack.c.bf16 %v7671, %v7669
          %v7892 = vpack.c.bf16 %v7672, %v7670
          %v7893 = vpack.c.bf16 %v7675, %v7673
          %v7894 = vpack.c.bf16 %v7676, %v7674
          %v7895 = vpack.c.bf16 %v7679, %v7677
          %v7896 = vpack.c.bf16 %v7680, %v7678
          %v7897 = vpack.c.bf16 %v7683, %v7681
          %v7898 = vpack.c.bf16 %v7684, %v7682
          %v7899 = vpack.c.bf16 %v7687, %v7685
          %v7900 = vpack.c.bf16 %v7688, %v7686
          %v7901 = vpack.c.bf16 %v7691, %v7689
          %v7902 = vpack.c.bf16 %v7692, %v7690
          %v7903 = vpack.c.bf16 %v7695, %v7693
          %v7904 = vpack.c.bf16 %v7696, %v7694
          %v7905 = vpack.c.bf16 %v7699, %v7697
          %v7906 = vpack.c.bf16 %v7700, %v7698
          %v7907 = vpack.c.bf16 %v7703, %v7701
          %v7908 = vpack.c.bf16 %v7704, %v7702
          %v7909 = vpack.c.bf16 %v7707, %v7705
          %v7910 = vpack.c.bf16 %v7708, %v7706
          %v7911 = vpack.c.bf16 %v7711, %v7709
          %v7912 = vpack.c.bf16 %v7712, %v7710
          %v7913 = vpack.c.bf16 %v7715, %v7713
          %v7914 = vpack.c.bf16 %v7716, %v7714
          %v7915 = vpack.c.bf16 %v7719, %v7717
          %v7916 = vpack.c.bf16 %v7720, %v7718
          %v7917 = vpack.c.bf16 %v7723, %v7721
          %v7918 = vpack.c.bf16 %v7724, %v7722
          %v7919 = vpack.c.bf16 %v7727, %v7725
          %v7920 = vpack.c.bf16 %v7728, %v7726
          %v7921 = vpack.c.bf16 %v7731, %v7729
          %v7922 = vpack.c.bf16 %v7732, %v7730
          %v7923 = vpack.c.bf16 %v7735, %v7733
          %v7924 = vpack.c.bf16 %v7736, %v7734
          %v7925 = vpack.c.bf16 %v7739, %v7737
          %v7926 = vpack.c.bf16 %v7740, %v7738
          %v7927 = vpack.c.bf16 %v7743, %v7741
          %v7928 = vpack.c.bf16 %v7744, %v7742
          %v7929 = vpack.c.bf16 %v7747, %v7745
          %v7930 = vpack.c.bf16 %v7748, %v7746
          %v7931 = vpack.c.bf16 %v7751, %v7749
          %v7932 = vpack.c.bf16 %v7752, %v7750
          %v7933 = vpack.c.bf16 %v7755, %v7753
          %v7934 = vpack.c.bf16 %v7756, %v7754
          %v7935 = vpack.c.bf16 %v7759, %v7757
          %v7936 = vpack.c.bf16 %v7760, %v7758
          %v7937 = vpack.c.bf16 %v7763, %v7761
          %v7938 = vpack.c.bf16 %v7764, %v7762
          %v7939 = vpack.c.bf16 %v7767, %v7765
          %v7940 = vpack.c.bf16 %v7768, %v7766
          %v7941 = vpack.c.bf16 %v7771, %v7769
          %v7942 = vpack.c.bf16 %v7772, %v7770
          %v7943 = vpack.c.bf16 %v7775, %v7773
          %v7944 = vpack.c.bf16 %v7776, %v7774
          %v7945 = vpack.c.bf16 %v7779, %v7777
          %v7946 = vpack.c.bf16 %v7780, %v7778
          %v7947 = vpack.c.bf16 %v7783, %v7781
          %v7948 = vpack.c.bf16 %v7784, %v7782
          %v7949 = vpack.c.bf16 %v7787, %v7785
          %v7950 = vpack.c.bf16 %v7788, %v7786
          %v7951 = vpack.c.bf16 %v7791, %v7789
          %v7952 = vpack.c.bf16 %v7792, %v7790
          %v7953 = vpack.c.bf16 %v7795, %v7793
          %v7954 = vpack.c.bf16 %v7796, %v7794
          %v7955 = vpack.c.bf16 %v7799, %v7797
          %v7956 = vpack.c.bf16 %v7800, %v7798
          %v7957 = vpack.c.bf16 %v7803, %v7801
          %v7958 = vpack.c.bf16 %v7804, %v7802
          %v7959 = vpack.c.bf16 %v7807, %v7805
          %v7960 = vpack.c.bf16 %v7808, %v7806
          %v7961 = vpack.c.bf16 %v7811, %v7809
          %v7962 = vpack.c.bf16 %v7812, %v7810
          %v7963 = vpack.c.bf16 %v7815, %v7813
          %v7964 = vpack.c.bf16 %v7816, %v7814
          %v7965 = vpack.c.bf16 %v7819, %v7817
          %v7966 = vpack.c.bf16 %v7820, %v7818
          %v7967 = vpack.c.bf16 %v7823, %v7821
          %v7968 = vpack.c.bf16 %v7824, %v7822
          %v7969 = vpack.c.bf16 %v7827, %v7825
          %v7970 = vpack.c.bf16 %v7828, %v7826
          %v7971 = vpack.c.bf16 %v7831, %v7829
          %v7972 = vpack.c.bf16 %v7832, %v7830
          %v7973 = vpack.c.bf16 %v7835, %v7833
          %v7974 = vpack.c.bf16 %v7836, %v7834
          %v7975 = vpack.c.bf16 %v7839, %v7837
          %v7976 = vpack.c.bf16 %v7840, %v7838
          %v7977 = vpack.c.bf16 %v7843, %v7841
          %v7978 = vpack.c.bf16 %v7844, %v7842
          %v7979 = vpack.c.bf16 %v7847, %v7845
          %v7980 = vpack.c.bf16 %v7848, %v7846
          %v7981 = vpack.c.bf16 %v7851, %v7849
          %v7982 = vpack.c.bf16 %v7852, %v7850
          %v7983 = vpack.c.bf16 %v7855, %v7853
          %v7984 = vpack.c.bf16 %v7856, %v7854
          %v8113 = vunpack.c.l.b16 %v7857
          %v8114 = vunpack.c.l.b16 %v7858
          %v8115 = vunpack.c.h.b16 %v7857
          %v8116 = vunpack.c.h.b16 %v7858
          %v8117 = vunpack.c.l.b16 %v7859
          %v8118 = vunpack.c.l.b16 %v7860
          %v8119 = vunpack.c.h.b16 %v7859
          %v8120 = vunpack.c.h.b16 %v7860
          %v8121 = vunpack.c.l.b16 %v7861
          %v8122 = vunpack.c.l.b16 %v7862
          %v8123 = vunpack.c.h.b16 %v7861
          %v8124 = vunpack.c.h.b16 %v7862
          %v8125 = vunpack.c.l.b16 %v7863
          %v8126 = vunpack.c.l.b16 %v7864
          %v8127 = vunpack.c.h.b16 %v7863
          %v8128 = vunpack.c.h.b16 %v7864
          %v8129 = vunpack.c.l.b16 %v7865
          %v8130 = vunpack.c.l.b16 %v7866
          %v8131 = vunpack.c.h.b16 %v7865
          %v8132 = vunpack.c.h.b16 %v7866
          %v8133 = vunpack.c.l.b16 %v7867
          %v8134 = vunpack.c.l.b16 %v7868
          %v8135 = vunpack.c.h.b16 %v7867
          %v8136 = vunpack.c.h.b16 %v7868
          %v8137 = vunpack.c.l.b16 %v7869
          %v8138 = vunpack.c.l.b16 %v7870
          %v8139 = vunpack.c.h.b16 %v7869
          %v8140 = vunpack.c.h.b16 %v7870
          %v8141 = vunpack.c.l.b16 %v7871
          %v8142 = vunpack.c.l.b16 %v7872
          %v8143 = vunpack.c.h.b16 %v7871
          %v8144 = vunpack.c.h.b16 %v7872
          %v8145 = vunpack.c.l.b16 %v7873
          %v8146 = vunpack.c.l.b16 %v7874
          %v8147 = vunpack.c.h.b16 %v7873
          %v8148 = vunpack.c.h.b16 %v7874
          %v8149 = vunpack.c.l.b16 %v7875
          %v8150 = vunpack.c.l.b16 %v7876
          %v8151 = vunpack.c.h.b16 %v7875
          %v8152 = vunpack.c.h.b16 %v7876
          %v8153 = vunpack.c.l.b16 %v7877
          %v8154 = vunpack.c.l.b16 %v7878
          %v8155 = vunpack.c.h.b16 %v7877
          %v8156 = vunpack.c.h.b16 %v7878
          %v8157 = vunpack.c.l.b16 %v7879
          %v8158 = vunpack.c.l.b16 %v7880
          %v8159 = vunpack.c.h.b16 %v7879
          %v8160 = vunpack.c.h.b16 %v7880
          %v8161 = vunpack.c.l.b16 %v7881
          %v8162 = vunpack.c.l.b16 %v7882
          %v8163 = vunpack.c.h.b16 %v7881
          %v8164 = vunpack.c.h.b16 %v7882
          %v8165 = vunpack.c.l.b16 %v7883
          %v8166 = vunpack.c.l.b16 %v7884
          %v8167 = vunpack.c.h.b16 %v7883
          %v8168 = vunpack.c.h.b16 %v7884
          %v8169 = vunpack.c.l.b16 %v7885
          %v8170 = vunpack.c.l.b16 %v7886
          %v8171 = vunpack.c.h.b16 %v7885
          %v8172 = vunpack.c.h.b16 %v7886
          %v8173 = vunpack.c.l.b16 %v7887
          %v8174 = vunpack.c.l.b16 %v7888
          %v8175 = vunpack.c.h.b16 %v7887
          %v8176 = vunpack.c.h.b16 %v7888
          %v8177 = vunpack.c.l.b16 %v7889
          %v8178 = vunpack.c.l.b16 %v7890
          %v8179 = vunpack.c.h.b16 %v7889
          %v8180 = vunpack.c.h.b16 %v7890
          %v8181 = vunpack.c.l.b16 %v7891
          %v8182 = vunpack.c.l.b16 %v7892
          %v8183 = vunpack.c.h.b16 %v7891
          %v8184 = vunpack.c.h.b16 %v7892
          %v8185 = vunpack.c.l.b16 %v7893
          %v8186 = vunpack.c.l.b16 %v7894
          %v8187 = vunpack.c.h.b16 %v7893
          %v8188 = vunpack.c.h.b16 %v7894
          %v8189 = vunpack.c.l.b16 %v7895
          %v8190 = vunpack.c.l.b16 %v7896
          %v8191 = vunpack.c.h.b16 %v7895
          %v8192 = vunpack.c.h.b16 %v7896
          %v8193 = vunpack.c.l.b16 %v7897
          %v8194 = vunpack.c.l.b16 %v7898
          %v8195 = vunpack.c.h.b16 %v7897
          %v8196 = vunpack.c.h.b16 %v7898
          %v8197 = vunpack.c.l.b16 %v7899
          %v8198 = vunpack.c.l.b16 %v7900
          %v8199 = vunpack.c.h.b16 %v7899
          %v8200 = vunpack.c.h.b16 %v7900
          %v8201 = vunpack.c.l.b16 %v7901
          %v8202 = vunpack.c.l.b16 %v7902
          %v8203 = vunpack.c.h.b16 %v7901
          %v8204 = vunpack.c.h.b16 %v7902
          %v8205 = vunpack.c.l.b16 %v7903
          %v8206 = vunpack.c.l.b16 %v7904
          %v8207 = vunpack.c.h.b16 %v7903
          %v8208 = vunpack.c.h.b16 %v7904
          %v8209 = vunpack.c.l.b16 %v7905
          %v8210 = vunpack.c.l.b16 %v7906
          %v8211 = vunpack.c.h.b16 %v7905
          %v8212 = vunpack.c.h.b16 %v7906
          %v8213 = vunpack.c.l.b16 %v7907
          %v8214 = vunpack.c.l.b16 %v7908
          %v8215 = vunpack.c.h.b16 %v7907
          %v8216 = vunpack.c.h.b16 %v7908
          %v8217 = vunpack.c.l.b16 %v7909
          %v8218 = vunpack.c.l.b16 %v7910
          %v8219 = vunpack.c.h.b16 %v7909
          %v8220 = vunpack.c.h.b16 %v7910
          %v8221 = vunpack.c.l.b16 %v7911
          %v8222 = vunpack.c.l.b16 %v7912
          %v8223 = vunpack.c.h.b16 %v7911
          %v8224 = vunpack.c.h.b16 %v7912
          %v8225 = vunpack.c.l.b16 %v7913
          %v8226 = vunpack.c.l.b16 %v7914
          %v8227 = vunpack.c.h.b16 %v7913
          %v8228 = vunpack.c.h.b16 %v7914
          %v8229 = vunpack.c.l.b16 %v7915
          %v8230 = vunpack.c.l.b16 %v7916
          %v8231 = vunpack.c.h.b16 %v7915
          %v8232 = vunpack.c.h.b16 %v7916
          %v8233 = vunpack.c.l.b16 %v7917
          %v8234 = vunpack.c.l.b16 %v7918
          %v8235 = vunpack.c.h.b16 %v7917
          %v8236 = vunpack.c.h.b16 %v7918
          %v8237 = vunpack.c.l.b16 %v7919
          %v8238 = vunpack.c.l.b16 %v7920
          %v8239 = vunpack.c.h.b16 %v7919
          %v8240 = vunpack.c.h.b16 %v7920
          %v8241 = vunpack.c.l.b16 %v7921
          %v8242 = vunpack.c.l.b16 %v7922
          %v8243 = vunpack.c.h.b16 %v7921
          %v8244 = vunpack.c.h.b16 %v7922
          %v8245 = vunpack.c.l.b16 %v7923
          %v8246 = vunpack.c.l.b16 %v7924
          %v8247 = vunpack.c.h.b16 %v7923
          %v8248 = vunpack.c.h.b16 %v7924
          %v8249 = vunpack.c.l.b16 %v7925
          %v8250 = vunpack.c.l.b16 %v7926
          %v8251 = vunpack.c.h.b16 %v7925
          %v8252 = vunpack.c.h.b16 %v7926
          %v8253 = vunpack.c.l.b16 %v7927
          %v8254 = vunpack.c.l.b16 %v7928
          %v8255 = vunpack.c.h.b16 %v7927
          %v8256 = vunpack.c.h.b16 %v7928
          %v8257 = vunpack.c.l.b16 %v7929
          %v8258 = vunpack.c.l.b16 %v7930
          %v8259 = vunpack.c.h.b16 %v7929
          %v8260 = vunpack.c.h.b16 %v7930
          %v8261 = vunpack.c.l.b16 %v7931
          %v8262 = vunpack.c.l.b16 %v7932
          %v8263 = vunpack.c.h.b16 %v7931
          %v8264 = vunpack.c.h.b16 %v7932
          %v8265 = vunpack.c.l.b16 %v7933
          %v8266 = vunpack.c.l.b16 %v7934
          %v8267 = vunpack.c.h.b16 %v7933
          %v8268 = vunpack.c.h.b16 %v7934
          %v8269 = vunpack.c.l.b16 %v7935
          %v8270 = vunpack.c.l.b16 %v7936
          %v8271 = vunpack.c.h.b16 %v7935
          %v8272 = vunpack.c.h.b16 %v7936
          %v8273 = vunpack.c.l.b16 %v7937
          %v8274 = vunpack.c.l.b16 %v7938
          %v8275 = vunpack.c.h.b16 %v7937
          %v8276 = vunpack.c.h.b16 %v7938
          %v8277 = vunpack.c.l.b16 %v7939
          %v8278 = vunpack.c.l.b16 %v7940
          %v8279 = vunpack.c.h.b16 %v7939
          %v8280 = vunpack.c.h.b16 %v7940
          %v8281 = vunpack.c.l.b16 %v7941
          %v8282 = vunpack.c.l.b16 %v7942
          %v8283 = vunpack.c.h.b16 %v7941
          %v8284 = vunpack.c.h.b16 %v7942
          %v8285 = vunpack.c.l.b16 %v7943
          %v8286 = vunpack.c.l.b16 %v7944
          %v8287 = vunpack.c.h.b16 %v7943
          %v8288 = vunpack.c.h.b16 %v7944
          %v8289 = vunpack.c.l.b16 %v7945
          %v8290 = vunpack.c.l.b16 %v7946
          %v8291 = vunpack.c.h.b16 %v7945
          %v8292 = vunpack.c.h.b16 %v7946
          %v8293 = vunpack.c.l.b16 %v7947
          %v8294 = vunpack.c.l.b16 %v7948
          %v8295 = vunpack.c.h.b16 %v7947
          %v8296 = vunpack.c.h.b16 %v7948
          %v8297 = vunpack.c.l.b16 %v7949
          %v8298 = vunpack.c.l.b16 %v7950
          %v8299 = vunpack.c.h.b16 %v7949
          %v8300 = vunpack.c.h.b16 %v7950
          %v8301 = vunpack.c.l.b16 %v7951
          %v8302 = vunpack.c.l.b16 %v7952
          %v8303 = vunpack.c.h.b16 %v7951
          %v8304 = vunpack.c.h.b16 %v7952
          %v8305 = vunpack.c.l.b16 %v7953
          %v8306 = vunpack.c.l.b16 %v7954
          %v8307 = vunpack.c.h.b16 %v7953
          %v8308 = vunpack.c.h.b16 %v7954
          %v8309 = vunpack.c.l.b16 %v7955
          %v8310 = vunpack.c.l.b16 %v7956
          %v8311 = vunpack.c.h.b16 %v7955
          %v8312 = vunpack.c.h.b16 %v7956
          %v8313 = vunpack.c.l.b16 %v7957
          %v8314 = vunpack.c.l.b16 %v7958
          %v8315 = vunpack.c.h.b16 %v7957
          %v8316 = vunpack.c.h.b16 %v7958
          %v8317 = vunpack.c.l.b16 %v7959
          %v8318 = vunpack.c.l.b16 %v7960
          %v8319 = vunpack.c.h.b16 %v7959
          %v8320 = vunpack.c.h.b16 %v7960
          %v8321 = vunpack.c.l.b16 %v7961
          %v8322 = vunpack.c.l.b16 %v7962
          %v8323 = vunpack.c.h.b16 %v7961
          %v8324 = vunpack.c.h.b16 %v7962
          %v8325 = vunpack.c.l.b16 %v7963
          %v8326 = vunpack.c.l.b16 %v7964
          %v8327 = vunpack.c.h.b16 %v7963
          %v8328 = vunpack.c.h.b16 %v7964
          %v8329 = vunpack.c.l.b16 %v7965
          %v8330 = vunpack.c.l.b16 %v7966
          %v8331 = vunpack.c.h.b16 %v7965
          %v8332 = vunpack.c.h.b16 %v7966
          %v8333 = vunpack.c.l.b16 %v7967
          %v8334 = vunpack.c.l.b16 %v7968
          %v8335 = vunpack.c.h.b16 %v7967
          %v8336 = vunpack.c.h.b16 %v7968
          %v8337 = vunpack.c.l.b16 %v7969
          %v8338 = vunpack.c.l.b16 %v7970
          %v8339 = vunpack.c.h.b16 %v7969
          %v8340 = vunpack.c.h.b16 %v7970
          %v8341 = vunpack.c.l.b16 %v7971
          %v8342 = vunpack.c.l.b16 %v7972
          %v8343 = vunpack.c.h.b16 %v7971
          %v8344 = vunpack.c.h.b16 %v7972
          %v8345 = vunpack.c.l.b16 %v7973
          %v8346 = vunpack.c.l.b16 %v7974
          %v8347 = vunpack.c.h.b16 %v7973
          %v8348 = vunpack.c.h.b16 %v7974
          %v8349 = vunpack.c.l.b16 %v7975
          %v8350 = vunpack.c.l.b16 %v7976
          %v8351 = vunpack.c.h.b16 %v7975
          %v8352 = vunpack.c.h.b16 %v7976
          %v8353 = vunpack.c.l.b16 %v7977
          %v8354 = vunpack.c.l.b16 %v7978
          %v8355 = vunpack.c.h.b16 %v7977
          %v8356 = vunpack.c.h.b16 %v7978
          %v8357 = vunpack.c.l.b16 %v7979
          %v8358 = vunpack.c.l.b16 %v7980
          %v8359 = vunpack.c.h.b16 %v7979
          %v8360 = vunpack.c.h.b16 %v7980
          %v8361 = vunpack.c.l.b16 %v7981
          %v8362 = vunpack.c.l.b16 %v7982
          %v8363 = vunpack.c.h.b16 %v7981
          %v8364 = vunpack.c.h.b16 %v7982
          %v8365 = vunpack.c.l.b16 %v7983
          %v8366 = vunpack.c.l.b16 %v7984
          %v8367 = vunpack.c.h.b16 %v7983
          %v8368 = vunpack.c.h.b16 %v7984
          %v8369 = vpack.c.b16 %v8114, %v8113
          %v8370 = vpack.c.b16 %v8116, %v8115
          %v8371 = vpack.c.b16 %v8118, %v8117
          %v8372 = vpack.c.b16 %v8120, %v8119
          %v8373 = vpack.c.b16 %v8122, %v8121
          %v8374 = vpack.c.b16 %v8124, %v8123
          %v8375 = vpack.c.b16 %v8126, %v8125
          %v8376 = vpack.c.b16 %v8128, %v8127
          %v8377 = vpack.c.b16 %v8130, %v8129
          %v8378 = vpack.c.b16 %v8132, %v8131
          %v8379 = vpack.c.b16 %v8134, %v8133
          %v8380 = vpack.c.b16 %v8136, %v8135
          %v8381 = vpack.c.b16 %v8138, %v8137
          %v8382 = vpack.c.b16 %v8140, %v8139
          %v8383 = vpack.c.b16 %v8142, %v8141
          %v8384 = vpack.c.b16 %v8144, %v8143
          %v8385 = vpack.c.b16 %v8146, %v8145
          %v8386 = vpack.c.b16 %v8148, %v8147
          %v8387 = vpack.c.b16 %v8150, %v8149
          %v8388 = vpack.c.b16 %v8152, %v8151
          %v8389 = vpack.c.b16 %v8154, %v8153
          %v8390 = vpack.c.b16 %v8156, %v8155
          %v8391 = vpack.c.b16 %v8158, %v8157
          %v8392 = vpack.c.b16 %v8160, %v8159
          %v8393 = vpack.c.b16 %v8162, %v8161
          %v8394 = vpack.c.b16 %v8164, %v8163
          %v8395 = vpack.c.b16 %v8166, %v8165
          %v8396 = vpack.c.b16 %v8168, %v8167
          %v8397 = vpack.c.b16 %v8170, %v8169
          %v8398 = vpack.c.b16 %v8172, %v8171
          %v8399 = vpack.c.b16 %v8174, %v8173
          %v8400 = vpack.c.b16 %v8176, %v8175
          %v8401 = vpack.c.b16 %v8178, %v8177
          %v8402 = vpack.c.b16 %v8180, %v8179
          %v8403 = vpack.c.b16 %v8182, %v8181
          %v8404 = vpack.c.b16 %v8184, %v8183
          %v8405 = vpack.c.b16 %v8186, %v8185
          %v8406 = vpack.c.b16 %v8188, %v8187
          %v8407 = vpack.c.b16 %v8190, %v8189
          %v8408 = vpack.c.b16 %v8192, %v8191
          %v8409 = vpack.c.b16 %v8194, %v8193
          %v8410 = vpack.c.b16 %v8196, %v8195
          %v8411 = vpack.c.b16 %v8198, %v8197
          %v8412 = vpack.c.b16 %v8200, %v8199
          %v8413 = vpack.c.b16 %v8202, %v8201
          %v8414 = vpack.c.b16 %v8204, %v8203
          %v8415 = vpack.c.b16 %v8206, %v8205
          %v8416 = vpack.c.b16 %v8208, %v8207
          %v8417 = vpack.c.b16 %v8210, %v8209
          %v8418 = vpack.c.b16 %v8212, %v8211
          %v8419 = vpack.c.b16 %v8214, %v8213
          %v8420 = vpack.c.b16 %v8216, %v8215
          %v8421 = vpack.c.b16 %v8218, %v8217
          %v8422 = vpack.c.b16 %v8220, %v8219
          %v8423 = vpack.c.b16 %v8222, %v8221
          %v8424 = vpack.c.b16 %v8224, %v8223
          %v8425 = vpack.c.b16 %v8226, %v8225
          %v8426 = vpack.c.b16 %v8228, %v8227
          %v8427 = vpack.c.b16 %v8230, %v8229
          %v8428 = vpack.c.b16 %v8232, %v8231
          %v8429 = vpack.c.b16 %v8234, %v8233
          %v8430 = vpack.c.b16 %v8236, %v8235
          %v8431 = vpack.c.b16 %v8238, %v8237
          %v8432 = vpack.c.b16 %v8240, %v8239
          %v8433 = vpack.c.b16 %v8242, %v8241
          %v8434 = vpack.c.b16 %v8244, %v8243
          %v8435 = vpack.c.b16 %v8246, %v8245
          %v8436 = vpack.c.b16 %v8248, %v8247
          %v8437 = vpack.c.b16 %v8250, %v8249
          %v8438 = vpack.c.b16 %v8252, %v8251
          %v8439 = vpack.c.b16 %v8254, %v8253
          %v8440 = vpack.c.b16 %v8256, %v8255
          %v8441 = vpack.c.b16 %v8258, %v8257
          %v8442 = vpack.c.b16 %v8260, %v8259
          %v8443 = vpack.c.b16 %v8262, %v8261
          %v8444 = vpack.c.b16 %v8264, %v8263
          %v8445 = vpack.c.b16 %v8266, %v8265
          %v8446 = vpack.c.b16 %v8268, %v8267
          %v8447 = vpack.c.b16 %v8270, %v8269
          %v8448 = vpack.c.b16 %v8272, %v8271
          %v8449 = vpack.c.b16 %v8274, %v8273
          %v8450 = vpack.c.b16 %v8276, %v8275
          %v8451 = vpack.c.b16 %v8278, %v8277
          %v8452 = vpack.c.b16 %v8280, %v8279
          %v8453 = vpack.c.b16 %v8282, %v8281
          %v8454 = vpack.c.b16 %v8284, %v8283
          %v8455 = vpack.c.b16 %v8286, %v8285
          %v8456 = vpack.c.b16 %v8288, %v8287
          %v8457 = vpack.c.b16 %v8290, %v8289
          %v8458 = vpack.c.b16 %v8292, %v8291
          %v8459 = vpack.c.b16 %v8294, %v8293
          %v8460 = vpack.c.b16 %v8296, %v8295
          %v8461 = vpack.c.b16 %v8298, %v8297
          %v8462 = vpack.c.b16 %v8300, %v8299
          %v8463 = vpack.c.b16 %v8302, %v8301
          %v8464 = vpack.c.b16 %v8304, %v8303
          %v8465 = vpack.c.b16 %v8306, %v8305
          %v8466 = vpack.c.b16 %v8308, %v8307
          %v8467 = vpack.c.b16 %v8310, %v8309
          %v8468 = vpack.c.b16 %v8312, %v8311
          %v8469 = vpack.c.b16 %v8314, %v8313
          %v8470 = vpack.c.b16 %v8316, %v8315
          %v8471 = vpack.c.b16 %v8318, %v8317
          %v8472 = vpack.c.b16 %v8320, %v8319
          %v8473 = vpack.c.b16 %v8322, %v8321
          %v8474 = vpack.c.b16 %v8324, %v8323
          %v8475 = vpack.c.b16 %v8326, %v8325
          %v8476 = vpack.c.b16 %v8328, %v8327
          %v8477 = vpack.c.b16 %v8330, %v8329
          %v8478 = vpack.c.b16 %v8332, %v8331
          %v8479 = vpack.c.b16 %v8334, %v8333
          %v8480 = vpack.c.b16 %v8336, %v8335
          %v8481 = vpack.c.b16 %v8338, %v8337
          %v8482 = vpack.c.b16 %v8340, %v8339
          %v8483 = vpack.c.b16 %v8342, %v8341
          %v8484 = vpack.c.b16 %v8344, %v8343
          %v8485 = vpack.c.b16 %v8346, %v8345
          %v8486 = vpack.c.b16 %v8348, %v8347
          %v8487 = vpack.c.b16 %v8350, %v8349
          %v8488 = vpack.c.b16 %v8352, %v8351
          %v8489 = vpack.c.b16 %v8354, %v8353
          %v8490 = vpack.c.b16 %v8356, %v8355
          %v8491 = vpack.c.b16 %v8358, %v8357
          %v8492 = vpack.c.b16 %v8360, %v8359
          %v8493 = vpack.c.b16 %v8362, %v8361
          %v8494 = vpack.c.b16 %v8364, %v8363
          %v8495 = vpack.c.b16 %v8366, %v8365
          %v8496 = vpack.c.b16 %v8368, %v8367
          %8625 = vst [vmem:[%s325] sm:$0xff] %v8369
          %8626 = vst [vmem:[%s325 + $0x8] sm:$0xff] %v8370
          %8627 = vst [vmem:[%s325 + $0x10] sm:$0xff] %v8371
          %8628 = vst [vmem:[%s325 + $0x18] sm:$0xff] %v8372
          %8629 = vst [vmem:[%s325 + $0x20] sm:$0xff] %v8373
          %8630 = vst [vmem:[%s325 + $0x28] sm:$0xff] %v8374
          %8631 = vst [vmem:[%s325 + $0x30] sm:$0xff] %v8375
          %8632 = vst [vmem:[%s325 + $0x38] sm:$0xff] %v8376
          %8633 = vst [vmem:[%s325 + $0x40] sm:$0xff] %v8377
          %8634 = vst [vmem:[%s325 + $0x48] sm:$0xff] %v8378
          %8635 = vst [vmem:[%s325 + $0x50] sm:$0xff] %v8379
          %8636 = vst [vmem:[%s325 + $0x58] sm:$0xff] %v8380
          %8637 = vst [vmem:[%s325 + $0x60] sm:$0xff] %v8381
          %8638 = vst [vmem:[%s325 + $0x68] sm:$0xff] %v8382
          %8639 = vst [vmem:[%s325 + $0x70] sm:$0xff] %v8383
          %8640 = vst [vmem:[%s325 + $0x78] sm:$0xff] %v8384
          %8641 = vst [vmem:[%s325 + $0x80] sm:$0xff] %v8385
          %8642 = vst [vmem:[%s325 + $0x88] sm:$0xff] %v8386
          %8643 = vst [vmem:[%s325 + $0x90] sm:$0xff] %v8387
          %8644 = vst [vmem:[%s325 + $0x98] sm:$0xff] %v8388
          %8645 = vst [vmem:[%s325 + $0xa0] sm:$0xff] %v8389
          %8646 = vst [vmem:[%s325 + $0xa8] sm:$0xff] %v8390
          %8647 = vst [vmem:[%s325 + $0xb0] sm:$0xff] %v8391
          %8648 = vst [vmem:[%s325 + $0xb8] sm:$0xff] %v8392
          %8649 = vst [vmem:[%s325 + $0xc0] sm:$0xff] %v8393
          %8650 = vst [vmem:[%s325 + $0xc8] sm:$0xff] %v8394
          %8651 = vst [vmem:[%s325 + $0xd0] sm:$0xff] %v8395
          %8652 = vst [vmem:[%s325 + $0xd8] sm:$0xff] %v8396
          %8653 = vst [vmem:[%s325 + $0xe0] sm:$0xff] %v8397
          %8654 = vst [vmem:[%s325 + $0xe8] sm:$0xff] %v8398
          %8655 = vst [vmem:[%s325 + $0xf0] sm:$0xff] %v8399
          %8656 = vst [vmem:[%s325 + $0xf8] sm:$0xff] %v8400
          %8657 = vst [vmem:[%s325 + $0x100] sm:$0xff] %v8401
          %8658 = vst [vmem:[%s325 + $0x108] sm:$0xff] %v8402
          %8659 = vst [vmem:[%s325 + $0x110] sm:$0xff] %v8403
          %8660 = vst [vmem:[%s325 + $0x118] sm:$0xff] %v8404
          %8661 = vst [vmem:[%s325 + $0x120] sm:$0xff] %v8405
          %8662 = vst [vmem:[%s325 + $0x128] sm:$0xff] %v8406
          %8663 = vst [vmem:[%s325 + $0x130] sm:$0xff] %v8407
          %8664 = vst [vmem:[%s325 + $0x138] sm:$0xff] %v8408
          %8665 = vst [vmem:[%s325 + $0x140] sm:$0xff] %v8409
          %8666 = vst [vmem:[%s325 + $0x148] sm:$0xff] %v8410
          %8667 = vst [vmem:[%s325 + $0x150] sm:$0xff] %v8411
          %8668 = vst [vmem:[%s325 + $0x158] sm:$0xff] %v8412
          %8669 = vst [vmem:[%s325 + $0x160] sm:$0xff] %v8413
          %8670 = vst [vmem:[%s325 + $0x168] sm:$0xff] %v8414
          %8671 = vst [vmem:[%s325 + $0x170] sm:$0xff] %v8415
          %8672 = vst [vmem:[%s325 + $0x178] sm:$0xff] %v8416
          %8673 = vst [vmem:[%s325 + $0x180] sm:$0xff] %v8417
          %8674 = vst [vmem:[%s325 + $0x188] sm:$0xff] %v8418
          %8675 = vst [vmem:[%s325 + $0x190] sm:$0xff] %v8419
          %8676 = vst [vmem:[%s325 + $0x198] sm:$0xff] %v8420
          %8677 = vst [vmem:[%s325 + $0x1a0] sm:$0xff] %v8421
          %8678 = vst [vmem:[%s325 + $0x1a8] sm:$0xff] %v8422
          %8679 = vst [vmem:[%s325 + $0x1b0] sm:$0xff] %v8423
          %8680 = vst [vmem:[%s325 + $0x1b8] sm:$0xff] %v8424
          %8681 = vst [vmem:[%s325 + $0x1c0] sm:$0xff] %v8425
          %8682 = vst [vmem:[%s325 + $0x1c8] sm:$0xff] %v8426
          %8683 = vst [vmem:[%s325 + $0x1d0] sm:$0xff] %v8427
          %8684 = vst [vmem:[%s325 + $0x1d8] sm:$0xff] %v8428
          %8685 = vst [vmem:[%s325 + $0x1e0] sm:$0xff] %v8429
          %8686 = vst [vmem:[%s325 + $0x1e8] sm:$0xff] %v8430
          %8687 = vst [vmem:[%s325 + $0x1f0] sm:$0xff] %v8431
          %8688 = vst [vmem:[%s325 + $0x1f8] sm:$0xff] %v8432
          %8689 = vst [vmem:[%s325 + $0x200] sm:$0xff] %v8433
          %8690 = vst [vmem:[%s325 + $0x208] sm:$0xff] %v8434
          %8691 = vst [vmem:[%s325 + $0x210] sm:$0xff] %v8435
          %8692 = vst [vmem:[%s325 + $0x218] sm:$0xff] %v8436
          %8693 = vst [vmem:[%s325 + $0x220] sm:$0xff] %v8437
          %8694 = vst [vmem:[%s325 + $0x228] sm:$0xff] %v8438
          %8695 = vst [vmem:[%s325 + $0x230] sm:$0xff] %v8439
          %8696 = vst [vmem:[%s325 + $0x238] sm:$0xff] %v8440
          %8697 = vst [vmem:[%s325 + $0x240] sm:$0xff] %v8441
          %8698 = vst [vmem:[%s325 + $0x248] sm:$0xff] %v8442
          %8699 = vst [vmem:[%s325 + $0x250] sm:$0xff] %v8443
          %8700 = vst [vmem:[%s325 + $0x258] sm:$0xff] %v8444
          %8701 = vst [vmem:[%s325 + $0x260] sm:$0xff] %v8445
          %8702 = vst [vmem:[%s325 + $0x268] sm:$0xff] %v8446
          %8703 = vst [vmem:[%s325 + $0x270] sm:$0xff] %v8447
          %8704 = vst [vmem:[%s325 + $0x278] sm:$0xff] %v8448
          %8705 = vst [vmem:[%s325 + $0x280] sm:$0xff] %v8449
          %8706 = vst [vmem:[%s325 + $0x288] sm:$0xff] %v8450
          %8707 = vst [vmem:[%s325 + $0x290] sm:$0xff] %v8451
          %8708 = vst [vmem:[%s325 + $0x298] sm:$0xff] %v8452
          %8709 = vst [vmem:[%s325 + $0x2a0] sm:$0xff] %v8453
          %8710 = vst [vmem:[%s325 + $0x2a8] sm:$0xff] %v8454
          %8711 = vst [vmem:[%s325 + $0x2b0] sm:$0xff] %v8455
          %8712 = vst [vmem:[%s325 + $0x2b8] sm:$0xff] %v8456
          %8713 = vst [vmem:[%s325 + $0x2c0] sm:$0xff] %v8457
          %8714 = vst [vmem:[%s325 + $0x2c8] sm:$0xff] %v8458
          %8715 = vst [vmem:[%s325 + $0x2d0] sm:$0xff] %v8459
          %8716 = vst [vmem:[%s325 + $0x2d8] sm:$0xff] %v8460
          %8717 = vst [vmem:[%s325 + $0x2e0] sm:$0xff] %v8461
          %8718 = vst [vmem:[%s325 + $0x2e8] sm:$0xff] %v8462
          %8719 = vst [vmem:[%s325 + $0x2f0] sm:$0xff] %v8463
          %8720 = vst [vmem:[%s325 + $0x2f8] sm:$0xff] %v8464
          %8721 = vst [vmem:[%s325 + $0x300] sm:$0xff] %v8465
          %8722 = vst [vmem:[%s325 + $0x308] sm:$0xff] %v8466
          %8723 = vst [vmem:[%s325 + $0x310] sm:$0xff] %v8467
          %8724 = vst [vmem:[%s325 + $0x318] sm:$0xff] %v8468
          %8725 = vst [vmem:[%s325 + $0x320] sm:$0xff] %v8469
          %8726 = vst [vmem:[%s325 + $0x328] sm:$0xff] %v8470
          %8727 = vst [vmem:[%s325 + $0x330] sm:$0xff] %v8471
          %8728 = vst [vmem:[%s325 + $0x338] sm:$0xff] %v8472
          %8729 = vst [vmem:[%s325 + $0x340] sm:$0xff] %v8473
          %8730 = vst [vmem:[%s325 + $0x348] sm:$0xff] %v8474
          %8731 = vst [vmem:[%s325 + $0x350] sm:$0xff] %v8475
          %8732 = vst [vmem:[%s325 + $0x358] sm:$0xff] %v8476
          %8733 = vst [vmem:[%s325 + $0x360] sm:$0xff] %v8477
          %8734 = vst [vmem:[%s325 + $0x368] sm:$0xff] %v8478
          %8735 = vst [vmem:[%s325 + $0x370] sm:$0xff] %v8479
          %8736 = vst [vmem:[%s325 + $0x378] sm:$0xff] %v8480
          %8737 = vst [vmem:[%s325 + $0x380] sm:$0xff] %v8481
          %8738 = vst [vmem:[%s325 + $0x388] sm:$0xff] %v8482
          %8739 = vst [vmem:[%s325 + $0x390] sm:$0xff] %v8483
          %8740 = vst [vmem:[%s325 + $0x398] sm:$0xff] %v8484
          %8741 = vst [vmem:[%s325 + $0x3a0] sm:$0xff] %v8485
          %8742 = vst [vmem:[%s325 + $0x3a8] sm:$0xff] %v8486
          %8743 = vst [vmem:[%s325 + $0x3b0] sm:$0xff] %v8487
          %8744 = vst [vmem:[%s325 + $0x3b8] sm:$0xff] %v8488
          %8745 = vst [vmem:[%s325 + $0x3c0] sm:$0xff] %v8489
          %8746 = vst [vmem:[%s325 + $0x3c8] sm:$0xff] %v8490
          %8747 = vst [vmem:[%s325 + $0x3d0] sm:$0xff] %v8491
          %8748 = vst [vmem:[%s325 + $0x3d8] sm:$0xff] %v8492
          %8749 = vst [vmem:[%s325 + $0x3e0] sm:$0xff] %v8493
          %8750 = vst [vmem:[%s325 + $0x3e8] sm:$0xff] %v8494
          %8751 = vst [vmem:[%s325 + $0x3f0] sm:$0xff] %v8495
          %8752 = vst [vmem:[%s325 + $0x3f8] sm:$0xff] %v8496
        $region64: #{tpu_custom_call.1} parent=35 // pred_fallthru
          _
        %s8753 = sand.u32 %s161, 1
        %s8754 = scalar_lea.sflag [#allocation8], %s8753
        %s8755 = sand.u32 %s161, 1
        %s8756 = smul.addr %s8755, 1024
        %s8757 = scalar_lea.vmem [#allocation14], %s8756
        // Predicated region
        $region65: #{tpu_custom_call.1} parent=35 // pred_check
          %p8758 = pneg %p171
        $region66: #{tpu_custom_call.1} parent=35 // pred_check_branch
          %8760 = sbr.rel (%p8758) target = $region68
        $region67: #{tpu_custom_call.1} parent=35 // pred_region
          %s8761 = smul.u32 128, %s37
          %s8763 = ssub.s32 16384, 16384
          %8764 = vsyncadd %s8754, %s8763
          %s8765 = smul.addr %s8761, 2
          %s8766 = smul.addr %s8765, 64
          %s8767 = scalar_lea.hbm %s6, %s8766
          %s8768 = sshll.u32 %s8757, 4
          %s8769 = int_to_ptr.vmem [resolvable:$true] %s8768
          %8774 = dma.vmem_to_hbm [thread:$0]  %s8769, 16384, %s8767, %s8754, 128, 128, 8
        $region68: #{tpu_custom_call.1} parent=35 // pred_fallthru
          _
      $region36: #{tpu_custom_call.1} parent=5 // pred_fallthru
        _
      %p8775 = scmp.le.s32.totalorder 2, %s28
      // Predicated region
      $region69: #{tpu_custom_call.1} parent=5 // pred_check
        %p8776 = pneg %p8775
      $region70: #{tpu_custom_call.1} parent=5 // pred_check_branch
        %8778 = sbr.rel (%p8776) target = $region72
      $region71: #{tpu_custom_call.1} parent=5 // pred_region
        %s8779 = ssub.s32 %s28, 2
        // Predicated region
        $region73: #{tpu_custom_call.1} parent=71 // pred_check
          %p8780 = pneg %p177
        $region74: #{tpu_custom_call.1} parent=71 // pred_check_branch
          %8782 = sbr.rel (%p8780) target = $region76
        $region75: #{tpu_custom_call.1} parent=71 // pred_region
          %s8783 = sand.u32 %s162, 1
          %s8784 = scalar_lea.sflag [#allocation8], %s8783
          %s8785 = sand.u32 %s162, 1
          %s8786 = smul.addr %s8785, 1024
          %s8787 = scalar_lea.vmem [#allocation14], %s8786
          %8788 = dma.done %s8784, 16384
        $region76: #{tpu_custom_call.1} parent=71 // pred_fallthru
          _
      $region72: #{tpu_custom_call.1} parent=5 // pred_fallthru
        _
    $region6: #{tpu_custom_call.1} parent=1 // loop_footer
      %s32 = sadd.s32 1, %s28
    $region7: #{tpu_custom_call.1} parent=1 // loop_footer_branch
      %27 = sbr.rel target = $region3
    $region8: #{tpu_custom_call.1} parent=1 // loop_exit
      _
    %8789 = vsyncpa [#allocation7], 1
    %s8790 = scalar_lea.sflag [#allocation7], 1
    %8791 = vsyncpa %s8790, 1
    %8792 = vsyncpa [#allocation10], 1
    %s8793 = scalar_lea.sflag [#allocation10], 1
    %8794 = vsyncpa %s8793, 1
    %8795 = vsyncpa [#allocation13], 1
    %8796 = vsyncpa [#allocation8], 1
    %s8797 = scalar_lea.sflag [#allocation8], 1
    %8798 = vsyncpa %s8797, 1

</llo_original>
